<compile_context>
chip_gen: v7x
topology: tpu7x:2x2x1
jax: 0.10.0
libtpu: 0.0.40
codegen_flags: <defaults>
</compile_context>

<pallas_src>
import functools
import math

import jax
import jax.numpy as jnp
from jax import lax
from jax.experimental import pallas as pl
from jax.experimental.pallas import tpu as pltpu

EPS = 1e-5


# ---------------------------------------------------------------------------
# In-kernel BatchNorm2d (training-mode batch statistics), two-pass, f32
# ---------------------------------------------------------------------------
def _bn(t, g, b, inv_m):
    m = jnp.sum(t, axis=(0, 1, 2), keepdims=True) * inv_m
    c = t - m
    v = jnp.sum(c * c, axis=(0, 1, 2), keepdims=True) * inv_m
    # rsqrt goes to the EUP slot; gamma folded into the scale -> one full multiply.
    return c * (lax.rsqrt(v + EPS) * g) + b


# ---------------------------------------------------------------------------
# Pallas kernel: whole bottleneck block in one invocation (shapes fit VMEM)
# ---------------------------------------------------------------------------
def bottleneck_kernel(dilation, wl, mxu_dtype,
                      x_ref,
                      w1_ref, g1_ref, b1_ref,
                      w2_ref, g2_ref, b2_ref,
                      w3_ref, g3_ref, b3_ref,
                      wr_ref, gr_ref, br_ref,
                      out_ref, pad_ref):
    d = dilation
    x = x_ref[...]
    N, H, W, _ = x.shape
    inv_m = 1.0 / float(N * H * W)

    # MXU operands in mxu_dtype (bf16 by default); accumulation stays f32.
    xm = x.astype(mxu_dtype)

    # cb_residual 1x1 conv is hoisted next to cbr_1's 1x1 conv so xm (the widest,
    # Cin-channel activation) dies right after these two matmuls.
    res_raw = jnp.einsum("nhwc,co->nhwo", xm, wr_ref[...],
                         preferred_element_type=jnp.float32)
    c1_raw = jnp.einsum("nhwc,co->nhwo", xm, w1_ref[...],
                        preferred_element_type=jnp.float32)
    res = _bn(res_raw, gr_ref[...], br_ref[...], inv_m)                 # cb_residual BN
    t1 = jnp.maximum(_bn(c1_raw, g1_ref[...], b1_ref[...], inv_m), 0.0)  # cbr_1
    Cm = t1.shape[-1]

    # cbr_2: 3x3 dilated conv (stride=1, padding=d) -> BN -> ReLU.
    # One dense (unmasked) zero fill of the padded scratch, then the interior
    # write at a sublane-aligned W offset (wl is a multiple of 8 / 16 for bf16).
    pad_ref[...] = jnp.zeros(pad_ref.shape, mxu_dtype)
    pad_ref[:, d:d + H, wl:wl + W, :] = t1.astype(mxu_dtype)

    # Unrolled 9-tap accumulation: identical total MXU work to im2col (K = 9*Cmid
    # contracted), but peak VMEM is ~1x t1 + 1x acc; on v7x the MRB accumulates
    # in place, on v5e/v6e the adds are VALU filler hidden under the MXU.
    acc = jnp.zeros((N, H, W, Cm), jnp.float32)
    for ky in range(3):
        for kx in range(3):
            win = pad_ref[:, ky * d:ky * d + H,
                          wl + (kx - 1) * d:wl + (kx - 1) * d + W, :]
            acc = acc + jnp.einsum("nhwc,co->nhwo", win, w2_ref[ky * 3 + kx],
                                   preferred_element_type=jnp.float32)
    t2 = jnp.maximum(_bn(acc, g2_ref[...], b2_ref[...], inv_m), 0.0)

    # cb_3: 1x1 conv -> BN
    conv = _bn(jnp.einsum("nhwc,co->nhwo", t2.astype(mxu_dtype), w3_ref[...],
                          preferred_element_type=jnp.float32),
               g3_ref[...], b3_ref[...], inv_m)

    # final ReLU(conv + residual)
    out_ref[...] = jnp.maximum(conv + res, 0.0)


# ---------------------------------------------------------------------------
# VMEM footprint estimate ((8,128) tile padding on the last two dims)
# ---------------------------------------------------------------------------
def _tile_padded_bytes(shape, dtype):
    shape = tuple(int(s) for s in shape)
    if len(shape) == 1:
        shape = (1,) + shape
    *lead, s, l = shape
    s = -(-s // 8) * 8
    l = -(-l // 128) * 128
    n = 1
    for v in lead:
        n *= v
    return n * s * l * jnp.dtype(dtype).itemsize


def _nbytes(shape, dtype):
    return math.prod(int(s) for s in shape) * jnp.dtype(dtype).itemsize


def _vmem_cap_bytes():
    # Per-generation ceiling (v5e/v6e: 128 MiB, v7x: 64 MiB) with headroom left
    # for compiler-internal scratch and pipeline buffers.
    try:
        cap = int(pltpu.get_tpu_info().vmem_capacity_bytes)
    except Exception:
        cap = 128 << 20
    return int(cap * 0.85)


# ---------------------------------------------------------------------------
# Wrappers
# ---------------------------------------------------------------------------
def bottleneck_psp_nhwc(x_nhwc, params, *, stride=1, dilation=2,
                        mxu_dtype=jnp.bfloat16):
    """Core NHWC entry point (no boundary transposes on this path)."""
    # TODO(synk): stride > 1 not implemented.
    assert stride == 1
    x = x_nhwc.astype(jnp.float32)
    N, H, W, Cin = x.shape
    Cmid = params["w1"].shape[1]
    Cout = params["w3"].shape[1]
    d = dilation

    # Left halo rounded up so the interior scratch write lands sublane-aligned
    # (8 sublanes for f32, 16 for packed bf16).
    sub = 16 if jnp.dtype(mxu_dtype).itemsize == 2 else 8
    wl = -(-d // sub) * sub
    pad_shape = (N, H + 2 * d, wl + W + d, Cmid)

    # 3x3 weight HWIO -> (tap, Cmid_in, Cmid_out); tap = ky*3 + kx matches kernel.
    w2t = params["w2"].reshape(9, Cmid, Cmid)

    inputs = (x,
              params["w1"].astype(mxu_dtype), params["g1"], params["b1"],
              w2t.astype(mxu_dtype),          params["g2"], params["b2"],
              params["w3"].astype(mxu_dtype), params["g3"], params["b3"],
              params["wr"].astype(mxu_dtype), params["gr"], params["br"])
    out_sds = jax.ShapeDtypeStruct((N, H, W, Cout), jnp.float32)

    # Accurate VMEM accounting: inputs + output + scratch + every live intermediate.
    tensors = [(a.shape, a.dtype) for a in inputs]
    tensors += [(out_sds.shape, out_sds.dtype), (pad_shape, mxu_dtype)]
    tensors += [
        ((N, H, W, Cin), mxu_dtype),       # xm
        ((N, H, W, Cout), jnp.float32),    # res_raw
        ((N, H, W, Cmid), jnp.float32),    # c1_raw
        ((N, H, W, Cout), jnp.float32),    # res
        ((N, H, W, Cmid), jnp.float32),    # t1
        ((N, H, W, Cmid), mxu_dtype),      # per-tap window
        ((N, H, W, Cmid), jnp.float32),    # acc
        ((N, H, W, Cmid), jnp.float32),    # t2
        ((N, H, W, Cmid), mxu_dtype),      # t2 cast
        ((N, H, W, Cout), jnp.float32),    # conv
    ]
    vmem_bytes = sum(_tile_padded_bytes(s, dt) for s, dt in tensors)
    vmem_limit = int(min(max(int(1.5 * vmem_bytes), 8 << 20), _vmem_cap_bytes()))

    # Advisory cost estimate so XLA's scheduler overlaps surrounding ops properly.
    flops = 2 * N * H * W * (Cin * Cmid + 9 * Cmid * Cmid + Cmid * Cout + Cin * Cout)
    bytes_accessed = (sum(_nbytes(a.shape, a.dtype) for a in inputs)
                      + _nbytes(out_sds.shape, out_sds.dtype))
    cost = pl.CostEstimate(flops=int(flops), transcendentals=0,
                           bytes_accessed=int(bytes_accessed))

    vmem = functools.partial(pl.BlockSpec, memory_space=pltpu.MemorySpace.VMEM)
    return pl.pallas_call(
        functools.partial(bottleneck_kernel, d, wl, mxu_dtype),
        out_shape=out_sds,
        in_specs=[vmem() for _ in inputs],
        out_specs=vmem(),
        scratch_shapes=[pltpu.VMEM(pad_shape, mxu_dtype)],
        compiler_params=pltpu.CompilerParams(vmem_limit_bytes=vmem_limit),
        cost_estimate=cost,
    )(*inputs)


def bottleneck_psp(x_nchw, params, *, stride=1, dilation=2,
                   mxu_dtype=jnp.bfloat16):
    """Thin NCHW wrapper for PyTorch parity (layout conversion only at the boundary)."""
    x = jnp.transpose(x_nchw, (0, 2, 3, 1))
    y = bottleneck_psp_nhwc(x, params, stride=stride, dilation=dilation,
                            mxu_dtype=mxu_dtype)
    return jnp.transpose(y, (0, 3, 1, 2))


# ---------------------------------------------------------------------------
# Deterministic parameter init (synthetic; shapes follow the PyTorch module)
# ---------------------------------------------------------------------------
def init_params(key, cin, cmid, cout):
    ks = jax.random.split(key, 8)

    def w(k, shape, fan_in):
        return jax.random.normal(k, shape, jnp.float32) / jnp.sqrt(fan_in)

    params = dict(
        w1=w(ks[0], (cin, cmid), cin),              # cbr_1 1x1
        w2=w(ks[1], (3, 3, cmid, cmid), 9 * cmid),  # cbr_2 3x3 (HWIO)
        w3=w(ks[2], (cmid, cout), cmid),            # cb_3 1x1
        wr=w(ks[3], (cin, cout), cin),              # cb_residual 1x1
    )
    for name, c, k in (("1", cmid, ks[4]), ("2", cmid, ks[5]),
                       ("3", cout, ks[6]), ("r", cout, ks[7])):
        kg, kb = jax.random.split(k)
        params["g" + name] = 1.0 + 0.1 * jax.random.normal(kg, (1, 1, 1, c), jnp.float32)
        params["b" + name] = 0.1 * jax.random.normal(kb, (1, 1, 1, c), jnp.float32)
    return params


# ---------------------------------------------------------------------------
# Pure-JAX reference (for correctness check)
# ---------------------------------------------------------------------------
def ref_forward(x_nchw, params, *, dilation=2):
    x = jnp.transpose(x_nchw, (0, 2, 3, 1)).astype(jnp.float32)
    dn = ("NHWC", "HWIO", "NHWC")
    cin, cmid = params["w1"].shape
    cout = params["w3"].shape[1]

    def bn(t, g, b):
        m = jnp.mean(t, axis=(0, 1, 2), keepdims=True)
        v = jnp.mean(jnp.square(t - m), axis=(0, 1, 2), keepdims=True)
        return (t - m) / jnp.sqrt(v + EPS) * g + b

    t1 = jax.nn.relu(bn(lax.conv_general_dilated(
        x, params["w1"].reshape(1, 1, cin, cmid), (1, 1), "VALID",
        dimension_numbers=dn), params["g1"], params["b1"]))
    t2 = jax.nn.relu(bn(lax.conv_general_dilated(
        t1, params["w2"], (1, 1), [(dilation, dilation)] * 2,
        rhs_dilation=(dilation, dilation), dimension_numbers=dn),
        params["g2"], params["b2"]))
    conv = bn(lax.conv_general_dilated(
        t2, params["w3"].reshape(1, 1, cmid, cout), (1, 1), "VALID",
        dimension_numbers=dn), params["g3"], params["b3"])
    res = bn(lax.conv_general_dilated(
        x, params["wr"].reshape(1, 1, cin, cout), (1, 1), "VALID",
        dimension_numbers=dn), params["gr"], params["br"])
    return jnp.transpose(jax.nn.relu(conv + res), (0, 3, 1, 2))


if __name__ == "__main__":
    key = jax.random.PRNGKey(0)
    kx, kp = jax.random.split(key)

    # bottleNeckPSP(in_channels=16, mid_channels=8, out_channels=32, stride=1, dilation=2)
    # NOTE: toy widths are for correctness only (channels pad to 128 lanes);
    # do not draw performance conclusions here — tune at Cmid>=256 / Cout>=1024.
    N, Cin, Cmid, Cout, H, W = 2, 16, 8, 32, 16, 16
    stride, dilation = 1, 2

    x = jax.random.normal(kx, (N, Cin, H, W), jnp.float32)   # PyTorch NCHW input
    params = init_params(kp, Cin, Cmid, Cout)

    ref = ref_forward(x, params, dilation=dilation)

    # f32-MXU path: tight parity with the reference.
    out_f32 = jax.block_until_ready(
        bottleneck_psp(x, params, stride=stride, dilation=dilation,
                       mxu_dtype=jnp.float32))
    assert out_f32.shape == (N, Cout, H, W)
    err32 = float(jnp.max(jnp.abs(out_f32 - ref)))
    assert jnp.allclose(out_f32, ref, atol=1e-3, rtol=1e-3), f"f32 max abs err {err32}"

    # Default production path: bf16 MXU operands, f32 accumulation / BN / ReLU.
    out_bf16 = jax.block_until_ready(
        bottleneck_psp(x, params, stride=stride, dilation=dilation))
    errbf = float(jnp.max(jnp.abs(out_bf16 - ref)))
    assert jnp.allclose(out_bf16, ref, atol=1e-1, rtol=1e-1), f"bf16 max abs err {errbf}"

    print("KERNEL_OK")
</pallas_src>

<mosaic_0001>
module attributes {stable_mosaic.version = 11 : i64} {
  func.func @bottleneck_kernel(%arg0: memref<2x16x16x16xf32, #tpu.memory_space<vmem>>, %arg1: memref<16x8xf32, #tpu.memory_space<vmem>>, %arg2: memref<1x1x1x8xf32, #tpu.memory_space<vmem>>, %arg3: memref<1x1x1x8xf32, #tpu.memory_space<vmem>>, %arg4: memref<9x8x8xf32, #tpu.memory_space<vmem>>, %arg5: memref<1x1x1x8xf32, #tpu.memory_space<vmem>>, %arg6: memref<1x1x1x8xf32, #tpu.memory_space<vmem>>, %arg7: memref<8x32xf32, #tpu.memory_space<vmem>>, %arg8: memref<1x1x1x32xf32, #tpu.memory_space<vmem>>, %arg9: memref<1x1x1x32xf32, #tpu.memory_space<vmem>>, %arg10: memref<16x32xf32, #tpu.memory_space<vmem>>, %arg11: memref<1x1x1x32xf32, #tpu.memory_space<vmem>>, %arg12: memref<1x1x1x32xf32, #tpu.memory_space<vmem>>, %arg13: memref<2x16x16x32xf32, #tpu.memory_space<vmem>>, %arg14: memref<2x20x26x8xf32, #tpu.memory_space<vmem>>) attributes {dimension_semantics = [], scalar_prefetch = 0 : i64, scratch_operands = 1 : i64, tpu.core_type = #tpu.core_type<tc>} {
    %c0 = arith.constant 0 : index
    %c0_0 = arith.constant 0 : index
    %c0_1 = arith.constant 0 : index
    %c0_2 = arith.constant 0 : index
    %0 = vector.load %arg0[%c0, %c0_0, %c0_1, %c0_2] : memref<2x16x16x16xf32, #tpu.memory_space<vmem>>, vector<2x16x16x16xf32>
    %c0_3 = arith.constant 0 : index
    %c0_4 = arith.constant 0 : index
    %1 = vector.load %arg10[%c0_3, %c0_4] : memref<16x32xf32, #tpu.memory_space<vmem>>, vector<16x32xf32>
    "tpu.trace_start"() <{level = 10 : i32, message = "nhwc,co->nhwo"}> : () -> ()
    %cst = arith.constant dense<0.000000e+00> : vector<2x16x16x32xf32>
    %2 = tpu.matmul %0, %1, %cst {dimension_numbers = #tpu.dot_dimension_numbers<[3], [0], [0, 1, 2], [1], [0, 0, 0, 1, 0, 2, 1, 1], [], []>} : vector<2x16x16x16xf32>, vector<16x32xf32>, vector<2x16x16x32xf32> -> vector<2x16x16x32xf32>
    "tpu.trace_stop"() : () -> ()
    %c0_5 = arith.constant 0 : index
    %c0_6 = arith.constant 0 : index
    %3 = vector.load %arg1[%c0_5, %c0_6] : memref<16x8xf32, #tpu.memory_space<vmem>>, vector<16x8xf32>
    "tpu.trace_start"() <{level = 10 : i32, message = "nhwc,co->nhwo"}> : () -> ()
    %cst_7 = arith.constant dense<0.000000e+00> : vector<2x16x16x8xf32>
    %4 = tpu.matmul %0, %3, %cst_7 {dimension_numbers = #tpu.dot_dimension_numbers<[3], [0], [0, 1, 2], [1], [0, 0, 0, 1, 0, 2, 1, 1], [], []>} : vector<2x16x16x16xf32>, vector<16x8xf32>, vector<2x16x16x8xf32> -> vector<2x16x16x8xf32>
    "tpu.trace_stop"() : () -> ()
    %c0_8 = arith.constant 0 : index
    %c0_9 = arith.constant 0 : index
    %c0_10 = arith.constant 0 : index
    %c0_11 = arith.constant 0 : index
    %5 = vector.load %arg11[%c0_8, %c0_9, %c0_10, %c0_11] : memref<1x1x1x32xf32, #tpu.memory_space<vmem>>, vector<1x1x1x32xf32>
    %c0_12 = arith.constant 0 : index
    %c0_13 = arith.constant 0 : index
    %c0_14 = arith.constant 0 : index
    %c0_15 = arith.constant 0 : index
    %6 = vector.load %arg12[%c0_12, %c0_13, %c0_14, %c0_15] : memref<1x1x1x32xf32, #tpu.memory_space<vmem>>, vector<1x1x1x32xf32>
    %cst_16 = arith.constant dense<0.000000e+00> : vector<32xf32>
    %7 = vector.multi_reduction <add>, %2, %cst_16 [0, 1, 2] : vector<2x16x16x32xf32> to vector<32xf32>
    %8 = vector.shape_cast %7 : vector<32xf32> to vector<1x1x1x32xf32>
    %cst_17 = arith.constant 0.001953125 : f32
    %9 = vector.broadcast %cst_17 : f32 to vector<1x1x1x32xf32>
    %10 = arith.mulf %8, %9 : vector<1x1x1x32xf32>
    %11 = vector.broadcast %10 : vector<1x1x1x32xf32> to vector<2x16x16x32xf32>
    %12 = arith.subf %2, %11 : vector<2x16x16x32xf32>
    %13 = arith.mulf %12, %12 : vector<2x16x16x32xf32>
    %cst_18 = arith.constant dense<0.000000e+00> : vector<32xf32>
    %14 = vector.multi_reduction <add>, %13, %cst_18 [0, 1, 2] : vector<2x16x16x32xf32> to vector<32xf32>
    %15 = vector.shape_cast %14 : vector<32xf32> to vector<1x1x1x32xf32>
    %cst_19 = arith.constant 0.001953125 : f32
    %16 = vector.broadcast %cst_19 : f32 to vector<1x1x1x32xf32>
    %17 = arith.mulf %15, %16 : vector<1x1x1x32xf32>
    %cst_20 = arith.constant 9.99999974E-6 : f32
    %18 = vector.broadcast %cst_20 : f32 to vector<1x1x1x32xf32>
    %19 = arith.addf %17, %18 : vector<1x1x1x32xf32>
    %20 = math.rsqrt %19 : vector<1x1x1x32xf32>
    %21 = arith.mulf %20, %5 : vector<1x1x1x32xf32>
    %22 = vector.broadcast %21 : vector<1x1x1x32xf32> to vector<2x16x16x32xf32>
    %23 = arith.mulf %12, %22 : vector<2x16x16x32xf32>
    %24 = vector.broadcast %6 : vector<1x1x1x32xf32> to vector<2x16x16x32xf32>
    %25 = arith.addf %23, %24 : vector<2x16x16x32xf32>
    %c0_21 = arith.constant 0 : index
    %c0_22 = arith.constant 0 : index
    %c0_23 = arith.constant 0 : index
    %c0_24 = arith.constant 0 : index
    %26 = vector.load %arg2[%c0_21, %c0_22, %c0_23, %c0_24] : memref<1x1x1x8xf32, #tpu.memory_space<vmem>>, vector<1x1x1x8xf32>
    %c0_25 = arith.constant 0 : index
    %c0_26 = arith.constant 0 : index
    %c0_27 = arith.constant 0 : index
    %c0_28 = arith.constant 0 : index
    %27 = vector.load %arg3[%c0_25, %c0_26, %c0_27, %c0_28] : memref<1x1x1x8xf32, #tpu.memory_space<vmem>>, vector<1x1x1x8xf32>
    %cst_29 = arith.constant dense<0.000000e+00> : vector<8xf32>
    %28 = vector.multi_reduction <add>, %4, %cst_29 [0, 1, 2] : vector<2x16x16x8xf32> to vector<8xf32>
    %29 = vector.shape_cast %28 : vector<8xf32> to vector<1x1x1x8xf32>
    %cst_30 = arith.constant 0.001953125 : f32
    %30 = vector.broadcast %cst_30 : f32 to vector<1x1x1x8xf32>
    %31 = arith.mulf %29, %30 : vector<1x1x1x8xf32>
    %32 = vector.broadcast %31 : vector<1x1x1x8xf32> to vector<2x16x16x8xf32>
    %33 = arith.subf %4, %32 : vector<2x16x16x8xf32>
    %34 = arith.mulf %33, %33 : vector<2x16x16x8xf32>
    %cst_31 = arith.constant dense<0.000000e+00> : vector<8xf32>
    %35 = vector.multi_reduction <add>, %34, %cst_31 [0, 1, 2] : vector<2x16x16x8xf32> to vector<8xf32>
    %36 = vector.shape_cast %35 : vector<8xf32> to vector<1x1x1x8xf32>
    %cst_32 = arith.constant 0.001953125 : f32
    %37 = vector.broadcast %cst_32 : f32 to vector<1x1x1x8xf32>
    %38 = arith.mulf %36, %37 : vector<1x1x1x8xf32>
    %cst_33 = arith.constant 9.99999974E-6 : f32
    %39 = vector.broadcast %cst_33 : f32 to vector<1x1x1x8xf32>
    %40 = arith.addf %38, %39 : vector<1x1x1x8xf32>
    %41 = math.rsqrt %40 : vector<1x1x1x8xf32>
    %42 = arith.mulf %41, %26 : vector<1x1x1x8xf32>
    %43 = vector.broadcast %42 : vector<1x1x1x8xf32> to vector<2x16x16x8xf32>
    %44 = arith.mulf %33, %43 : vector<2x16x16x8xf32>
    %45 = vector.broadcast %27 : vector<1x1x1x8xf32> to vector<2x16x16x8xf32>
    %46 = arith.addf %44, %45 : vector<2x16x16x8xf32>
    %cst_34 = arith.constant 0.000000e+00 : f32
    %47 = vector.broadcast %cst_34 : f32 to vector<2x16x16x8xf32>
    %48 = arith.maximumf %46, %47 : vector<2x16x16x8xf32>
    %cst_35 = arith.constant 0.000000e+00 : f32
    %49 = vector.broadcast %cst_35 : f32 to vector<2x20x26x8xf32>
    %c0_36 = arith.constant 0 : index
    %c0_37 = arith.constant 0 : index
    %c0_38 = arith.constant 0 : index
    %c0_39 = arith.constant 0 : index
    %50 = vector.load %arg14[%c0_36, %c0_37, %c0_38, %c0_39] : memref<2x20x26x8xf32, #tpu.memory_space<vmem>>, vector<2x20x26x8xf32>
    tpu.vector_store %arg14[%c0_36, %c0_37, %c0_38, %c0_39], %49 {strides = array<i32>} : memref<2x20x26x8xf32, #tpu.memory_space<vmem>>, vector<2x20x26x8xf32>,
    %c0_40 = arith.constant 0 : index
    %c2 = arith.constant 2 : index
    %c8 = arith.constant 8 : index
    %c0_41 = arith.constant 0 : index
    %51 = vector.load %arg14[%c0_40, %c2, %c8, %c0_41] : memref<2x20x26x8xf32, #tpu.memory_space<vmem>>, vector<2x16x16x8xf32>
    tpu.vector_store %arg14[%c0_40, %c2, %c8, %c0_41], %48 {strides = array<i32>} : memref<2x20x26x8xf32, #tpu.memory_space<vmem>>, vector<2x16x16x8xf32>,
    %cst_42 = arith.constant 0.000000e+00 : f32
    %52 = vector.broadcast %cst_42 : f32 to vector<2x16x16x8xf32>
    %c0_43 = arith.constant 0 : index
    %c0_44 = arith.constant 0 : index
    %c6 = arith.constant 6 : index
    %c0_45 = arith.constant 0 : index
    %53 = vector.load %arg14[%c0_43, %c0_44, %c6, %c0_45] : memref<2x20x26x8xf32, #tpu.memory_space<vmem>>, vector<2x16x16x8xf32>
    %c0_46 = arith.constant 0 : index
    %c0_47 = arith.constant 0 : index
    %c0_48 = arith.constant 0 : index
    %54 = vector.load %arg4[%c0_46, %c0_47, %c0_48] : memref<9x8x8xf32, #tpu.memory_space<vmem>>, vector<1x8x8xf32>
    %55 = vector.shape_cast %54 : vector<1x8x8xf32> to vector<8x8xf32>
    "tpu.trace_start"() <{level = 10 : i32, message = "nhwc,co->nhwo"}> : () -> ()
    %cst_49 = arith.constant dense<0.000000e+00> : vector<2x16x16x8xf32>
    %56 = tpu.matmul %53, %55, %cst_49 {dimension_numbers = #tpu.dot_dimension_numbers<[3], [0], [0, 1, 2], [1], [0, 0, 0, 1, 0, 2, 1, 1], [], []>} : vector<2x16x16x8xf32>, vector<8x8xf32>, vector<2x16x16x8xf32> -> vector<2x16x16x8xf32>
    "tpu.trace_stop"() : () -> ()
    %57 = arith.addf %52, %56 : vector<2x16x16x8xf32>
    %c0_50 = arith.constant 0 : index
    %c0_51 = arith.constant 0 : index
    %c8_52 = arith.constant 8 : index
    %c0_53 = arith.constant 0 : index
    %58 = vector.load %arg14[%c0_50, %c0_51, %c8_52, %c0_53] : memref<2x20x26x8xf32, #tpu.memory_space<vmem>>, vector<2x16x16x8xf32>
    %c1 = arith.constant 1 : index
    %c0_54 = arith.constant 0 : index
    %c0_55 = arith.constant 0 : index
    %59 = vector.load %arg4[%c1, %c0_54, %c0_55] : memref<9x8x8xf32, #tpu.memory_space<vmem>>, vector<1x8x8xf32>
    %60 = vector.shape_cast %59 : vector<1x8x8xf32> to vector<8x8xf32>
    "tpu.trace_start"() <{level = 10 : i32, message = "nhwc,co->nhwo"}> : () -> ()
    %cst_56 = arith.constant dense<0.000000e+00> : vector<2x16x16x8xf32>
    %61 = tpu.matmul %58, %60, %cst_56 {dimension_numbers = #tpu.dot_dimension_numbers<[3], [0], [0, 1, 2], [1], [0, 0, 0, 1, 0, 2, 1, 1], [], []>} : vector<2x16x16x8xf32>, vector<8x8xf32>, vector<2x16x16x8xf32> -> vector<2x16x16x8xf32>
    "tpu.trace_stop"() : () -> ()
    %62 = arith.addf %57, %61 : vector<2x16x16x8xf32>
    %c0_57 = arith.constant 0 : index
    %c0_58 = arith.constant 0 : index
    %c10 = arith.constant 10 : index
    %c0_59 = arith.constant 0 : index
    %63 = vector.load %arg14[%c0_57, %c0_58, %c10, %c0_59] : memref<2x20x26x8xf32, #tpu.memory_space<vmem>>, vector<2x16x16x8xf32>
    %c2_60 = arith.constant 2 : index
    %c0_61 = arith.constant 0 : index
    %c0_62 = arith.constant 0 : index
    %64 = vector.load %arg4[%c2_60, %c0_61, %c0_62] : memref<9x8x8xf32, #tpu.memory_space<vmem>>, vector<1x8x8xf32>
    %65 = vector.shape_cast %64 : vector<1x8x8xf32> to vector<8x8xf32>
    "tpu.trace_start"() <{level = 10 : i32, message = "nhwc,co->nhwo"}> : () -> ()
    %cst_63 = arith.constant dense<0.000000e+00> : vector<2x16x16x8xf32>
    %66 = tpu.matmul %63, %65, %cst_63 {dimension_numbers = #tpu.dot_dimension_numbers<[3], [0], [0, 1, 2], [1], [0, 0, 0, 1, 0, 2, 1, 1], [], []>} : vector<2x16x16x8xf32>, vector<8x8xf32>, vector<2x16x16x8xf32> -> vector<2x16x16x8xf32>
    "tpu.trace_stop"() : () -> ()
    %67 = arith.addf %62, %66 : vector<2x16x16x8xf32>
    %c0_64 = arith.constant 0 : index
    %c2_65 = arith.constant 2 : index
    %c6_66 = arith.constant 6 : index
    %c0_67 = arith.constant 0 : index
    %68 = vector.load %arg14[%c0_64, %c2_65, %c6_66, %c0_67] : memref<2x20x26x8xf32, #tpu.memory_space<vmem>>, vector<2x16x16x8xf32>
    %c3 = arith.constant 3 : index
    %c0_68 = arith.constant 0 : index
    %c0_69 = arith.constant 0 : index
    %69 = vector.load %arg4[%c3, %c0_68, %c0_69] : memref<9x8x8xf32, #tpu.memory_space<vmem>>, vector<1x8x8xf32>
    %70 = vector.shape_cast %69 : vector<1x8x8xf32> to vector<8x8xf32>
    "tpu.trace_start"() <{level = 10 : i32, message = "nhwc,co->nhwo"}> : () -> ()
    %cst_70 = arith.constant dense<0.000000e+00> : vector<2x16x16x8xf32>
    %71 = tpu.matmul %68, %70, %cst_70 {dimension_numbers = #tpu.dot_dimension_numbers<[3], [0], [0, 1, 2], [1], [0, 0, 0, 1, 0, 2, 1, 1], [], []>} : vector<2x16x16x8xf32>, vector<8x8xf32>, vector<2x16x16x8xf32> -> vector<2x16x16x8xf32>
    "tpu.trace_stop"() : () -> ()
    %72 = arith.addf %67, %71 : vector<2x16x16x8xf32>
    %c0_71 = arith.constant 0 : index
    %c2_72 = arith.constant 2 : index
    %c8_73 = arith.constant 8 : index
    %c0_74 = arith.constant 0 : index
    %73 = vector.load %arg14[%c0_71, %c2_72, %c8_73, %c0_74] : memref<2x20x26x8xf32, #tpu.memory_space<vmem>>, vector<2x16x16x8xf32>
    %c4 = arith.constant 4 : index
    %c0_75 = arith.constant 0 : index
    %c0_76 = arith.constant 0 : index
    %74 = vector.load %arg4[%c4, %c0_75, %c0_76] : memref<9x8x8xf32, #tpu.memory_space<vmem>>, vector<1x8x8xf32>
    %75 = vector.shape_cast %74 : vector<1x8x8xf32> to vector<8x8xf32>
    "tpu.trace_start"() <{level = 10 : i32, message = "nhwc,co->nhwo"}> : () -> ()
    %cst_77 = arith.constant dense<0.000000e+00> : vector<2x16x16x8xf32>
    %76 = tpu.matmul %73, %75, %cst_77 {dimension_numbers = #tpu.dot_dimension_numbers<[3], [0], [0, 1, 2], [1], [0, 0, 0, 1, 0, 2, 1, 1], [], []>} : vector<2x16x16x8xf32>, vector<8x8xf32>, vector<2x16x16x8xf32> -> vector<2x16x16x8xf32>
    "tpu.trace_stop"() : () -> ()
    %77 = arith.addf %72, %76 : vector<2x16x16x8xf32>
    %c0_78 = arith.constant 0 : index
    %c2_79 = arith.constant 2 : index
    %c10_80 = arith.constant 10 : index
    %c0_81 = arith.constant 0 : index
    %78 = vector.load %arg14[%c0_78, %c2_79, %c10_80, %c0_81] : memref<2x20x26x8xf32, #tpu.memory_space<vmem>>, vector<2x16x16x8xf32>
    %c5 = arith.constant 5 : index
    %c0_82 = arith.constant 0 : index
    %c0_83 = arith.constant 0 : index
    %79 = vector.load %arg4[%c5, %c0_82, %c0_83] : memref<9x8x8xf32, #tpu.memory_space<vmem>>, vector<1x8x8xf32>
    %80 = vector.shape_cast %79 : vector<1x8x8xf32> to vector<8x8xf32>
    "tpu.trace_start"() <{level = 10 : i32, message = "nhwc,co->nhwo"}> : () -> ()
    %cst_84 = arith.constant dense<0.000000e+00> : vector<2x16x16x8xf32>
    %81 = tpu.matmul %78, %80, %cst_84 {dimension_numbers = #tpu.dot_dimension_numbers<[3], [0], [0, 1, 2], [1], [0, 0, 0, 1, 0, 2, 1, 1], [], []>} : vector<2x16x16x8xf32>, vector<8x8xf32>, vector<2x16x16x8xf32> -> vector<2x16x16x8xf32>
    "tpu.trace_stop"() : () -> ()
    %82 = arith.addf %77, %81 : vector<2x16x16x8xf32>
    %c0_85 = arith.constant 0 : index
    %c4_86 = arith.constant 4 : index
    %c6_87 = arith.constant 6 : index
    %c0_88 = arith.constant 0 : index
    %83 = vector.load %arg14[%c0_85, %c4_86, %c6_87, %c0_88] : memref<2x20x26x8xf32, #tpu.memory_space<vmem>>, vector<2x16x16x8xf32>
    %c6_89 = arith.constant 6 : index
    %c0_90 = arith.constant 0 : index
    %c0_91 = arith.constant 0 : index
    %84 = vector.load %arg4[%c6_89, %c0_90, %c0_91] : memref<9x8x8xf32, #tpu.memory_space<vmem>>, vector<1x8x8xf32>
    %85 = vector.shape_cast %84 : vector<1x8x8xf32> to vector<8x8xf32>
    "tpu.trace_start"() <{level = 10 : i32, message = "nhwc,co->nhwo"}> : () -> ()
    %cst_92 = arith.constant dense<0.000000e+00> : vector<2x16x16x8xf32>
    %86 = tpu.matmul %83, %85, %cst_92 {dimension_numbers = #tpu.dot_dimension_numbers<[3], [0], [0, 1, 2], [1], [0, 0, 0, 1, 0, 2, 1, 1], [], []>} : vector<2x16x16x8xf32>, vector<8x8xf32>, vector<2x16x16x8xf32> -> vector<2x16x16x8xf32>
    "tpu.trace_stop"() : () -> ()
    %87 = arith.addf %82, %86 : vector<2x16x16x8xf32>
    %c0_93 = arith.constant 0 : index
    %c4_94 = arith.constant 4 : index
    %c8_95 = arith.constant 8 : index
    %c0_96 = arith.constant 0 : index
    %88 = vector.load %arg14[%c0_93, %c4_94, %c8_95, %c0_96] : memref<2x20x26x8xf32, #tpu.memory_space<vmem>>, vector<2x16x16x8xf32>
    %c7 = arith.constant 7 : index
    %c0_97 = arith.constant 0 : index
    %c0_98 = arith.constant 0 : index
    %89 = vector.load %arg4[%c7, %c0_97, %c0_98] : memref<9x8x8xf32, #tpu.memory_space<vmem>>, vector<1x8x8xf32>
    %90 = vector.shape_cast %89 : vector<1x8x8xf32> to vector<8x8xf32>
    "tpu.trace_start"() <{level = 10 : i32, message = "nhwc,co->nhwo"}> : () -> ()
    %cst_99 = arith.constant dense<0.000000e+00> : vector<2x16x16x8xf32>
    %91 = tpu.matmul %88, %90, %cst_99 {dimension_numbers = #tpu.dot_dimension_numbers<[3], [0], [0, 1, 2], [1], [0, 0, 0, 1, 0, 2, 1, 1], [], []>} : vector<2x16x16x8xf32>, vector<8x8xf32>, vector<2x16x16x8xf32> -> vector<2x16x16x8xf32>
    "tpu.trace_stop"() : () -> ()
    %92 = arith.addf %87, %91 : vector<2x16x16x8xf32>
    %c0_100 = arith.constant 0 : index
    %c4_101 = arith.constant 4 : index
    %c10_102 = arith.constant 10 : index
    %c0_103 = arith.constant 0 : index
    %93 = vector.load %arg14[%c0_100, %c4_101, %c10_102, %c0_103] : memref<2x20x26x8xf32, #tpu.memory_space<vmem>>, vector<2x16x16x8xf32>
    %c8_104 = arith.constant 8 : index
    %c0_105 = arith.constant 0 : index
    %c0_106 = arith.constant 0 : index
    %94 = vector.load %arg4[%c8_104, %c0_105, %c0_106] : memref<9x8x8xf32, #tpu.memory_space<vmem>>, vector<1x8x8xf32>
    %95 = vector.shape_cast %94 : vector<1x8x8xf32> to vector<8x8xf32>
    "tpu.trace_start"() <{level = 10 : i32, message = "nhwc,co->nhwo"}> : () -> ()
    %cst_107 = arith.constant dense<0.000000e+00> : vector<2x16x16x8xf32>
    %96 = tpu.matmul %93, %95, %cst_107 {dimension_numbers = #tpu.dot_dimension_numbers<[3], [0], [0, 1, 2], [1], [0, 0, 0, 1, 0, 2, 1, 1], [], []>} : vector<2x16x16x8xf32>, vector<8x8xf32>, vector<2x16x16x8xf32> -> vector<2x16x16x8xf32>
    "tpu.trace_stop"() : () -> ()
    %97 = arith.addf %92, %96 : vector<2x16x16x8xf32>
    %c0_108 = arith.constant 0 : index
    %c0_109 = arith.constant 0 : index
    %c0_110 = arith.constant 0 : index
    %c0_111 = arith.constant 0 : index
    %98 = vector.load %arg5[%c0_108, %c0_109, %c0_110, %c0_111] : memref<1x1x1x8xf32, #tpu.memory_space<vmem>>, vector<1x1x1x8xf32>
    %c0_112 = arith.constant 0 : index
    %c0_113 = arith.constant 0 : index
    %c0_114 = arith.constant 0 : index
    %c0_115 = arith.constant 0 : index
    %99 = vector.load %arg6[%c0_112, %c0_113, %c0_114, %c0_115] : memref<1x1x1x8xf32, #tpu.memory_space<vmem>>, vector<1x1x1x8xf32>
    %cst_116 = arith.constant dense<0.000000e+00> : vector<8xf32>
    %100 = vector.multi_reduction <add>, %97, %cst_116 [0, 1, 2] : vector<2x16x16x8xf32> to vector<8xf32>
    %101 = vector.shape_cast %100 : vector<8xf32> to vector<1x1x1x8xf32>
    %cst_117 = arith.constant 0.001953125 : f32
    %102 = vector.broadcast %cst_117 : f32 to vector<1x1x1x8xf32>
    %103 = arith.mulf %101, %102 : vector<1x1x1x8xf32>
    %104 = vector.broadcast %103 : vector<1x1x1x8xf32> to vector<2x16x16x8xf32>
    %105 = arith.subf %97, %104 : vector<2x16x16x8xf32>
    %106 = arith.mulf %105, %105 : vector<2x16x16x8xf32>
    %cst_118 = arith.constant dense<0.000000e+00> : vector<8xf32>
    %107 = vector.multi_reduction <add>, %106, %cst_118 [0, 1, 2] : vector<2x16x16x8xf32> to vector<8xf32>
    %108 = vector.shape_cast %107 : vector<8xf32> to vector<1x1x1x8xf32>
    %cst_119 = arith.constant 0.001953125 : f32
    %109 = vector.broadcast %cst_119 : f32 to vector<1x1x1x8xf32>
    %110 = arith.mulf %108, %109 : vector<1x1x1x8xf32>
    %cst_120 = arith.constant 9.99999974E-6 : f32
    %111 = vector.broadcast %cst_120 : f32 to vector<1x1x1x8xf32>
    %112 = arith.addf %110, %111 : vector<1x1x1x8xf32>
    %113 = math.rsqrt %112 : vector<1x1x1x8xf32>
    %114 = arith.mulf %113, %98 : vector<1x1x1x8xf32>
    %115 = vector.broadcast %114 : vector<1x1x1x8xf32> to vector<2x16x16x8xf32>
    %116 = arith.mulf %105, %115 : vector<2x16x16x8xf32>
    %117 = vector.broadcast %99 : vector<1x1x1x8xf32> to vector<2x16x16x8xf32>
    %118 = arith.addf %116, %117 : vector<2x16x16x8xf32>
    %cst_121 = arith.constant 0.000000e+00 : f32
    %119 = vector.broadcast %cst_121 : f32 to vector<2x16x16x8xf32>
    %120 = arith.maximumf %118, %119 : vector<2x16x16x8xf32>
    %c0_122 = arith.constant 0 : index
    %c0_123 = arith.constant 0 : index
    %121 = vector.load %arg7[%c0_122, %c0_123] : memref<8x32xf32, #tpu.memory_space<vmem>>, vector<8x32xf32>
    "tpu.trace_start"() <{level = 10 : i32, message = "nhwc,co->nhwo"}> : () -> ()
    %cst_124 = arith.constant dense<0.000000e+00> : vector<2x16x16x32xf32>
    %122 = tpu.matmul %120, %121, %cst_124 {dimension_numbers = #tpu.dot_dimension_numbers<[3], [0], [0, 1, 2], [1], [0, 0, 0, 1, 0, 2, 1, 1], [], []>} : vector<2x16x16x8xf32>, vector<8x32xf32>, vector<2x16x16x32xf32> -> vector<2x16x16x32xf32>
    "tpu.trace_stop"() : () -> ()
    %c0_125 = arith.constant 0 : index
    %c0_126 = arith.constant 0 : index
    %c0_127 = arith.constant 0 : index
    %c0_128 = arith.constant 0 : index
    %123 = vector.load %arg8[%c0_125, %c0_126, %c0_127, %c0_128] : memref<1x1x1x32xf32, #tpu.memory_space<vmem>>, vector<1x1x1x32xf32>
    %c0_129 = arith.constant 0 : index
    %c0_130 = arith.constant 0 : index
    %c0_131 = arith.constant 0 : index
    %c0_132 = arith.constant 0 : index
    %124 = vector.load %arg9[%c0_129, %c0_130, %c0_131, %c0_132] : memref<1x1x1x32xf32, #tpu.memory_space<vmem>>, vector<1x1x1x32xf32>
    %cst_133 = arith.constant dense<0.000000e+00> : vector<32xf32>
    %125 = vector.multi_reduction <add>, %122, %cst_133 [0, 1, 2] : vector<2x16x16x32xf32> to vector<32xf32>
    %126 = vector.shape_cast %125 : vector<32xf32> to vector<1x1x1x32xf32>
    %cst_134 = arith.constant 0.001953125 : f32
    %127 = vector.broadcast %cst_134 : f32 to vector<1x1x1x32xf32>
    %128 = arith.mulf %126, %127 : vector<1x1x1x32xf32>
    %129 = vector.broadcast %128 : vector<1x1x1x32xf32> to vector<2x16x16x32xf32>
    %130 = arith.subf %122, %129 : vector<2x16x16x32xf32>
    %131 = arith.mulf %130, %130 : vector<2x16x16x32xf32>
    %cst_135 = arith.constant dense<0.000000e+00> : vector<32xf32>
    %132 = vector.multi_reduction <add>, %131, %cst_135 [0, 1, 2] : vector<2x16x16x32xf32> to vector<32xf32>
    %133 = vector.shape_cast %132 : vector<32xf32> to vector<1x1x1x32xf32>
    %cst_136 = arith.constant 0.001953125 : f32
    %134 = vector.broadcast %cst_136 : f32 to vector<1x1x1x32xf32>
    %135 = arith.mulf %133, %134 : vector<1x1x1x32xf32>
    %cst_137 = arith.constant 9.99999974E-6 : f32
    %136 = vector.broadcast %cst_137 : f32 to vector<1x1x1x32xf32>
    %137 = arith.addf %135, %136 : vector<1x1x1x32xf32>
    %138 = math.rsqrt %137 : vector<1x1x1x32xf32>
    %139 = arith.mulf %138, %123 : vector<1x1x1x32xf32>
    %140 = vector.broadcast %139 : vector<1x1x1x32xf32> to vector<2x16x16x32xf32>
    %141 = arith.mulf %130, %140 : vector<2x16x16x32xf32>
    %142 = vector.broadcast %124 : vector<1x1x1x32xf32> to vector<2x16x16x32xf32>
    %143 = arith.addf %141, %142 : vector<2x16x16x32xf32>
    %144 = arith.addf %143, %25 : vector<2x16x16x32xf32>
    %cst_138 = arith.constant 0.000000e+00 : f32
    %145 = vector.broadcast %cst_138 : f32 to vector<2x16x16x32xf32>
    %146 = arith.maximumf %144, %145 : vector<2x16x16x32xf32>
    %c0_139 = arith.constant 0 : index
    %c0_140 = arith.constant 0 : index
    %c0_141 = arith.constant 0 : index
    %c0_142 = arith.constant 0 : index
    %147 = vector.load %arg13[%c0_139, %c0_140, %c0_141, %c0_142] : memref<2x16x16x32xf32, #tpu.memory_space<vmem>>, vector<2x16x16x32xf32>
    tpu.vector_store %arg13[%c0_139, %c0_140, %c0_141, %c0_142], %146 {strides = array<i32>} : memref<2x16x16x32xf32, #tpu.memory_space<vmem>>, vector<2x16x16x32xf32>,
    return
  }
}

</mosaic_0001>

<llo_original>
// kernel: tpu_custom_call.1
$region0: #{tpu_custom_call.1}
  #allocation0 [shape = 'u32[]', space=smem, size = 0x4, offset = 0x4, fixed_abs, tag = 'smem constant byte address 0x4 - core index']
  #allocation1 [shape = 'u32[144,128]{1,0:T(1,128)}', space=vmem, size = 0x12000, scoped, tag = 'internal scratch']
  #allocation2 [shape = 'f32[2,20,26,8]{3,2,1,0:T(8,128)}', space=vmem, size = 0xa0000, scoped, tag = 'scratch operand']
  %s0 = inlined_call_operand.hbm [shape: f32[2,16,16,16], index: 0, kind: input, shape index: {}]
  %s1 = inlined_call_operand.vmem [shape: f32[16,8], index: 1, kind: input, shape index: {}]
  %s2 = inlined_call_operand.vmem [shape: f32[1,1,1,8], index: 2, kind: input, shape index: {}]
  %s3 = inlined_call_operand.vmem [shape: f32[1,1,1,8], index: 3, kind: input, shape index: {}]
  %s4 = inlined_call_operand.vmem [shape: f32[9,8,8], index: 4, kind: input, shape index: {}]
  %s5 = inlined_call_operand.vmem [shape: f32[1,1,1,8], index: 5, kind: input, shape index: {}]
  %s6 = inlined_call_operand.vmem [shape: f32[1,1,1,8], index: 6, kind: input, shape index: {}]
  %s7 = inlined_call_operand.vmem [shape: f32[8,32], index: 7, kind: input, shape index: {}]
  %s8 = inlined_call_operand.vmem [shape: f32[1,1,1,32], index: 8, kind: input, shape index: {}]
  %s9 = inlined_call_operand.vmem [shape: f32[1,1,1,32], index: 9, kind: input, shape index: {}]
  %s10 = inlined_call_operand.vmem [shape: f32[16,32], index: 10, kind: input, shape index: {}]
  %s11 = inlined_call_operand.vmem [shape: f32[1,1,1,32], index: 11, kind: input, shape index: {}]
  %s12 = inlined_call_operand.vmem [shape: f32[1,1,1,32], index: 12, kind: input, shape index: {}]
  %s13 = inlined_call_operand.hbm [shape: f32[2,16,16,32], index: 13, kind: output, shape index: {}]
  %s14 = sld [smem:[#allocation0]]
  $region66: #{tpu_custom_call.1} parent=0
    _
  %s16 = ssub.s32 1, %s14
  %s17 = scalar_select 0, %s16, %s14
  $region1: #{tpu_custom_call.1} parent=0
    #allocation3 [shape = 'u8[262144]{0}', space=vmem, size = 0x40000, scoped, tag = 'input window, operand 0, single buffered']
    #allocation4 [shape = 's32[1]{0}', space=sflag, size = 0x4, scoped, tag = 'scoped memory for tpu_custom_call.1']
    #allocation5 [shape = 's32[1]{0}', space=sflag, size = 0x4, scoped, tag = 'scoped memory for tpu_custom_call.1']
    #allocation6 [shape = 'u8[262144]{0}', space=vmem, size = 0x40000, scoped, tag = 'output window, operand 0, single buffered']
    %18 = vsyncpa [#allocation4], 0
    %19 = vsyncpa [#allocation5], 0
    // Predicated region
    $region2: #{tpu_custom_call.1} parent=1 // pred_check
      _
    $region3: #{tpu_custom_call.1} parent=1 // pred_check_branch
      %21 = sbr.rel (0) target = $region5
    $region4: #{tpu_custom_call.1} parent=1 // pred_region
      %s23 = ssub.s32 8192, 8192
      %24 = vsyncadd [#allocation4], %s23
      %s25 = sshll.u32 [#allocation3], 4
      %s26 = int_to_ptr.vmem [resolvable:$true] %s25
      %31 = dma.hbm_to_vmem [thread:$0]  %s0, 8192, %s26, [#allocation4], 128, 128, 8
    $region5: #{tpu_custom_call.1} parent=1 // pred_fallthru
      _
    // Predicated region
    $region6: #{tpu_custom_call.1} parent=1 // pred_check
      _
    $region7: #{tpu_custom_call.1} parent=1 // pred_check_branch
      %33 = sbr.rel (0) target = $region9
    $region8: #{tpu_custom_call.1} parent=1 // pred_region
      _
    $region9: #{tpu_custom_call.1} parent=1 // pred_fallthru
      _
    // Predicated region
    $region10: #{tpu_custom_call.1} parent=1 // pred_check
      _
    $region11: #{tpu_custom_call.1} parent=1 // pred_check_branch
      %35 = sbr.rel (0) target = $region13
    $region12: #{tpu_custom_call.1} parent=1 // pred_region
      _
    $region13: #{tpu_custom_call.1} parent=1 // pred_fallthru
      _
    // Predicated region
    $region14: #{tpu_custom_call.1} parent=1 // pred_check
      _
    $region15: #{tpu_custom_call.1} parent=1 // pred_check_branch
      %37 = sbr.rel (0) target = $region17
    $region16: #{tpu_custom_call.1} parent=1 // pred_region
      _
    $region17: #{tpu_custom_call.1} parent=1 // pred_fallthru
      _
    // Predicated region
    $region18: #{tpu_custom_call.1} parent=1 // pred_check
      _
    $region19: #{tpu_custom_call.1} parent=1 // pred_check_branch
      %39 = sbr.rel (0) target = $region21
    $region20: #{tpu_custom_call.1} parent=1 // pred_region
      _
    $region21: #{tpu_custom_call.1} parent=1 // pred_fallthru
      _
    // Predicated region
    $region22: #{tpu_custom_call.1} parent=1 // pred_check
      _
    $region23: #{tpu_custom_call.1} parent=1 // pred_check_branch
      %41 = sbr.rel (0) target = $region25
    $region24: #{tpu_custom_call.1} parent=1 // pred_region
      _
    $region25: #{tpu_custom_call.1} parent=1 // pred_fallthru
      _
    // Predicated region
    $region26: #{tpu_custom_call.1} parent=1 // pred_check
      _
    $region27: #{tpu_custom_call.1} parent=1 // pred_check_branch
      %43 = sbr.rel (0) target = $region29
    $region28: #{tpu_custom_call.1} parent=1 // pred_region
      _
    $region29: #{tpu_custom_call.1} parent=1 // pred_fallthru
      _
    // Predicated region
    $region30: #{tpu_custom_call.1} parent=1 // pred_check
      _
    $region31: #{tpu_custom_call.1} parent=1 // pred_check_branch
      %45 = sbr.rel (0) target = $region33
    $region32: #{tpu_custom_call.1} parent=1 // pred_region
      _
    $region33: #{tpu_custom_call.1} parent=1 // pred_fallthru
      _
    // Predicated region
    $region34: #{tpu_custom_call.1} parent=1 // pred_check
      _
    $region35: #{tpu_custom_call.1} parent=1 // pred_check_branch
      %47 = sbr.rel (0) target = $region37
    $region36: #{tpu_custom_call.1} parent=1 // pred_region
      _
    $region37: #{tpu_custom_call.1} parent=1 // pred_fallthru
      _
    // Predicated region
    $region38: #{tpu_custom_call.1} parent=1 // pred_check
      _
    $region39: #{tpu_custom_call.1} parent=1 // pred_check_branch
      %49 = sbr.rel (0) target = $region41
    $region40: #{tpu_custom_call.1} parent=1 // pred_region
      _
    $region41: #{tpu_custom_call.1} parent=1 // pred_fallthru
      _
    // Predicated region
    $region42: #{tpu_custom_call.1} parent=1 // pred_check
      _
    $region43: #{tpu_custom_call.1} parent=1 // pred_check_branch
      %51 = sbr.rel (0) target = $region45
    $region44: #{tpu_custom_call.1} parent=1 // pred_region
      _
    $region45: #{tpu_custom_call.1} parent=1 // pred_fallthru
      _
    // Predicated region
    $region46: #{tpu_custom_call.1} parent=1 // pred_check
      _
    $region47: #{tpu_custom_call.1} parent=1 // pred_check_branch
      %53 = sbr.rel (0) target = $region49
    $region48: #{tpu_custom_call.1} parent=1 // pred_region
      _
    $region49: #{tpu_custom_call.1} parent=1 // pred_fallthru
      _
    // Predicated region
    $region50: #{tpu_custom_call.1} parent=1 // pred_check
      _
    $region51: #{tpu_custom_call.1} parent=1 // pred_check_branch
      %55 = sbr.rel (0) target = $region53
    $region52: #{tpu_custom_call.1} parent=1 // pred_region
      _
    $region53: #{tpu_custom_call.1} parent=1 // pred_fallthru
      _
    // Predicated region
    $region54: #{tpu_custom_call.1} parent=1 // pred_check
      _
    $region55: #{tpu_custom_call.1} parent=1 // pred_check_branch
      %57 = sbr.rel (0) target = $region57
    $region56: #{tpu_custom_call.1} parent=1 // pred_region
      %58 = dma.done [#allocation4], 8192
    $region57: #{tpu_custom_call.1} parent=1 // pred_fallthru
      _
    %v59 = vld [vmem:[#allocation3] sm:$0xff]
    %v60 = vld [vmem:[#allocation3 + $0x8] sm:$0xff]
    %v61 = vld [vmem:[#allocation3 + $0x10] sm:$0xff]
    %v62 = vld [vmem:[#allocation3 + $0x18] sm:$0xff]
    %v63 = vld [vmem:[#allocation3 + $0x20] sm:$0xff]
    %v64 = vld [vmem:[#allocation3 + $0x28] sm:$0xff]
    %v65 = vld [vmem:[#allocation3 + $0x30] sm:$0xff]
    %v66 = vld [vmem:[#allocation3 + $0x38] sm:$0xff]
    %v67 = vld [vmem:[#allocation3 + $0x40] sm:$0xff]
    %v68 = vld [vmem:[#allocation3 + $0x48] sm:$0xff]
    %v69 = vld [vmem:[#allocation3 + $0x50] sm:$0xff]
    %v70 = vld [vmem:[#allocation3 + $0x58] sm:$0xff]
    %v71 = vld [vmem:[#allocation3 + $0x60] sm:$0xff]
    %v72 = vld [vmem:[#allocation3 + $0x68] sm:$0xff]
    %v73 = vld [vmem:[#allocation3 + $0x70] sm:$0xff]
    %v74 = vld [vmem:[#allocation3 + $0x78] sm:$0xff]
    %v75 = vld [vmem:[#allocation3 + $0x80] sm:$0xff]
    %v76 = vld [vmem:[#allocation3 + $0x88] sm:$0xff]
    %v77 = vld [vmem:[#allocation3 + $0x90] sm:$0xff]
    %v78 = vld [vmem:[#allocation3 + $0x98] sm:$0xff]
    %v79 = vld [vmem:[#allocation3 + $0xa0] sm:$0xff]
    %v80 = vld [vmem:[#allocation3 + $0xa8] sm:$0xff]
    %v81 = vld [vmem:[#allocation3 + $0xb0] sm:$0xff]
    %v82 = vld [vmem:[#allocation3 + $0xb8] sm:$0xff]
    %v83 = vld [vmem:[#allocation3 + $0xc0] sm:$0xff]
    %v84 = vld [vmem:[#allocation3 + $0xc8] sm:$0xff]
    %v85 = vld [vmem:[#allocation3 + $0xd0] sm:$0xff]
    %v86 = vld [vmem:[#allocation3 + $0xd8] sm:$0xff]
    %v87 = vld [vmem:[#allocation3 + $0xe0] sm:$0xff]
    %v88 = vld [vmem:[#allocation3 + $0xe8] sm:$0xff]
    %v89 = vld [vmem:[#allocation3 + $0xf0] sm:$0xff]
    %v90 = vld [vmem:[#allocation3 + $0xf8] sm:$0xff]
    %v91 = vld [vmem:[#allocation3 + $0x100] sm:$0xff]
    %v92 = vld [vmem:[#allocation3 + $0x108] sm:$0xff]
    %v93 = vld [vmem:[#allocation3 + $0x110] sm:$0xff]
    %v94 = vld [vmem:[#allocation3 + $0x118] sm:$0xff]
    %v95 = vld [vmem:[#allocation3 + $0x120] sm:$0xff]
    %v96 = vld [vmem:[#allocation3 + $0x128] sm:$0xff]
    %v97 = vld [vmem:[#allocation3 + $0x130] sm:$0xff]
    %v98 = vld [vmem:[#allocation3 + $0x138] sm:$0xff]
    %v99 = vld [vmem:[#allocation3 + $0x140] sm:$0xff]
    %v100 = vld [vmem:[#allocation3 + $0x148] sm:$0xff]
    %v101 = vld [vmem:[#allocation3 + $0x150] sm:$0xff]
    %v102 = vld [vmem:[#allocation3 + $0x158] sm:$0xff]
    %v103 = vld [vmem:[#allocation3 + $0x160] sm:$0xff]
    %v104 = vld [vmem:[#allocation3 + $0x168] sm:$0xff]
    %v105 = vld [vmem:[#allocation3 + $0x170] sm:$0xff]
    %v106 = vld [vmem:[#allocation3 + $0x178] sm:$0xff]
    %v107 = vld [vmem:[#allocation3 + $0x180] sm:$0xff]
    %v108 = vld [vmem:[#allocation3 + $0x188] sm:$0xff]
    %v109 = vld [vmem:[#allocation3 + $0x190] sm:$0xff]
    %v110 = vld [vmem:[#allocation3 + $0x198] sm:$0xff]
    %v111 = vld [vmem:[#allocation3 + $0x1a0] sm:$0xff]
    %v112 = vld [vmem:[#allocation3 + $0x1a8] sm:$0xff]
    %v113 = vld [vmem:[#allocation3 + $0x1b0] sm:$0xff]
    %v114 = vld [vmem:[#allocation3 + $0x1b8] sm:$0xff]
    %v115 = vld [vmem:[#allocation3 + $0x1c0] sm:$0xff]
    %v116 = vld [vmem:[#allocation3 + $0x1c8] sm:$0xff]
    %v117 = vld [vmem:[#allocation3 + $0x1d0] sm:$0xff]
    %v118 = vld [vmem:[#allocation3 + $0x1d8] sm:$0xff]
    %v119 = vld [vmem:[#allocation3 + $0x1e0] sm:$0xff]
    %v120 = vld [vmem:[#allocation3 + $0x1e8] sm:$0xff]
    %v121 = vld [vmem:[#allocation3 + $0x1f0] sm:$0xff]
    %v122 = vld [vmem:[#allocation3 + $0x1f8] sm:$0xff]
    %v123 = vld [vmem:[%s10] sm:$0xff]
    %v124 = vld [vmem:[%s10 + $0x8] sm:$0xff]
    %vm125 = vcmask 130048
    %v127 = vsel %vm125, %v59, 0
    %v130 = vsel %vm125, %v60, 0
    %v133 = vsel %vm125, %v61, 0
    %v136 = vsel %vm125, %v62, 0
    %v139 = vsel %vm125, %v63, 0
    %v142 = vsel %vm125, %v64, 0
    %v145 = vsel %vm125, %v65, 0
    %v148 = vsel %vm125, %v66, 0
    %v151 = vsel %vm125, %v67, 0
    %v154 = vsel %vm125, %v68, 0
    %v157 = vsel %vm125, %v69, 0
    %v160 = vsel %vm125, %v70, 0
    %v163 = vsel %vm125, %v71, 0
    %v166 = vsel %vm125, %v72, 0
    %v169 = vsel %vm125, %v73, 0
    %v172 = vsel %vm125, %v74, 0
    %v175 = vsel %vm125, %v75, 0
    %v178 = vsel %vm125, %v76, 0
    %v181 = vsel %vm125, %v77, 0
    %v184 = vsel %vm125, %v78, 0
    %v187 = vsel %vm125, %v79, 0
    %v190 = vsel %vm125, %v80, 0
    %v193 = vsel %vm125, %v81, 0
    %v196 = vsel %vm125, %v82, 0
    %v199 = vsel %vm125, %v83, 0
    %v202 = vsel %vm125, %v84, 0
    %v205 = vsel %vm125, %v85, 0
    %v208 = vsel %vm125, %v86, 0
    %v211 = vsel %vm125, %v87, 0
    %v214 = vsel %vm125, %v88, 0
    %v217 = vsel %vm125, %v89, 0
    %v220 = vsel %vm125, %v90, 0
    %v223 = vsel %vm125, %v91, 0
    %v226 = vsel %vm125, %v92, 0
    %v229 = vsel %vm125, %v93, 0
    %v232 = vsel %vm125, %v94, 0
    %v235 = vsel %vm125, %v95, 0
    %v238 = vsel %vm125, %v96, 0
    %v241 = vsel %vm125, %v97, 0
    %v244 = vsel %vm125, %v98, 0
    %v247 = vsel %vm125, %v99, 0
    %v250 = vsel %vm125, %v100, 0
    %v253 = vsel %vm125, %v101, 0
    %v256 = vsel %vm125, %v102, 0
    %v259 = vsel %vm125, %v103, 0
    %v262 = vsel %vm125, %v104, 0
    %v265 = vsel %vm125, %v105, 0
    %v268 = vsel %vm125, %v106, 0
    %v271 = vsel %vm125, %v107, 0
    %v274 = vsel %vm125, %v108, 0
    %v277 = vsel %vm125, %v109, 0
    %v280 = vsel %vm125, %v110, 0
    %v283 = vsel %vm125, %v111, 0
    %v286 = vsel %vm125, %v112, 0
    %v289 = vsel %vm125, %v113, 0
    %v292 = vsel %vm125, %v114, 0
    %v295 = vsel %vm125, %v115, 0
    %v298 = vsel %vm125, %v116, 0
    %v301 = vsel %vm125, %v117, 0
    %v304 = vsel %vm125, %v118, 0
    %v307 = vsel %vm125, %v119, 0
    %v310 = vsel %vm125, %v120, 0
    %v313 = vsel %vm125, %v121, 0
    %v316 = vsel %vm125, %v122, 0
    %318 = vmatprep.subr.mxu0 0.0
    %319 = vmatpush1.msra.mxu0 %v123
    %320 = vmatprep.subr.mxu0 0.0
    %321 = vmatpush1.msra.mxu0 %v124
    %322 = vmatprep.subr.mxu0 0.0
    %323 = vmatpush1.msra.mxu0 0.0
    %324 = vmatprep.subr.mxu0 0.0
    %325 = vmatpush1.msra.mxu0 0.0
    %326 = vmatprep.subr.mxu0 0.0
    %327 = vmatpush1.msra.mxu0 0.0
    %328 = vmatprep.subr.mxu0 0.0
    %329 = vmatpush1.msra.mxu0 0.0
    %330 = vmatprep.subr.mxu0 0.0
    %331 = vmatpush1.msra.mxu0 0.0
    %332 = vmatprep.subr.mxu0 0.0
    %333 = vmatpush1.msra.mxu0 0.0
    %334 = vmatprep.subr.mxu0 0.0
    %335 = vmatpush1.msra.mxu0 0.0
    %336 = vmatprep.subr.mxu0 0.0
    %337 = vmatpush1.msra.mxu0 0.0
    %338 = vmatprep.subr.mxu0 0.0
    %339 = vmatpush1.msra.mxu0 0.0
    %340 = vmatprep.subr.mxu0 0.0
    %341 = vmatpush1.msra.mxu0 0.0
    %342 = vmatprep.subr.mxu0 0.0
    %343 = vmatpush1.msra.mxu0 0.0
    %344 = vmatprep.subr.mxu0 0.0
    %345 = vmatpush1.msra.mxu0 0.0
    %346 = vmatprep.subr.mxu0 0.0
    %347 = vmatpush1.msra.mxu0 0.0
    %348 = vmatprep.subr.mxu0 0.0
    %349 = vmatpush1.msra.mxu0 0.0
    %350 = vmatprep.subr.mxu0 0.0
    %351 = vmatpush1.msra.mxu0 0.0
    %352 = vmatprep.subr.mxu0 0.0
    %353 = vmatpush1.msra.mxu0 0.0
    %354 = vmatprep.subr.mxu0 0.0
    %355 = vmatpush1.msra.mxu0 0.0
    %356 = vmatprep.subr.mxu0 0.0
    %357 = vmatpush1.msra.mxu0 0.0
    %358 = vmatprep.subr.mxu0 0.0
    %359 = vmatpush1.msra.mxu0 0.0
    %360 = vmatprep.subr.mxu0 0.0
    %361 = vmatpush1.msra.mxu0 0.0
    %362 = vmatprep.subr.mxu0 0.0
    %363 = vmatpush1.msra.mxu0 0.0
    %364 = vmatprep.subr.mxu0 0.0
    %365 = vmatpush1.msra.mxu0 0.0
    %366 = vmatprep.subr.mxu0 0.0
    %367 = vmatpush1.msra.mxu0 0.0
    %368 = vmatprep.subr.mxu0 0.0
    %369 = vmatpush1.msra.mxu0 0.0
    %370 = vmatprep.subr.mxu0 0.0
    %371 = vmatpush1.msra.mxu0 0.0
    %372 = vmatprep.subr.mxu0 0.0
    %373 = vmatpush1.msra.mxu0 0.0
    %374 = vmatprep.subr.mxu0 0.0
    %375 = vmatpush1.msra.mxu0 0.0
    %376 = vmatprep.subr.mxu0 0.0
    %377 = vmatpush1.msra.mxu0 0.0
    %378 = vmatprep.subr.mxu0 0.0
    %379 = vmatpush1.msra.mxu0 0.0
    %380 = vmatprep.subr.mxu0 0.0
    %381 = vmatpush1.msra.mxu0 0.0
    %382 = vmatprep.mubr.f32.mxu0 0.0
    %383 = vmatmul.mubr.f32.gmra.mrb[0].mxu0 %v127
    %v384 = vpop.f32.mrb[0].mxu0
    %v385 = vadd.f32 0.0, %v384
    %v386 = vpop.f32.mrb[0].mxu0
    %387 = vmatprep.mubr.f32.mxu0 0.0
    %388 = vmatmul.mubr.f32.gmra.mrb[0].mxu0 %v130
    %v389 = vpop.f32.mrb[0].mxu0
    %v390 = vadd.f32 0.0, %v389
    %v391 = vpop.f32.mrb[0].mxu0
    %392 = vmatprep.mubr.f32.mxu0 0.0
    %393 = vmatmul.mubr.f32.gmra.mrb[0].mxu0 %v133
    %v394 = vpop.f32.mrb[0].mxu0
    %v395 = vadd.f32 0.0, %v394
    %v396 = vpop.f32.mrb[0].mxu0
    %397 = vmatprep.mubr.f32.mxu0 0.0
    %398 = vmatmul.mubr.f32.gmra.mrb[0].mxu0 %v136
    %v399 = vpop.f32.mrb[0].mxu0
    %v400 = vadd.f32 0.0, %v399
    %v401 = vpop.f32.mrb[0].mxu0
    %402 = vmatprep.mubr.f32.mxu0 0.0
    %403 = vmatmul.mubr.f32.gmra.mrb[0].mxu0 %v139
    %v404 = vpop.f32.mrb[0].mxu0
    %v405 = vadd.f32 0.0, %v404
    %v406 = vpop.f32.mrb[0].mxu0
    %407 = vmatprep.mubr.f32.mxu0 0.0
    %408 = vmatmul.mubr.f32.gmra.mrb[0].mxu0 %v142
    %v409 = vpop.f32.mrb[0].mxu0
    %v410 = vadd.f32 0.0, %v409
    %v411 = vpop.f32.mrb[0].mxu0
    %412 = vmatprep.mubr.f32.mxu0 0.0
    %413 = vmatmul.mubr.f32.gmra.mrb[0].mxu0 %v145
    %v414 = vpop.f32.mrb[0].mxu0
    %v415 = vadd.f32 0.0, %v414
    %v416 = vpop.f32.mrb[0].mxu0
    %417 = vmatprep.mubr.f32.mxu0 0.0
    %418 = vmatmul.mubr.f32.gmra.mrb[0].mxu0 %v148
    %v419 = vpop.f32.mrb[0].mxu0
    %v420 = vadd.f32 0.0, %v419
    %v421 = vpop.f32.mrb[0].mxu0
    %422 = vmatprep.mubr.f32.mxu0 0.0
    %423 = vmatmul.mubr.f32.gmra.mrb[0].mxu0 %v151
    %v424 = vpop.f32.mrb[0].mxu0
    %v425 = vadd.f32 0.0, %v424
    %v426 = vpop.f32.mrb[0].mxu0
    %427 = vmatprep.mubr.f32.mxu0 0.0
    %428 = vmatmul.mubr.f32.gmra.mrb[0].mxu0 %v154
    %v429 = vpop.f32.mrb[0].mxu0
    %v430 = vadd.f32 0.0, %v429
    %v431 = vpop.f32.mrb[0].mxu0
    %432 = vmatprep.mubr.f32.mxu0 0.0
    %433 = vmatmul.mubr.f32.gmra.mrb[0].mxu0 %v157
    %v434 = vpop.f32.mrb[0].mxu0
    %v435 = vadd.f32 0.0, %v434
    %v436 = vpop.f32.mrb[0].mxu0
    %437 = vmatprep.mubr.f32.mxu0 0.0
    %438 = vmatmul.mubr.f32.gmra.mrb[0].mxu0 %v160
    %v439 = vpop.f32.mrb[0].mxu0
    %v440 = vadd.f32 0.0, %v439
    %v441 = vpop.f32.mrb[0].mxu0
    %442 = vmatprep.mubr.f32.mxu0 0.0
    %443 = vmatmul.mubr.f32.gmra.mrb[0].mxu0 %v163
    %v444 = vpop.f32.mrb[0].mxu0
    %v445 = vadd.f32 0.0, %v444
    %v446 = vpop.f32.mrb[0].mxu0
    %447 = vmatprep.mubr.f32.mxu0 0.0
    %448 = vmatmul.mubr.f32.gmra.mrb[0].mxu0 %v166
    %v449 = vpop.f32.mrb[0].mxu0
    %v450 = vadd.f32 0.0, %v449
    %v451 = vpop.f32.mrb[0].mxu0
    %452 = vmatprep.mubr.f32.mxu0 0.0
    %453 = vmatmul.mubr.f32.gmra.mrb[0].mxu0 %v169
    %v454 = vpop.f32.mrb[0].mxu0
    %v455 = vadd.f32 0.0, %v454
    %v456 = vpop.f32.mrb[0].mxu0
    %457 = vmatprep.mubr.f32.mxu0 0.0
    %458 = vmatmul.mubr.f32.gmra.mrb[0].mxu0 %v172
    %v459 = vpop.f32.mrb[0].mxu0
    %v460 = vadd.f32 0.0, %v459
    %v461 = vpop.f32.mrb[0].mxu0
    %462 = vmatprep.mubr.f32.mxu0 0.0
    %463 = vmatmul.mubr.f32.gmra.mrb[0].mxu0 %v175
    %v464 = vpop.f32.mrb[0].mxu0
    %v465 = vadd.f32 0.0, %v464
    %v466 = vpop.f32.mrb[0].mxu0
    %467 = vmatprep.mubr.f32.mxu0 0.0
    %468 = vmatmul.mubr.f32.gmra.mrb[0].mxu0 %v178
    %v469 = vpop.f32.mrb[0].mxu0
    %v470 = vadd.f32 0.0, %v469
    %v471 = vpop.f32.mrb[0].mxu0
    %472 = vmatprep.mubr.f32.mxu0 0.0
    %473 = vmatmul.mubr.f32.gmra.mrb[0].mxu0 %v181
    %v474 = vpop.f32.mrb[0].mxu0
    %v475 = vadd.f32 0.0, %v474
    %v476 = vpop.f32.mrb[0].mxu0
    %477 = vmatprep.mubr.f32.mxu0 0.0
    %478 = vmatmul.mubr.f32.gmra.mrb[0].mxu0 %v184
    %v479 = vpop.f32.mrb[0].mxu0
    %v480 = vadd.f32 0.0, %v479
    %v481 = vpop.f32.mrb[0].mxu0
    %482 = vmatprep.mubr.f32.mxu0 0.0
    %483 = vmatmul.mubr.f32.gmra.mrb[0].mxu0 %v187
    %v484 = vpop.f32.mrb[0].mxu0
    %v485 = vadd.f32 0.0, %v484
    %v486 = vpop.f32.mrb[0].mxu0
    %487 = vmatprep.mubr.f32.mxu0 0.0
    %488 = vmatmul.mubr.f32.gmra.mrb[0].mxu0 %v190
    %v489 = vpop.f32.mrb[0].mxu0
    %v490 = vadd.f32 0.0, %v489
    %v491 = vpop.f32.mrb[0].mxu0
    %492 = vmatprep.mubr.f32.mxu0 0.0
    %493 = vmatmul.mubr.f32.gmra.mrb[0].mxu0 %v193
    %v494 = vpop.f32.mrb[0].mxu0
    %v495 = vadd.f32 0.0, %v494
    %v496 = vpop.f32.mrb[0].mxu0
    %497 = vmatprep.mubr.f32.mxu0 0.0
    %498 = vmatmul.mubr.f32.gmra.mrb[0].mxu0 %v196
    %v499 = vpop.f32.mrb[0].mxu0
    %v500 = vadd.f32 0.0, %v499
    %v501 = vpop.f32.mrb[0].mxu0
    %502 = vmatprep.mubr.f32.mxu0 0.0
    %503 = vmatmul.mubr.f32.gmra.mrb[0].mxu0 %v199
    %v504 = vpop.f32.mrb[0].mxu0
    %v505 = vadd.f32 0.0, %v504
    %v506 = vpop.f32.mrb[0].mxu0
    %507 = vmatprep.mubr.f32.mxu0 0.0
    %508 = vmatmul.mubr.f32.gmra.mrb[0].mxu0 %v202
    %v509 = vpop.f32.mrb[0].mxu0
    %v510 = vadd.f32 0.0, %v509
    %v511 = vpop.f32.mrb[0].mxu0
    %512 = vmatprep.mubr.f32.mxu0 0.0
    %513 = vmatmul.mubr.f32.gmra.mrb[0].mxu0 %v205
    %v514 = vpop.f32.mrb[0].mxu0
    %v515 = vadd.f32 0.0, %v514
    %v516 = vpop.f32.mrb[0].mxu0
    %517 = vmatprep.mubr.f32.mxu0 0.0
    %518 = vmatmul.mubr.f32.gmra.mrb[0].mxu0 %v208
    %v519 = vpop.f32.mrb[0].mxu0
    %v520 = vadd.f32 0.0, %v519
    %v521 = vpop.f32.mrb[0].mxu0
    %522 = vmatprep.mubr.f32.mxu0 0.0
    %523 = vmatmul.mubr.f32.gmra.mrb[0].mxu0 %v211
    %v524 = vpop.f32.mrb[0].mxu0
    %v525 = vadd.f32 0.0, %v524
    %v526 = vpop.f32.mrb[0].mxu0
    %527 = vmatprep.mubr.f32.mxu0 0.0
    %528 = vmatmul.mubr.f32.gmra.mrb[0].mxu0 %v214
    %v529 = vpop.f32.mrb[0].mxu0
    %v530 = vadd.f32 0.0, %v529
    %v531 = vpop.f32.mrb[0].mxu0
    %532 = vmatprep.mubr.f32.mxu0 0.0
    %533 = vmatmul.mubr.f32.gmra.mrb[0].mxu0 %v217
    %v534 = vpop.f32.mrb[0].mxu0
    %v535 = vadd.f32 0.0, %v534
    %v536 = vpop.f32.mrb[0].mxu0
    %537 = vmatprep.mubr.f32.mxu0 0.0
    %538 = vmatmul.mubr.f32.gmra.mrb[0].mxu0 %v220
    %v539 = vpop.f32.mrb[0].mxu0
    %v540 = vadd.f32 0.0, %v539
    %v541 = vpop.f32.mrb[0].mxu0
    %542 = vmatprep.mubr.f32.mxu0 0.0
    %543 = vmatmul.mubr.f32.gmra.mrb[0].mxu0 %v223
    %v544 = vpop.f32.mrb[0].mxu0
    %v545 = vadd.f32 0.0, %v544
    %v546 = vpop.f32.mrb[0].mxu0
    %547 = vmatprep.mubr.f32.mxu0 0.0
    %548 = vmatmul.mubr.f32.gmra.mrb[0].mxu0 %v226
    %v549 = vpop.f32.mrb[0].mxu0
    %v550 = vadd.f32 0.0, %v549
    %v551 = vpop.f32.mrb[0].mxu0
    %552 = vmatprep.mubr.f32.mxu0 0.0
    %553 = vmatmul.mubr.f32.gmra.mrb[0].mxu0 %v229
    %v554 = vpop.f32.mrb[0].mxu0
    %v555 = vadd.f32 0.0, %v554
    %v556 = vpop.f32.mrb[0].mxu0
    %557 = vmatprep.mubr.f32.mxu0 0.0
    %558 = vmatmul.mubr.f32.gmra.mrb[0].mxu0 %v232
    %v559 = vpop.f32.mrb[0].mxu0
    %v560 = vadd.f32 0.0, %v559
    %v561 = vpop.f32.mrb[0].mxu0
    %562 = vmatprep.mubr.f32.mxu0 0.0
    %563 = vmatmul.mubr.f32.gmra.mrb[0].mxu0 %v235
    %v564 = vpop.f32.mrb[0].mxu0
    %v565 = vadd.f32 0.0, %v564
    %v566 = vpop.f32.mrb[0].mxu0
    %567 = vmatprep.mubr.f32.mxu0 0.0
    %568 = vmatmul.mubr.f32.gmra.mrb[0].mxu0 %v238
    %v569 = vpop.f32.mrb[0].mxu0
    %v570 = vadd.f32 0.0, %v569
    %v571 = vpop.f32.mrb[0].mxu0
    %572 = vmatprep.mubr.f32.mxu0 0.0
    %573 = vmatmul.mubr.f32.gmra.mrb[0].mxu0 %v241
    %v574 = vpop.f32.mrb[0].mxu0
    %v575 = vadd.f32 0.0, %v574
    %v576 = vpop.f32.mrb[0].mxu0
    %577 = vmatprep.mubr.f32.mxu0 0.0
    %578 = vmatmul.mubr.f32.gmra.mrb[0].mxu0 %v244
    %v579 = vpop.f32.mrb[0].mxu0
    %v580 = vadd.f32 0.0, %v579
    %v581 = vpop.f32.mrb[0].mxu0
    %582 = vmatprep.mubr.f32.mxu0 0.0
    %583 = vmatmul.mubr.f32.gmra.mrb[0].mxu0 %v247
    %v584 = vpop.f32.mrb[0].mxu0
    %v585 = vadd.f32 0.0, %v584
    %v586 = vpop.f32.mrb[0].mxu0
    %587 = vmatprep.mubr.f32.mxu0 0.0
    %588 = vmatmul.mubr.f32.gmra.mrb[0].mxu0 %v250
    %v589 = vpop.f32.mrb[0].mxu0
    %v590 = vadd.f32 0.0, %v589
    %v591 = vpop.f32.mrb[0].mxu0
    %592 = vmatprep.mubr.f32.mxu0 0.0
    %593 = vmatmul.mubr.f32.gmra.mrb[0].mxu0 %v253
    %v594 = vpop.f32.mrb[0].mxu0
    %v595 = vadd.f32 0.0, %v594
    %v596 = vpop.f32.mrb[0].mxu0
    %597 = vmatprep.mubr.f32.mxu0 0.0
    %598 = vmatmul.mubr.f32.gmra.mrb[0].mxu0 %v256
    %v599 = vpop.f32.mrb[0].mxu0
    %v600 = vadd.f32 0.0, %v599
    %v601 = vpop.f32.mrb[0].mxu0
    %602 = vmatprep.mubr.f32.mxu0 0.0
    %603 = vmatmul.mubr.f32.gmra.mrb[0].mxu0 %v259
    %v604 = vpop.f32.mrb[0].mxu0
    %v605 = vadd.f32 0.0, %v604
    %v606 = vpop.f32.mrb[0].mxu0
    %607 = vmatprep.mubr.f32.mxu0 0.0
    %608 = vmatmul.mubr.f32.gmra.mrb[0].mxu0 %v262
    %v609 = vpop.f32.mrb[0].mxu0
    %v610 = vadd.f32 0.0, %v609
    %v611 = vpop.f32.mrb[0].mxu0
    %612 = vmatprep.mubr.f32.mxu0 0.0
    %613 = vmatmul.mubr.f32.gmra.mrb[0].mxu0 %v265
    %v614 = vpop.f32.mrb[0].mxu0
    %v615 = vadd.f32 0.0, %v614
    %v616 = vpop.f32.mrb[0].mxu0
    %617 = vmatprep.mubr.f32.mxu0 0.0
    %618 = vmatmul.mubr.f32.gmra.mrb[0].mxu0 %v268
    %v619 = vpop.f32.mrb[0].mxu0
    %v620 = vadd.f32 0.0, %v619
    %v621 = vpop.f32.mrb[0].mxu0
    %622 = vmatprep.mubr.f32.mxu0 0.0
    %623 = vmatmul.mubr.f32.gmra.mrb[0].mxu0 %v271
    %v624 = vpop.f32.mrb[0].mxu0
    %v625 = vadd.f32 0.0, %v624
    %v626 = vpop.f32.mrb[0].mxu0
    %627 = vmatprep.mubr.f32.mxu0 0.0
    %628 = vmatmul.mubr.f32.gmra.mrb[0].mxu0 %v274
    %v629 = vpop.f32.mrb[0].mxu0
    %v630 = vadd.f32 0.0, %v629
    %v631 = vpop.f32.mrb[0].mxu0
    %632 = vmatprep.mubr.f32.mxu0 0.0
    %633 = vmatmul.mubr.f32.gmra.mrb[0].mxu0 %v277
    %v634 = vpop.f32.mrb[0].mxu0
    %v635 = vadd.f32 0.0, %v634
    %v636 = vpop.f32.mrb[0].mxu0
    %637 = vmatprep.mubr.f32.mxu0 0.0
    %638 = vmatmul.mubr.f32.gmra.mrb[0].mxu0 %v280
    %v639 = vpop.f32.mrb[0].mxu0
    %v640 = vadd.f32 0.0, %v639
    %v641 = vpop.f32.mrb[0].mxu0
    %642 = vmatprep.mubr.f32.mxu0 0.0
    %643 = vmatmul.mubr.f32.gmra.mrb[0].mxu0 %v283
    %v644 = vpop.f32.mrb[0].mxu0
    %v645 = vadd.f32 0.0, %v644
    %v646 = vpop.f32.mrb[0].mxu0
    %647 = vmatprep.mubr.f32.mxu0 0.0
    %648 = vmatmul.mubr.f32.gmra.mrb[0].mxu0 %v286
    %v649 = vpop.f32.mrb[0].mxu0
    %v650 = vadd.f32 0.0, %v649
    %v651 = vpop.f32.mrb[0].mxu0
    %652 = vmatprep.mubr.f32.mxu0 0.0
    %653 = vmatmul.mubr.f32.gmra.mrb[0].mxu0 %v289
    %v654 = vpop.f32.mrb[0].mxu0
    %v655 = vadd.f32 0.0, %v654
    %v656 = vpop.f32.mrb[0].mxu0
    %657 = vmatprep.mubr.f32.mxu0 0.0
    %658 = vmatmul.mubr.f32.gmra.mrb[0].mxu0 %v292
    %v659 = vpop.f32.mrb[0].mxu0
    %v660 = vadd.f32 0.0, %v659
    %v661 = vpop.f32.mrb[0].mxu0
    %662 = vmatprep.mubr.f32.mxu0 0.0
    %663 = vmatmul.mubr.f32.gmra.mrb[0].mxu0 %v295
    %v664 = vpop.f32.mrb[0].mxu0
    %v665 = vadd.f32 0.0, %v664
    %v666 = vpop.f32.mrb[0].mxu0
    %667 = vmatprep.mubr.f32.mxu0 0.0
    %668 = vmatmul.mubr.f32.gmra.mrb[0].mxu0 %v298
    %v669 = vpop.f32.mrb[0].mxu0
    %v670 = vadd.f32 0.0, %v669
    %v671 = vpop.f32.mrb[0].mxu0
    %672 = vmatprep.mubr.f32.mxu0 0.0
    %673 = vmatmul.mubr.f32.gmra.mrb[0].mxu0 %v301
    %v674 = vpop.f32.mrb[0].mxu0
    %v675 = vadd.f32 0.0, %v674
    %v676 = vpop.f32.mrb[0].mxu0
    %677 = vmatprep.mubr.f32.mxu0 0.0
    %678 = vmatmul.mubr.f32.gmra.mrb[0].mxu0 %v304
    %v679 = vpop.f32.mrb[0].mxu0
    %v680 = vadd.f32 0.0, %v679
    %v681 = vpop.f32.mrb[0].mxu0
    %682 = vmatprep.mubr.f32.mxu0 0.0
    %683 = vmatmul.mubr.f32.gmra.mrb[0].mxu0 %v307
    %v684 = vpop.f32.mrb[0].mxu0
    %v685 = vadd.f32 0.0, %v684
    %v686 = vpop.f32.mrb[0].mxu0
    %687 = vmatprep.mubr.f32.mxu0 0.0
    %688 = vmatmul.mubr.f32.gmra.mrb[0].mxu0 %v310
    %v689 = vpop.f32.mrb[0].mxu0
    %v690 = vadd.f32 0.0, %v689
    %v691 = vpop.f32.mrb[0].mxu0
    %692 = vmatprep.mubr.f32.mxu0 0.0
    %693 = vmatmul.mubr.f32.gmra.mrb[0].mxu0 %v313
    %v694 = vpop.f32.mrb[0].mxu0
    %v695 = vadd.f32 0.0, %v694
    %v696 = vpop.f32.mrb[0].mxu0
    %697 = vmatprep.mubr.f32.mxu0 0.0
    %698 = vmatmul.mubr.f32.gmra.mrb[0].mxu0 %v316
    %v699 = vpop.f32.mrb[0].mxu0
    %v700 = vadd.f32 0.0, %v699
    %v701 = vpop.f32.mrb[0].mxu0
    %702 = vdwg.mxu0
    %v703 = vld [vmem:[%s1] sm:$0xff]
    %v704 = vld [vmem:[%s1 + $0x8] sm:$0xff]
    %705 = vmatprep.subr.mxu0 0.0
    %706 = vmatpush1.msra.mxu0 %v703
    %707 = vmatprep.subr.mxu0 0.0
    %708 = vmatpush1.msra.mxu0 %v704
    %709 = vmatprep.subr.mxu0 0.0
    %710 = vmatpush1.msra.mxu0 0.0
    %711 = vmatprep.subr.mxu0 0.0
    %712 = vmatpush1.msra.mxu0 0.0
    %713 = vmatprep.subr.mxu0 0.0
    %714 = vmatpush1.msra.mxu0 0.0
    %715 = vmatprep.subr.mxu0 0.0
    %716 = vmatpush1.msra.mxu0 0.0
    %717 = vmatprep.subr.mxu0 0.0
    %718 = vmatpush1.msra.mxu0 0.0
    %719 = vmatprep.subr.mxu0 0.0
    %720 = vmatpush1.msra.mxu0 0.0
    %721 = vmatprep.subr.mxu0 0.0
    %722 = vmatpush1.msra.mxu0 0.0
    %723 = vmatprep.subr.mxu0 0.0
    %724 = vmatpush1.msra.mxu0 0.0
    %725 = vmatprep.subr.mxu0 0.0
    %726 = vmatpush1.msra.mxu0 0.0
    %727 = vmatprep.subr.mxu0 0.0
    %728 = vmatpush1.msra.mxu0 0.0
    %729 = vmatprep.subr.mxu0 0.0
    %730 = vmatpush1.msra.mxu0 0.0
    %731 = vmatprep.subr.mxu0 0.0
    %732 = vmatpush1.msra.mxu0 0.0
    %733 = vmatprep.subr.mxu0 0.0
    %734 = vmatpush1.msra.mxu0 0.0
    %735 = vmatprep.subr.mxu0 0.0
    %736 = vmatpush1.msra.mxu0 0.0
    %737 = vmatprep.subr.mxu0 0.0
    %738 = vmatpush1.msra.mxu0 0.0
    %739 = vmatprep.subr.mxu0 0.0
    %740 = vmatpush1.msra.mxu0 0.0
    %741 = vmatprep.subr.mxu0 0.0
    %742 = vmatpush1.msra.mxu0 0.0
    %743 = vmatprep.subr.mxu0 0.0
    %744 = vmatpush1.msra.mxu0 0.0
    %745 = vmatprep.subr.mxu0 0.0
    %746 = vmatpush1.msra.mxu0 0.0
    %747 = vmatprep.subr.mxu0 0.0
    %748 = vmatpush1.msra.mxu0 0.0
    %749 = vmatprep.subr.mxu0 0.0
    %750 = vmatpush1.msra.mxu0 0.0
    %751 = vmatprep.subr.mxu0 0.0
    %752 = vmatpush1.msra.mxu0 0.0
    %753 = vmatprep.subr.mxu0 0.0
    %754 = vmatpush1.msra.mxu0 0.0
    %755 = vmatprep.subr.mxu0 0.0
    %756 = vmatpush1.msra.mxu0 0.0
    %757 = vmatprep.subr.mxu0 0.0
    %758 = vmatpush1.msra.mxu0 0.0
    %759 = vmatprep.subr.mxu0 0.0
    %760 = vmatpush1.msra.mxu0 0.0
    %761 = vmatprep.subr.mxu0 0.0
    %762 = vmatpush1.msra.mxu0 0.0
    %763 = vmatprep.subr.mxu0 0.0
    %764 = vmatpush1.msra.mxu0 0.0
    %765 = vmatprep.subr.mxu0 0.0
    %766 = vmatpush1.msra.mxu0 0.0
    %767 = vmatprep.subr.mxu0 0.0
    %768 = vmatpush1.msra.mxu0 0.0
    %769 = vmatprep.mubr.f32.mxu0 0.0
    %770 = vmatmul.mubr.f32.gmra.mrb[0].mxu0 %v127
    %v771 = vpop.f32.mrb[0].mxu0
    %v772 = vadd.f32 0.0, %v771
    %v773 = vpop.f32.mrb[0].mxu0
    %774 = vmatprep.mubr.f32.mxu0 0.0
    %775 = vmatmul.mubr.f32.gmra.mrb[0].mxu0 %v130
    %v776 = vpop.f32.mrb[0].mxu0
    %v777 = vadd.f32 0.0, %v776
    %v778 = vpop.f32.mrb[0].mxu0
    %779 = vmatprep.mubr.f32.mxu0 0.0
    %780 = vmatmul.mubr.f32.gmra.mrb[0].mxu0 %v133
    %v781 = vpop.f32.mrb[0].mxu0
    %v782 = vadd.f32 0.0, %v781
    %v783 = vpop.f32.mrb[0].mxu0
    %784 = vmatprep.mubr.f32.mxu0 0.0
    %785 = vmatmul.mubr.f32.gmra.mrb[0].mxu0 %v136
    %v786 = vpop.f32.mrb[0].mxu0
    %v787 = vadd.f32 0.0, %v786
    %v788 = vpop.f32.mrb[0].mxu0
    %789 = vmatprep.mubr.f32.mxu0 0.0
    %790 = vmatmul.mubr.f32.gmra.mrb[0].mxu0 %v139
    %v791 = vpop.f32.mrb[0].mxu0
    %v792 = vadd.f32 0.0, %v791
    %v793 = vpop.f32.mrb[0].mxu0
    %794 = vmatprep.mubr.f32.mxu0 0.0
    %795 = vmatmul.mubr.f32.gmra.mrb[0].mxu0 %v142
    %v796 = vpop.f32.mrb[0].mxu0
    %v797 = vadd.f32 0.0, %v796
    %v798 = vpop.f32.mrb[0].mxu0
    %799 = vmatprep.mubr.f32.mxu0 0.0
    %800 = vmatmul.mubr.f32.gmra.mrb[0].mxu0 %v145
    %v801 = vpop.f32.mrb[0].mxu0
    %v802 = vadd.f32 0.0, %v801
    %v803 = vpop.f32.mrb[0].mxu0
    %804 = vmatprep.mubr.f32.mxu0 0.0
    %805 = vmatmul.mubr.f32.gmra.mrb[0].mxu0 %v148
    %v806 = vpop.f32.mrb[0].mxu0
    %v807 = vadd.f32 0.0, %v806
    %v808 = vpop.f32.mrb[0].mxu0
    %809 = vmatprep.mubr.f32.mxu0 0.0
    %810 = vmatmul.mubr.f32.gmra.mrb[0].mxu0 %v151
    %v811 = vpop.f32.mrb[0].mxu0
    %v812 = vadd.f32 0.0, %v811
    %v813 = vpop.f32.mrb[0].mxu0
    %814 = vmatprep.mubr.f32.mxu0 0.0
    %815 = vmatmul.mubr.f32.gmra.mrb[0].mxu0 %v154
    %v816 = vpop.f32.mrb[0].mxu0
    %v817 = vadd.f32 0.0, %v816
    %v818 = vpop.f32.mrb[0].mxu0
    %819 = vmatprep.mubr.f32.mxu0 0.0
    %820 = vmatmul.mubr.f32.gmra.mrb[0].mxu0 %v157
    %v821 = vpop.f32.mrb[0].mxu0
    %v822 = vadd.f32 0.0, %v821
    %v823 = vpop.f32.mrb[0].mxu0
    %824 = vmatprep.mubr.f32.mxu0 0.0
    %825 = vmatmul.mubr.f32.gmra.mrb[0].mxu0 %v160
    %v826 = vpop.f32.mrb[0].mxu0
    %v827 = vadd.f32 0.0, %v826
    %v828 = vpop.f32.mrb[0].mxu0
    %829 = vmatprep.mubr.f32.mxu0 0.0
    %830 = vmatmul.mubr.f32.gmra.mrb[0].mxu0 %v163
    %v831 = vpop.f32.mrb[0].mxu0
    %v832 = vadd.f32 0.0, %v831
    %v833 = vpop.f32.mrb[0].mxu0
    %834 = vmatprep.mubr.f32.mxu0 0.0
    %835 = vmatmul.mubr.f32.gmra.mrb[0].mxu0 %v166
    %v836 = vpop.f32.mrb[0].mxu0
    %v837 = vadd.f32 0.0, %v836
    %v838 = vpop.f32.mrb[0].mxu0
    %839 = vmatprep.mubr.f32.mxu0 0.0
    %840 = vmatmul.mubr.f32.gmra.mrb[0].mxu0 %v169
    %v841 = vpop.f32.mrb[0].mxu0
    %v842 = vadd.f32 0.0, %v841
    %v843 = vpop.f32.mrb[0].mxu0
    %844 = vmatprep.mubr.f32.mxu0 0.0
    %845 = vmatmul.mubr.f32.gmra.mrb[0].mxu0 %v172
    %v846 = vpop.f32.mrb[0].mxu0
    %v847 = vadd.f32 0.0, %v846
    %v848 = vpop.f32.mrb[0].mxu0
    %849 = vmatprep.mubr.f32.mxu0 0.0
    %850 = vmatmul.mubr.f32.gmra.mrb[0].mxu0 %v175
    %v851 = vpop.f32.mrb[0].mxu0
    %v852 = vadd.f32 0.0, %v851
    %v853 = vpop.f32.mrb[0].mxu0
    %854 = vmatprep.mubr.f32.mxu0 0.0
    %855 = vmatmul.mubr.f32.gmra.mrb[0].mxu0 %v178
    %v856 = vpop.f32.mrb[0].mxu0
    %v857 = vadd.f32 0.0, %v856
    %v858 = vpop.f32.mrb[0].mxu0
    %859 = vmatprep.mubr.f32.mxu0 0.0
    %860 = vmatmul.mubr.f32.gmra.mrb[0].mxu0 %v181
    %v861 = vpop.f32.mrb[0].mxu0
    %v862 = vadd.f32 0.0, %v861
    %v863 = vpop.f32.mrb[0].mxu0
    %864 = vmatprep.mubr.f32.mxu0 0.0
    %865 = vmatmul.mubr.f32.gmra.mrb[0].mxu0 %v184
    %v866 = vpop.f32.mrb[0].mxu0
    %v867 = vadd.f32 0.0, %v866
    %v868 = vpop.f32.mrb[0].mxu0
    %869 = vmatprep.mubr.f32.mxu0 0.0
    %870 = vmatmul.mubr.f32.gmra.mrb[0].mxu0 %v187
    %v871 = vpop.f32.mrb[0].mxu0
    %v872 = vadd.f32 0.0, %v871
    %v873 = vpop.f32.mrb[0].mxu0
    %874 = vmatprep.mubr.f32.mxu0 0.0
    %875 = vmatmul.mubr.f32.gmra.mrb[0].mxu0 %v190
    %v876 = vpop.f32.mrb[0].mxu0
    %v877 = vadd.f32 0.0, %v876
    %v878 = vpop.f32.mrb[0].mxu0
    %879 = vmatprep.mubr.f32.mxu0 0.0
    %880 = vmatmul.mubr.f32.gmra.mrb[0].mxu0 %v193
    %v881 = vpop.f32.mrb[0].mxu0
    %v882 = vadd.f32 0.0, %v881
    %v883 = vpop.f32.mrb[0].mxu0
    %884 = vmatprep.mubr.f32.mxu0 0.0
    %885 = vmatmul.mubr.f32.gmra.mrb[0].mxu0 %v196
    %v886 = vpop.f32.mrb[0].mxu0
    %v887 = vadd.f32 0.0, %v886
    %v888 = vpop.f32.mrb[0].mxu0
    %889 = vmatprep.mubr.f32.mxu0 0.0
    %890 = vmatmul.mubr.f32.gmra.mrb[0].mxu0 %v199
    %v891 = vpop.f32.mrb[0].mxu0
    %v892 = vadd.f32 0.0, %v891
    %v893 = vpop.f32.mrb[0].mxu0
    %894 = vmatprep.mubr.f32.mxu0 0.0
    %895 = vmatmul.mubr.f32.gmra.mrb[0].mxu0 %v202
    %v896 = vpop.f32.mrb[0].mxu0
    %v897 = vadd.f32 0.0, %v896
    %v898 = vpop.f32.mrb[0].mxu0
    %899 = vmatprep.mubr.f32.mxu0 0.0
    %900 = vmatmul.mubr.f32.gmra.mrb[0].mxu0 %v205
    %v901 = vpop.f32.mrb[0].mxu0
    %v902 = vadd.f32 0.0, %v901
    %v903 = vpop.f32.mrb[0].mxu0
    %904 = vmatprep.mubr.f32.mxu0 0.0
    %905 = vmatmul.mubr.f32.gmra.mrb[0].mxu0 %v208
    %v906 = vpop.f32.mrb[0].mxu0
    %v907 = vadd.f32 0.0, %v906
    %v908 = vpop.f32.mrb[0].mxu0
    %909 = vmatprep.mubr.f32.mxu0 0.0
    %910 = vmatmul.mubr.f32.gmra.mrb[0].mxu0 %v211
    %v911 = vpop.f32.mrb[0].mxu0
    %v912 = vadd.f32 0.0, %v911
    %v913 = vpop.f32.mrb[0].mxu0
    %914 = vmatprep.mubr.f32.mxu0 0.0
    %915 = vmatmul.mubr.f32.gmra.mrb[0].mxu0 %v214
    %v916 = vpop.f32.mrb[0].mxu0
    %v917 = vadd.f32 0.0, %v916
    %v918 = vpop.f32.mrb[0].mxu0
    %919 = vmatprep.mubr.f32.mxu0 0.0
    %920 = vmatmul.mubr.f32.gmra.mrb[0].mxu0 %v217
    %v921 = vpop.f32.mrb[0].mxu0
    %v922 = vadd.f32 0.0, %v921
    %v923 = vpop.f32.mrb[0].mxu0
    %924 = vmatprep.mubr.f32.mxu0 0.0
    %925 = vmatmul.mubr.f32.gmra.mrb[0].mxu0 %v220
    %v926 = vpop.f32.mrb[0].mxu0
    %v927 = vadd.f32 0.0, %v926
    %v928 = vpop.f32.mrb[0].mxu0
    %929 = vmatprep.mubr.f32.mxu0 0.0
    %930 = vmatmul.mubr.f32.gmra.mrb[0].mxu0 %v223
    %v931 = vpop.f32.mrb[0].mxu0
    %v932 = vadd.f32 0.0, %v931
    %v933 = vpop.f32.mrb[0].mxu0
    %934 = vmatprep.mubr.f32.mxu0 0.0
    %935 = vmatmul.mubr.f32.gmra.mrb[0].mxu0 %v226
    %v936 = vpop.f32.mrb[0].mxu0
    %v937 = vadd.f32 0.0, %v936
    %v938 = vpop.f32.mrb[0].mxu0
    %939 = vmatprep.mubr.f32.mxu0 0.0
    %940 = vmatmul.mubr.f32.gmra.mrb[0].mxu0 %v229
    %v941 = vpop.f32.mrb[0].mxu0
    %v942 = vadd.f32 0.0, %v941
    %v943 = vpop.f32.mrb[0].mxu0
    %944 = vmatprep.mubr.f32.mxu0 0.0
    %945 = vmatmul.mubr.f32.gmra.mrb[0].mxu0 %v232
    %v946 = vpop.f32.mrb[0].mxu0
    %v947 = vadd.f32 0.0, %v946
    %v948 = vpop.f32.mrb[0].mxu0
    %949 = vmatprep.mubr.f32.mxu0 0.0
    %950 = vmatmul.mubr.f32.gmra.mrb[0].mxu0 %v235
    %v951 = vpop.f32.mrb[0].mxu0
    %v952 = vadd.f32 0.0, %v951
    %v953 = vpop.f32.mrb[0].mxu0
    %954 = vmatprep.mubr.f32.mxu0 0.0
    %955 = vmatmul.mubr.f32.gmra.mrb[0].mxu0 %v238
    %v956 = vpop.f32.mrb[0].mxu0
    %v957 = vadd.f32 0.0, %v956
    %v958 = vpop.f32.mrb[0].mxu0
    %959 = vmatprep.mubr.f32.mxu0 0.0
    %960 = vmatmul.mubr.f32.gmra.mrb[0].mxu0 %v241
    %v961 = vpop.f32.mrb[0].mxu0
    %v962 = vadd.f32 0.0, %v961
    %v963 = vpop.f32.mrb[0].mxu0
    %964 = vmatprep.mubr.f32.mxu0 0.0
    %965 = vmatmul.mubr.f32.gmra.mrb[0].mxu0 %v244
    %v966 = vpop.f32.mrb[0].mxu0
    %v967 = vadd.f32 0.0, %v966
    %v968 = vpop.f32.mrb[0].mxu0
    %969 = vmatprep.mubr.f32.mxu0 0.0
    %970 = vmatmul.mubr.f32.gmra.mrb[0].mxu0 %v247
    %v971 = vpop.f32.mrb[0].mxu0
    %v972 = vadd.f32 0.0, %v971
    %v973 = vpop.f32.mrb[0].mxu0
    %974 = vmatprep.mubr.f32.mxu0 0.0
    %975 = vmatmul.mubr.f32.gmra.mrb[0].mxu0 %v250
    %v976 = vpop.f32.mrb[0].mxu0
    %v977 = vadd.f32 0.0, %v976
    %v978 = vpop.f32.mrb[0].mxu0
    %979 = vmatprep.mubr.f32.mxu0 0.0
    %980 = vmatmul.mubr.f32.gmra.mrb[0].mxu0 %v253
    %v981 = vpop.f32.mrb[0].mxu0
    %v982 = vadd.f32 0.0, %v981
    %v983 = vpop.f32.mrb[0].mxu0
    %984 = vmatprep.mubr.f32.mxu0 0.0
    %985 = vmatmul.mubr.f32.gmra.mrb[0].mxu0 %v256
    %v986 = vpop.f32.mrb[0].mxu0
    %v987 = vadd.f32 0.0, %v986
    %v988 = vpop.f32.mrb[0].mxu0
    %989 = vmatprep.mubr.f32.mxu0 0.0
    %990 = vmatmul.mubr.f32.gmra.mrb[0].mxu0 %v259
    %v991 = vpop.f32.mrb[0].mxu0
    %v992 = vadd.f32 0.0, %v991
    %v993 = vpop.f32.mrb[0].mxu0
    %994 = vmatprep.mubr.f32.mxu0 0.0
    %995 = vmatmul.mubr.f32.gmra.mrb[0].mxu0 %v262
    %v996 = vpop.f32.mrb[0].mxu0
    %v997 = vadd.f32 0.0, %v996
    %v998 = vpop.f32.mrb[0].mxu0
    %999 = vmatprep.mubr.f32.mxu0 0.0
    %1000 = vmatmul.mubr.f32.gmra.mrb[0].mxu0 %v265
    %v1001 = vpop.f32.mrb[0].mxu0
    %v1002 = vadd.f32 0.0, %v1001
    %v1003 = vpop.f32.mrb[0].mxu0
    %1004 = vmatprep.mubr.f32.mxu0 0.0
    %1005 = vmatmul.mubr.f32.gmra.mrb[0].mxu0 %v268
    %v1006 = vpop.f32.mrb[0].mxu0
    %v1007 = vadd.f32 0.0, %v1006
    %v1008 = vpop.f32.mrb[0].mxu0
    %1009 = vmatprep.mubr.f32.mxu0 0.0
    %1010 = vmatmul.mubr.f32.gmra.mrb[0].mxu0 %v271
    %v1011 = vpop.f32.mrb[0].mxu0
    %v1012 = vadd.f32 0.0, %v1011
    %v1013 = vpop.f32.mrb[0].mxu0
    %1014 = vmatprep.mubr.f32.mxu0 0.0
    %1015 = vmatmul.mubr.f32.gmra.mrb[0].mxu0 %v274
    %v1016 = vpop.f32.mrb[0].mxu0
    %v1017 = vadd.f32 0.0, %v1016
    %v1018 = vpop.f32.mrb[0].mxu0
    %1019 = vmatprep.mubr.f32.mxu0 0.0
    %1020 = vmatmul.mubr.f32.gmra.mrb[0].mxu0 %v277
    %v1021 = vpop.f32.mrb[0].mxu0
    %v1022 = vadd.f32 0.0, %v1021
    %v1023 = vpop.f32.mrb[0].mxu0
    %1024 = vmatprep.mubr.f32.mxu0 0.0
    %1025 = vmatmul.mubr.f32.gmra.mrb[0].mxu0 %v280
    %v1026 = vpop.f32.mrb[0].mxu0
    %v1027 = vadd.f32 0.0, %v1026
    %v1028 = vpop.f32.mrb[0].mxu0
    %1029 = vmatprep.mubr.f32.mxu0 0.0
    %1030 = vmatmul.mubr.f32.gmra.mrb[0].mxu0 %v283
    %v1031 = vpop.f32.mrb[0].mxu0
    %v1032 = vadd.f32 0.0, %v1031
    %v1033 = vpop.f32.mrb[0].mxu0
    %1034 = vmatprep.mubr.f32.mxu0 0.0
    %1035 = vmatmul.mubr.f32.gmra.mrb[0].mxu0 %v286
    %v1036 = vpop.f32.mrb[0].mxu0
    %v1037 = vadd.f32 0.0, %v1036
    %v1038 = vpop.f32.mrb[0].mxu0
    %1039 = vmatprep.mubr.f32.mxu0 0.0
    %1040 = vmatmul.mubr.f32.gmra.mrb[0].mxu0 %v289
    %v1041 = vpop.f32.mrb[0].mxu0
    %v1042 = vadd.f32 0.0, %v1041
    %v1043 = vpop.f32.mrb[0].mxu0
    %1044 = vmatprep.mubr.f32.mxu0 0.0
    %1045 = vmatmul.mubr.f32.gmra.mrb[0].mxu0 %v292
    %v1046 = vpop.f32.mrb[0].mxu0
    %v1047 = vadd.f32 0.0, %v1046
    %v1048 = vpop.f32.mrb[0].mxu0
    %1049 = vmatprep.mubr.f32.mxu0 0.0
    %1050 = vmatmul.mubr.f32.gmra.mrb[0].mxu0 %v295
    %v1051 = vpop.f32.mrb[0].mxu0
    %v1052 = vadd.f32 0.0, %v1051
    %v1053 = vpop.f32.mrb[0].mxu0
    %1054 = vmatprep.mubr.f32.mxu0 0.0
    %1055 = vmatmul.mubr.f32.gmra.mrb[0].mxu0 %v298
    %v1056 = vpop.f32.mrb[0].mxu0
    %v1057 = vadd.f32 0.0, %v1056
    %v1058 = vpop.f32.mrb[0].mxu0
    %1059 = vmatprep.mubr.f32.mxu0 0.0
    %1060 = vmatmul.mubr.f32.gmra.mrb[0].mxu0 %v301
    %v1061 = vpop.f32.mrb[0].mxu0
    %v1062 = vadd.f32 0.0, %v1061
    %v1063 = vpop.f32.mrb[0].mxu0
    %1064 = vmatprep.mubr.f32.mxu0 0.0
    %1065 = vmatmul.mubr.f32.gmra.mrb[0].mxu0 %v304
    %v1066 = vpop.f32.mrb[0].mxu0
    %v1067 = vadd.f32 0.0, %v1066
    %v1068 = vpop.f32.mrb[0].mxu0
    %1069 = vmatprep.mubr.f32.mxu0 0.0
    %1070 = vmatmul.mubr.f32.gmra.mrb[0].mxu0 %v307
    %v1071 = vpop.f32.mrb[0].mxu0
    %v1072 = vadd.f32 0.0, %v1071
    %v1073 = vpop.f32.mrb[0].mxu0
    %1074 = vmatprep.mubr.f32.mxu0 0.0
    %1075 = vmatmul.mubr.f32.gmra.mrb[0].mxu0 %v310
    %v1076 = vpop.f32.mrb[0].mxu0
    %v1077 = vadd.f32 0.0, %v1076
    %v1078 = vpop.f32.mrb[0].mxu0
    %1079 = vmatprep.mubr.f32.mxu0 0.0
    %1080 = vmatmul.mubr.f32.gmra.mrb[0].mxu0 %v313
    %v1081 = vpop.f32.mrb[0].mxu0
    %v1082 = vadd.f32 0.0, %v1081
    %v1083 = vpop.f32.mrb[0].mxu0
    %1084 = vmatprep.mubr.f32.mxu0 0.0
    %1085 = vmatmul.mubr.f32.gmra.mrb[0].mxu0 %v316
    %v1086 = vpop.f32.mrb[0].mxu0
    %v1087 = vadd.f32 0.0, %v1086
    %v1088 = vpop.f32.mrb[0].mxu0
    %1089 = vdwg.mxu0
    %v1090 = vld [vmem:[%s11] sm:$0x1]
    %v1091 = vld [vmem:[%s12] sm:$0x1]
    %vm1092 = vcmask 261120
    %v1093 = vsel %vm1092, %v385, 0.0
    %v1094 = vsel %vm1092, %v390, 0.0
    %v1095 = vadd.f32 %v1093, %v1094
    %v1096 = vsel %vm1092, %v395, 0.0
    %v1097 = vadd.f32 %v1095, %v1096
    %v1098 = vsel %vm1092, %v400, 0.0
    %v1099 = vadd.f32 %v1097, %v1098
    %v1100 = vsel %vm1092, %v405, 0.0
    %v1101 = vadd.f32 %v1099, %v1100
    %v1102 = vsel %vm1092, %v410, 0.0
    %v1103 = vadd.f32 %v1101, %v1102
    %v1104 = vsel %vm1092, %v415, 0.0
    %v1105 = vadd.f32 %v1103, %v1104
    %v1106 = vsel %vm1092, %v420, 0.0
    %v1107 = vadd.f32 %v1105, %v1106
    %v1108 = vsel %vm1092, %v425, 0.0
    %v1109 = vadd.f32 %v1107, %v1108
    %v1110 = vsel %vm1092, %v430, 0.0
    %v1111 = vadd.f32 %v1109, %v1110
    %v1112 = vsel %vm1092, %v435, 0.0
    %v1113 = vadd.f32 %v1111, %v1112
    %v1114 = vsel %vm1092, %v440, 0.0
    %v1115 = vadd.f32 %v1113, %v1114
    %v1116 = vsel %vm1092, %v445, 0.0
    %v1117 = vadd.f32 %v1115, %v1116
    %v1118 = vsel %vm1092, %v450, 0.0
    %v1119 = vadd.f32 %v1117, %v1118
    %v1120 = vsel %vm1092, %v455, 0.0
    %v1121 = vadd.f32 %v1119, %v1120
    %v1122 = vsel %vm1092, %v460, 0.0
    %v1123 = vadd.f32 %v1121, %v1122
    %v1124 = vsel %vm1092, %v465, 0.0
    %v1125 = vadd.f32 %v1123, %v1124
    %v1126 = vsel %vm1092, %v470, 0.0
    %v1127 = vadd.f32 %v1125, %v1126
    %v1128 = vsel %vm1092, %v475, 0.0
    %v1129 = vadd.f32 %v1127, %v1128
    %v1130 = vsel %vm1092, %v480, 0.0
    %v1131 = vadd.f32 %v1129, %v1130
    %v1132 = vsel %vm1092, %v485, 0.0
    %v1133 = vadd.f32 %v1131, %v1132
    %v1134 = vsel %vm1092, %v490, 0.0
    %v1135 = vadd.f32 %v1133, %v1134
    %v1136 = vsel %vm1092, %v495, 0.0
    %v1137 = vadd.f32 %v1135, %v1136
    %v1138 = vsel %vm1092, %v500, 0.0
    %v1139 = vadd.f32 %v1137, %v1138
    %v1140 = vsel %vm1092, %v505, 0.0
    %v1141 = vadd.f32 %v1139, %v1140
    %v1142 = vsel %vm1092, %v510, 0.0
    %v1143 = vadd.f32 %v1141, %v1142
    %v1144 = vsel %vm1092, %v515, 0.0
    %v1145 = vadd.f32 %v1143, %v1144
    %v1146 = vsel %vm1092, %v520, 0.0
    %v1147 = vadd.f32 %v1145, %v1146
    %v1148 = vsel %vm1092, %v525, 0.0
    %v1149 = vadd.f32 %v1147, %v1148
    %v1150 = vsel %vm1092, %v530, 0.0
    %v1151 = vadd.f32 %v1149, %v1150
    %v1152 = vsel %vm1092, %v535, 0.0
    %v1153 = vadd.f32 %v1151, %v1152
    %v1154 = vsel %vm1092, %v540, 0.0
    %v1155 = vadd.f32 %v1153, %v1154
    %v1156 = vsel %vm1092, %v545, 0.0
    %v1157 = vadd.f32 %v1155, %v1156
    %v1158 = vsel %vm1092, %v550, 0.0
    %v1159 = vadd.f32 %v1157, %v1158
    %v1160 = vsel %vm1092, %v555, 0.0
    %v1161 = vadd.f32 %v1159, %v1160
    %v1162 = vsel %vm1092, %v560, 0.0
    %v1163 = vadd.f32 %v1161, %v1162
    %v1164 = vsel %vm1092, %v565, 0.0
    %v1165 = vadd.f32 %v1163, %v1164
    %v1166 = vsel %vm1092, %v570, 0.0
    %v1167 = vadd.f32 %v1165, %v1166
    %v1168 = vsel %vm1092, %v575, 0.0
    %v1169 = vadd.f32 %v1167, %v1168
    %v1170 = vsel %vm1092, %v580, 0.0
    %v1171 = vadd.f32 %v1169, %v1170
    %v1172 = vsel %vm1092, %v585, 0.0
    %v1173 = vadd.f32 %v1171, %v1172
    %v1174 = vsel %vm1092, %v590, 0.0
    %v1175 = vadd.f32 %v1173, %v1174
    %v1176 = vsel %vm1092, %v595, 0.0
    %v1177 = vadd.f32 %v1175, %v1176
    %v1178 = vsel %vm1092, %v600, 0.0
    %v1179 = vadd.f32 %v1177, %v1178
    %v1180 = vsel %vm1092, %v605, 0.0
    %v1181 = vadd.f32 %v1179, %v1180
    %v1182 = vsel %vm1092, %v610, 0.0
    %v1183 = vadd.f32 %v1181, %v1182
    %v1184 = vsel %vm1092, %v615, 0.0
    %v1185 = vadd.f32 %v1183, %v1184
    %v1186 = vsel %vm1092, %v620, 0.0
    %v1187 = vadd.f32 %v1185, %v1186
    %v1188 = vsel %vm1092, %v625, 0.0
    %v1189 = vadd.f32 %v1187, %v1188
    %v1190 = vsel %vm1092, %v630, 0.0
    %v1191 = vadd.f32 %v1189, %v1190
    %v1192 = vsel %vm1092, %v635, 0.0
    %v1193 = vadd.f32 %v1191, %v1192
    %v1194 = vsel %vm1092, %v640, 0.0
    %v1195 = vadd.f32 %v1193, %v1194
    %v1196 = vsel %vm1092, %v645, 0.0
    %v1197 = vadd.f32 %v1195, %v1196
    %v1198 = vsel %vm1092, %v650, 0.0
    %v1199 = vadd.f32 %v1197, %v1198
    %v1200 = vsel %vm1092, %v655, 0.0
    %v1201 = vadd.f32 %v1199, %v1200
    %v1202 = vsel %vm1092, %v660, 0.0
    %v1203 = vadd.f32 %v1201, %v1202
    %v1204 = vsel %vm1092, %v665, 0.0
    %v1205 = vadd.f32 %v1203, %v1204
    %v1206 = vsel %vm1092, %v670, 0.0
    %v1207 = vadd.f32 %v1205, %v1206
    %v1208 = vsel %vm1092, %v675, 0.0
    %v1209 = vadd.f32 %v1207, %v1208
    %v1210 = vsel %vm1092, %v680, 0.0
    %v1211 = vadd.f32 %v1209, %v1210
    %v1212 = vsel %vm1092, %v685, 0.0
    %v1213 = vadd.f32 %v1211, %v1212
    %v1214 = vsel %vm1092, %v690, 0.0
    %v1215 = vadd.f32 %v1213, %v1214
    %v1216 = vsel %vm1092, %v695, 0.0
    %v1217 = vadd.f32 %v1215, %v1216
    %v1218 = vsel %vm1092, %v700, 0.0
    %v1219 = vadd.f32 %v1217, %v1218
    %v1220 = vrot.slane %v1219, 4
    %v1221 = vadd.f32 %v1219, %v1220
    %v1222 = vrot.slane %v1221, 2
    %v1223 = vadd.f32 %v1221, %v1222
    %v1224 = vrot.slane %v1223, 1
    %v1225 = vadd.f32 %v1223, %v1224
    %v1226 = vmul.f32 %v1225, 0.001953125
    %v1227 = vsub.f32 %v385, %v1226
    %v1228 = vsub.f32 %v390, %v1226
    %v1229 = vsub.f32 %v395, %v1226
    %v1230 = vsub.f32 %v400, %v1226
    %v1231 = vsub.f32 %v405, %v1226
    %v1232 = vsub.f32 %v410, %v1226
    %v1233 = vsub.f32 %v415, %v1226
    %v1234 = vsub.f32 %v420, %v1226
    %v1235 = vsub.f32 %v425, %v1226
    %v1236 = vsub.f32 %v430, %v1226
    %v1237 = vsub.f32 %v435, %v1226
    %v1238 = vsub.f32 %v440, %v1226
    %v1239 = vsub.f32 %v445, %v1226
    %v1240 = vsub.f32 %v450, %v1226
    %v1241 = vsub.f32 %v455, %v1226
    %v1242 = vsub.f32 %v460, %v1226
    %v1243 = vsub.f32 %v465, %v1226
    %v1244 = vsub.f32 %v470, %v1226
    %v1245 = vsub.f32 %v475, %v1226
    %v1246 = vsub.f32 %v480, %v1226
    %v1247 = vsub.f32 %v485, %v1226
    %v1248 = vsub.f32 %v490, %v1226
    %v1249 = vsub.f32 %v495, %v1226
    %v1250 = vsub.f32 %v500, %v1226
    %v1251 = vsub.f32 %v505, %v1226
    %v1252 = vsub.f32 %v510, %v1226
    %v1253 = vsub.f32 %v515, %v1226
    %v1254 = vsub.f32 %v520, %v1226
    %v1255 = vsub.f32 %v525, %v1226
    %v1256 = vsub.f32 %v530, %v1226
    %v1257 = vsub.f32 %v535, %v1226
    %v1258 = vsub.f32 %v540, %v1226
    %v1259 = vsub.f32 %v545, %v1226
    %v1260 = vsub.f32 %v550, %v1226
    %v1261 = vsub.f32 %v555, %v1226
    %v1262 = vsub.f32 %v560, %v1226
    %v1263 = vsub.f32 %v565, %v1226
    %v1264 = vsub.f32 %v570, %v1226
    %v1265 = vsub.f32 %v575, %v1226
    %v1266 = vsub.f32 %v580, %v1226
    %v1267 = vsub.f32 %v585, %v1226
    %v1268 = vsub.f32 %v590, %v1226
    %v1269 = vsub.f32 %v595, %v1226
    %v1270 = vsub.f32 %v600, %v1226
    %v1271 = vsub.f32 %v605, %v1226
    %v1272 = vsub.f32 %v610, %v1226
    %v1273 = vsub.f32 %v615, %v1226
    %v1274 = vsub.f32 %v620, %v1226
    %v1275 = vsub.f32 %v625, %v1226
    %v1276 = vsub.f32 %v630, %v1226
    %v1277 = vsub.f32 %v635, %v1226
    %v1278 = vsub.f32 %v640, %v1226
    %v1279 = vsub.f32 %v645, %v1226
    %v1280 = vsub.f32 %v650, %v1226
    %v1281 = vsub.f32 %v655, %v1226
    %v1282 = vsub.f32 %v660, %v1226
    %v1283 = vsub.f32 %v665, %v1226
    %v1284 = vsub.f32 %v670, %v1226
    %v1285 = vsub.f32 %v675, %v1226
    %v1286 = vsub.f32 %v680, %v1226
    %v1287 = vsub.f32 %v685, %v1226
    %v1288 = vsub.f32 %v690, %v1226
    %v1289 = vsub.f32 %v695, %v1226
    %v1290 = vsub.f32 %v700, %v1226
    %v1291 = vmul.f32 %v1227, %v1227
    %v1292 = vmul.f32 %v1228, %v1228
    %v1293 = vmul.f32 %v1229, %v1229
    %v1294 = vmul.f32 %v1230, %v1230
    %v1295 = vmul.f32 %v1231, %v1231
    %v1296 = vmul.f32 %v1232, %v1232
    %v1297 = vmul.f32 %v1233, %v1233
    %v1298 = vmul.f32 %v1234, %v1234
    %v1299 = vmul.f32 %v1235, %v1235
    %v1300 = vmul.f32 %v1236, %v1236
    %v1301 = vmul.f32 %v1237, %v1237
    %v1302 = vmul.f32 %v1238, %v1238
    %v1303 = vmul.f32 %v1239, %v1239
    %v1304 = vmul.f32 %v1240, %v1240
    %v1305 = vmul.f32 %v1241, %v1241
    %v1306 = vmul.f32 %v1242, %v1242
    %v1307 = vmul.f32 %v1243, %v1243
    %v1308 = vmul.f32 %v1244, %v1244
    %v1309 = vmul.f32 %v1245, %v1245
    %v1310 = vmul.f32 %v1246, %v1246
    %v1311 = vmul.f32 %v1247, %v1247
    %v1312 = vmul.f32 %v1248, %v1248
    %v1313 = vmul.f32 %v1249, %v1249
    %v1314 = vmul.f32 %v1250, %v1250
    %v1315 = vmul.f32 %v1251, %v1251
    %v1316 = vmul.f32 %v1252, %v1252
    %v1317 = vmul.f32 %v1253, %v1253
    %v1318 = vmul.f32 %v1254, %v1254
    %v1319 = vmul.f32 %v1255, %v1255
    %v1320 = vmul.f32 %v1256, %v1256
    %v1321 = vmul.f32 %v1257, %v1257
    %v1322 = vmul.f32 %v1258, %v1258
    %v1323 = vmul.f32 %v1259, %v1259
    %v1324 = vmul.f32 %v1260, %v1260
    %v1325 = vmul.f32 %v1261, %v1261
    %v1326 = vmul.f32 %v1262, %v1262
    %v1327 = vmul.f32 %v1263, %v1263
    %v1328 = vmul.f32 %v1264, %v1264
    %v1329 = vmul.f32 %v1265, %v1265
    %v1330 = vmul.f32 %v1266, %v1266
    %v1331 = vmul.f32 %v1267, %v1267
    %v1332 = vmul.f32 %v1268, %v1268
    %v1333 = vmul.f32 %v1269, %v1269
    %v1334 = vmul.f32 %v1270, %v1270
    %v1335 = vmul.f32 %v1271, %v1271
    %v1336 = vmul.f32 %v1272, %v1272
    %v1337 = vmul.f32 %v1273, %v1273
    %v1338 = vmul.f32 %v1274, %v1274
    %v1339 = vmul.f32 %v1275, %v1275
    %v1340 = vmul.f32 %v1276, %v1276
    %v1341 = vmul.f32 %v1277, %v1277
    %v1342 = vmul.f32 %v1278, %v1278
    %v1343 = vmul.f32 %v1279, %v1279
    %v1344 = vmul.f32 %v1280, %v1280
    %v1345 = vmul.f32 %v1281, %v1281
    %v1346 = vmul.f32 %v1282, %v1282
    %v1347 = vmul.f32 %v1283, %v1283
    %v1348 = vmul.f32 %v1284, %v1284
    %v1349 = vmul.f32 %v1285, %v1285
    %v1350 = vmul.f32 %v1286, %v1286
    %v1351 = vmul.f32 %v1287, %v1287
    %v1352 = vmul.f32 %v1288, %v1288
    %v1353 = vmul.f32 %v1289, %v1289
    %v1354 = vmul.f32 %v1290, %v1290
    %v1355 = vsel %vm1092, %v1291, 0.0
    %v1356 = vsel %vm1092, %v1292, 0.0
    %v1357 = vadd.f32 %v1355, %v1356
    %v1358 = vsel %vm1092, %v1293, 0.0
    %v1359 = vadd.f32 %v1357, %v1358
    %v1360 = vsel %vm1092, %v1294, 0.0
    %v1361 = vadd.f32 %v1359, %v1360
    %v1362 = vsel %vm1092, %v1295, 0.0
    %v1363 = vadd.f32 %v1361, %v1362
    %v1364 = vsel %vm1092, %v1296, 0.0
    %v1365 = vadd.f32 %v1363, %v1364
    %v1366 = vsel %vm1092, %v1297, 0.0
    %v1367 = vadd.f32 %v1365, %v1366
    %v1368 = vsel %vm1092, %v1298, 0.0
    %v1369 = vadd.f32 %v1367, %v1368
    %v1370 = vsel %vm1092, %v1299, 0.0
    %v1371 = vadd.f32 %v1369, %v1370
    %v1372 = vsel %vm1092, %v1300, 0.0
    %v1373 = vadd.f32 %v1371, %v1372
    %v1374 = vsel %vm1092, %v1301, 0.0
    %v1375 = vadd.f32 %v1373, %v1374
    %v1376 = vsel %vm1092, %v1302, 0.0
    %v1377 = vadd.f32 %v1375, %v1376
    %v1378 = vsel %vm1092, %v1303, 0.0
    %v1379 = vadd.f32 %v1377, %v1378
    %v1380 = vsel %vm1092, %v1304, 0.0
    %v1381 = vadd.f32 %v1379, %v1380
    %v1382 = vsel %vm1092, %v1305, 0.0
    %v1383 = vadd.f32 %v1381, %v1382
    %v1384 = vsel %vm1092, %v1306, 0.0
    %v1385 = vadd.f32 %v1383, %v1384
    %v1386 = vsel %vm1092, %v1307, 0.0
    %v1387 = vadd.f32 %v1385, %v1386
    %v1388 = vsel %vm1092, %v1308, 0.0
    %v1389 = vadd.f32 %v1387, %v1388
    %v1390 = vsel %vm1092, %v1309, 0.0
    %v1391 = vadd.f32 %v1389, %v1390
    %v1392 = vsel %vm1092, %v1310, 0.0
    %v1393 = vadd.f32 %v1391, %v1392
    %v1394 = vsel %vm1092, %v1311, 0.0
    %v1395 = vadd.f32 %v1393, %v1394
    %v1396 = vsel %vm1092, %v1312, 0.0
    %v1397 = vadd.f32 %v1395, %v1396
    %v1398 = vsel %vm1092, %v1313, 0.0
    %v1399 = vadd.f32 %v1397, %v1398
    %v1400 = vsel %vm1092, %v1314, 0.0
    %v1401 = vadd.f32 %v1399, %v1400
    %v1402 = vsel %vm1092, %v1315, 0.0
    %v1403 = vadd.f32 %v1401, %v1402
    %v1404 = vsel %vm1092, %v1316, 0.0
    %v1405 = vadd.f32 %v1403, %v1404
    %v1406 = vsel %vm1092, %v1317, 0.0
    %v1407 = vadd.f32 %v1405, %v1406
    %v1408 = vsel %vm1092, %v1318, 0.0
    %v1409 = vadd.f32 %v1407, %v1408
    %v1410 = vsel %vm1092, %v1319, 0.0
    %v1411 = vadd.f32 %v1409, %v1410
    %v1412 = vsel %vm1092, %v1320, 0.0
    %v1413 = vadd.f32 %v1411, %v1412
    %v1414 = vsel %vm1092, %v1321, 0.0
    %v1415 = vadd.f32 %v1413, %v1414
    %v1416 = vsel %vm1092, %v1322, 0.0
    %v1417 = vadd.f32 %v1415, %v1416
    %v1418 = vsel %vm1092, %v1323, 0.0
    %v1419 = vadd.f32 %v1417, %v1418
    %v1420 = vsel %vm1092, %v1324, 0.0
    %v1421 = vadd.f32 %v1419, %v1420
    %v1422 = vsel %vm1092, %v1325, 0.0
    %v1423 = vadd.f32 %v1421, %v1422
    %v1424 = vsel %vm1092, %v1326, 0.0
    %v1425 = vadd.f32 %v1423, %v1424
    %v1426 = vsel %vm1092, %v1327, 0.0
    %v1427 = vadd.f32 %v1425, %v1426
    %v1428 = vsel %vm1092, %v1328, 0.0
    %v1429 = vadd.f32 %v1427, %v1428
    %v1430 = vsel %vm1092, %v1329, 0.0
    %v1431 = vadd.f32 %v1429, %v1430
    %v1432 = vsel %vm1092, %v1330, 0.0
    %v1433 = vadd.f32 %v1431, %v1432
    %v1434 = vsel %vm1092, %v1331, 0.0
    %v1435 = vadd.f32 %v1433, %v1434
    %v1436 = vsel %vm1092, %v1332, 0.0
    %v1437 = vadd.f32 %v1435, %v1436
    %v1438 = vsel %vm1092, %v1333, 0.0
    %v1439 = vadd.f32 %v1437, %v1438
    %v1440 = vsel %vm1092, %v1334, 0.0
    %v1441 = vadd.f32 %v1439, %v1440
    %v1442 = vsel %vm1092, %v1335, 0.0
    %v1443 = vadd.f32 %v1441, %v1442
    %v1444 = vsel %vm1092, %v1336, 0.0
    %v1445 = vadd.f32 %v1443, %v1444
    %v1446 = vsel %vm1092, %v1337, 0.0
    %v1447 = vadd.f32 %v1445, %v1446
    %v1448 = vsel %vm1092, %v1338, 0.0
    %v1449 = vadd.f32 %v1447, %v1448
    %v1450 = vsel %vm1092, %v1339, 0.0
    %v1451 = vadd.f32 %v1449, %v1450
    %v1452 = vsel %vm1092, %v1340, 0.0
    %v1453 = vadd.f32 %v1451, %v1452
    %v1454 = vsel %vm1092, %v1341, 0.0
    %v1455 = vadd.f32 %v1453, %v1454
    %v1456 = vsel %vm1092, %v1342, 0.0
    %v1457 = vadd.f32 %v1455, %v1456
    %v1458 = vsel %vm1092, %v1343, 0.0
    %v1459 = vadd.f32 %v1457, %v1458
    %v1460 = vsel %vm1092, %v1344, 0.0
    %v1461 = vadd.f32 %v1459, %v1460
    %v1462 = vsel %vm1092, %v1345, 0.0
    %v1463 = vadd.f32 %v1461, %v1462
    %v1464 = vsel %vm1092, %v1346, 0.0
    %v1465 = vadd.f32 %v1463, %v1464
    %v1466 = vsel %vm1092, %v1347, 0.0
    %v1467 = vadd.f32 %v1465, %v1466
    %v1468 = vsel %vm1092, %v1348, 0.0
    %v1469 = vadd.f32 %v1467, %v1468
    %v1470 = vsel %vm1092, %v1349, 0.0
    %v1471 = vadd.f32 %v1469, %v1470
    %v1472 = vsel %vm1092, %v1350, 0.0
    %v1473 = vadd.f32 %v1471, %v1472
    %v1474 = vsel %vm1092, %v1351, 0.0
    %v1475 = vadd.f32 %v1473, %v1474
    %v1476 = vsel %vm1092, %v1352, 0.0
    %v1477 = vadd.f32 %v1475, %v1476
    %v1478 = vsel %vm1092, %v1353, 0.0
    %v1479 = vadd.f32 %v1477, %v1478
    %v1480 = vsel %vm1092, %v1354, 0.0
    %v1481 = vadd.f32 %v1479, %v1480
    %v1482 = vrot.slane %v1481, 4
    %v1483 = vadd.f32 %v1481, %v1482
    %v1484 = vrot.slane %v1483, 2
    %v1485 = vadd.f32 %v1483, %v1484
    %v1486 = vrot.slane %v1485, 1
    %v1487 = vadd.f32 %v1485, %v1486
    %v1488 = vmul.f32 %v1487, 0.001953125
    %v1489 = vadd.f32 %v1488, 1e-05
    %v1490 = vrsqrt.pop %v1489
    %v1491 = vmul.f32 %v1490, %v1090
    %v1492 = vlaneseq
    %v1493 = vshrl.u32 %v1492, 7
    %v1494 = vsub.s32 0, %v1493
    %v1495 = vrot.slane %v1491, %v1494
    %v1496 = vmul.f32 %v1227, %v1495
    %v1497 = vmul.f32 %v1228, %v1495
    %v1498 = vmul.f32 %v1229, %v1495
    %v1499 = vmul.f32 %v1230, %v1495
    %v1500 = vmul.f32 %v1231, %v1495
    %v1501 = vmul.f32 %v1232, %v1495
    %v1502 = vmul.f32 %v1233, %v1495
    %v1503 = vmul.f32 %v1234, %v1495
    %v1504 = vmul.f32 %v1235, %v1495
    %v1505 = vmul.f32 %v1236, %v1495
    %v1506 = vmul.f32 %v1237, %v1495
    %v1507 = vmul.f32 %v1238, %v1495
    %v1508 = vmul.f32 %v1239, %v1495
    %v1509 = vmul.f32 %v1240, %v1495
    %v1510 = vmul.f32 %v1241, %v1495
    %v1511 = vmul.f32 %v1242, %v1495
    %v1512 = vmul.f32 %v1243, %v1495
    %v1513 = vmul.f32 %v1244, %v1495
    %v1514 = vmul.f32 %v1245, %v1495
    %v1515 = vmul.f32 %v1246, %v1495
    %v1516 = vmul.f32 %v1247, %v1495
    %v1517 = vmul.f32 %v1248, %v1495
    %v1518 = vmul.f32 %v1249, %v1495
    %v1519 = vmul.f32 %v1250, %v1495
    %v1520 = vmul.f32 %v1251, %v1495
    %v1521 = vmul.f32 %v1252, %v1495
    %v1522 = vmul.f32 %v1253, %v1495
    %v1523 = vmul.f32 %v1254, %v1495
    %v1524 = vmul.f32 %v1255, %v1495
    %v1525 = vmul.f32 %v1256, %v1495
    %v1526 = vmul.f32 %v1257, %v1495
    %v1527 = vmul.f32 %v1258, %v1495
    %v1528 = vmul.f32 %v1259, %v1495
    %v1529 = vmul.f32 %v1260, %v1495
    %v1530 = vmul.f32 %v1261, %v1495
    %v1531 = vmul.f32 %v1262, %v1495
    %v1532 = vmul.f32 %v1263, %v1495
    %v1533 = vmul.f32 %v1264, %v1495
    %v1534 = vmul.f32 %v1265, %v1495
    %v1535 = vmul.f32 %v1266, %v1495
    %v1536 = vmul.f32 %v1267, %v1495
    %v1537 = vmul.f32 %v1268, %v1495
    %v1538 = vmul.f32 %v1269, %v1495
    %v1539 = vmul.f32 %v1270, %v1495
    %v1540 = vmul.f32 %v1271, %v1495
    %v1541 = vmul.f32 %v1272, %v1495
    %v1542 = vmul.f32 %v1273, %v1495
    %v1543 = vmul.f32 %v1274, %v1495
    %v1544 = vmul.f32 %v1275, %v1495
    %v1545 = vmul.f32 %v1276, %v1495
    %v1546 = vmul.f32 %v1277, %v1495
    %v1547 = vmul.f32 %v1278, %v1495
    %v1548 = vmul.f32 %v1279, %v1495
    %v1549 = vmul.f32 %v1280, %v1495
    %v1550 = vmul.f32 %v1281, %v1495
    %v1551 = vmul.f32 %v1282, %v1495
    %v1552 = vmul.f32 %v1283, %v1495
    %v1553 = vmul.f32 %v1284, %v1495
    %v1554 = vmul.f32 %v1285, %v1495
    %v1555 = vmul.f32 %v1286, %v1495
    %v1556 = vmul.f32 %v1287, %v1495
    %v1557 = vmul.f32 %v1288, %v1495
    %v1558 = vmul.f32 %v1289, %v1495
    %v1559 = vmul.f32 %v1290, %v1495
    %v1561 = vlaneseq
    %v1562 = vshrl.u32 %v1561, 7
    %v1563 = vsub.s32 0, %v1562
    %v1564 = vrot.slane %v1091, %v1563
    %v1566 = vadd.f32 %v1496, %v1564
    %v1567 = vadd.f32 %v1497, %v1564
    %v1568 = vadd.f32 %v1498, %v1564
    %v1569 = vadd.f32 %v1499, %v1564
    %v1570 = vadd.f32 %v1500, %v1564
    %v1571 = vadd.f32 %v1501, %v1564
    %v1572 = vadd.f32 %v1502, %v1564
    %v1573 = vadd.f32 %v1503, %v1564
    %v1574 = vadd.f32 %v1504, %v1564
    %v1575 = vadd.f32 %v1505, %v1564
    %v1576 = vadd.f32 %v1506, %v1564
    %v1577 = vadd.f32 %v1507, %v1564
    %v1578 = vadd.f32 %v1508, %v1564
    %v1579 = vadd.f32 %v1509, %v1564
    %v1580 = vadd.f32 %v1510, %v1564
    %v1581 = vadd.f32 %v1511, %v1564
    %v1582 = vadd.f32 %v1512, %v1564
    %v1583 = vadd.f32 %v1513, %v1564
    %v1584 = vadd.f32 %v1514, %v1564
    %v1585 = vadd.f32 %v1515, %v1564
    %v1586 = vadd.f32 %v1516, %v1564
    %v1587 = vadd.f32 %v1517, %v1564
    %v1588 = vadd.f32 %v1518, %v1564
    %v1589 = vadd.f32 %v1519, %v1564
    %v1590 = vadd.f32 %v1520, %v1564
    %v1591 = vadd.f32 %v1521, %v1564
    %v1592 = vadd.f32 %v1522, %v1564
    %v1593 = vadd.f32 %v1523, %v1564
    %v1594 = vadd.f32 %v1524, %v1564
    %v1595 = vadd.f32 %v1525, %v1564
    %v1596 = vadd.f32 %v1526, %v1564
    %v1597 = vadd.f32 %v1527, %v1564
    %v1598 = vadd.f32 %v1528, %v1564
    %v1599 = vadd.f32 %v1529, %v1564
    %v1600 = vadd.f32 %v1530, %v1564
    %v1601 = vadd.f32 %v1531, %v1564
    %v1602 = vadd.f32 %v1532, %v1564
    %v1603 = vadd.f32 %v1533, %v1564
    %v1604 = vadd.f32 %v1534, %v1564
    %v1605 = vadd.f32 %v1535, %v1564
    %v1606 = vadd.f32 %v1536, %v1564
    %v1607 = vadd.f32 %v1537, %v1564
    %v1608 = vadd.f32 %v1538, %v1564
    %v1609 = vadd.f32 %v1539, %v1564
    %v1610 = vadd.f32 %v1540, %v1564
    %v1611 = vadd.f32 %v1541, %v1564
    %v1612 = vadd.f32 %v1542, %v1564
    %v1613 = vadd.f32 %v1543, %v1564
    %v1614 = vadd.f32 %v1544, %v1564
    %v1615 = vadd.f32 %v1545, %v1564
    %v1616 = vadd.f32 %v1546, %v1564
    %v1617 = vadd.f32 %v1547, %v1564
    %v1618 = vadd.f32 %v1548, %v1564
    %v1619 = vadd.f32 %v1549, %v1564
    %v1620 = vadd.f32 %v1550, %v1564
    %v1621 = vadd.f32 %v1551, %v1564
    %v1622 = vadd.f32 %v1552, %v1564
    %v1623 = vadd.f32 %v1553, %v1564
    %v1624 = vadd.f32 %v1554, %v1564
    %v1625 = vadd.f32 %v1555, %v1564
    %v1626 = vadd.f32 %v1556, %v1564
    %v1627 = vadd.f32 %v1557, %v1564
    %v1628 = vadd.f32 %v1558, %v1564
    %v1629 = vadd.f32 %v1559, %v1564
    %v1630 = vld [vmem:[%s2] sm:$0x1]
    %v1631 = vld [vmem:[%s3] sm:$0x1]
    %vm1632 = vcmask 64512
    %v1633 = vsel %vm1632, %v772, 0.0
    %v1634 = vsel %vm1632, %v777, 0.0
    %v1635 = vadd.f32 %v1633, %v1634
    %v1636 = vsel %vm1632, %v782, 0.0
    %v1637 = vadd.f32 %v1635, %v1636
    %v1638 = vsel %vm1632, %v787, 0.0
    %v1639 = vadd.f32 %v1637, %v1638
    %v1640 = vsel %vm1632, %v792, 0.0
    %v1641 = vadd.f32 %v1639, %v1640
    %v1642 = vsel %vm1632, %v797, 0.0
    %v1643 = vadd.f32 %v1641, %v1642
    %v1644 = vsel %vm1632, %v802, 0.0
    %v1645 = vadd.f32 %v1643, %v1644
    %v1646 = vsel %vm1632, %v807, 0.0
    %v1647 = vadd.f32 %v1645, %v1646
    %v1648 = vsel %vm1632, %v812, 0.0
    %v1649 = vadd.f32 %v1647, %v1648
    %v1650 = vsel %vm1632, %v817, 0.0
    %v1651 = vadd.f32 %v1649, %v1650
    %v1652 = vsel %vm1632, %v822, 0.0
    %v1653 = vadd.f32 %v1651, %v1652
    %v1654 = vsel %vm1632, %v827, 0.0
    %v1655 = vadd.f32 %v1653, %v1654
    %v1656 = vsel %vm1632, %v832, 0.0
    %v1657 = vadd.f32 %v1655, %v1656
    %v1658 = vsel %vm1632, %v837, 0.0
    %v1659 = vadd.f32 %v1657, %v1658
    %v1660 = vsel %vm1632, %v842, 0.0
    %v1661 = vadd.f32 %v1659, %v1660
    %v1662 = vsel %vm1632, %v847, 0.0
    %v1663 = vadd.f32 %v1661, %v1662
    %v1664 = vsel %vm1632, %v852, 0.0
    %v1665 = vadd.f32 %v1663, %v1664
    %v1666 = vsel %vm1632, %v857, 0.0
    %v1667 = vadd.f32 %v1665, %v1666
    %v1668 = vsel %vm1632, %v862, 0.0
    %v1669 = vadd.f32 %v1667, %v1668
    %v1670 = vsel %vm1632, %v867, 0.0
    %v1671 = vadd.f32 %v1669, %v1670
    %v1672 = vsel %vm1632, %v872, 0.0
    %v1673 = vadd.f32 %v1671, %v1672
    %v1674 = vsel %vm1632, %v877, 0.0
    %v1675 = vadd.f32 %v1673, %v1674
    %v1676 = vsel %vm1632, %v882, 0.0
    %v1677 = vadd.f32 %v1675, %v1676
    %v1678 = vsel %vm1632, %v887, 0.0
    %v1679 = vadd.f32 %v1677, %v1678
    %v1680 = vsel %vm1632, %v892, 0.0
    %v1681 = vadd.f32 %v1679, %v1680
    %v1682 = vsel %vm1632, %v897, 0.0
    %v1683 = vadd.f32 %v1681, %v1682
    %v1684 = vsel %vm1632, %v902, 0.0
    %v1685 = vadd.f32 %v1683, %v1684
    %v1686 = vsel %vm1632, %v907, 0.0
    %v1687 = vadd.f32 %v1685, %v1686
    %v1688 = vsel %vm1632, %v912, 0.0
    %v1689 = vadd.f32 %v1687, %v1688
    %v1690 = vsel %vm1632, %v917, 0.0
    %v1691 = vadd.f32 %v1689, %v1690
    %v1692 = vsel %vm1632, %v922, 0.0
    %v1693 = vadd.f32 %v1691, %v1692
    %v1694 = vsel %vm1632, %v927, 0.0
    %v1695 = vadd.f32 %v1693, %v1694
    %v1696 = vsel %vm1632, %v932, 0.0
    %v1697 = vadd.f32 %v1695, %v1696
    %v1698 = vsel %vm1632, %v937, 0.0
    %v1699 = vadd.f32 %v1697, %v1698
    %v1700 = vsel %vm1632, %v942, 0.0
    %v1701 = vadd.f32 %v1699, %v1700
    %v1702 = vsel %vm1632, %v947, 0.0
    %v1703 = vadd.f32 %v1701, %v1702
    %v1704 = vsel %vm1632, %v952, 0.0
    %v1705 = vadd.f32 %v1703, %v1704
    %v1706 = vsel %vm1632, %v957, 0.0
    %v1707 = vadd.f32 %v1705, %v1706
    %v1708 = vsel %vm1632, %v962, 0.0
    %v1709 = vadd.f32 %v1707, %v1708
    %v1710 = vsel %vm1632, %v967, 0.0
    %v1711 = vadd.f32 %v1709, %v1710
    %v1712 = vsel %vm1632, %v972, 0.0
    %v1713 = vadd.f32 %v1711, %v1712
    %v1714 = vsel %vm1632, %v977, 0.0
    %v1715 = vadd.f32 %v1713, %v1714
    %v1716 = vsel %vm1632, %v982, 0.0
    %v1717 = vadd.f32 %v1715, %v1716
    %v1718 = vsel %vm1632, %v987, 0.0
    %v1719 = vadd.f32 %v1717, %v1718
    %v1720 = vsel %vm1632, %v992, 0.0
    %v1721 = vadd.f32 %v1719, %v1720
    %v1722 = vsel %vm1632, %v997, 0.0
    %v1723 = vadd.f32 %v1721, %v1722
    %v1724 = vsel %vm1632, %v1002, 0.0
    %v1725 = vadd.f32 %v1723, %v1724
    %v1726 = vsel %vm1632, %v1007, 0.0
    %v1727 = vadd.f32 %v1725, %v1726
    %v1728 = vsel %vm1632, %v1012, 0.0
    %v1729 = vadd.f32 %v1727, %v1728
    %v1730 = vsel %vm1632, %v1017, 0.0
    %v1731 = vadd.f32 %v1729, %v1730
    %v1732 = vsel %vm1632, %v1022, 0.0
    %v1733 = vadd.f32 %v1731, %v1732
    %v1734 = vsel %vm1632, %v1027, 0.0
    %v1735 = vadd.f32 %v1733, %v1734
    %v1736 = vsel %vm1632, %v1032, 0.0
    %v1737 = vadd.f32 %v1735, %v1736
    %v1738 = vsel %vm1632, %v1037, 0.0
    %v1739 = vadd.f32 %v1737, %v1738
    %v1740 = vsel %vm1632, %v1042, 0.0
    %v1741 = vadd.f32 %v1739, %v1740
    %v1742 = vsel %vm1632, %v1047, 0.0
    %v1743 = vadd.f32 %v1741, %v1742
    %v1744 = vsel %vm1632, %v1052, 0.0
    %v1745 = vadd.f32 %v1743, %v1744
    %v1746 = vsel %vm1632, %v1057, 0.0
    %v1747 = vadd.f32 %v1745, %v1746
    %v1748 = vsel %vm1632, %v1062, 0.0
    %v1749 = vadd.f32 %v1747, %v1748
    %v1750 = vsel %vm1632, %v1067, 0.0
    %v1751 = vadd.f32 %v1749, %v1750
    %v1752 = vsel %vm1632, %v1072, 0.0
    %v1753 = vadd.f32 %v1751, %v1752
    %v1754 = vsel %vm1632, %v1077, 0.0
    %v1755 = vadd.f32 %v1753, %v1754
    %v1756 = vsel %vm1632, %v1082, 0.0
    %v1757 = vadd.f32 %v1755, %v1756
    %v1758 = vsel %vm1632, %v1087, 0.0
    %v1759 = vadd.f32 %v1757, %v1758
    %v1760 = vrot.slane %v1759, 4
    %v1761 = vadd.f32 %v1759, %v1760
    %v1762 = vrot.slane %v1761, 2
    %v1763 = vadd.f32 %v1761, %v1762
    %v1764 = vrot.slane %v1763, 1
    %v1765 = vadd.f32 %v1763, %v1764
    %v1766 = vmul.f32 %v1765, 0.001953125
    %v1767 = vsub.f32 %v772, %v1766
    %v1768 = vsub.f32 %v777, %v1766
    %v1769 = vsub.f32 %v782, %v1766
    %v1770 = vsub.f32 %v787, %v1766
    %v1771 = vsub.f32 %v792, %v1766
    %v1772 = vsub.f32 %v797, %v1766
    %v1773 = vsub.f32 %v802, %v1766
    %v1774 = vsub.f32 %v807, %v1766
    %v1775 = vsub.f32 %v812, %v1766
    %v1776 = vsub.f32 %v817, %v1766
    %v1777 = vsub.f32 %v822, %v1766
    %v1778 = vsub.f32 %v827, %v1766
    %v1779 = vsub.f32 %v832, %v1766
    %v1780 = vsub.f32 %v837, %v1766
    %v1781 = vsub.f32 %v842, %v1766
    %v1782 = vsub.f32 %v847, %v1766
    %v1783 = vsub.f32 %v852, %v1766
    %v1784 = vsub.f32 %v857, %v1766
    %v1785 = vsub.f32 %v862, %v1766
    %v1786 = vsub.f32 %v867, %v1766
    %v1787 = vsub.f32 %v872, %v1766
    %v1788 = vsub.f32 %v877, %v1766
    %v1789 = vsub.f32 %v882, %v1766
    %v1790 = vsub.f32 %v887, %v1766
    %v1791 = vsub.f32 %v892, %v1766
    %v1792 = vsub.f32 %v897, %v1766
    %v1793 = vsub.f32 %v902, %v1766
    %v1794 = vsub.f32 %v907, %v1766
    %v1795 = vsub.f32 %v912, %v1766
    %v1796 = vsub.f32 %v917, %v1766
    %v1797 = vsub.f32 %v922, %v1766
    %v1798 = vsub.f32 %v927, %v1766
    %v1799 = vsub.f32 %v932, %v1766
    %v1800 = vsub.f32 %v937, %v1766
    %v1801 = vsub.f32 %v942, %v1766
    %v1802 = vsub.f32 %v947, %v1766
    %v1803 = vsub.f32 %v952, %v1766
    %v1804 = vsub.f32 %v957, %v1766
    %v1805 = vsub.f32 %v962, %v1766
    %v1806 = vsub.f32 %v967, %v1766
    %v1807 = vsub.f32 %v972, %v1766
    %v1808 = vsub.f32 %v977, %v1766
    %v1809 = vsub.f32 %v982, %v1766
    %v1810 = vsub.f32 %v987, %v1766
    %v1811 = vsub.f32 %v992, %v1766
    %v1812 = vsub.f32 %v997, %v1766
    %v1813 = vsub.f32 %v1002, %v1766
    %v1814 = vsub.f32 %v1007, %v1766
    %v1815 = vsub.f32 %v1012, %v1766
    %v1816 = vsub.f32 %v1017, %v1766
    %v1817 = vsub.f32 %v1022, %v1766
    %v1818 = vsub.f32 %v1027, %v1766
    %v1819 = vsub.f32 %v1032, %v1766
    %v1820 = vsub.f32 %v1037, %v1766
    %v1821 = vsub.f32 %v1042, %v1766
    %v1822 = vsub.f32 %v1047, %v1766
    %v1823 = vsub.f32 %v1052, %v1766
    %v1824 = vsub.f32 %v1057, %v1766
    %v1825 = vsub.f32 %v1062, %v1766
    %v1826 = vsub.f32 %v1067, %v1766
    %v1827 = vsub.f32 %v1072, %v1766
    %v1828 = vsub.f32 %v1077, %v1766
    %v1829 = vsub.f32 %v1082, %v1766
    %v1830 = vsub.f32 %v1087, %v1766
    %v1831 = vmul.f32 %v1767, %v1767
    %v1832 = vmul.f32 %v1768, %v1768
    %v1833 = vmul.f32 %v1769, %v1769
    %v1834 = vmul.f32 %v1770, %v1770
    %v1835 = vmul.f32 %v1771, %v1771
    %v1836 = vmul.f32 %v1772, %v1772
    %v1837 = vmul.f32 %v1773, %v1773
    %v1838 = vmul.f32 %v1774, %v1774
    %v1839 = vmul.f32 %v1775, %v1775
    %v1840 = vmul.f32 %v1776, %v1776
    %v1841 = vmul.f32 %v1777, %v1777
    %v1842 = vmul.f32 %v1778, %v1778
    %v1843 = vmul.f32 %v1779, %v1779
    %v1844 = vmul.f32 %v1780, %v1780
    %v1845 = vmul.f32 %v1781, %v1781
    %v1846 = vmul.f32 %v1782, %v1782
    %v1847 = vmul.f32 %v1783, %v1783
    %v1848 = vmul.f32 %v1784, %v1784
    %v1849 = vmul.f32 %v1785, %v1785
    %v1850 = vmul.f32 %v1786, %v1786
    %v1851 = vmul.f32 %v1787, %v1787
    %v1852 = vmul.f32 %v1788, %v1788
    %v1853 = vmul.f32 %v1789, %v1789
    %v1854 = vmul.f32 %v1790, %v1790
    %v1855 = vmul.f32 %v1791, %v1791
    %v1856 = vmul.f32 %v1792, %v1792
    %v1857 = vmul.f32 %v1793, %v1793
    %v1858 = vmul.f32 %v1794, %v1794
    %v1859 = vmul.f32 %v1795, %v1795
    %v1860 = vmul.f32 %v1796, %v1796
    %v1861 = vmul.f32 %v1797, %v1797
    %v1862 = vmul.f32 %v1798, %v1798
    %v1863 = vmul.f32 %v1799, %v1799
    %v1864 = vmul.f32 %v1800, %v1800
    %v1865 = vmul.f32 %v1801, %v1801
    %v1866 = vmul.f32 %v1802, %v1802
    %v1867 = vmul.f32 %v1803, %v1803
    %v1868 = vmul.f32 %v1804, %v1804
    %v1869 = vmul.f32 %v1805, %v1805
    %v1870 = vmul.f32 %v1806, %v1806
    %v1871 = vmul.f32 %v1807, %v1807
    %v1872 = vmul.f32 %v1808, %v1808
    %v1873 = vmul.f32 %v1809, %v1809
    %v1874 = vmul.f32 %v1810, %v1810
    %v1875 = vmul.f32 %v1811, %v1811
    %v1876 = vmul.f32 %v1812, %v1812
    %v1877 = vmul.f32 %v1813, %v1813
    %v1878 = vmul.f32 %v1814, %v1814
    %v1879 = vmul.f32 %v1815, %v1815
    %v1880 = vmul.f32 %v1816, %v1816
    %v1881 = vmul.f32 %v1817, %v1817
    %v1882 = vmul.f32 %v1818, %v1818
    %v1883 = vmul.f32 %v1819, %v1819
    %v1884 = vmul.f32 %v1820, %v1820
    %v1885 = vmul.f32 %v1821, %v1821
    %v1886 = vmul.f32 %v1822, %v1822
    %v1887 = vmul.f32 %v1823, %v1823
    %v1888 = vmul.f32 %v1824, %v1824
    %v1889 = vmul.f32 %v1825, %v1825
    %v1890 = vmul.f32 %v1826, %v1826
    %v1891 = vmul.f32 %v1827, %v1827
    %v1892 = vmul.f32 %v1828, %v1828
    %v1893 = vmul.f32 %v1829, %v1829
    %v1894 = vmul.f32 %v1830, %v1830
    %v1895 = vsel %vm1632, %v1831, 0.0
    %v1896 = vsel %vm1632, %v1832, 0.0
    %v1897 = vadd.f32 %v1895, %v1896
    %v1898 = vsel %vm1632, %v1833, 0.0
    %v1899 = vadd.f32 %v1897, %v1898
    %v1900 = vsel %vm1632, %v1834, 0.0
    %v1901 = vadd.f32 %v1899, %v1900
    %v1902 = vsel %vm1632, %v1835, 0.0
    %v1903 = vadd.f32 %v1901, %v1902
    %v1904 = vsel %vm1632, %v1836, 0.0
    %v1905 = vadd.f32 %v1903, %v1904
    %v1906 = vsel %vm1632, %v1837, 0.0
    %v1907 = vadd.f32 %v1905, %v1906
    %v1908 = vsel %vm1632, %v1838, 0.0
    %v1909 = vadd.f32 %v1907, %v1908
    %v1910 = vsel %vm1632, %v1839, 0.0
    %v1911 = vadd.f32 %v1909, %v1910
    %v1912 = vsel %vm1632, %v1840, 0.0
    %v1913 = vadd.f32 %v1911, %v1912
    %v1914 = vsel %vm1632, %v1841, 0.0
    %v1915 = vadd.f32 %v1913, %v1914
    %v1916 = vsel %vm1632, %v1842, 0.0
    %v1917 = vadd.f32 %v1915, %v1916
    %v1918 = vsel %vm1632, %v1843, 0.0
    %v1919 = vadd.f32 %v1917, %v1918
    %v1920 = vsel %vm1632, %v1844, 0.0
    %v1921 = vadd.f32 %v1919, %v1920
    %v1922 = vsel %vm1632, %v1845, 0.0
    %v1923 = vadd.f32 %v1921, %v1922
    %v1924 = vsel %vm1632, %v1846, 0.0
    %v1925 = vadd.f32 %v1923, %v1924
    %v1926 = vsel %vm1632, %v1847, 0.0
    %v1927 = vadd.f32 %v1925, %v1926
    %v1928 = vsel %vm1632, %v1848, 0.0
    %v1929 = vadd.f32 %v1927, %v1928
    %v1930 = vsel %vm1632, %v1849, 0.0
    %v1931 = vadd.f32 %v1929, %v1930
    %v1932 = vsel %vm1632, %v1850, 0.0
    %v1933 = vadd.f32 %v1931, %v1932
    %v1934 = vsel %vm1632, %v1851, 0.0
    %v1935 = vadd.f32 %v1933, %v1934
    %v1936 = vsel %vm1632, %v1852, 0.0
    %v1937 = vadd.f32 %v1935, %v1936
    %v1938 = vsel %vm1632, %v1853, 0.0
    %v1939 = vadd.f32 %v1937, %v1938
    %v1940 = vsel %vm1632, %v1854, 0.0
    %v1941 = vadd.f32 %v1939, %v1940
    %v1942 = vsel %vm1632, %v1855, 0.0
    %v1943 = vadd.f32 %v1941, %v1942
    %v1944 = vsel %vm1632, %v1856, 0.0
    %v1945 = vadd.f32 %v1943, %v1944
    %v1946 = vsel %vm1632, %v1857, 0.0
    %v1947 = vadd.f32 %v1945, %v1946
    %v1948 = vsel %vm1632, %v1858, 0.0
    %v1949 = vadd.f32 %v1947, %v1948
    %v1950 = vsel %vm1632, %v1859, 0.0
    %v1951 = vadd.f32 %v1949, %v1950
    %v1952 = vsel %vm1632, %v1860, 0.0
    %v1953 = vadd.f32 %v1951, %v1952
    %v1954 = vsel %vm1632, %v1861, 0.0
    %v1955 = vadd.f32 %v1953, %v1954
    %v1956 = vsel %vm1632, %v1862, 0.0
    %v1957 = vadd.f32 %v1955, %v1956
    %v1958 = vsel %vm1632, %v1863, 0.0
    %v1959 = vadd.f32 %v1957, %v1958
    %v1960 = vsel %vm1632, %v1864, 0.0
    %v1961 = vadd.f32 %v1959, %v1960
    %v1962 = vsel %vm1632, %v1865, 0.0
    %v1963 = vadd.f32 %v1961, %v1962
    %v1964 = vsel %vm1632, %v1866, 0.0
    %v1965 = vadd.f32 %v1963, %v1964
    %v1966 = vsel %vm1632, %v1867, 0.0
    %v1967 = vadd.f32 %v1965, %v1966
    %v1968 = vsel %vm1632, %v1868, 0.0
    %v1969 = vadd.f32 %v1967, %v1968
    %v1970 = vsel %vm1632, %v1869, 0.0
    %v1971 = vadd.f32 %v1969, %v1970
    %v1972 = vsel %vm1632, %v1870, 0.0
    %v1973 = vadd.f32 %v1971, %v1972
    %v1974 = vsel %vm1632, %v1871, 0.0
    %v1975 = vadd.f32 %v1973, %v1974
    %v1976 = vsel %vm1632, %v1872, 0.0
    %v1977 = vadd.f32 %v1975, %v1976
    %v1978 = vsel %vm1632, %v1873, 0.0
    %v1979 = vadd.f32 %v1977, %v1978
    %v1980 = vsel %vm1632, %v1874, 0.0
    %v1981 = vadd.f32 %v1979, %v1980
    %v1982 = vsel %vm1632, %v1875, 0.0
    %v1983 = vadd.f32 %v1981, %v1982
    %v1984 = vsel %vm1632, %v1876, 0.0
    %v1985 = vadd.f32 %v1983, %v1984
    %v1986 = vsel %vm1632, %v1877, 0.0
    %v1987 = vadd.f32 %v1985, %v1986
    %v1988 = vsel %vm1632, %v1878, 0.0
    %v1989 = vadd.f32 %v1987, %v1988
    %v1990 = vsel %vm1632, %v1879, 0.0
    %v1991 = vadd.f32 %v1989, %v1990
    %v1992 = vsel %vm1632, %v1880, 0.0
    %v1993 = vadd.f32 %v1991, %v1992
    %v1994 = vsel %vm1632, %v1881, 0.0
    %v1995 = vadd.f32 %v1993, %v1994
    %v1996 = vsel %vm1632, %v1882, 0.0
    %v1997 = vadd.f32 %v1995, %v1996
    %v1998 = vsel %vm1632, %v1883, 0.0
    %v1999 = vadd.f32 %v1997, %v1998
    %v2000 = vsel %vm1632, %v1884, 0.0
    %v2001 = vadd.f32 %v1999, %v2000
    %v2002 = vsel %vm1632, %v1885, 0.0
    %v2003 = vadd.f32 %v2001, %v2002
    %v2004 = vsel %vm1632, %v1886, 0.0
    %v2005 = vadd.f32 %v2003, %v2004
    %v2006 = vsel %vm1632, %v1887, 0.0
    %v2007 = vadd.f32 %v2005, %v2006
    %v2008 = vsel %vm1632, %v1888, 0.0
    %v2009 = vadd.f32 %v2007, %v2008
    %v2010 = vsel %vm1632, %v1889, 0.0
    %v2011 = vadd.f32 %v2009, %v2010
    %v2012 = vsel %vm1632, %v1890, 0.0
    %v2013 = vadd.f32 %v2011, %v2012
    %v2014 = vsel %vm1632, %v1891, 0.0
    %v2015 = vadd.f32 %v2013, %v2014
    %v2016 = vsel %vm1632, %v1892, 0.0
    %v2017 = vadd.f32 %v2015, %v2016
    %v2018 = vsel %vm1632, %v1893, 0.0
    %v2019 = vadd.f32 %v2017, %v2018
    %v2020 = vsel %vm1632, %v1894, 0.0
    %v2021 = vadd.f32 %v2019, %v2020
    %v2022 = vrot.slane %v2021, 4
    %v2023 = vadd.f32 %v2021, %v2022
    %v2024 = vrot.slane %v2023, 2
    %v2025 = vadd.f32 %v2023, %v2024
    %v2026 = vrot.slane %v2025, 1
    %v2027 = vadd.f32 %v2025, %v2026
    %v2028 = vmul.f32 %v2027, 0.001953125
    %v2029 = vadd.f32 %v2028, 1e-05
    %v2030 = vrsqrt.pop %v2029
    %v2031 = vmul.f32 %v2030, %v1630
    %v2032 = vlaneseq
    %v2033 = vshrl.u32 %v2032, 7
    %v2034 = vsub.s32 0, %v2033
    %v2035 = vrot.slane %v2031, %v2034
    %v2036 = vmul.f32 %v1767, %v2035
    %v2037 = vmul.f32 %v1768, %v2035
    %v2038 = vmul.f32 %v1769, %v2035
    %v2039 = vmul.f32 %v1770, %v2035
    %v2040 = vmul.f32 %v1771, %v2035
    %v2041 = vmul.f32 %v1772, %v2035
    %v2042 = vmul.f32 %v1773, %v2035
    %v2043 = vmul.f32 %v1774, %v2035
    %v2044 = vmul.f32 %v1775, %v2035
    %v2045 = vmul.f32 %v1776, %v2035
    %v2046 = vmul.f32 %v1777, %v2035
    %v2047 = vmul.f32 %v1778, %v2035
    %v2048 = vmul.f32 %v1779, %v2035
    %v2049 = vmul.f32 %v1780, %v2035
    %v2050 = vmul.f32 %v1781, %v2035
    %v2051 = vmul.f32 %v1782, %v2035
    %v2052 = vmul.f32 %v1783, %v2035
    %v2053 = vmul.f32 %v1784, %v2035
    %v2054 = vmul.f32 %v1785, %v2035
    %v2055 = vmul.f32 %v1786, %v2035
    %v2056 = vmul.f32 %v1787, %v2035
    %v2057 = vmul.f32 %v1788, %v2035
    %v2058 = vmul.f32 %v1789, %v2035
    %v2059 = vmul.f32 %v1790, %v2035
    %v2060 = vmul.f32 %v1791, %v2035
    %v2061 = vmul.f32 %v1792, %v2035
    %v2062 = vmul.f32 %v1793, %v2035
    %v2063 = vmul.f32 %v1794, %v2035
    %v2064 = vmul.f32 %v1795, %v2035
    %v2065 = vmul.f32 %v1796, %v2035
    %v2066 = vmul.f32 %v1797, %v2035
    %v2067 = vmul.f32 %v1798, %v2035
    %v2068 = vmul.f32 %v1799, %v2035
    %v2069 = vmul.f32 %v1800, %v2035
    %v2070 = vmul.f32 %v1801, %v2035
    %v2071 = vmul.f32 %v1802, %v2035
    %v2072 = vmul.f32 %v1803, %v2035
    %v2073 = vmul.f32 %v1804, %v2035
    %v2074 = vmul.f32 %v1805, %v2035
    %v2075 = vmul.f32 %v1806, %v2035
    %v2076 = vmul.f32 %v1807, %v2035
    %v2077 = vmul.f32 %v1808, %v2035
    %v2078 = vmul.f32 %v1809, %v2035
    %v2079 = vmul.f32 %v1810, %v2035
    %v2080 = vmul.f32 %v1811, %v2035
    %v2081 = vmul.f32 %v1812, %v2035
    %v2082 = vmul.f32 %v1813, %v2035
    %v2083 = vmul.f32 %v1814, %v2035
    %v2084 = vmul.f32 %v1815, %v2035
    %v2085 = vmul.f32 %v1816, %v2035
    %v2086 = vmul.f32 %v1817, %v2035
    %v2087 = vmul.f32 %v1818, %v2035
    %v2088 = vmul.f32 %v1819, %v2035
    %v2089 = vmul.f32 %v1820, %v2035
    %v2090 = vmul.f32 %v1821, %v2035
    %v2091 = vmul.f32 %v1822, %v2035
    %v2092 = vmul.f32 %v1823, %v2035
    %v2093 = vmul.f32 %v1824, %v2035
    %v2094 = vmul.f32 %v1825, %v2035
    %v2095 = vmul.f32 %v1826, %v2035
    %v2096 = vmul.f32 %v1827, %v2035
    %v2097 = vmul.f32 %v1828, %v2035
    %v2098 = vmul.f32 %v1829, %v2035
    %v2099 = vmul.f32 %v1830, %v2035
    %v2101 = vlaneseq
    %v2102 = vshrl.u32 %v2101, 7
    %v2103 = vsub.s32 0, %v2102
    %v2104 = vrot.slane %v1631, %v2103
    %v2106 = vadd.f32 %v2036, %v2104
    %v2107 = vadd.f32 %v2037, %v2104
    %v2108 = vadd.f32 %v2038, %v2104
    %v2109 = vadd.f32 %v2039, %v2104
    %v2110 = vadd.f32 %v2040, %v2104
    %v2111 = vadd.f32 %v2041, %v2104
    %v2112 = vadd.f32 %v2042, %v2104
    %v2113 = vadd.f32 %v2043, %v2104
    %v2114 = vadd.f32 %v2044, %v2104
    %v2115 = vadd.f32 %v2045, %v2104
    %v2116 = vadd.f32 %v2046, %v2104
    %v2117 = vadd.f32 %v2047, %v2104
    %v2118 = vadd.f32 %v2048, %v2104
    %v2119 = vadd.f32 %v2049, %v2104
    %v2120 = vadd.f32 %v2050, %v2104
    %v2121 = vadd.f32 %v2051, %v2104
    %v2122 = vadd.f32 %v2052, %v2104
    %v2123 = vadd.f32 %v2053, %v2104
    %v2124 = vadd.f32 %v2054, %v2104
    %v2125 = vadd.f32 %v2055, %v2104
    %v2126 = vadd.f32 %v2056, %v2104
    %v2127 = vadd.f32 %v2057, %v2104
    %v2128 = vadd.f32 %v2058, %v2104
    %v2129 = vadd.f32 %v2059, %v2104
    %v2130 = vadd.f32 %v2060, %v2104
    %v2131 = vadd.f32 %v2061, %v2104
    %v2132 = vadd.f32 %v2062, %v2104
    %v2133 = vadd.f32 %v2063, %v2104
    %v2134 = vadd.f32 %v2064, %v2104
    %v2135 = vadd.f32 %v2065, %v2104
    %v2136 = vadd.f32 %v2066, %v2104
    %v2137 = vadd.f32 %v2067, %v2104
    %v2138 = vadd.f32 %v2068, %v2104
    %v2139 = vadd.f32 %v2069, %v2104
    %v2140 = vadd.f32 %v2070, %v2104
    %v2141 = vadd.f32 %v2071, %v2104
    %v2142 = vadd.f32 %v2072, %v2104
    %v2143 = vadd.f32 %v2073, %v2104
    %v2144 = vadd.f32 %v2074, %v2104
    %v2145 = vadd.f32 %v2075, %v2104
    %v2146 = vadd.f32 %v2076, %v2104
    %v2147 = vadd.f32 %v2077, %v2104
    %v2148 = vadd.f32 %v2078, %v2104
    %v2149 = vadd.f32 %v2079, %v2104
    %v2150 = vadd.f32 %v2080, %v2104
    %v2151 = vadd.f32 %v2081, %v2104
    %v2152 = vadd.f32 %v2082, %v2104
    %v2153 = vadd.f32 %v2083, %v2104
    %v2154 = vadd.f32 %v2084, %v2104
    %v2155 = vadd.f32 %v2085, %v2104
    %v2156 = vadd.f32 %v2086, %v2104
    %v2157 = vadd.f32 %v2087, %v2104
    %v2158 = vadd.f32 %v2088, %v2104
    %v2159 = vadd.f32 %v2089, %v2104
    %v2160 = vadd.f32 %v2090, %v2104
    %v2161 = vadd.f32 %v2091, %v2104
    %v2162 = vadd.f32 %v2092, %v2104
    %v2163 = vadd.f32 %v2093, %v2104
    %v2164 = vadd.f32 %v2094, %v2104
    %v2165 = vadd.f32 %v2095, %v2104
    %v2166 = vadd.f32 %v2096, %v2104
    %v2167 = vadd.f32 %v2097, %v2104
    %v2168 = vadd.f32 %v2098, %v2104
    %v2169 = vadd.f32 %v2099, %v2104
    %v2170 = vmax.f32 %v2106, 0.0
    %v2171 = vmax.f32 %v2107, 0.0
    %v2172 = vmax.f32 %v2108, 0.0
    %v2173 = vmax.f32 %v2109, 0.0
    %v2174 = vmax.f32 %v2110, 0.0
    %v2175 = vmax.f32 %v2111, 0.0
    %v2176 = vmax.f32 %v2112, 0.0
    %v2177 = vmax.f32 %v2113, 0.0
    %v2178 = vmax.f32 %v2114, 0.0
    %v2179 = vmax.f32 %v2115, 0.0
    %v2180 = vmax.f32 %v2116, 0.0
    %v2181 = vmax.f32 %v2117, 0.0
    %v2182 = vmax.f32 %v2118, 0.0
    %v2183 = vmax.f32 %v2119, 0.0
    %v2184 = vmax.f32 %v2120, 0.0
    %v2185 = vmax.f32 %v2121, 0.0
    %v2186 = vmax.f32 %v2122, 0.0
    %v2187 = vmax.f32 %v2123, 0.0
    %v2188 = vmax.f32 %v2124, 0.0
    %v2189 = vmax.f32 %v2125, 0.0
    %v2190 = vmax.f32 %v2126, 0.0
    %v2191 = vmax.f32 %v2127, 0.0
    %v2192 = vmax.f32 %v2128, 0.0
    %v2193 = vmax.f32 %v2129, 0.0
    %v2194 = vmax.f32 %v2130, 0.0
    %v2195 = vmax.f32 %v2131, 0.0
    %v2196 = vmax.f32 %v2132, 0.0
    %v2197 = vmax.f32 %v2133, 0.0
    %v2198 = vmax.f32 %v2134, 0.0
    %v2199 = vmax.f32 %v2135, 0.0
    %v2200 = vmax.f32 %v2136, 0.0
    %v2201 = vmax.f32 %v2137, 0.0
    %v2202 = vmax.f32 %v2138, 0.0
    %v2203 = vmax.f32 %v2139, 0.0
    %v2204 = vmax.f32 %v2140, 0.0
    %v2205 = vmax.f32 %v2141, 0.0
    %v2206 = vmax.f32 %v2142, 0.0
    %v2207 = vmax.f32 %v2143, 0.0
    %v2208 = vmax.f32 %v2144, 0.0
    %v2209 = vmax.f32 %v2145, 0.0
    %v2210 = vmax.f32 %v2146, 0.0
    %v2211 = vmax.f32 %v2147, 0.0
    %v2212 = vmax.f32 %v2148, 0.0
    %v2213 = vmax.f32 %v2149, 0.0
    %v2214 = vmax.f32 %v2150, 0.0
    %v2215 = vmax.f32 %v2151, 0.0
    %v2216 = vmax.f32 %v2152, 0.0
    %v2217 = vmax.f32 %v2153, 0.0
    %v2218 = vmax.f32 %v2154, 0.0
    %v2219 = vmax.f32 %v2155, 0.0
    %v2220 = vmax.f32 %v2156, 0.0
    %v2221 = vmax.f32 %v2157, 0.0
    %v2222 = vmax.f32 %v2158, 0.0
    %v2223 = vmax.f32 %v2159, 0.0
    %v2224 = vmax.f32 %v2160, 0.0
    %v2225 = vmax.f32 %v2161, 0.0
    %v2226 = vmax.f32 %v2162, 0.0
    %v2227 = vmax.f32 %v2163, 0.0
    %v2228 = vmax.f32 %v2164, 0.0
    %v2229 = vmax.f32 %v2165, 0.0
    %v2230 = vmax.f32 %v2166, 0.0
    %v2231 = vmax.f32 %v2167, 0.0
    %v2232 = vmax.f32 %v2168, 0.0
    %v2233 = vmax.f32 %v2169, 0.0
    %2234 = vst.msk [vmem:[#allocation2] sm:$0xff] %vm1632, 0.0
    %2235 = vst.msk [vmem:[#allocation2 + $0x8] sm:$0xff] %vm1632, 0.0
    %2236 = vst.msk [vmem:[#allocation2 + $0x10] sm:$0xff] %vm1632, 0.0
    %vm2237 = vcmask 58368
    %2238 = vst.msk [vmem:[#allocation2 + $0x18] sm:$0x3] %vm2237, 0.0
    %2239 = vst.msk [vmem:[#allocation2 + $0x20] sm:$0xff] %vm1632, 0.0
    %2240 = vst.msk [vmem:[#allocation2 + $0x28] sm:$0xff] %vm1632, 0.0
    %2241 = vst.msk [vmem:[#allocation2 + $0x30] sm:$0xff] %vm1632, 0.0
    %2242 = vst.msk [vmem:[#allocation2 + $0x38] sm:$0x3] %vm2237, 0.0
    %2243 = vst.msk [vmem:[#allocation2 + $0x40] sm:$0xff] %vm1632, 0.0
    %2244 = vst.msk [vmem:[#allocation2 + $0x48] sm:$0xff] %vm1632, 0.0
    %2245 = vst.msk [vmem:[#allocation2 + $0x50] sm:$0xff] %vm1632, 0.0
    %2246 = vst.msk [vmem:[#allocation2 + $0x58] sm:$0x3] %vm2237, 0.0
    %2247 = vst.msk [vmem:[#allocation2 + $0x60] sm:$0xff] %vm1632, 0.0
    %2248 = vst.msk [vmem:[#allocation2 + $0x68] sm:$0xff] %vm1632, 0.0
    %2249 = vst.msk [vmem:[#allocation2 + $0x70] sm:$0xff] %vm1632, 0.0
    %2250 = vst.msk [vmem:[#allocation2 + $0x78] sm:$0x3] %vm2237, 0.0
    %2251 = vst.msk [vmem:[#allocation2 + $0x80] sm:$0xff] %vm1632, 0.0
    %2252 = vst.msk [vmem:[#allocation2 + $0x88] sm:$0xff] %vm1632, 0.0
    %2253 = vst.msk [vmem:[#allocation2 + $0x90] sm:$0xff] %vm1632, 0.0
    %2254 = vst.msk [vmem:[#allocation2 + $0x98] sm:$0x3] %vm2237, 0.0
    %2255 = vst.msk [vmem:[#allocation2 + $0xa0] sm:$0xff] %vm1632, 0.0
    %2256 = vst.msk [vmem:[#allocation2 + $0xa8] sm:$0xff] %vm1632, 0.0
    %2257 = vst.msk [vmem:[#allocation2 + $0xb0] sm:$0xff] %vm1632, 0.0
    %2258 = vst.msk [vmem:[#allocation2 + $0xb8] sm:$0x3] %vm2237, 0.0
    %2259 = vst.msk [vmem:[#allocation2 + $0xc0] sm:$0xff] %vm1632, 0.0
    %2260 = vst.msk [vmem:[#allocation2 + $0xc8] sm:$0xff] %vm1632, 0.0
    %2261 = vst.msk [vmem:[#allocation2 + $0xd0] sm:$0xff] %vm1632, 0.0
    %2262 = vst.msk [vmem:[#allocation2 + $0xd8] sm:$0x3] %vm2237, 0.0
    %2263 = vst.msk [vmem:[#allocation2 + $0xe0] sm:$0xff] %vm1632, 0.0
    %2264 = vst.msk [vmem:[#allocation2 + $0xe8] sm:$0xff] %vm1632, 0.0
    %2265 = vst.msk [vmem:[#allocation2 + $0xf0] sm:$0xff] %vm1632, 0.0
    %2266 = vst.msk [vmem:[#allocation2 + $0xf8] sm:$0x3] %vm2237, 0.0
    %2267 = vst.msk [vmem:[#allocation2 + $0x100] sm:$0xff] %vm1632, 0.0
    %2268 = vst.msk [vmem:[#allocation2 + $0x108] sm:$0xff] %vm1632, 0.0
    %2269 = vst.msk [vmem:[#allocation2 + $0x110] sm:$0xff] %vm1632, 0.0
    %2270 = vst.msk [vmem:[#allocation2 + $0x118] sm:$0x3] %vm2237, 0.0
    %2271 = vst.msk [vmem:[#allocation2 + $0x120] sm:$0xff] %vm1632, 0.0
    %2272 = vst.msk [vmem:[#allocation2 + $0x128] sm:$0xff] %vm1632, 0.0
    %2273 = vst.msk [vmem:[#allocation2 + $0x130] sm:$0xff] %vm1632, 0.0
    %2274 = vst.msk [vmem:[#allocation2 + $0x138] sm:$0x3] %vm2237, 0.0
    %2275 = vst.msk [vmem:[#allocation2 + $0x140] sm:$0xff] %vm1632, 0.0
    %2276 = vst.msk [vmem:[#allocation2 + $0x148] sm:$0xff] %vm1632, 0.0
    %2277 = vst.msk [vmem:[#allocation2 + $0x150] sm:$0xff] %vm1632, 0.0
    %2278 = vst.msk [vmem:[#allocation2 + $0x158] sm:$0x3] %vm2237, 0.0
    %2279 = vst.msk [vmem:[#allocation2 + $0x160] sm:$0xff] %vm1632, 0.0
    %2280 = vst.msk [vmem:[#allocation2 + $0x168] sm:$0xff] %vm1632, 0.0
    %2281 = vst.msk [vmem:[#allocation2 + $0x170] sm:$0xff] %vm1632, 0.0
    %2282 = vst.msk [vmem:[#allocation2 + $0x178] sm:$0x3] %vm2237, 0.0
    %2283 = vst.msk [vmem:[#allocation2 + $0x180] sm:$0xff] %vm1632, 0.0
    %2284 = vst.msk [vmem:[#allocation2 + $0x188] sm:$0xff] %vm1632, 0.0
    %2285 = vst.msk [vmem:[#allocation2 + $0x190] sm:$0xff] %vm1632, 0.0
    %2286 = vst.msk [vmem:[#allocation2 + $0x198] sm:$0x3] %vm2237, 0.0
    %2287 = vst.msk [vmem:[#allocation2 + $0x1a0] sm:$0xff] %vm1632, 0.0
    %2288 = vst.msk [vmem:[#allocation2 + $0x1a8] sm:$0xff] %vm1632, 0.0
    %2289 = vst.msk [vmem:[#allocation2 + $0x1b0] sm:$0xff] %vm1632, 0.0
    %2290 = vst.msk [vmem:[#allocation2 + $0x1b8] sm:$0x3] %vm2237, 0.0
    %2291 = vst.msk [vmem:[#allocation2 + $0x1c0] sm:$0xff] %vm1632, 0.0
    %2292 = vst.msk [vmem:[#allocation2 + $0x1c8] sm:$0xff] %vm1632, 0.0
    %2293 = vst.msk [vmem:[#allocation2 + $0x1d0] sm:$0xff] %vm1632, 0.0
    %2294 = vst.msk [vmem:[#allocation2 + $0x1d8] sm:$0x3] %vm2237, 0.0
    %2295 = vst.msk [vmem:[#allocation2 + $0x1e0] sm:$0xff] %vm1632, 0.0
    %2296 = vst.msk [vmem:[#allocation2 + $0x1e8] sm:$0xff] %vm1632, 0.0
    %2297 = vst.msk [vmem:[#allocation2 + $0x1f0] sm:$0xff] %vm1632, 0.0
    %2298 = vst.msk [vmem:[#allocation2 + $0x1f8] sm:$0x3] %vm2237, 0.0
    %2299 = vst.msk [vmem:[#allocation2 + $0x200] sm:$0xff] %vm1632, 0.0
    %2300 = vst.msk [vmem:[#allocation2 + $0x208] sm:$0xff] %vm1632, 0.0
    %2301 = vst.msk [vmem:[#allocation2 + $0x210] sm:$0xff] %vm1632, 0.0
    %2302 = vst.msk [vmem:[#allocation2 + $0x218] sm:$0x3] %vm2237, 0.0
    %2303 = vst.msk [vmem:[#allocation2 + $0x220] sm:$0xff] %vm1632, 0.0
    %2304 = vst.msk [vmem:[#allocation2 + $0x228] sm:$0xff] %vm1632, 0.0
    %2305 = vst.msk [vmem:[#allocation2 + $0x230] sm:$0xff] %vm1632, 0.0
    %2306 = vst.msk [vmem:[#allocation2 + $0x238] sm:$0x3] %vm2237, 0.0
    %2307 = vst.msk [vmem:[#allocation2 + $0x240] sm:$0xff] %vm1632, 0.0
    %2308 = vst.msk [vmem:[#allocation2 + $0x248] sm:$0xff] %vm1632, 0.0
    %2309 = vst.msk [vmem:[#allocation2 + $0x250] sm:$0xff] %vm1632, 0.0
    %2310 = vst.msk [vmem:[#allocation2 + $0x258] sm:$0x3] %vm2237, 0.0
    %2311 = vst.msk [vmem:[#allocation2 + $0x260] sm:$0xff] %vm1632, 0.0
    %2312 = vst.msk [vmem:[#allocation2 + $0x268] sm:$0xff] %vm1632, 0.0
    %2313 = vst.msk [vmem:[#allocation2 + $0x270] sm:$0xff] %vm1632, 0.0
    %2314 = vst.msk [vmem:[#allocation2 + $0x278] sm:$0x3] %vm2237, 0.0
    %2315 = vst.msk [vmem:[#allocation2 + $0x280] sm:$0xff] %vm1632, 0.0
    %2316 = vst.msk [vmem:[#allocation2 + $0x288] sm:$0xff] %vm1632, 0.0
    %2317 = vst.msk [vmem:[#allocation2 + $0x290] sm:$0xff] %vm1632, 0.0
    %2318 = vst.msk [vmem:[#allocation2 + $0x298] sm:$0x3] %vm2237, 0.0
    %2319 = vst.msk [vmem:[#allocation2 + $0x2a0] sm:$0xff] %vm1632, 0.0
    %2320 = vst.msk [vmem:[#allocation2 + $0x2a8] sm:$0xff] %vm1632, 0.0
    %2321 = vst.msk [vmem:[#allocation2 + $0x2b0] sm:$0xff] %vm1632, 0.0
    %2322 = vst.msk [vmem:[#allocation2 + $0x2b8] sm:$0x3] %vm2237, 0.0
    %2323 = vst.msk [vmem:[#allocation2 + $0x2c0] sm:$0xff] %vm1632, 0.0
    %2324 = vst.msk [vmem:[#allocation2 + $0x2c8] sm:$0xff] %vm1632, 0.0
    %2325 = vst.msk [vmem:[#allocation2 + $0x2d0] sm:$0xff] %vm1632, 0.0
    %2326 = vst.msk [vmem:[#allocation2 + $0x2d8] sm:$0x3] %vm2237, 0.0
    %2327 = vst.msk [vmem:[#allocation2 + $0x2e0] sm:$0xff] %vm1632, 0.0
    %2328 = vst.msk [vmem:[#allocation2 + $0x2e8] sm:$0xff] %vm1632, 0.0
    %2329 = vst.msk [vmem:[#allocation2 + $0x2f0] sm:$0xff] %vm1632, 0.0
    %2330 = vst.msk [vmem:[#allocation2 + $0x2f8] sm:$0x3] %vm2237, 0.0
    %2331 = vst.msk [vmem:[#allocation2 + $0x300] sm:$0xff] %vm1632, 0.0
    %2332 = vst.msk [vmem:[#allocation2 + $0x308] sm:$0xff] %vm1632, 0.0
    %2333 = vst.msk [vmem:[#allocation2 + $0x310] sm:$0xff] %vm1632, 0.0
    %2334 = vst.msk [vmem:[#allocation2 + $0x318] sm:$0x3] %vm2237, 0.0
    %2335 = vst.msk [vmem:[#allocation2 + $0x320] sm:$0xff] %vm1632, 0.0
    %2336 = vst.msk [vmem:[#allocation2 + $0x328] sm:$0xff] %vm1632, 0.0
    %2337 = vst.msk [vmem:[#allocation2 + $0x330] sm:$0xff] %vm1632, 0.0
    %2338 = vst.msk [vmem:[#allocation2 + $0x338] sm:$0x3] %vm2237, 0.0
    %2339 = vst.msk [vmem:[#allocation2 + $0x340] sm:$0xff] %vm1632, 0.0
    %2340 = vst.msk [vmem:[#allocation2 + $0x348] sm:$0xff] %vm1632, 0.0
    %2341 = vst.msk [vmem:[#allocation2 + $0x350] sm:$0xff] %vm1632, 0.0
    %2342 = vst.msk [vmem:[#allocation2 + $0x358] sm:$0x3] %vm2237, 0.0
    %2343 = vst.msk [vmem:[#allocation2 + $0x360] sm:$0xff] %vm1632, 0.0
    %2344 = vst.msk [vmem:[#allocation2 + $0x368] sm:$0xff] %vm1632, 0.0
    %2345 = vst.msk [vmem:[#allocation2 + $0x370] sm:$0xff] %vm1632, 0.0
    %2346 = vst.msk [vmem:[#allocation2 + $0x378] sm:$0x3] %vm2237, 0.0
    %2347 = vst.msk [vmem:[#allocation2 + $0x380] sm:$0xff] %vm1632, 0.0
    %2348 = vst.msk [vmem:[#allocation2 + $0x388] sm:$0xff] %vm1632, 0.0
    %2349 = vst.msk [vmem:[#allocation2 + $0x390] sm:$0xff] %vm1632, 0.0
    %2350 = vst.msk [vmem:[#allocation2 + $0x398] sm:$0x3] %vm2237, 0.0
    %2351 = vst.msk [vmem:[#allocation2 + $0x3a0] sm:$0xff] %vm1632, 0.0
    %2352 = vst.msk [vmem:[#allocation2 + $0x3a8] sm:$0xff] %vm1632, 0.0
    %2353 = vst.msk [vmem:[#allocation2 + $0x3b0] sm:$0xff] %vm1632, 0.0
    %2354 = vst.msk [vmem:[#allocation2 + $0x3b8] sm:$0x3] %vm2237, 0.0
    %2355 = vst.msk [vmem:[#allocation2 + $0x3c0] sm:$0xff] %vm1632, 0.0
    %2356 = vst.msk [vmem:[#allocation2 + $0x3c8] sm:$0xff] %vm1632, 0.0
    %2357 = vst.msk [vmem:[#allocation2 + $0x3d0] sm:$0xff] %vm1632, 0.0
    %2358 = vst.msk [vmem:[#allocation2 + $0x3d8] sm:$0x3] %vm2237, 0.0
    %2359 = vst.msk [vmem:[#allocation2 + $0x3e0] sm:$0xff] %vm1632, 0.0
    %2360 = vst.msk [vmem:[#allocation2 + $0x3e8] sm:$0xff] %vm1632, 0.0
    %2361 = vst.msk [vmem:[#allocation2 + $0x3f0] sm:$0xff] %vm1632, 0.0
    %2362 = vst.msk [vmem:[#allocation2 + $0x3f8] sm:$0x3] %vm2237, 0.0
    %2363 = vst.msk [vmem:[#allocation2 + $0x400] sm:$0xff] %vm1632, 0.0
    %2364 = vst.msk [vmem:[#allocation2 + $0x408] sm:$0xff] %vm1632, 0.0
    %2365 = vst.msk [vmem:[#allocation2 + $0x410] sm:$0xff] %vm1632, 0.0
    %2366 = vst.msk [vmem:[#allocation2 + $0x418] sm:$0x3] %vm2237, 0.0
    %2367 = vst.msk [vmem:[#allocation2 + $0x420] sm:$0xff] %vm1632, 0.0
    %2368 = vst.msk [vmem:[#allocation2 + $0x428] sm:$0xff] %vm1632, 0.0
    %2369 = vst.msk [vmem:[#allocation2 + $0x430] sm:$0xff] %vm1632, 0.0
    %2370 = vst.msk [vmem:[#allocation2 + $0x438] sm:$0x3] %vm2237, 0.0
    %2371 = vst.msk [vmem:[#allocation2 + $0x440] sm:$0xff] %vm1632, 0.0
    %2372 = vst.msk [vmem:[#allocation2 + $0x448] sm:$0xff] %vm1632, 0.0
    %2373 = vst.msk [vmem:[#allocation2 + $0x450] sm:$0xff] %vm1632, 0.0
    %2374 = vst.msk [vmem:[#allocation2 + $0x458] sm:$0x3] %vm2237, 0.0
    %2375 = vst.msk [vmem:[#allocation2 + $0x460] sm:$0xff] %vm1632, 0.0
    %2376 = vst.msk [vmem:[#allocation2 + $0x468] sm:$0xff] %vm1632, 0.0
    %2377 = vst.msk [vmem:[#allocation2 + $0x470] sm:$0xff] %vm1632, 0.0
    %2378 = vst.msk [vmem:[#allocation2 + $0x478] sm:$0x3] %vm2237, 0.0
    %2379 = vst.msk [vmem:[#allocation2 + $0x480] sm:$0xff] %vm1632, 0.0
    %2380 = vst.msk [vmem:[#allocation2 + $0x488] sm:$0xff] %vm1632, 0.0
    %2381 = vst.msk [vmem:[#allocation2 + $0x490] sm:$0xff] %vm1632, 0.0
    %2382 = vst.msk [vmem:[#allocation2 + $0x498] sm:$0x3] %vm2237, 0.0
    %2383 = vst.msk [vmem:[#allocation2 + $0x4a0] sm:$0xff] %vm1632, 0.0
    %2384 = vst.msk [vmem:[#allocation2 + $0x4a8] sm:$0xff] %vm1632, 0.0
    %2385 = vst.msk [vmem:[#allocation2 + $0x4b0] sm:$0xff] %vm1632, 0.0
    %2386 = vst.msk [vmem:[#allocation2 + $0x4b8] sm:$0x3] %vm2237, 0.0
    %2387 = vst.msk [vmem:[#allocation2 + $0x4c0] sm:$0xff] %vm1632, 0.0
    %2388 = vst.msk [vmem:[#allocation2 + $0x4c8] sm:$0xff] %vm1632, 0.0
    %2389 = vst.msk [vmem:[#allocation2 + $0x4d0] sm:$0xff] %vm1632, 0.0
    %2390 = vst.msk [vmem:[#allocation2 + $0x4d8] sm:$0x3] %vm2237, 0.0
    %2391 = vst.msk [vmem:[#allocation2 + $0x4e0] sm:$0xff] %vm1632, 0.0
    %2392 = vst.msk [vmem:[#allocation2 + $0x4e8] sm:$0xff] %vm1632, 0.0
    %2393 = vst.msk [vmem:[#allocation2 + $0x4f0] sm:$0xff] %vm1632, 0.0
    %2394 = vst.msk [vmem:[#allocation2 + $0x4f8] sm:$0x3] %vm2237, 0.0
    %s2395 = scalar_lea.vmem [#allocation2], 64
    %2396 = vst.msk [vmem:[%s2395 + $0x8] sm:$0xff] %vm1632, %v2170
    %2397 = vst.msk [vmem:[%s2395 + $0x10] sm:$0xff] %vm1632, %v2171
    %2398 = vst.msk [vmem:[%s2395 + $0x28] sm:$0xff] %vm1632, %v2172
    %2399 = vst.msk [vmem:[%s2395 + $0x30] sm:$0xff] %vm1632, %v2173
    %2400 = vst.msk [vmem:[%s2395 + $0x48] sm:$0xff] %vm1632, %v2174
    %2401 = vst.msk [vmem:[%s2395 + $0x50] sm:$0xff] %vm1632, %v2175
    %2402 = vst.msk [vmem:[%s2395 + $0x68] sm:$0xff] %vm1632, %v2176
    %2403 = vst.msk [vmem:[%s2395 + $0x70] sm:$0xff] %vm1632, %v2177
    %2404 = vst.msk [vmem:[%s2395 + $0x88] sm:$0xff] %vm1632, %v2178
    %2405 = vst.msk [vmem:[%s2395 + $0x90] sm:$0xff] %vm1632, %v2179
    %2406 = vst.msk [vmem:[%s2395 + $0xa8] sm:$0xff] %vm1632, %v2180
    %2407 = vst.msk [vmem:[%s2395 + $0xb0] sm:$0xff] %vm1632, %v2181
    %2408 = vst.msk [vmem:[%s2395 + $0xc8] sm:$0xff] %vm1632, %v2182
    %2409 = vst.msk [vmem:[%s2395 + $0xd0] sm:$0xff] %vm1632, %v2183
    %2410 = vst.msk [vmem:[%s2395 + $0xe8] sm:$0xff] %vm1632, %v2184
    %2411 = vst.msk [vmem:[%s2395 + $0xf0] sm:$0xff] %vm1632, %v2185
    %2412 = vst.msk [vmem:[%s2395 + $0x108] sm:$0xff] %vm1632, %v2186
    %2413 = vst.msk [vmem:[%s2395 + $0x110] sm:$0xff] %vm1632, %v2187
    %2414 = vst.msk [vmem:[%s2395 + $0x128] sm:$0xff] %vm1632, %v2188
    %2415 = vst.msk [vmem:[%s2395 + $0x130] sm:$0xff] %vm1632, %v2189
    %2416 = vst.msk [vmem:[%s2395 + $0x148] sm:$0xff] %vm1632, %v2190
    %2417 = vst.msk [vmem:[%s2395 + $0x150] sm:$0xff] %vm1632, %v2191
    %2418 = vst.msk [vmem:[%s2395 + $0x168] sm:$0xff] %vm1632, %v2192
    %2419 = vst.msk [vmem:[%s2395 + $0x170] sm:$0xff] %vm1632, %v2193
    %2420 = vst.msk [vmem:[%s2395 + $0x188] sm:$0xff] %vm1632, %v2194
    %2421 = vst.msk [vmem:[%s2395 + $0x190] sm:$0xff] %vm1632, %v2195
    %2422 = vst.msk [vmem:[%s2395 + $0x1a8] sm:$0xff] %vm1632, %v2196
    %2423 = vst.msk [vmem:[%s2395 + $0x1b0] sm:$0xff] %vm1632, %v2197
    %2424 = vst.msk [vmem:[%s2395 + $0x1c8] sm:$0xff] %vm1632, %v2198
    %2425 = vst.msk [vmem:[%s2395 + $0x1d0] sm:$0xff] %vm1632, %v2199
    %2426 = vst.msk [vmem:[%s2395 + $0x1e8] sm:$0xff] %vm1632, %v2200
    %2427 = vst.msk [vmem:[%s2395 + $0x1f0] sm:$0xff] %vm1632, %v2201
    %2428 = vst.msk [vmem:[%s2395 + $0x288] sm:$0xff] %vm1632, %v2202
    %2429 = vst.msk [vmem:[%s2395 + $0x290] sm:$0xff] %vm1632, %v2203
    %2430 = vst.msk [vmem:[%s2395 + $0x2a8] sm:$0xff] %vm1632, %v2204
    %2431 = vst.msk [vmem:[%s2395 + $0x2b0] sm:$0xff] %vm1632, %v2205
    %2432 = vst.msk [vmem:[%s2395 + $0x2c8] sm:$0xff] %vm1632, %v2206
    %2433 = vst.msk [vmem:[%s2395 + $0x2d0] sm:$0xff] %vm1632, %v2207
    %2434 = vst.msk [vmem:[%s2395 + $0x2e8] sm:$0xff] %vm1632, %v2208
    %2435 = vst.msk [vmem:[%s2395 + $0x2f0] sm:$0xff] %vm1632, %v2209
    %2436 = vst.msk [vmem:[%s2395 + $0x308] sm:$0xff] %vm1632, %v2210
    %2437 = vst.msk [vmem:[%s2395 + $0x310] sm:$0xff] %vm1632, %v2211
    %2438 = vst.msk [vmem:[%s2395 + $0x328] sm:$0xff] %vm1632, %v2212
    %2439 = vst.msk [vmem:[%s2395 + $0x330] sm:$0xff] %vm1632, %v2213
    %2440 = vst.msk [vmem:[%s2395 + $0x348] sm:$0xff] %vm1632, %v2214
    %2441 = vst.msk [vmem:[%s2395 + $0x350] sm:$0xff] %vm1632, %v2215
    %2442 = vst.msk [vmem:[%s2395 + $0x368] sm:$0xff] %vm1632, %v2216
    %2443 = vst.msk [vmem:[%s2395 + $0x370] sm:$0xff] %vm1632, %v2217
    %2444 = vst.msk [vmem:[%s2395 + $0x388] sm:$0xff] %vm1632, %v2218
    %2445 = vst.msk [vmem:[%s2395 + $0x390] sm:$0xff] %vm1632, %v2219
    %2446 = vst.msk [vmem:[%s2395 + $0x3a8] sm:$0xff] %vm1632, %v2220
    %2447 = vst.msk [vmem:[%s2395 + $0x3b0] sm:$0xff] %vm1632, %v2221
    %2448 = vst.msk [vmem:[%s2395 + $0x3c8] sm:$0xff] %vm1632, %v2222
    %2449 = vst.msk [vmem:[%s2395 + $0x3d0] sm:$0xff] %vm1632, %v2223
    %2450 = vst.msk [vmem:[%s2395 + $0x3e8] sm:$0xff] %vm1632, %v2224
    %2451 = vst.msk [vmem:[%s2395 + $0x3f0] sm:$0xff] %vm1632, %v2225
    %2452 = vst.msk [vmem:[%s2395 + $0x408] sm:$0xff] %vm1632, %v2226
    %2453 = vst.msk [vmem:[%s2395 + $0x410] sm:$0xff] %vm1632, %v2227
    %2454 = vst.msk [vmem:[%s2395 + $0x428] sm:$0xff] %vm1632, %v2228
    %2455 = vst.msk [vmem:[%s2395 + $0x430] sm:$0xff] %vm1632, %v2229
    %2456 = vst.msk [vmem:[%s2395 + $0x448] sm:$0xff] %vm1632, %v2230
    %2457 = vst.msk [vmem:[%s2395 + $0x450] sm:$0xff] %vm1632, %v2231
    %2458 = vst.msk [vmem:[%s2395 + $0x468] sm:$0xff] %vm1632, %v2232
    %2459 = vst.msk [vmem:[%s2395 + $0x470] sm:$0xff] %vm1632, %v2233
    %v2460 = vld [vmem:[#allocation2 + $0x6] sm:$0xff]
    %v2461 = vld [vmem:[#allocation2 + $0xe] sm:$0xff]
    %v2462 = vld [vmem:[#allocation2 + $0x26] sm:$0xff]
    %v2463 = vld [vmem:[#allocation2 + $0x2e] sm:$0xff]
    %v2464 = vld [vmem:[#allocation2 + $0x46] sm:$0xff]
    %v2465 = vld [vmem:[#allocation2 + $0x4e] sm:$0xff]
    %v2466 = vld [vmem:[#allocation2 + $0x66] sm:$0xff]
    %v2467 = vld [vmem:[#allocation2 + $0x6e] sm:$0xff]
    %v2468 = vld [vmem:[#allocation2 + $0x86] sm:$0xff]
    %v2469 = vld [vmem:[#allocation2 + $0x8e] sm:$0xff]
    %v2470 = vld [vmem:[#allocation2 + $0xa6] sm:$0xff]
    %v2471 = vld [vmem:[#allocation2 + $0xae] sm:$0xff]
    %v2472 = vld [vmem:[#allocation2 + $0xc6] sm:$0xff]
    %v2473 = vld [vmem:[#allocation2 + $0xce] sm:$0xff]
    %v2474 = vld [vmem:[#allocation2 + $0xe6] sm:$0xff]
    %v2475 = vld [vmem:[#allocation2 + $0xee] sm:$0xff]
    %v2476 = vld [vmem:[#allocation2 + $0x106] sm:$0xff]
    %v2477 = vld [vmem:[#allocation2 + $0x10e] sm:$0xff]
    %v2478 = vld [vmem:[#allocation2 + $0x126] sm:$0xff]
    %v2479 = vld [vmem:[#allocation2 + $0x12e] sm:$0xff]
    %v2480 = vld [vmem:[#allocation2 + $0x146] sm:$0xff]
    %v2481 = vld [vmem:[#allocation2 + $0x14e] sm:$0xff]
    %v2482 = vld [vmem:[#allocation2 + $0x166] sm:$0xff]
    %v2483 = vld [vmem:[#allocation2 + $0x16e] sm:$0xff]
    %v2484 = vld [vmem:[#allocation2 + $0x186] sm:$0xff]
    %v2485 = vld [vmem:[#allocation2 + $0x18e] sm:$0xff]
    %v2486 = vld [vmem:[#allocation2 + $0x1a6] sm:$0xff]
    %v2487 = vld [vmem:[#allocation2 + $0x1ae] sm:$0xff]
    %v2488 = vld [vmem:[#allocation2 + $0x1c6] sm:$0xff]
    %v2489 = vld [vmem:[#allocation2 + $0x1ce] sm:$0xff]
    %v2490 = vld [vmem:[#allocation2 + $0x1e6] sm:$0xff]
    %v2491 = vld [vmem:[#allocation2 + $0x1ee] sm:$0xff]
    %v2492 = vld [vmem:[#allocation2 + $0x286] sm:$0xff]
    %v2493 = vld [vmem:[#allocation2 + $0x28e] sm:$0xff]
    %v2494 = vld [vmem:[#allocation2 + $0x2a6] sm:$0xff]
    %v2495 = vld [vmem:[#allocation2 + $0x2ae] sm:$0xff]
    %v2496 = vld [vmem:[#allocation2 + $0x2c6] sm:$0xff]
    %v2497 = vld [vmem:[#allocation2 + $0x2ce] sm:$0xff]
    %v2498 = vld [vmem:[#allocation2 + $0x2e6] sm:$0xff]
    %v2499 = vld [vmem:[#allocation2 + $0x2ee] sm:$0xff]
    %v2500 = vld [vmem:[#allocation2 + $0x306] sm:$0xff]
    %v2501 = vld [vmem:[#allocation2 + $0x30e] sm:$0xff]
    %v2502 = vld [vmem:[#allocation2 + $0x326] sm:$0xff]
    %v2503 = vld [vmem:[#allocation2 + $0x32e] sm:$0xff]
    %v2504 = vld [vmem:[#allocation2 + $0x346] sm:$0xff]
    %v2505 = vld [vmem:[#allocation2 + $0x34e] sm:$0xff]
    %v2506 = vld [vmem:[#allocation2 + $0x366] sm:$0xff]
    %v2507 = vld [vmem:[#allocation2 + $0x36e] sm:$0xff]
    %v2508 = vld [vmem:[#allocation2 + $0x386] sm:$0xff]
    %v2509 = vld [vmem:[#allocation2 + $0x38e] sm:$0xff]
    %v2510 = vld [vmem:[#allocation2 + $0x3a6] sm:$0xff]
    %v2511 = vld [vmem:[#allocation2 + $0x3ae] sm:$0xff]
    %v2512 = vld [vmem:[#allocation2 + $0x3c6] sm:$0xff]
    %v2513 = vld [vmem:[#allocation2 + $0x3ce] sm:$0xff]
    %v2514 = vld [vmem:[#allocation2 + $0x3e6] sm:$0xff]
    %v2515 = vld [vmem:[#allocation2 + $0x3ee] sm:$0xff]
    %v2516 = vld [vmem:[#allocation2 + $0x406] sm:$0xff]
    %v2517 = vld [vmem:[#allocation2 + $0x40e] sm:$0xff]
    %v2518 = vld [vmem:[#allocation2 + $0x426] sm:$0xff]
    %v2519 = vld [vmem:[#allocation2 + $0x42e] sm:$0xff]
    %v2520 = vld [vmem:[#allocation2 + $0x446] sm:$0xff]
    %v2521 = vld [vmem:[#allocation2 + $0x44e] sm:$0xff]
    %v2522 = vld [vmem:[#allocation2 + $0x466] sm:$0xff]
    %v2523 = vld [vmem:[#allocation2 + $0x46e] sm:$0xff]
    %v2524 = vld [vmem:[%s4] sm:$0xff]
    %v2525 = vld [vmem:[#allocation2 + $0x8] sm:$0xff]
    %v2526 = vld [vmem:[#allocation2 + $0x10] sm:$0xff]
    %v2527 = vld [vmem:[#allocation2 + $0x28] sm:$0xff]
    %v2528 = vld [vmem:[#allocation2 + $0x30] sm:$0xff]
    %v2529 = vld [vmem:[#allocation2 + $0x48] sm:$0xff]
    %v2530 = vld [vmem:[#allocation2 + $0x50] sm:$0xff]
    %v2531 = vld [vmem:[#allocation2 + $0x68] sm:$0xff]
    %v2532 = vld [vmem:[#allocation2 + $0x70] sm:$0xff]
    %v2533 = vld [vmem:[#allocation2 + $0x88] sm:$0xff]
    %v2534 = vld [vmem:[#allocation2 + $0x90] sm:$0xff]
    %v2535 = vld [vmem:[#allocation2 + $0xa8] sm:$0xff]
    %v2536 = vld [vmem:[#allocation2 + $0xb0] sm:$0xff]
    %v2537 = vld [vmem:[#allocation2 + $0xc8] sm:$0xff]
    %v2538 = vld [vmem:[#allocation2 + $0xd0] sm:$0xff]
    %v2539 = vld [vmem:[#allocation2 + $0xe8] sm:$0xff]
    %v2540 = vld [vmem:[#allocation2 + $0xf0] sm:$0xff]
    %v2541 = vld [vmem:[#allocation2 + $0x108] sm:$0xff]
    %v2542 = vld [vmem:[#allocation2 + $0x110] sm:$0xff]
    %v2543 = vld [vmem:[#allocation2 + $0x128] sm:$0xff]
    %v2544 = vld [vmem:[#allocation2 + $0x130] sm:$0xff]
    %v2545 = vld [vmem:[#allocation2 + $0x148] sm:$0xff]
    %v2546 = vld [vmem:[#allocation2 + $0x150] sm:$0xff]
    %v2547 = vld [vmem:[#allocation2 + $0x168] sm:$0xff]
    %v2548 = vld [vmem:[#allocation2 + $0x170] sm:$0xff]
    %v2549 = vld [vmem:[#allocation2 + $0x188] sm:$0xff]
    %v2550 = vld [vmem:[#allocation2 + $0x190] sm:$0xff]
    %v2551 = vld [vmem:[#allocation2 + $0x1a8] sm:$0xff]
    %v2552 = vld [vmem:[#allocation2 + $0x1b0] sm:$0xff]
    %v2553 = vld [vmem:[#allocation2 + $0x1c8] sm:$0xff]
    %v2554 = vld [vmem:[#allocation2 + $0x1d0] sm:$0xff]
    %v2555 = vld [vmem:[#allocation2 + $0x1e8] sm:$0xff]
    %v2556 = vld [vmem:[#allocation2 + $0x1f0] sm:$0xff]
    %v2557 = vld [vmem:[#allocation2 + $0x288] sm:$0xff]
    %v2558 = vld [vmem:[#allocation2 + $0x290] sm:$0xff]
    %v2559 = vld [vmem:[#allocation2 + $0x2a8] sm:$0xff]
    %v2560 = vld [vmem:[#allocation2 + $0x2b0] sm:$0xff]
    %v2561 = vld [vmem:[#allocation2 + $0x2c8] sm:$0xff]
    %v2562 = vld [vmem:[#allocation2 + $0x2d0] sm:$0xff]
    %v2563 = vld [vmem:[#allocation2 + $0x2e8] sm:$0xff]
    %v2564 = vld [vmem:[#allocation2 + $0x2f0] sm:$0xff]
    %v2565 = vld [vmem:[#allocation2 + $0x308] sm:$0xff]
    %v2566 = vld [vmem:[#allocation2 + $0x310] sm:$0xff]
    %v2567 = vld [vmem:[#allocation2 + $0x328] sm:$0xff]
    %v2568 = vld [vmem:[#allocation2 + $0x330] sm:$0xff]
    %v2569 = vld [vmem:[#allocation2 + $0x348] sm:$0xff]
    %v2570 = vld [vmem:[#allocation2 + $0x350] sm:$0xff]
    %v2571 = vld [vmem:[#allocation2 + $0x368] sm:$0xff]
    %v2572 = vld [vmem:[#allocation2 + $0x370] sm:$0xff]
    %v2573 = vld [vmem:[#allocation2 + $0x388] sm:$0xff]
    %v2574 = vld [vmem:[#allocation2 + $0x390] sm:$0xff]
    %v2575 = vld [vmem:[#allocation2 + $0x3a8] sm:$0xff]
    %v2576 = vld [vmem:[#allocation2 + $0x3b0] sm:$0xff]
    %v2577 = vld [vmem:[#allocation2 + $0x3c8] sm:$0xff]
    %v2578 = vld [vmem:[#allocation2 + $0x3d0] sm:$0xff]
    %v2579 = vld [vmem:[#allocation2 + $0x3e8] sm:$0xff]
    %v2580 = vld [vmem:[#allocation2 + $0x3f0] sm:$0xff]
    %v2581 = vld [vmem:[#allocation2 + $0x408] sm:$0xff]
    %v2582 = vld [vmem:[#allocation2 + $0x410] sm:$0xff]
    %v2583 = vld [vmem:[#allocation2 + $0x428] sm:$0xff]
    %v2584 = vld [vmem:[#allocation2 + $0x430] sm:$0xff]
    %v2585 = vld [vmem:[#allocation2 + $0x448] sm:$0xff]
    %v2586 = vld [vmem:[#allocation2 + $0x450] sm:$0xff]
    %v2587 = vld [vmem:[#allocation2 + $0x468] sm:$0xff]
    %v2588 = vld [vmem:[#allocation2 + $0x470] sm:$0xff]
    %s2589 = scalar_lea.vmem %s4, 8
    %v2590 = vld [vmem:[%s2589] sm:$0xff]
    %v2592 = vsel %vm1632, %v2525, 0
    %v2595 = vsel %vm1632, %v2526, 0
    %v2598 = vsel %vm1632, %v2527, 0
    %v2601 = vsel %vm1632, %v2528, 0
    %v2604 = vsel %vm1632, %v2529, 0
    %v2607 = vsel %vm1632, %v2530, 0
    %v2610 = vsel %vm1632, %v2531, 0
    %v2613 = vsel %vm1632, %v2532, 0
    %v2616 = vsel %vm1632, %v2533, 0
    %v2619 = vsel %vm1632, %v2534, 0
    %v2622 = vsel %vm1632, %v2535, 0
    %v2625 = vsel %vm1632, %v2536, 0
    %v2628 = vsel %vm1632, %v2537, 0
    %v2631 = vsel %vm1632, %v2538, 0
    %v2634 = vsel %vm1632, %v2539, 0
    %v2637 = vsel %vm1632, %v2540, 0
    %v2640 = vsel %vm1632, %v2541, 0
    %v2643 = vsel %vm1632, %v2542, 0
    %v2646 = vsel %vm1632, %v2543, 0
    %v2649 = vsel %vm1632, %v2544, 0
    %v2652 = vsel %vm1632, %v2545, 0
    %v2655 = vsel %vm1632, %v2546, 0
    %v2658 = vsel %vm1632, %v2547, 0
    %v2661 = vsel %vm1632, %v2548, 0
    %v2664 = vsel %vm1632, %v2549, 0
    %v2667 = vsel %vm1632, %v2550, 0
    %v2670 = vsel %vm1632, %v2551, 0
    %v2673 = vsel %vm1632, %v2552, 0
    %v2676 = vsel %vm1632, %v2553, 0
    %v2679 = vsel %vm1632, %v2554, 0
    %v2682 = vsel %vm1632, %v2555, 0
    %v2685 = vsel %vm1632, %v2556, 0
    %v2688 = vsel %vm1632, %v2557, 0
    %v2691 = vsel %vm1632, %v2558, 0
    %v2694 = vsel %vm1632, %v2559, 0
    %v2697 = vsel %vm1632, %v2560, 0
    %v2700 = vsel %vm1632, %v2561, 0
    %v2703 = vsel %vm1632, %v2562, 0
    %v2706 = vsel %vm1632, %v2563, 0
    %v2709 = vsel %vm1632, %v2564, 0
    %v2712 = vsel %vm1632, %v2565, 0
    %v2715 = vsel %vm1632, %v2566, 0
    %v2718 = vsel %vm1632, %v2567, 0
    %v2721 = vsel %vm1632, %v2568, 0
    %v2724 = vsel %vm1632, %v2569, 0
    %v2727 = vsel %vm1632, %v2570, 0
    %v2730 = vsel %vm1632, %v2571, 0
    %v2733 = vsel %vm1632, %v2572, 0
    %v2736 = vsel %vm1632, %v2573, 0
    %v2739 = vsel %vm1632, %v2574, 0
    %v2742 = vsel %vm1632, %v2575, 0
    %v2745 = vsel %vm1632, %v2576, 0
    %v2748 = vsel %vm1632, %v2577, 0
    %v2751 = vsel %vm1632, %v2578, 0
    %v2754 = vsel %vm1632, %v2579, 0
    %v2757 = vsel %vm1632, %v2580, 0
    %v2760 = vsel %vm1632, %v2581, 0
    %v2763 = vsel %vm1632, %v2582, 0
    %v2766 = vsel %vm1632, %v2583, 0
    %v2769 = vsel %vm1632, %v2584, 0
    %v2772 = vsel %vm1632, %v2585, 0
    %v2775 = vsel %vm1632, %v2586, 0
    %v2778 = vsel %vm1632, %v2587, 0
    %v2781 = vsel %vm1632, %v2588, 0
    %2783 = vmatprep.subr.mxu0 0.0
    %2784 = vmatpush1.msra.mxu0 %v2590
    %2785 = vmatprep.subr.mxu0 0.0
    %2786 = vmatpush1.msra.mxu0 0.0
    %2787 = vmatprep.subr.mxu0 0.0
    %2788 = vmatpush1.msra.mxu0 0.0
    %2789 = vmatprep.subr.mxu0 0.0
    %2790 = vmatpush1.msra.mxu0 0.0
    %2791 = vmatprep.subr.mxu0 0.0
    %2792 = vmatpush1.msra.mxu0 0.0
    %2793 = vmatprep.subr.mxu0 0.0
    %2794 = vmatpush1.msra.mxu0 0.0
    %2795 = vmatprep.subr.mxu0 0.0
    %2796 = vmatpush1.msra.mxu0 0.0
    %2797 = vmatprep.subr.mxu0 0.0
    %2798 = vmatpush1.msra.mxu0 0.0
    %2799 = vmatprep.subr.mxu0 0.0
    %2800 = vmatpush1.msra.mxu0 0.0
    %2801 = vmatprep.subr.mxu0 0.0
    %2802 = vmatpush1.msra.mxu0 0.0
    %2803 = vmatprep.subr.mxu0 0.0
    %2804 = vmatpush1.msra.mxu0 0.0
    %2805 = vmatprep.subr.mxu0 0.0
    %2806 = vmatpush1.msra.mxu0 0.0
    %2807 = vmatprep.subr.mxu0 0.0
    %2808 = vmatpush1.msra.mxu0 0.0
    %2809 = vmatprep.subr.mxu0 0.0
    %2810 = vmatpush1.msra.mxu0 0.0
    %2811 = vmatprep.subr.mxu0 0.0
    %2812 = vmatpush1.msra.mxu0 0.0
    %2813 = vmatprep.subr.mxu0 0.0
    %2814 = vmatpush1.msra.mxu0 0.0
    %2815 = vmatprep.subr.mxu0 0.0
    %2816 = vmatpush1.msra.mxu0 0.0
    %2817 = vmatprep.subr.mxu0 0.0
    %2818 = vmatpush1.msra.mxu0 0.0
    %2819 = vmatprep.subr.mxu0 0.0
    %2820 = vmatpush1.msra.mxu0 0.0
    %2821 = vmatprep.subr.mxu0 0.0
    %2822 = vmatpush1.msra.mxu0 0.0
    %2823 = vmatprep.subr.mxu0 0.0
    %2824 = vmatpush1.msra.mxu0 0.0
    %2825 = vmatprep.subr.mxu0 0.0
    %2826 = vmatpush1.msra.mxu0 0.0
    %2827 = vmatprep.subr.mxu0 0.0
    %2828 = vmatpush1.msra.mxu0 0.0
    %2829 = vmatprep.subr.mxu0 0.0
    %2830 = vmatpush1.msra.mxu0 0.0
    %2831 = vmatprep.subr.mxu0 0.0
    %2832 = vmatpush1.msra.mxu0 0.0
    %2833 = vmatprep.subr.mxu0 0.0
    %2834 = vmatpush1.msra.mxu0 0.0
    %2835 = vmatprep.subr.mxu0 0.0
    %2836 = vmatpush1.msra.mxu0 0.0
    %2837 = vmatprep.subr.mxu0 0.0
    %2838 = vmatpush1.msra.mxu0 0.0
    %2839 = vmatprep.subr.mxu0 0.0
    %2840 = vmatpush1.msra.mxu0 0.0
    %2841 = vmatprep.subr.mxu0 0.0
    %2842 = vmatpush1.msra.mxu0 0.0
    %2843 = vmatprep.subr.mxu0 0.0
    %2844 = vmatpush1.msra.mxu0 0.0
    %2845 = vmatprep.subr.mxu0 0.0
    %2846 = vmatpush1.msra.mxu0 0.0
    %2847 = vmatprep.mubr.f32.mxu0 0.0
    %2848 = vmatmul.mubr.f32.gmra.mrb[0].mxu0 %v2592
    %v2849 = vpop.f32.mrb[0].mxu0
    %v2850 = vadd.f32 0.0, %v2849
    %v2851 = vpop.f32.mrb[0].mxu0
    %2852 = vmatprep.mubr.f32.mxu0 0.0
    %2853 = vmatmul.mubr.f32.gmra.mrb[0].mxu0 %v2595
    %v2854 = vpop.f32.mrb[0].mxu0
    %v2855 = vadd.f32 0.0, %v2854
    %v2856 = vpop.f32.mrb[0].mxu0
    %2857 = vmatprep.mubr.f32.mxu0 0.0
    %2858 = vmatmul.mubr.f32.gmra.mrb[0].mxu0 %v2598
    %v2859 = vpop.f32.mrb[0].mxu0
    %v2860 = vadd.f32 0.0, %v2859
    %v2861 = vpop.f32.mrb[0].mxu0
    %2862 = vmatprep.mubr.f32.mxu0 0.0
    %2863 = vmatmul.mubr.f32.gmra.mrb[0].mxu0 %v2601
    %v2864 = vpop.f32.mrb[0].mxu0
    %v2865 = vadd.f32 0.0, %v2864
    %v2866 = vpop.f32.mrb[0].mxu0
    %2867 = vmatprep.mubr.f32.mxu0 0.0
    %2868 = vmatmul.mubr.f32.gmra.mrb[0].mxu0 %v2604
    %v2869 = vpop.f32.mrb[0].mxu0
    %v2870 = vadd.f32 0.0, %v2869
    %v2871 = vpop.f32.mrb[0].mxu0
    %2872 = vmatprep.mubr.f32.mxu0 0.0
    %2873 = vmatmul.mubr.f32.gmra.mrb[0].mxu0 %v2607
    %v2874 = vpop.f32.mrb[0].mxu0
    %v2875 = vadd.f32 0.0, %v2874
    %v2876 = vpop.f32.mrb[0].mxu0
    %2877 = vmatprep.mubr.f32.mxu0 0.0
    %2878 = vmatmul.mubr.f32.gmra.mrb[0].mxu0 %v2610
    %v2879 = vpop.f32.mrb[0].mxu0
    %v2880 = vadd.f32 0.0, %v2879
    %v2881 = vpop.f32.mrb[0].mxu0
    %2882 = vmatprep.mubr.f32.mxu0 0.0
    %2883 = vmatmul.mubr.f32.gmra.mrb[0].mxu0 %v2613
    %v2884 = vpop.f32.mrb[0].mxu0
    %v2885 = vadd.f32 0.0, %v2884
    %v2886 = vpop.f32.mrb[0].mxu0
    %2887 = vmatprep.mubr.f32.mxu0 0.0
    %2888 = vmatmul.mubr.f32.gmra.mrb[0].mxu0 %v2616
    %v2889 = vpop.f32.mrb[0].mxu0
    %v2890 = vadd.f32 0.0, %v2889
    %v2891 = vpop.f32.mrb[0].mxu0
    %2892 = vmatprep.mubr.f32.mxu0 0.0
    %2893 = vmatmul.mubr.f32.gmra.mrb[0].mxu0 %v2619
    %v2894 = vpop.f32.mrb[0].mxu0
    %v2895 = vadd.f32 0.0, %v2894
    %v2896 = vpop.f32.mrb[0].mxu0
    %2897 = vmatprep.mubr.f32.mxu0 0.0
    %2898 = vmatmul.mubr.f32.gmra.mrb[0].mxu0 %v2622
    %v2899 = vpop.f32.mrb[0].mxu0
    %v2900 = vadd.f32 0.0, %v2899
    %v2901 = vpop.f32.mrb[0].mxu0
    %2902 = vmatprep.mubr.f32.mxu0 0.0
    %2903 = vmatmul.mubr.f32.gmra.mrb[0].mxu0 %v2625
    %v2904 = vpop.f32.mrb[0].mxu0
    %v2905 = vadd.f32 0.0, %v2904
    %v2906 = vpop.f32.mrb[0].mxu0
    %2907 = vmatprep.mubr.f32.mxu0 0.0
    %2908 = vmatmul.mubr.f32.gmra.mrb[0].mxu0 %v2628
    %v2909 = vpop.f32.mrb[0].mxu0
    %v2910 = vadd.f32 0.0, %v2909
    %v2911 = vpop.f32.mrb[0].mxu0
    %2912 = vmatprep.mubr.f32.mxu0 0.0
    %2913 = vmatmul.mubr.f32.gmra.mrb[0].mxu0 %v2631
    %v2914 = vpop.f32.mrb[0].mxu0
    %v2915 = vadd.f32 0.0, %v2914
    %v2916 = vpop.f32.mrb[0].mxu0
    %2917 = vmatprep.mubr.f32.mxu0 0.0
    %2918 = vmatmul.mubr.f32.gmra.mrb[0].mxu0 %v2634
    %v2919 = vpop.f32.mrb[0].mxu0
    %v2920 = vadd.f32 0.0, %v2919
    %v2921 = vpop.f32.mrb[0].mxu0
    %2922 = vmatprep.mubr.f32.mxu0 0.0
    %2923 = vmatmul.mubr.f32.gmra.mrb[0].mxu0 %v2637
    %v2924 = vpop.f32.mrb[0].mxu0
    %v2925 = vadd.f32 0.0, %v2924
    %v2926 = vpop.f32.mrb[0].mxu0
    %2927 = vmatprep.mubr.f32.mxu0 0.0
    %2928 = vmatmul.mubr.f32.gmra.mrb[0].mxu0 %v2640
    %v2929 = vpop.f32.mrb[0].mxu0
    %v2930 = vadd.f32 0.0, %v2929
    %v2931 = vpop.f32.mrb[0].mxu0
    %2932 = vmatprep.mubr.f32.mxu0 0.0
    %2933 = vmatmul.mubr.f32.gmra.mrb[0].mxu0 %v2643
    %v2934 = vpop.f32.mrb[0].mxu0
    %v2935 = vadd.f32 0.0, %v2934
    %v2936 = vpop.f32.mrb[0].mxu0
    %2937 = vmatprep.mubr.f32.mxu0 0.0
    %2938 = vmatmul.mubr.f32.gmra.mrb[0].mxu0 %v2646
    %v2939 = vpop.f32.mrb[0].mxu0
    %v2940 = vadd.f32 0.0, %v2939
    %v2941 = vpop.f32.mrb[0].mxu0
    %2942 = vmatprep.mubr.f32.mxu0 0.0
    %2943 = vmatmul.mubr.f32.gmra.mrb[0].mxu0 %v2649
    %v2944 = vpop.f32.mrb[0].mxu0
    %v2945 = vadd.f32 0.0, %v2944
    %v2946 = vpop.f32.mrb[0].mxu0
    %2947 = vmatprep.mubr.f32.mxu0 0.0
    %2948 = vmatmul.mubr.f32.gmra.mrb[0].mxu0 %v2652
    %v2949 = vpop.f32.mrb[0].mxu0
    %v2950 = vadd.f32 0.0, %v2949
    %v2951 = vpop.f32.mrb[0].mxu0
    %2952 = vmatprep.mubr.f32.mxu0 0.0
    %2953 = vmatmul.mubr.f32.gmra.mrb[0].mxu0 %v2655
    %v2954 = vpop.f32.mrb[0].mxu0
    %v2955 = vadd.f32 0.0, %v2954
    %v2956 = vpop.f32.mrb[0].mxu0
    %2957 = vmatprep.mubr.f32.mxu0 0.0
    %2958 = vmatmul.mubr.f32.gmra.mrb[0].mxu0 %v2658
    %v2959 = vpop.f32.mrb[0].mxu0
    %v2960 = vadd.f32 0.0, %v2959
    %v2961 = vpop.f32.mrb[0].mxu0
    %2962 = vmatprep.mubr.f32.mxu0 0.0
    %2963 = vmatmul.mubr.f32.gmra.mrb[0].mxu0 %v2661
    %v2964 = vpop.f32.mrb[0].mxu0
    %v2965 = vadd.f32 0.0, %v2964
    %v2966 = vpop.f32.mrb[0].mxu0
    %2967 = vmatprep.mubr.f32.mxu0 0.0
    %2968 = vmatmul.mubr.f32.gmra.mrb[0].mxu0 %v2664
    %v2969 = vpop.f32.mrb[0].mxu0
    %v2970 = vadd.f32 0.0, %v2969
    %v2971 = vpop.f32.mrb[0].mxu0
    %2972 = vmatprep.mubr.f32.mxu0 0.0
    %2973 = vmatmul.mubr.f32.gmra.mrb[0].mxu0 %v2667
    %v2974 = vpop.f32.mrb[0].mxu0
    %v2975 = vadd.f32 0.0, %v2974
    %v2976 = vpop.f32.mrb[0].mxu0
    %2977 = vmatprep.mubr.f32.mxu0 0.0
    %2978 = vmatmul.mubr.f32.gmra.mrb[0].mxu0 %v2670
    %v2979 = vpop.f32.mrb[0].mxu0
    %v2980 = vadd.f32 0.0, %v2979
    %v2981 = vpop.f32.mrb[0].mxu0
    %2982 = vmatprep.mubr.f32.mxu0 0.0
    %2983 = vmatmul.mubr.f32.gmra.mrb[0].mxu0 %v2673
    %v2984 = vpop.f32.mrb[0].mxu0
    %v2985 = vadd.f32 0.0, %v2984
    %v2986 = vpop.f32.mrb[0].mxu0
    %2987 = vmatprep.mubr.f32.mxu0 0.0
    %2988 = vmatmul.mubr.f32.gmra.mrb[0].mxu0 %v2676
    %v2989 = vpop.f32.mrb[0].mxu0
    %v2990 = vadd.f32 0.0, %v2989
    %v2991 = vpop.f32.mrb[0].mxu0
    %2992 = vmatprep.mubr.f32.mxu0 0.0
    %2993 = vmatmul.mubr.f32.gmra.mrb[0].mxu0 %v2679
    %v2994 = vpop.f32.mrb[0].mxu0
    %v2995 = vadd.f32 0.0, %v2994
    %v2996 = vpop.f32.mrb[0].mxu0
    %2997 = vmatprep.mubr.f32.mxu0 0.0
    %2998 = vmatmul.mubr.f32.gmra.mrb[0].mxu0 %v2682
    %v2999 = vpop.f32.mrb[0].mxu0
    %v3000 = vadd.f32 0.0, %v2999
    %v3001 = vpop.f32.mrb[0].mxu0
    %3002 = vmatprep.mubr.f32.mxu0 0.0
    %3003 = vmatmul.mubr.f32.gmra.mrb[0].mxu0 %v2685
    %v3004 = vpop.f32.mrb[0].mxu0
    %v3005 = vadd.f32 0.0, %v3004
    %v3006 = vpop.f32.mrb[0].mxu0
    %3007 = vmatprep.mubr.f32.mxu0 0.0
    %3008 = vmatmul.mubr.f32.gmra.mrb[0].mxu0 %v2688
    %v3009 = vpop.f32.mrb[0].mxu0
    %v3010 = vadd.f32 0.0, %v3009
    %v3011 = vpop.f32.mrb[0].mxu0
    %3012 = vmatprep.mubr.f32.mxu0 0.0
    %3013 = vmatmul.mubr.f32.gmra.mrb[0].mxu0 %v2691
    %v3014 = vpop.f32.mrb[0].mxu0
    %v3015 = vadd.f32 0.0, %v3014
    %v3016 = vpop.f32.mrb[0].mxu0
    %3017 = vmatprep.mubr.f32.mxu0 0.0
    %3018 = vmatmul.mubr.f32.gmra.mrb[0].mxu0 %v2694
    %v3019 = vpop.f32.mrb[0].mxu0
    %v3020 = vadd.f32 0.0, %v3019
    %v3021 = vpop.f32.mrb[0].mxu0
    %3022 = vmatprep.mubr.f32.mxu0 0.0
    %3023 = vmatmul.mubr.f32.gmra.mrb[0].mxu0 %v2697
    %v3024 = vpop.f32.mrb[0].mxu0
    %v3025 = vadd.f32 0.0, %v3024
    %v3026 = vpop.f32.mrb[0].mxu0
    %3027 = vmatprep.mubr.f32.mxu0 0.0
    %3028 = vmatmul.mubr.f32.gmra.mrb[0].mxu0 %v2700
    %v3029 = vpop.f32.mrb[0].mxu0
    %v3030 = vadd.f32 0.0, %v3029
    %v3031 = vpop.f32.mrb[0].mxu0
    %3032 = vmatprep.mubr.f32.mxu0 0.0
    %3033 = vmatmul.mubr.f32.gmra.mrb[0].mxu0 %v2703
    %v3034 = vpop.f32.mrb[0].mxu0
    %v3035 = vadd.f32 0.0, %v3034
    %v3036 = vpop.f32.mrb[0].mxu0
    %3037 = vmatprep.mubr.f32.mxu0 0.0
    %3038 = vmatmul.mubr.f32.gmra.mrb[0].mxu0 %v2706
    %v3039 = vpop.f32.mrb[0].mxu0
    %v3040 = vadd.f32 0.0, %v3039
    %v3041 = vpop.f32.mrb[0].mxu0
    %3042 = vmatprep.mubr.f32.mxu0 0.0
    %3043 = vmatmul.mubr.f32.gmra.mrb[0].mxu0 %v2709
    %v3044 = vpop.f32.mrb[0].mxu0
    %v3045 = vadd.f32 0.0, %v3044
    %v3046 = vpop.f32.mrb[0].mxu0
    %3047 = vmatprep.mubr.f32.mxu0 0.0
    %3048 = vmatmul.mubr.f32.gmra.mrb[0].mxu0 %v2712
    %v3049 = vpop.f32.mrb[0].mxu0
    %v3050 = vadd.f32 0.0, %v3049
    %v3051 = vpop.f32.mrb[0].mxu0
    %3052 = vmatprep.mubr.f32.mxu0 0.0
    %3053 = vmatmul.mubr.f32.gmra.mrb[0].mxu0 %v2715
    %v3054 = vpop.f32.mrb[0].mxu0
    %v3055 = vadd.f32 0.0, %v3054
    %v3056 = vpop.f32.mrb[0].mxu0
    %3057 = vmatprep.mubr.f32.mxu0 0.0
    %3058 = vmatmul.mubr.f32.gmra.mrb[0].mxu0 %v2718
    %v3059 = vpop.f32.mrb[0].mxu0
    %v3060 = vadd.f32 0.0, %v3059
    %v3061 = vpop.f32.mrb[0].mxu0
    %3062 = vmatprep.mubr.f32.mxu0 0.0
    %3063 = vmatmul.mubr.f32.gmra.mrb[0].mxu0 %v2721
    %v3064 = vpop.f32.mrb[0].mxu0
    %v3065 = vadd.f32 0.0, %v3064
    %v3066 = vpop.f32.mrb[0].mxu0
    %3067 = vmatprep.mubr.f32.mxu0 0.0
    %3068 = vmatmul.mubr.f32.gmra.mrb[0].mxu0 %v2724
    %v3069 = vpop.f32.mrb[0].mxu0
    %v3070 = vadd.f32 0.0, %v3069
    %v3071 = vpop.f32.mrb[0].mxu0
    %3072 = vmatprep.mubr.f32.mxu0 0.0
    %3073 = vmatmul.mubr.f32.gmra.mrb[0].mxu0 %v2727
    %v3074 = vpop.f32.mrb[0].mxu0
    %v3075 = vadd.f32 0.0, %v3074
    %v3076 = vpop.f32.mrb[0].mxu0
    %3077 = vmatprep.mubr.f32.mxu0 0.0
    %3078 = vmatmul.mubr.f32.gmra.mrb[0].mxu0 %v2730
    %v3079 = vpop.f32.mrb[0].mxu0
    %v3080 = vadd.f32 0.0, %v3079
    %v3081 = vpop.f32.mrb[0].mxu0
    %3082 = vmatprep.mubr.f32.mxu0 0.0
    %3083 = vmatmul.mubr.f32.gmra.mrb[0].mxu0 %v2733
    %v3084 = vpop.f32.mrb[0].mxu0
    %v3085 = vadd.f32 0.0, %v3084
    %v3086 = vpop.f32.mrb[0].mxu0
    %3087 = vmatprep.mubr.f32.mxu0 0.0
    %3088 = vmatmul.mubr.f32.gmra.mrb[0].mxu0 %v2736
    %v3089 = vpop.f32.mrb[0].mxu0
    %v3090 = vadd.f32 0.0, %v3089
    %v3091 = vpop.f32.mrb[0].mxu0
    %3092 = vmatprep.mubr.f32.mxu0 0.0
    %3093 = vmatmul.mubr.f32.gmra.mrb[0].mxu0 %v2739
    %v3094 = vpop.f32.mrb[0].mxu0
    %v3095 = vadd.f32 0.0, %v3094
    %v3096 = vpop.f32.mrb[0].mxu0
    %3097 = vmatprep.mubr.f32.mxu0 0.0
    %3098 = vmatmul.mubr.f32.gmra.mrb[0].mxu0 %v2742
    %v3099 = vpop.f32.mrb[0].mxu0
    %v3100 = vadd.f32 0.0, %v3099
    %v3101 = vpop.f32.mrb[0].mxu0
    %3102 = vmatprep.mubr.f32.mxu0 0.0
    %3103 = vmatmul.mubr.f32.gmra.mrb[0].mxu0 %v2745
    %v3104 = vpop.f32.mrb[0].mxu0
    %v3105 = vadd.f32 0.0, %v3104
    %v3106 = vpop.f32.mrb[0].mxu0
    %3107 = vmatprep.mubr.f32.mxu0 0.0
    %3108 = vmatmul.mubr.f32.gmra.mrb[0].mxu0 %v2748
    %v3109 = vpop.f32.mrb[0].mxu0
    %v3110 = vadd.f32 0.0, %v3109
    %v3111 = vpop.f32.mrb[0].mxu0
    %3112 = vmatprep.mubr.f32.mxu0 0.0
    %3113 = vmatmul.mubr.f32.gmra.mrb[0].mxu0 %v2751
    %v3114 = vpop.f32.mrb[0].mxu0
    %v3115 = vadd.f32 0.0, %v3114
    %v3116 = vpop.f32.mrb[0].mxu0
    %3117 = vmatprep.mubr.f32.mxu0 0.0
    %3118 = vmatmul.mubr.f32.gmra.mrb[0].mxu0 %v2754
    %v3119 = vpop.f32.mrb[0].mxu0
    %v3120 = vadd.f32 0.0, %v3119
    %v3121 = vpop.f32.mrb[0].mxu0
    %3122 = vmatprep.mubr.f32.mxu0 0.0
    %3123 = vmatmul.mubr.f32.gmra.mrb[0].mxu0 %v2757
    %v3124 = vpop.f32.mrb[0].mxu0
    %v3125 = vadd.f32 0.0, %v3124
    %v3126 = vpop.f32.mrb[0].mxu0
    %3127 = vmatprep.mubr.f32.mxu0 0.0
    %3128 = vmatmul.mubr.f32.gmra.mrb[0].mxu0 %v2760
    %v3129 = vpop.f32.mrb[0].mxu0
    %v3130 = vadd.f32 0.0, %v3129
    %v3131 = vpop.f32.mrb[0].mxu0
    %3132 = vmatprep.mubr.f32.mxu0 0.0
    %3133 = vmatmul.mubr.f32.gmra.mrb[0].mxu0 %v2763
    %v3134 = vpop.f32.mrb[0].mxu0
    %v3135 = vadd.f32 0.0, %v3134
    %v3136 = vpop.f32.mrb[0].mxu0
    %3137 = vmatprep.mubr.f32.mxu0 0.0
    %3138 = vmatmul.mubr.f32.gmra.mrb[0].mxu0 %v2766
    %v3139 = vpop.f32.mrb[0].mxu0
    %v3140 = vadd.f32 0.0, %v3139
    %v3141 = vpop.f32.mrb[0].mxu0
    %3142 = vmatprep.mubr.f32.mxu0 0.0
    %3143 = vmatmul.mubr.f32.gmra.mrb[0].mxu0 %v2769
    %v3144 = vpop.f32.mrb[0].mxu0
    %v3145 = vadd.f32 0.0, %v3144
    %v3146 = vpop.f32.mrb[0].mxu0
    %3147 = vmatprep.mubr.f32.mxu0 0.0
    %3148 = vmatmul.mubr.f32.gmra.mrb[0].mxu0 %v2772
    %v3149 = vpop.f32.mrb[0].mxu0
    %v3150 = vadd.f32 0.0, %v3149
    %v3151 = vpop.f32.mrb[0].mxu0
    %3152 = vmatprep.mubr.f32.mxu0 0.0
    %3153 = vmatmul.mubr.f32.gmra.mrb[0].mxu0 %v2775
    %v3154 = vpop.f32.mrb[0].mxu0
    %v3155 = vadd.f32 0.0, %v3154
    %v3156 = vpop.f32.mrb[0].mxu0
    %3157 = vmatprep.mubr.f32.mxu0 0.0
    %3158 = vmatmul.mubr.f32.gmra.mrb[0].mxu0 %v2778
    %v3159 = vpop.f32.mrb[0].mxu0
    %v3160 = vadd.f32 0.0, %v3159
    %v3161 = vpop.f32.mrb[0].mxu0
    %3162 = vmatprep.mubr.f32.mxu0 0.0
    %3163 = vmatmul.mubr.f32.gmra.mrb[0].mxu0 %v2781
    %v3164 = vpop.f32.mrb[0].mxu0
    %v3165 = vadd.f32 0.0, %v3164
    %v3166 = vpop.f32.mrb[0].mxu0
    %3167 = vdwg.mxu0
    %v3169 = vsel %vm1632, %v2460, 0
    %v3172 = vsel %vm1632, %v2461, 0
    %v3175 = vsel %vm1632, %v2462, 0
    %v3178 = vsel %vm1632, %v2463, 0
    %v3181 = vsel %vm1632, %v2464, 0
    %v3184 = vsel %vm1632, %v2465, 0
    %v3187 = vsel %vm1632, %v2466, 0
    %v3190 = vsel %vm1632, %v2467, 0
    %v3193 = vsel %vm1632, %v2468, 0
    %v3196 = vsel %vm1632, %v2469, 0
    %v3199 = vsel %vm1632, %v2470, 0
    %v3202 = vsel %vm1632, %v2471, 0
    %v3205 = vsel %vm1632, %v2472, 0
    %v3208 = vsel %vm1632, %v2473, 0
    %v3211 = vsel %vm1632, %v2474, 0
    %v3214 = vsel %vm1632, %v2475, 0
    %v3217 = vsel %vm1632, %v2476, 0
    %v3220 = vsel %vm1632, %v2477, 0
    %v3223 = vsel %vm1632, %v2478, 0
    %v3226 = vsel %vm1632, %v2479, 0
    %v3229 = vsel %vm1632, %v2480, 0
    %v3232 = vsel %vm1632, %v2481, 0
    %v3235 = vsel %vm1632, %v2482, 0
    %v3238 = vsel %vm1632, %v2483, 0
    %v3241 = vsel %vm1632, %v2484, 0
    %v3244 = vsel %vm1632, %v2485, 0
    %v3247 = vsel %vm1632, %v2486, 0
    %v3250 = vsel %vm1632, %v2487, 0
    %v3253 = vsel %vm1632, %v2488, 0
    %v3256 = vsel %vm1632, %v2489, 0
    %v3259 = vsel %vm1632, %v2490, 0
    %v3262 = vsel %vm1632, %v2491, 0
    %v3265 = vsel %vm1632, %v2492, 0
    %v3268 = vsel %vm1632, %v2493, 0
    %v3271 = vsel %vm1632, %v2494, 0
    %v3274 = vsel %vm1632, %v2495, 0
    %v3277 = vsel %vm1632, %v2496, 0
    %v3280 = vsel %vm1632, %v2497, 0
    %v3283 = vsel %vm1632, %v2498, 0
    %v3286 = vsel %vm1632, %v2499, 0
    %v3289 = vsel %vm1632, %v2500, 0
    %v3292 = vsel %vm1632, %v2501, 0
    %v3295 = vsel %vm1632, %v2502, 0
    %v3298 = vsel %vm1632, %v2503, 0
    %v3301 = vsel %vm1632, %v2504, 0
    %v3304 = vsel %vm1632, %v2505, 0
    %v3307 = vsel %vm1632, %v2506, 0
    %v3310 = vsel %vm1632, %v2507, 0
    %v3313 = vsel %vm1632, %v2508, 0
    %v3316 = vsel %vm1632, %v2509, 0
    %v3319 = vsel %vm1632, %v2510, 0
    %v3322 = vsel %vm1632, %v2511, 0
    %v3325 = vsel %vm1632, %v2512, 0
    %v3328 = vsel %vm1632, %v2513, 0
    %v3331 = vsel %vm1632, %v2514, 0
    %v3334 = vsel %vm1632, %v2515, 0
    %v3337 = vsel %vm1632, %v2516, 0
    %v3340 = vsel %vm1632, %v2517, 0
    %v3343 = vsel %vm1632, %v2518, 0
    %v3346 = vsel %vm1632, %v2519, 0
    %v3349 = vsel %vm1632, %v2520, 0
    %v3352 = vsel %vm1632, %v2521, 0
    %v3355 = vsel %vm1632, %v2522, 0
    %v3358 = vsel %vm1632, %v2523, 0
    %3360 = vmatprep.subr.mxu0 0.0
    %3361 = vmatpush1.msra.mxu0 %v2524
    %3362 = vmatprep.subr.mxu0 0.0
    %3363 = vmatpush1.msra.mxu0 0.0
    %3364 = vmatprep.subr.mxu0 0.0
    %3365 = vmatpush1.msra.mxu0 0.0
    %3366 = vmatprep.subr.mxu0 0.0
    %3367 = vmatpush1.msra.mxu0 0.0
    %3368 = vmatprep.subr.mxu0 0.0
    %3369 = vmatpush1.msra.mxu0 0.0
    %3370 = vmatprep.subr.mxu0 0.0
    %3371 = vmatpush1.msra.mxu0 0.0
    %3372 = vmatprep.subr.mxu0 0.0
    %3373 = vmatpush1.msra.mxu0 0.0
    %3374 = vmatprep.subr.mxu0 0.0
    %3375 = vmatpush1.msra.mxu0 0.0
    %3376 = vmatprep.subr.mxu0 0.0
    %3377 = vmatpush1.msra.mxu0 0.0
    %3378 = vmatprep.subr.mxu0 0.0
    %3379 = vmatpush1.msra.mxu0 0.0
    %3380 = vmatprep.subr.mxu0 0.0
    %3381 = vmatpush1.msra.mxu0 0.0
    %3382 = vmatprep.subr.mxu0 0.0
    %3383 = vmatpush1.msra.mxu0 0.0
    %3384 = vmatprep.subr.mxu0 0.0
    %3385 = vmatpush1.msra.mxu0 0.0
    %3386 = vmatprep.subr.mxu0 0.0
    %3387 = vmatpush1.msra.mxu0 0.0
    %3388 = vmatprep.subr.mxu0 0.0
    %3389 = vmatpush1.msra.mxu0 0.0
    %3390 = vmatprep.subr.mxu0 0.0
    %3391 = vmatpush1.msra.mxu0 0.0
    %3392 = vmatprep.subr.mxu0 0.0
    %3393 = vmatpush1.msra.mxu0 0.0
    %3394 = vmatprep.subr.mxu0 0.0
    %3395 = vmatpush1.msra.mxu0 0.0
    %3396 = vmatprep.subr.mxu0 0.0
    %3397 = vmatpush1.msra.mxu0 0.0
    %3398 = vmatprep.subr.mxu0 0.0
    %3399 = vmatpush1.msra.mxu0 0.0
    %3400 = vmatprep.subr.mxu0 0.0
    %3401 = vmatpush1.msra.mxu0 0.0
    %3402 = vmatprep.subr.mxu0 0.0
    %3403 = vmatpush1.msra.mxu0 0.0
    %3404 = vmatprep.subr.mxu0 0.0
    %3405 = vmatpush1.msra.mxu0 0.0
    %3406 = vmatprep.subr.mxu0 0.0
    %3407 = vmatpush1.msra.mxu0 0.0
    %3408 = vmatprep.subr.mxu0 0.0
    %3409 = vmatpush1.msra.mxu0 0.0
    %3410 = vmatprep.subr.mxu0 0.0
    %3411 = vmatpush1.msra.mxu0 0.0
    %3412 = vmatprep.subr.mxu0 0.0
    %3413 = vmatpush1.msra.mxu0 0.0
    %3414 = vmatprep.subr.mxu0 0.0
    %3415 = vmatpush1.msra.mxu0 0.0
    %3416 = vmatprep.subr.mxu0 0.0
    %3417 = vmatpush1.msra.mxu0 0.0
    %3418 = vmatprep.subr.mxu0 0.0
    %3419 = vmatpush1.msra.mxu0 0.0
    %3420 = vmatprep.subr.mxu0 0.0
    %3421 = vmatpush1.msra.mxu0 0.0
    %3422 = vmatprep.subr.mxu0 0.0
    %3423 = vmatpush1.msra.mxu0 0.0
    %3424 = vmatprep.mubr.f32.mxu0 0.0
    %3425 = vmatmul.mubr.f32.gmra.mrb[0].mxu0 %v3169
    %v3426 = vpop.f32.mrb[0].mxu0
    %v3427 = vadd.f32 %v2850, %v3426
    %v3428 = vpop.f32.mrb[0].mxu0
    %3429 = vmatprep.mubr.f32.mxu0 0.0
    %3430 = vmatmul.mubr.f32.gmra.mrb[0].mxu0 %v3172
    %v3431 = vpop.f32.mrb[0].mxu0
    %v3432 = vadd.f32 %v2855, %v3431
    %v3433 = vpop.f32.mrb[0].mxu0
    %3434 = vmatprep.mubr.f32.mxu0 0.0
    %3435 = vmatmul.mubr.f32.gmra.mrb[0].mxu0 %v3175
    %v3436 = vpop.f32.mrb[0].mxu0
    %v3437 = vadd.f32 %v2860, %v3436
    %v3438 = vpop.f32.mrb[0].mxu0
    %3439 = vmatprep.mubr.f32.mxu0 0.0
    %3440 = vmatmul.mubr.f32.gmra.mrb[0].mxu0 %v3178
    %v3441 = vpop.f32.mrb[0].mxu0
    %v3442 = vadd.f32 %v2865, %v3441
    %v3443 = vpop.f32.mrb[0].mxu0
    %3444 = vmatprep.mubr.f32.mxu0 0.0
    %3445 = vmatmul.mubr.f32.gmra.mrb[0].mxu0 %v3181
    %v3446 = vpop.f32.mrb[0].mxu0
    %v3447 = vadd.f32 %v2870, %v3446
    %v3448 = vpop.f32.mrb[0].mxu0
    %3449 = vmatprep.mubr.f32.mxu0 0.0
    %3450 = vmatmul.mubr.f32.gmra.mrb[0].mxu0 %v3184
    %v3451 = vpop.f32.mrb[0].mxu0
    %v3452 = vadd.f32 %v2875, %v3451
    %v3453 = vpop.f32.mrb[0].mxu0
    %3454 = vmatprep.mubr.f32.mxu0 0.0
    %3455 = vmatmul.mubr.f32.gmra.mrb[0].mxu0 %v3187
    %v3456 = vpop.f32.mrb[0].mxu0
    %v3457 = vadd.f32 %v2880, %v3456
    %v3458 = vpop.f32.mrb[0].mxu0
    %3459 = vmatprep.mubr.f32.mxu0 0.0
    %3460 = vmatmul.mubr.f32.gmra.mrb[0].mxu0 %v3190
    %v3461 = vpop.f32.mrb[0].mxu0
    %v3462 = vadd.f32 %v2885, %v3461
    %v3463 = vpop.f32.mrb[0].mxu0
    %3464 = vmatprep.mubr.f32.mxu0 0.0
    %3465 = vmatmul.mubr.f32.gmra.mrb[0].mxu0 %v3193
    %v3466 = vpop.f32.mrb[0].mxu0
    %v3467 = vadd.f32 %v2890, %v3466
    %v3468 = vpop.f32.mrb[0].mxu0
    %3469 = vmatprep.mubr.f32.mxu0 0.0
    %3470 = vmatmul.mubr.f32.gmra.mrb[0].mxu0 %v3196
    %v3471 = vpop.f32.mrb[0].mxu0
    %v3472 = vadd.f32 %v2895, %v3471
    %v3473 = vpop.f32.mrb[0].mxu0
    %3474 = vmatprep.mubr.f32.mxu0 0.0
    %3475 = vmatmul.mubr.f32.gmra.mrb[0].mxu0 %v3199
    %v3476 = vpop.f32.mrb[0].mxu0
    %v3477 = vadd.f32 %v2900, %v3476
    %v3478 = vpop.f32.mrb[0].mxu0
    %3479 = vmatprep.mubr.f32.mxu0 0.0
    %3480 = vmatmul.mubr.f32.gmra.mrb[0].mxu0 %v3202
    %v3481 = vpop.f32.mrb[0].mxu0
    %v3482 = vadd.f32 %v2905, %v3481
    %v3483 = vpop.f32.mrb[0].mxu0
    %3484 = vmatprep.mubr.f32.mxu0 0.0
    %3485 = vmatmul.mubr.f32.gmra.mrb[0].mxu0 %v3205
    %v3486 = vpop.f32.mrb[0].mxu0
    %v3487 = vadd.f32 %v2910, %v3486
    %v3488 = vpop.f32.mrb[0].mxu0
    %3489 = vmatprep.mubr.f32.mxu0 0.0
    %3490 = vmatmul.mubr.f32.gmra.mrb[0].mxu0 %v3208
    %v3491 = vpop.f32.mrb[0].mxu0
    %v3492 = vadd.f32 %v2915, %v3491
    %v3493 = vpop.f32.mrb[0].mxu0
    %3494 = vmatprep.mubr.f32.mxu0 0.0
    %3495 = vmatmul.mubr.f32.gmra.mrb[0].mxu0 %v3211
    %v3496 = vpop.f32.mrb[0].mxu0
    %v3497 = vadd.f32 %v2920, %v3496
    %v3498 = vpop.f32.mrb[0].mxu0
    %3499 = vmatprep.mubr.f32.mxu0 0.0
    %3500 = vmatmul.mubr.f32.gmra.mrb[0].mxu0 %v3214
    %v3501 = vpop.f32.mrb[0].mxu0
    %v3502 = vadd.f32 %v2925, %v3501
    %v3503 = vpop.f32.mrb[0].mxu0
    %3504 = vmatprep.mubr.f32.mxu0 0.0
    %3505 = vmatmul.mubr.f32.gmra.mrb[0].mxu0 %v3217
    %v3506 = vpop.f32.mrb[0].mxu0
    %v3507 = vadd.f32 %v2930, %v3506
    %v3508 = vpop.f32.mrb[0].mxu0
    %3509 = vmatprep.mubr.f32.mxu0 0.0
    %3510 = vmatmul.mubr.f32.gmra.mrb[0].mxu0 %v3220
    %v3511 = vpop.f32.mrb[0].mxu0
    %v3512 = vadd.f32 %v2935, %v3511
    %v3513 = vpop.f32.mrb[0].mxu0
    %3514 = vmatprep.mubr.f32.mxu0 0.0
    %3515 = vmatmul.mubr.f32.gmra.mrb[0].mxu0 %v3223
    %v3516 = vpop.f32.mrb[0].mxu0
    %v3517 = vadd.f32 %v2940, %v3516
    %v3518 = vpop.f32.mrb[0].mxu0
    %3519 = vmatprep.mubr.f32.mxu0 0.0
    %3520 = vmatmul.mubr.f32.gmra.mrb[0].mxu0 %v3226
    %v3521 = vpop.f32.mrb[0].mxu0
    %v3522 = vadd.f32 %v2945, %v3521
    %v3523 = vpop.f32.mrb[0].mxu0
    %3524 = vmatprep.mubr.f32.mxu0 0.0
    %3525 = vmatmul.mubr.f32.gmra.mrb[0].mxu0 %v3229
    %v3526 = vpop.f32.mrb[0].mxu0
    %v3527 = vadd.f32 %v2950, %v3526
    %v3528 = vpop.f32.mrb[0].mxu0
    %3529 = vmatprep.mubr.f32.mxu0 0.0
    %3530 = vmatmul.mubr.f32.gmra.mrb[0].mxu0 %v3232
    %v3531 = vpop.f32.mrb[0].mxu0
    %v3532 = vadd.f32 %v2955, %v3531
    %v3533 = vpop.f32.mrb[0].mxu0
    %3534 = vmatprep.mubr.f32.mxu0 0.0
    %3535 = vmatmul.mubr.f32.gmra.mrb[0].mxu0 %v3235
    %v3536 = vpop.f32.mrb[0].mxu0
    %v3537 = vadd.f32 %v2960, %v3536
    %v3538 = vpop.f32.mrb[0].mxu0
    %3539 = vmatprep.mubr.f32.mxu0 0.0
    %3540 = vmatmul.mubr.f32.gmra.mrb[0].mxu0 %v3238
    %v3541 = vpop.f32.mrb[0].mxu0
    %v3542 = vadd.f32 %v2965, %v3541
    %v3543 = vpop.f32.mrb[0].mxu0
    %3544 = vmatprep.mubr.f32.mxu0 0.0
    %3545 = vmatmul.mubr.f32.gmra.mrb[0].mxu0 %v3241
    %v3546 = vpop.f32.mrb[0].mxu0
    %v3547 = vadd.f32 %v2970, %v3546
    %v3548 = vpop.f32.mrb[0].mxu0
    %3549 = vmatprep.mubr.f32.mxu0 0.0
    %3550 = vmatmul.mubr.f32.gmra.mrb[0].mxu0 %v3244
    %v3551 = vpop.f32.mrb[0].mxu0
    %v3552 = vadd.f32 %v2975, %v3551
    %v3553 = vpop.f32.mrb[0].mxu0
    %3554 = vmatprep.mubr.f32.mxu0 0.0
    %3555 = vmatmul.mubr.f32.gmra.mrb[0].mxu0 %v3247
    %v3556 = vpop.f32.mrb[0].mxu0
    %v3557 = vadd.f32 %v2980, %v3556
    %v3558 = vpop.f32.mrb[0].mxu0
    %3559 = vmatprep.mubr.f32.mxu0 0.0
    %3560 = vmatmul.mubr.f32.gmra.mrb[0].mxu0 %v3250
    %v3561 = vpop.f32.mrb[0].mxu0
    %v3562 = vadd.f32 %v2985, %v3561
    %v3563 = vpop.f32.mrb[0].mxu0
    %3564 = vmatprep.mubr.f32.mxu0 0.0
    %3565 = vmatmul.mubr.f32.gmra.mrb[0].mxu0 %v3253
    %v3566 = vpop.f32.mrb[0].mxu0
    %v3567 = vadd.f32 %v2990, %v3566
    %v3568 = vpop.f32.mrb[0].mxu0
    %3569 = vmatprep.mubr.f32.mxu0 0.0
    %3570 = vmatmul.mubr.f32.gmra.mrb[0].mxu0 %v3256
    %v3571 = vpop.f32.mrb[0].mxu0
    %v3572 = vadd.f32 %v2995, %v3571
    %v3573 = vpop.f32.mrb[0].mxu0
    %3574 = vmatprep.mubr.f32.mxu0 0.0
    %3575 = vmatmul.mubr.f32.gmra.mrb[0].mxu0 %v3259
    %v3576 = vpop.f32.mrb[0].mxu0
    %v3577 = vadd.f32 %v3000, %v3576
    %v3578 = vpop.f32.mrb[0].mxu0
    %3579 = vmatprep.mubr.f32.mxu0 0.0
    %3580 = vmatmul.mubr.f32.gmra.mrb[0].mxu0 %v3262
    %v3581 = vpop.f32.mrb[0].mxu0
    %v3582 = vadd.f32 %v3005, %v3581
    %v3583 = vpop.f32.mrb[0].mxu0
    %3584 = vmatprep.mubr.f32.mxu0 0.0
    %3585 = vmatmul.mubr.f32.gmra.mrb[0].mxu0 %v3265
    %v3586 = vpop.f32.mrb[0].mxu0
    %v3587 = vadd.f32 %v3010, %v3586
    %v3588 = vpop.f32.mrb[0].mxu0
    %3589 = vmatprep.mubr.f32.mxu0 0.0
    %3590 = vmatmul.mubr.f32.gmra.mrb[0].mxu0 %v3268
    %v3591 = vpop.f32.mrb[0].mxu0
    %v3592 = vadd.f32 %v3015, %v3591
    %v3593 = vpop.f32.mrb[0].mxu0
    %3594 = vmatprep.mubr.f32.mxu0 0.0
    %3595 = vmatmul.mubr.f32.gmra.mrb[0].mxu0 %v3271
    %v3596 = vpop.f32.mrb[0].mxu0
    %v3597 = vadd.f32 %v3020, %v3596
    %v3598 = vpop.f32.mrb[0].mxu0
    %3599 = vmatprep.mubr.f32.mxu0 0.0
    %3600 = vmatmul.mubr.f32.gmra.mrb[0].mxu0 %v3274
    %v3601 = vpop.f32.mrb[0].mxu0
    %v3602 = vadd.f32 %v3025, %v3601
    %v3603 = vpop.f32.mrb[0].mxu0
    %3604 = vmatprep.mubr.f32.mxu0 0.0
    %3605 = vmatmul.mubr.f32.gmra.mrb[0].mxu0 %v3277
    %v3606 = vpop.f32.mrb[0].mxu0
    %v3607 = vadd.f32 %v3030, %v3606
    %v3608 = vpop.f32.mrb[0].mxu0
    %3609 = vmatprep.mubr.f32.mxu0 0.0
    %3610 = vmatmul.mubr.f32.gmra.mrb[0].mxu0 %v3280
    %v3611 = vpop.f32.mrb[0].mxu0
    %v3612 = vadd.f32 %v3035, %v3611
    %v3613 = vpop.f32.mrb[0].mxu0
    %3614 = vmatprep.mubr.f32.mxu0 0.0
    %3615 = vmatmul.mubr.f32.gmra.mrb[0].mxu0 %v3283
    %v3616 = vpop.f32.mrb[0].mxu0
    %v3617 = vadd.f32 %v3040, %v3616
    %v3618 = vpop.f32.mrb[0].mxu0
    %3619 = vmatprep.mubr.f32.mxu0 0.0
    %3620 = vmatmul.mubr.f32.gmra.mrb[0].mxu0 %v3286
    %v3621 = vpop.f32.mrb[0].mxu0
    %v3622 = vadd.f32 %v3045, %v3621
    %v3623 = vpop.f32.mrb[0].mxu0
    %3624 = vmatprep.mubr.f32.mxu0 0.0
    %3625 = vmatmul.mubr.f32.gmra.mrb[0].mxu0 %v3289
    %v3626 = vpop.f32.mrb[0].mxu0
    %v3627 = vadd.f32 %v3050, %v3626
    %v3628 = vpop.f32.mrb[0].mxu0
    %3629 = vmatprep.mubr.f32.mxu0 0.0
    %3630 = vmatmul.mubr.f32.gmra.mrb[0].mxu0 %v3292
    %v3631 = vpop.f32.mrb[0].mxu0
    %v3632 = vadd.f32 %v3055, %v3631
    %v3633 = vpop.f32.mrb[0].mxu0
    %3634 = vmatprep.mubr.f32.mxu0 0.0
    %3635 = vmatmul.mubr.f32.gmra.mrb[0].mxu0 %v3295
    %v3636 = vpop.f32.mrb[0].mxu0
    %v3637 = vadd.f32 %v3060, %v3636
    %v3638 = vpop.f32.mrb[0].mxu0
    %3639 = vmatprep.mubr.f32.mxu0 0.0
    %3640 = vmatmul.mubr.f32.gmra.mrb[0].mxu0 %v3298
    %v3641 = vpop.f32.mrb[0].mxu0
    %v3642 = vadd.f32 %v3065, %v3641
    %v3643 = vpop.f32.mrb[0].mxu0
    %3644 = vmatprep.mubr.f32.mxu0 0.0
    %3645 = vmatmul.mubr.f32.gmra.mrb[0].mxu0 %v3301
    %v3646 = vpop.f32.mrb[0].mxu0
    %v3647 = vadd.f32 %v3070, %v3646
    %v3648 = vpop.f32.mrb[0].mxu0
    %3649 = vmatprep.mubr.f32.mxu0 0.0
    %3650 = vmatmul.mubr.f32.gmra.mrb[0].mxu0 %v3304
    %v3651 = vpop.f32.mrb[0].mxu0
    %v3652 = vadd.f32 %v3075, %v3651
    %v3653 = vpop.f32.mrb[0].mxu0
    %3654 = vmatprep.mubr.f32.mxu0 0.0
    %3655 = vmatmul.mubr.f32.gmra.mrb[0].mxu0 %v3307
    %v3656 = vpop.f32.mrb[0].mxu0
    %v3657 = vadd.f32 %v3080, %v3656
    %v3658 = vpop.f32.mrb[0].mxu0
    %3659 = vmatprep.mubr.f32.mxu0 0.0
    %3660 = vmatmul.mubr.f32.gmra.mrb[0].mxu0 %v3310
    %v3661 = vpop.f32.mrb[0].mxu0
    %v3662 = vadd.f32 %v3085, %v3661
    %v3663 = vpop.f32.mrb[0].mxu0
    %3664 = vmatprep.mubr.f32.mxu0 0.0
    %3665 = vmatmul.mubr.f32.gmra.mrb[0].mxu0 %v3313
    %v3666 = vpop.f32.mrb[0].mxu0
    %v3667 = vadd.f32 %v3090, %v3666
    %v3668 = vpop.f32.mrb[0].mxu0
    %3669 = vmatprep.mubr.f32.mxu0 0.0
    %3670 = vmatmul.mubr.f32.gmra.mrb[0].mxu0 %v3316
    %v3671 = vpop.f32.mrb[0].mxu0
    %v3672 = vadd.f32 %v3095, %v3671
    %v3673 = vpop.f32.mrb[0].mxu0
    %3674 = vmatprep.mubr.f32.mxu0 0.0
    %3675 = vmatmul.mubr.f32.gmra.mrb[0].mxu0 %v3319
    %v3676 = vpop.f32.mrb[0].mxu0
    %v3677 = vadd.f32 %v3100, %v3676
    %v3678 = vpop.f32.mrb[0].mxu0
    %3679 = vmatprep.mubr.f32.mxu0 0.0
    %3680 = vmatmul.mubr.f32.gmra.mrb[0].mxu0 %v3322
    %v3681 = vpop.f32.mrb[0].mxu0
    %v3682 = vadd.f32 %v3105, %v3681
    %v3683 = vpop.f32.mrb[0].mxu0
    %3684 = vmatprep.mubr.f32.mxu0 0.0
    %3685 = vmatmul.mubr.f32.gmra.mrb[0].mxu0 %v3325
    %v3686 = vpop.f32.mrb[0].mxu0
    %v3687 = vadd.f32 %v3110, %v3686
    %v3688 = vpop.f32.mrb[0].mxu0
    %3689 = vmatprep.mubr.f32.mxu0 0.0
    %3690 = vmatmul.mubr.f32.gmra.mrb[0].mxu0 %v3328
    %v3691 = vpop.f32.mrb[0].mxu0
    %v3692 = vadd.f32 %v3115, %v3691
    %v3693 = vpop.f32.mrb[0].mxu0
    %3694 = vmatprep.mubr.f32.mxu0 0.0
    %3695 = vmatmul.mubr.f32.gmra.mrb[0].mxu0 %v3331
    %v3696 = vpop.f32.mrb[0].mxu0
    %v3697 = vadd.f32 %v3120, %v3696
    %v3698 = vpop.f32.mrb[0].mxu0
    %3699 = vmatprep.mubr.f32.mxu0 0.0
    %3700 = vmatmul.mubr.f32.gmra.mrb[0].mxu0 %v3334
    %v3701 = vpop.f32.mrb[0].mxu0
    %v3702 = vadd.f32 %v3125, %v3701
    %v3703 = vpop.f32.mrb[0].mxu0
    %3704 = vmatprep.mubr.f32.mxu0 0.0
    %3705 = vmatmul.mubr.f32.gmra.mrb[0].mxu0 %v3337
    %v3706 = vpop.f32.mrb[0].mxu0
    %v3707 = vadd.f32 %v3130, %v3706
    %v3708 = vpop.f32.mrb[0].mxu0
    %3709 = vmatprep.mubr.f32.mxu0 0.0
    %3710 = vmatmul.mubr.f32.gmra.mrb[0].mxu0 %v3340
    %v3711 = vpop.f32.mrb[0].mxu0
    %v3712 = vadd.f32 %v3135, %v3711
    %v3713 = vpop.f32.mrb[0].mxu0
    %3714 = vmatprep.mubr.f32.mxu0 0.0
    %3715 = vmatmul.mubr.f32.gmra.mrb[0].mxu0 %v3343
    %v3716 = vpop.f32.mrb[0].mxu0
    %v3717 = vadd.f32 %v3140, %v3716
    %v3718 = vpop.f32.mrb[0].mxu0
    %3719 = vmatprep.mubr.f32.mxu0 0.0
    %3720 = vmatmul.mubr.f32.gmra.mrb[0].mxu0 %v3346
    %v3721 = vpop.f32.mrb[0].mxu0
    %v3722 = vadd.f32 %v3145, %v3721
    %v3723 = vpop.f32.mrb[0].mxu0
    %3724 = vmatprep.mubr.f32.mxu0 0.0
    %3725 = vmatmul.mubr.f32.gmra.mrb[0].mxu0 %v3349
    %v3726 = vpop.f32.mrb[0].mxu0
    %v3727 = vadd.f32 %v3150, %v3726
    %v3728 = vpop.f32.mrb[0].mxu0
    %3729 = vmatprep.mubr.f32.mxu0 0.0
    %3730 = vmatmul.mubr.f32.gmra.mrb[0].mxu0 %v3352
    %v3731 = vpop.f32.mrb[0].mxu0
    %v3732 = vadd.f32 %v3155, %v3731
    %v3733 = vpop.f32.mrb[0].mxu0
    %3734 = vmatprep.mubr.f32.mxu0 0.0
    %3735 = vmatmul.mubr.f32.gmra.mrb[0].mxu0 %v3355
    %v3736 = vpop.f32.mrb[0].mxu0
    %v3737 = vadd.f32 %v3160, %v3736
    %v3738 = vpop.f32.mrb[0].mxu0
    %3739 = vmatprep.mubr.f32.mxu0 0.0
    %3740 = vmatmul.mubr.f32.gmra.mrb[0].mxu0 %v3358
    %v3741 = vpop.f32.mrb[0].mxu0
    %v3742 = vadd.f32 %v3165, %v3741
    %v3743 = vpop.f32.mrb[0].mxu0
    %3744 = vdwg.mxu0
    %v3745 = vld [vmem:[#allocation2 + $0xa] sm:$0xff]
    %v3746 = vld [vmem:[#allocation2 + $0x12] sm:$0xff]
    %v3747 = vld [vmem:[#allocation2 + $0x2a] sm:$0xff]
    %v3748 = vld [vmem:[#allocation2 + $0x32] sm:$0xff]
    %v3749 = vld [vmem:[#allocation2 + $0x4a] sm:$0xff]
    %v3750 = vld [vmem:[#allocation2 + $0x52] sm:$0xff]
    %v3751 = vld [vmem:[#allocation2 + $0x6a] sm:$0xff]
    %v3752 = vld [vmem:[#allocation2 + $0x72] sm:$0xff]
    %v3753 = vld [vmem:[#allocation2 + $0x8a] sm:$0xff]
    %v3754 = vld [vmem:[#allocation2 + $0x92] sm:$0xff]
    %v3755 = vld [vmem:[#allocation2 + $0xaa] sm:$0xff]
    %v3756 = vld [vmem:[#allocation2 + $0xb2] sm:$0xff]
    %v3757 = vld [vmem:[#allocation2 + $0xca] sm:$0xff]
    %v3758 = vld [vmem:[#allocation2 + $0xd2] sm:$0xff]
    %v3759 = vld [vmem:[#allocation2 + $0xea] sm:$0xff]
    %v3760 = vld [vmem:[#allocation2 + $0xf2] sm:$0xff]
    %v3761 = vld [vmem:[#allocation2 + $0x10a] sm:$0xff]
    %v3762 = vld [vmem:[#allocation2 + $0x112] sm:$0xff]
    %v3763 = vld [vmem:[#allocation2 + $0x12a] sm:$0xff]
    %v3764 = vld [vmem:[#allocation2 + $0x132] sm:$0xff]
    %v3765 = vld [vmem:[#allocation2 + $0x14a] sm:$0xff]
    %v3766 = vld [vmem:[#allocation2 + $0x152] sm:$0xff]
    %v3767 = vld [vmem:[#allocation2 + $0x16a] sm:$0xff]
    %v3768 = vld [vmem:[#allocation2 + $0x172] sm:$0xff]
    %v3769 = vld [vmem:[#allocation2 + $0x18a] sm:$0xff]
    %v3770 = vld [vmem:[#allocation2 + $0x192] sm:$0xff]
    %v3771 = vld [vmem:[#allocation2 + $0x1aa] sm:$0xff]
    %v3772 = vld [vmem:[#allocation2 + $0x1b2] sm:$0xff]
    %v3773 = vld [vmem:[#allocation2 + $0x1ca] sm:$0xff]
    %v3774 = vld [vmem:[#allocation2 + $0x1d2] sm:$0xff]
    %v3775 = vld [vmem:[#allocation2 + $0x1ea] sm:$0xff]
    %v3776 = vld [vmem:[#allocation2 + $0x1f2] sm:$0xff]
    %v3777 = vld [vmem:[#allocation2 + $0x28a] sm:$0xff]
    %v3778 = vld [vmem:[#allocation2 + $0x292] sm:$0xff]
    %v3779 = vld [vmem:[#allocation2 + $0x2aa] sm:$0xff]
    %v3780 = vld [vmem:[#allocation2 + $0x2b2] sm:$0xff]
    %v3781 = vld [vmem:[#allocation2 + $0x2ca] sm:$0xff]
    %v3782 = vld [vmem:[#allocation2 + $0x2d2] sm:$0xff]
    %v3783 = vld [vmem:[#allocation2 + $0x2ea] sm:$0xff]
    %v3784 = vld [vmem:[#allocation2 + $0x2f2] sm:$0xff]
    %v3785 = vld [vmem:[#allocation2 + $0x30a] sm:$0xff]
    %v3786 = vld [vmem:[#allocation2 + $0x312] sm:$0xff]
    %v3787 = vld [vmem:[#allocation2 + $0x32a] sm:$0xff]
    %v3788 = vld [vmem:[#allocation2 + $0x332] sm:$0xff]
    %v3789 = vld [vmem:[#allocation2 + $0x34a] sm:$0xff]
    %v3790 = vld [vmem:[#allocation2 + $0x352] sm:$0xff]
    %v3791 = vld [vmem:[#allocation2 + $0x36a] sm:$0xff]
    %v3792 = vld [vmem:[#allocation2 + $0x372] sm:$0xff]
    %v3793 = vld [vmem:[#allocation2 + $0x38a] sm:$0xff]
    %v3794 = vld [vmem:[#allocation2 + $0x392] sm:$0xff]
    %v3795 = vld [vmem:[#allocation2 + $0x3aa] sm:$0xff]
    %v3796 = vld [vmem:[#allocation2 + $0x3b2] sm:$0xff]
    %v3797 = vld [vmem:[#allocation2 + $0x3ca] sm:$0xff]
    %v3798 = vld [vmem:[#allocation2 + $0x3d2] sm:$0xff]
    %v3799 = vld [vmem:[#allocation2 + $0x3ea] sm:$0xff]
    %v3800 = vld [vmem:[#allocation2 + $0x3f2] sm:$0xff]
    %v3801 = vld [vmem:[#allocation2 + $0x40a] sm:$0xff]
    %v3802 = vld [vmem:[#allocation2 + $0x412] sm:$0xff]
    %v3803 = vld [vmem:[#allocation2 + $0x42a] sm:$0xff]
    %v3804 = vld [vmem:[#allocation2 + $0x432] sm:$0xff]
    %v3805 = vld [vmem:[#allocation2 + $0x44a] sm:$0xff]
    %v3806 = vld [vmem:[#allocation2 + $0x452] sm:$0xff]
    %v3807 = vld [vmem:[#allocation2 + $0x46a] sm:$0xff]
    %v3808 = vld [vmem:[#allocation2 + $0x472] sm:$0xff]
    %s3809 = scalar_lea.vmem %s4, 16
    %v3810 = vld [vmem:[%s3809] sm:$0xff]
    %v3812 = vsel %vm1632, %v3745, 0
    %v3815 = vsel %vm1632, %v3746, 0
    %v3818 = vsel %vm1632, %v3747, 0
    %v3821 = vsel %vm1632, %v3748, 0
    %v3824 = vsel %vm1632, %v3749, 0
    %v3827 = vsel %vm1632, %v3750, 0
    %v3830 = vsel %vm1632, %v3751, 0
    %v3833 = vsel %vm1632, %v3752, 0
    %v3836 = vsel %vm1632, %v3753, 0
    %v3839 = vsel %vm1632, %v3754, 0
    %v3842 = vsel %vm1632, %v3755, 0
    %v3845 = vsel %vm1632, %v3756, 0
    %v3848 = vsel %vm1632, %v3757, 0
    %v3851 = vsel %vm1632, %v3758, 0
    %v3854 = vsel %vm1632, %v3759, 0
    %v3857 = vsel %vm1632, %v3760, 0
    %v3860 = vsel %vm1632, %v3761, 0
    %v3863 = vsel %vm1632, %v3762, 0
    %v3866 = vsel %vm1632, %v3763, 0
    %v3869 = vsel %vm1632, %v3764, 0
    %v3872 = vsel %vm1632, %v3765, 0
    %v3875 = vsel %vm1632, %v3766, 0
    %v3878 = vsel %vm1632, %v3767, 0
    %v3881 = vsel %vm1632, %v3768, 0
    %v3884 = vsel %vm1632, %v3769, 0
    %v3887 = vsel %vm1632, %v3770, 0
    %v3890 = vsel %vm1632, %v3771, 0
    %v3893 = vsel %vm1632, %v3772, 0
    %v3896 = vsel %vm1632, %v3773, 0
    %v3899 = vsel %vm1632, %v3774, 0
    %v3902 = vsel %vm1632, %v3775, 0
    %v3905 = vsel %vm1632, %v3776, 0
    %v3908 = vsel %vm1632, %v3777, 0
    %v3911 = vsel %vm1632, %v3778, 0
    %v3914 = vsel %vm1632, %v3779, 0
    %v3917 = vsel %vm1632, %v3780, 0
    %v3920 = vsel %vm1632, %v3781, 0
    %v3923 = vsel %vm1632, %v3782, 0
    %v3926 = vsel %vm1632, %v3783, 0
    %v3929 = vsel %vm1632, %v3784, 0
    %v3932 = vsel %vm1632, %v3785, 0
    %v3935 = vsel %vm1632, %v3786, 0
    %v3938 = vsel %vm1632, %v3787, 0
    %v3941 = vsel %vm1632, %v3788, 0
    %v3944 = vsel %vm1632, %v3789, 0
    %v3947 = vsel %vm1632, %v3790, 0
    %v3950 = vsel %vm1632, %v3791, 0
    %v3953 = vsel %vm1632, %v3792, 0
    %v3956 = vsel %vm1632, %v3793, 0
    %v3959 = vsel %vm1632, %v3794, 0
    %v3962 = vsel %vm1632, %v3795, 0
    %v3965 = vsel %vm1632, %v3796, 0
    %v3968 = vsel %vm1632, %v3797, 0
    %v3971 = vsel %vm1632, %v3798, 0
    %v3974 = vsel %vm1632, %v3799, 0
    %v3977 = vsel %vm1632, %v3800, 0
    %v3980 = vsel %vm1632, %v3801, 0
    %v3983 = vsel %vm1632, %v3802, 0
    %v3986 = vsel %vm1632, %v3803, 0
    %v3989 = vsel %vm1632, %v3804, 0
    %v3992 = vsel %vm1632, %v3805, 0
    %v3995 = vsel %vm1632, %v3806, 0
    %v3998 = vsel %vm1632, %v3807, 0
    %v4001 = vsel %vm1632, %v3808, 0
    %4003 = vmatprep.subr.mxu0 0.0
    %4004 = vmatpush1.msra.mxu0 %v3810
    %4005 = vmatprep.subr.mxu0 0.0
    %4006 = vmatpush1.msra.mxu0 0.0
    %4007 = vmatprep.subr.mxu0 0.0
    %4008 = vmatpush1.msra.mxu0 0.0
    %4009 = vmatprep.subr.mxu0 0.0
    %4010 = vmatpush1.msra.mxu0 0.0
    %4011 = vmatprep.subr.mxu0 0.0
    %4012 = vmatpush1.msra.mxu0 0.0
    %4013 = vmatprep.subr.mxu0 0.0
    %4014 = vmatpush1.msra.mxu0 0.0
    %4015 = vmatprep.subr.mxu0 0.0
    %4016 = vmatpush1.msra.mxu0 0.0
    %4017 = vmatprep.subr.mxu0 0.0
    %4018 = vmatpush1.msra.mxu0 0.0
    %4019 = vmatprep.subr.mxu0 0.0
    %4020 = vmatpush1.msra.mxu0 0.0
    %4021 = vmatprep.subr.mxu0 0.0
    %4022 = vmatpush1.msra.mxu0 0.0
    %4023 = vmatprep.subr.mxu0 0.0
    %4024 = vmatpush1.msra.mxu0 0.0
    %4025 = vmatprep.subr.mxu0 0.0
    %4026 = vmatpush1.msra.mxu0 0.0
    %4027 = vmatprep.subr.mxu0 0.0
    %4028 = vmatpush1.msra.mxu0 0.0
    %4029 = vmatprep.subr.mxu0 0.0
    %4030 = vmatpush1.msra.mxu0 0.0
    %4031 = vmatprep.subr.mxu0 0.0
    %4032 = vmatpush1.msra.mxu0 0.0
    %4033 = vmatprep.subr.mxu0 0.0
    %4034 = vmatpush1.msra.mxu0 0.0
    %4035 = vmatprep.subr.mxu0 0.0
    %4036 = vmatpush1.msra.mxu0 0.0
    %4037 = vmatprep.subr.mxu0 0.0
    %4038 = vmatpush1.msra.mxu0 0.0
    %4039 = vmatprep.subr.mxu0 0.0
    %4040 = vmatpush1.msra.mxu0 0.0
    %4041 = vmatprep.subr.mxu0 0.0
    %4042 = vmatpush1.msra.mxu0 0.0
    %4043 = vmatprep.subr.mxu0 0.0
    %4044 = vmatpush1.msra.mxu0 0.0
    %4045 = vmatprep.subr.mxu0 0.0
    %4046 = vmatpush1.msra.mxu0 0.0
    %4047 = vmatprep.subr.mxu0 0.0
    %4048 = vmatpush1.msra.mxu0 0.0
    %4049 = vmatprep.subr.mxu0 0.0
    %4050 = vmatpush1.msra.mxu0 0.0
    %4051 = vmatprep.subr.mxu0 0.0
    %4052 = vmatpush1.msra.mxu0 0.0
    %4053 = vmatprep.subr.mxu0 0.0
    %4054 = vmatpush1.msra.mxu0 0.0
    %4055 = vmatprep.subr.mxu0 0.0
    %4056 = vmatpush1.msra.mxu0 0.0
    %4057 = vmatprep.subr.mxu0 0.0
    %4058 = vmatpush1.msra.mxu0 0.0
    %4059 = vmatprep.subr.mxu0 0.0
    %4060 = vmatpush1.msra.mxu0 0.0
    %4061 = vmatprep.subr.mxu0 0.0
    %4062 = vmatpush1.msra.mxu0 0.0
    %4063 = vmatprep.subr.mxu0 0.0
    %4064 = vmatpush1.msra.mxu0 0.0
    %4065 = vmatprep.subr.mxu0 0.0
    %4066 = vmatpush1.msra.mxu0 0.0
    %4067 = vmatprep.mubr.f32.mxu0 0.0
    %4068 = vmatmul.mubr.f32.gmra.mrb[0].mxu0 %v3812
    %v4069 = vpop.f32.mrb[0].mxu0
    %v4070 = vadd.f32 0.0, %v4069
    %v4071 = vpop.f32.mrb[0].mxu0
    %4072 = vmatprep.mubr.f32.mxu0 0.0
    %4073 = vmatmul.mubr.f32.gmra.mrb[0].mxu0 %v3815
    %v4074 = vpop.f32.mrb[0].mxu0
    %v4075 = vadd.f32 0.0, %v4074
    %v4076 = vpop.f32.mrb[0].mxu0
    %4077 = vmatprep.mubr.f32.mxu0 0.0
    %4078 = vmatmul.mubr.f32.gmra.mrb[0].mxu0 %v3818
    %v4079 = vpop.f32.mrb[0].mxu0
    %v4080 = vadd.f32 0.0, %v4079
    %v4081 = vpop.f32.mrb[0].mxu0
    %4082 = vmatprep.mubr.f32.mxu0 0.0
    %4083 = vmatmul.mubr.f32.gmra.mrb[0].mxu0 %v3821
    %v4084 = vpop.f32.mrb[0].mxu0
    %v4085 = vadd.f32 0.0, %v4084
    %v4086 = vpop.f32.mrb[0].mxu0
    %4087 = vmatprep.mubr.f32.mxu0 0.0
    %4088 = vmatmul.mubr.f32.gmra.mrb[0].mxu0 %v3824
    %v4089 = vpop.f32.mrb[0].mxu0
    %v4090 = vadd.f32 0.0, %v4089
    %v4091 = vpop.f32.mrb[0].mxu0
    %4092 = vmatprep.mubr.f32.mxu0 0.0
    %4093 = vmatmul.mubr.f32.gmra.mrb[0].mxu0 %v3827
    %v4094 = vpop.f32.mrb[0].mxu0
    %v4095 = vadd.f32 0.0, %v4094
    %v4096 = vpop.f32.mrb[0].mxu0
    %4097 = vmatprep.mubr.f32.mxu0 0.0
    %4098 = vmatmul.mubr.f32.gmra.mrb[0].mxu0 %v3830
    %v4099 = vpop.f32.mrb[0].mxu0
    %v4100 = vadd.f32 0.0, %v4099
    %v4101 = vpop.f32.mrb[0].mxu0
    %4102 = vmatprep.mubr.f32.mxu0 0.0
    %4103 = vmatmul.mubr.f32.gmra.mrb[0].mxu0 %v3833
    %v4104 = vpop.f32.mrb[0].mxu0
    %v4105 = vadd.f32 0.0, %v4104
    %v4106 = vpop.f32.mrb[0].mxu0
    %4107 = vmatprep.mubr.f32.mxu0 0.0
    %4108 = vmatmul.mubr.f32.gmra.mrb[0].mxu0 %v3836
    %v4109 = vpop.f32.mrb[0].mxu0
    %v4110 = vadd.f32 0.0, %v4109
    %v4111 = vpop.f32.mrb[0].mxu0
    %4112 = vmatprep.mubr.f32.mxu0 0.0
    %4113 = vmatmul.mubr.f32.gmra.mrb[0].mxu0 %v3839
    %v4114 = vpop.f32.mrb[0].mxu0
    %v4115 = vadd.f32 0.0, %v4114
    %v4116 = vpop.f32.mrb[0].mxu0
    %4117 = vmatprep.mubr.f32.mxu0 0.0
    %4118 = vmatmul.mubr.f32.gmra.mrb[0].mxu0 %v3842
    %v4119 = vpop.f32.mrb[0].mxu0
    %v4120 = vadd.f32 0.0, %v4119
    %v4121 = vpop.f32.mrb[0].mxu0
    %4122 = vmatprep.mubr.f32.mxu0 0.0
    %4123 = vmatmul.mubr.f32.gmra.mrb[0].mxu0 %v3845
    %v4124 = vpop.f32.mrb[0].mxu0
    %v4125 = vadd.f32 0.0, %v4124
    %v4126 = vpop.f32.mrb[0].mxu0
    %4127 = vmatprep.mubr.f32.mxu0 0.0
    %4128 = vmatmul.mubr.f32.gmra.mrb[0].mxu0 %v3848
    %v4129 = vpop.f32.mrb[0].mxu0
    %v4130 = vadd.f32 0.0, %v4129
    %v4131 = vpop.f32.mrb[0].mxu0
    %4132 = vmatprep.mubr.f32.mxu0 0.0
    %4133 = vmatmul.mubr.f32.gmra.mrb[0].mxu0 %v3851
    %v4134 = vpop.f32.mrb[0].mxu0
    %v4135 = vadd.f32 0.0, %v4134
    %v4136 = vpop.f32.mrb[0].mxu0
    %4137 = vmatprep.mubr.f32.mxu0 0.0
    %4138 = vmatmul.mubr.f32.gmra.mrb[0].mxu0 %v3854
    %v4139 = vpop.f32.mrb[0].mxu0
    %v4140 = vadd.f32 0.0, %v4139
    %v4141 = vpop.f32.mrb[0].mxu0
    %4142 = vmatprep.mubr.f32.mxu0 0.0
    %4143 = vmatmul.mubr.f32.gmra.mrb[0].mxu0 %v3857
    %v4144 = vpop.f32.mrb[0].mxu0
    %v4145 = vadd.f32 0.0, %v4144
    %v4146 = vpop.f32.mrb[0].mxu0
    %4147 = vmatprep.mubr.f32.mxu0 0.0
    %4148 = vmatmul.mubr.f32.gmra.mrb[0].mxu0 %v3860
    %v4149 = vpop.f32.mrb[0].mxu0
    %v4150 = vadd.f32 0.0, %v4149
    %v4151 = vpop.f32.mrb[0].mxu0
    %4152 = vmatprep.mubr.f32.mxu0 0.0
    %4153 = vmatmul.mubr.f32.gmra.mrb[0].mxu0 %v3863
    %v4154 = vpop.f32.mrb[0].mxu0
    %v4155 = vadd.f32 0.0, %v4154
    %v4156 = vpop.f32.mrb[0].mxu0
    %4157 = vmatprep.mubr.f32.mxu0 0.0
    %4158 = vmatmul.mubr.f32.gmra.mrb[0].mxu0 %v3866
    %v4159 = vpop.f32.mrb[0].mxu0
    %v4160 = vadd.f32 0.0, %v4159
    %v4161 = vpop.f32.mrb[0].mxu0
    %4162 = vmatprep.mubr.f32.mxu0 0.0
    %4163 = vmatmul.mubr.f32.gmra.mrb[0].mxu0 %v3869
    %v4164 = vpop.f32.mrb[0].mxu0
    %v4165 = vadd.f32 0.0, %v4164
    %v4166 = vpop.f32.mrb[0].mxu0
    %4167 = vmatprep.mubr.f32.mxu0 0.0
    %4168 = vmatmul.mubr.f32.gmra.mrb[0].mxu0 %v3872
    %v4169 = vpop.f32.mrb[0].mxu0
    %v4170 = vadd.f32 0.0, %v4169
    %v4171 = vpop.f32.mrb[0].mxu0
    %4172 = vmatprep.mubr.f32.mxu0 0.0
    %4173 = vmatmul.mubr.f32.gmra.mrb[0].mxu0 %v3875
    %v4174 = vpop.f32.mrb[0].mxu0
    %v4175 = vadd.f32 0.0, %v4174
    %v4176 = vpop.f32.mrb[0].mxu0
    %4177 = vmatprep.mubr.f32.mxu0 0.0
    %4178 = vmatmul.mubr.f32.gmra.mrb[0].mxu0 %v3878
    %v4179 = vpop.f32.mrb[0].mxu0
    %v4180 = vadd.f32 0.0, %v4179
    %v4181 = vpop.f32.mrb[0].mxu0
    %4182 = vmatprep.mubr.f32.mxu0 0.0
    %4183 = vmatmul.mubr.f32.gmra.mrb[0].mxu0 %v3881
    %v4184 = vpop.f32.mrb[0].mxu0
    %v4185 = vadd.f32 0.0, %v4184
    %v4186 = vpop.f32.mrb[0].mxu0
    %4187 = vmatprep.mubr.f32.mxu0 0.0
    %4188 = vmatmul.mubr.f32.gmra.mrb[0].mxu0 %v3884
    %v4189 = vpop.f32.mrb[0].mxu0
    %v4190 = vadd.f32 0.0, %v4189
    %v4191 = vpop.f32.mrb[0].mxu0
    %4192 = vmatprep.mubr.f32.mxu0 0.0
    %4193 = vmatmul.mubr.f32.gmra.mrb[0].mxu0 %v3887
    %v4194 = vpop.f32.mrb[0].mxu0
    %v4195 = vadd.f32 0.0, %v4194
    %v4196 = vpop.f32.mrb[0].mxu0
    %4197 = vmatprep.mubr.f32.mxu0 0.0
    %4198 = vmatmul.mubr.f32.gmra.mrb[0].mxu0 %v3890
    %v4199 = vpop.f32.mrb[0].mxu0
    %v4200 = vadd.f32 0.0, %v4199
    %v4201 = vpop.f32.mrb[0].mxu0
    %4202 = vmatprep.mubr.f32.mxu0 0.0
    %4203 = vmatmul.mubr.f32.gmra.mrb[0].mxu0 %v3893
    %v4204 = vpop.f32.mrb[0].mxu0
    %v4205 = vadd.f32 0.0, %v4204
    %v4206 = vpop.f32.mrb[0].mxu0
    %4207 = vmatprep.mubr.f32.mxu0 0.0
    %4208 = vmatmul.mubr.f32.gmra.mrb[0].mxu0 %v3896
    %v4209 = vpop.f32.mrb[0].mxu0
    %v4210 = vadd.f32 0.0, %v4209
    %v4211 = vpop.f32.mrb[0].mxu0
    %4212 = vmatprep.mubr.f32.mxu0 0.0
    %4213 = vmatmul.mubr.f32.gmra.mrb[0].mxu0 %v3899
    %v4214 = vpop.f32.mrb[0].mxu0
    %v4215 = vadd.f32 0.0, %v4214
    %v4216 = vpop.f32.mrb[0].mxu0
    %4217 = vmatprep.mubr.f32.mxu0 0.0
    %4218 = vmatmul.mubr.f32.gmra.mrb[0].mxu0 %v3902
    %v4219 = vpop.f32.mrb[0].mxu0
    %v4220 = vadd.f32 0.0, %v4219
    %v4221 = vpop.f32.mrb[0].mxu0
    %4222 = vmatprep.mubr.f32.mxu0 0.0
    %4223 = vmatmul.mubr.f32.gmra.mrb[0].mxu0 %v3905
    %v4224 = vpop.f32.mrb[0].mxu0
    %v4225 = vadd.f32 0.0, %v4224
    %v4226 = vpop.f32.mrb[0].mxu0
    %4227 = vmatprep.mubr.f32.mxu0 0.0
    %4228 = vmatmul.mubr.f32.gmra.mrb[0].mxu0 %v3908
    %v4229 = vpop.f32.mrb[0].mxu0
    %v4230 = vadd.f32 0.0, %v4229
    %v4231 = vpop.f32.mrb[0].mxu0
    %4232 = vmatprep.mubr.f32.mxu0 0.0
    %4233 = vmatmul.mubr.f32.gmra.mrb[0].mxu0 %v3911
    %v4234 = vpop.f32.mrb[0].mxu0
    %v4235 = vadd.f32 0.0, %v4234
    %v4236 = vpop.f32.mrb[0].mxu0
    %4237 = vmatprep.mubr.f32.mxu0 0.0
    %4238 = vmatmul.mubr.f32.gmra.mrb[0].mxu0 %v3914
    %v4239 = vpop.f32.mrb[0].mxu0
    %v4240 = vadd.f32 0.0, %v4239
    %v4241 = vpop.f32.mrb[0].mxu0
    %4242 = vmatprep.mubr.f32.mxu0 0.0
    %4243 = vmatmul.mubr.f32.gmra.mrb[0].mxu0 %v3917
    %v4244 = vpop.f32.mrb[0].mxu0
    %v4245 = vadd.f32 0.0, %v4244
    %v4246 = vpop.f32.mrb[0].mxu0
    %4247 = vmatprep.mubr.f32.mxu0 0.0
    %4248 = vmatmul.mubr.f32.gmra.mrb[0].mxu0 %v3920
    %v4249 = vpop.f32.mrb[0].mxu0
    %v4250 = vadd.f32 0.0, %v4249
    %v4251 = vpop.f32.mrb[0].mxu0
    %4252 = vmatprep.mubr.f32.mxu0 0.0
    %4253 = vmatmul.mubr.f32.gmra.mrb[0].mxu0 %v3923
    %v4254 = vpop.f32.mrb[0].mxu0
    %v4255 = vadd.f32 0.0, %v4254
    %v4256 = vpop.f32.mrb[0].mxu0
    %4257 = vmatprep.mubr.f32.mxu0 0.0
    %4258 = vmatmul.mubr.f32.gmra.mrb[0].mxu0 %v3926
    %v4259 = vpop.f32.mrb[0].mxu0
    %v4260 = vadd.f32 0.0, %v4259
    %v4261 = vpop.f32.mrb[0].mxu0
    %4262 = vmatprep.mubr.f32.mxu0 0.0
    %4263 = vmatmul.mubr.f32.gmra.mrb[0].mxu0 %v3929
    %v4264 = vpop.f32.mrb[0].mxu0
    %v4265 = vadd.f32 0.0, %v4264
    %v4266 = vpop.f32.mrb[0].mxu0
    %4267 = vmatprep.mubr.f32.mxu0 0.0
    %4268 = vmatmul.mubr.f32.gmra.mrb[0].mxu0 %v3932
    %v4269 = vpop.f32.mrb[0].mxu0
    %v4270 = vadd.f32 0.0, %v4269
    %v4271 = vpop.f32.mrb[0].mxu0
    %4272 = vmatprep.mubr.f32.mxu0 0.0
    %4273 = vmatmul.mubr.f32.gmra.mrb[0].mxu0 %v3935
    %v4274 = vpop.f32.mrb[0].mxu0
    %v4275 = vadd.f32 0.0, %v4274
    %v4276 = vpop.f32.mrb[0].mxu0
    %4277 = vmatprep.mubr.f32.mxu0 0.0
    %4278 = vmatmul.mubr.f32.gmra.mrb[0].mxu0 %v3938
    %v4279 = vpop.f32.mrb[0].mxu0
    %v4280 = vadd.f32 0.0, %v4279
    %v4281 = vpop.f32.mrb[0].mxu0
    %4282 = vmatprep.mubr.f32.mxu0 0.0
    %4283 = vmatmul.mubr.f32.gmra.mrb[0].mxu0 %v3941
    %v4284 = vpop.f32.mrb[0].mxu0
    %v4285 = vadd.f32 0.0, %v4284
    %v4286 = vpop.f32.mrb[0].mxu0
    %4287 = vmatprep.mubr.f32.mxu0 0.0
    %4288 = vmatmul.mubr.f32.gmra.mrb[0].mxu0 %v3944
    %v4289 = vpop.f32.mrb[0].mxu0
    %v4290 = vadd.f32 0.0, %v4289
    %v4291 = vpop.f32.mrb[0].mxu0
    %4292 = vmatprep.mubr.f32.mxu0 0.0
    %4293 = vmatmul.mubr.f32.gmra.mrb[0].mxu0 %v3947
    %v4294 = vpop.f32.mrb[0].mxu0
    %v4295 = vadd.f32 0.0, %v4294
    %v4296 = vpop.f32.mrb[0].mxu0
    %4297 = vmatprep.mubr.f32.mxu0 0.0
    %4298 = vmatmul.mubr.f32.gmra.mrb[0].mxu0 %v3950
    %v4299 = vpop.f32.mrb[0].mxu0
    %v4300 = vadd.f32 0.0, %v4299
    %v4301 = vpop.f32.mrb[0].mxu0
    %4302 = vmatprep.mubr.f32.mxu0 0.0
    %4303 = vmatmul.mubr.f32.gmra.mrb[0].mxu0 %v3953
    %v4304 = vpop.f32.mrb[0].mxu0
    %v4305 = vadd.f32 0.0, %v4304
    %v4306 = vpop.f32.mrb[0].mxu0
    %4307 = vmatprep.mubr.f32.mxu0 0.0
    %4308 = vmatmul.mubr.f32.gmra.mrb[0].mxu0 %v3956
    %v4309 = vpop.f32.mrb[0].mxu0
    %v4310 = vadd.f32 0.0, %v4309
    %v4311 = vpop.f32.mrb[0].mxu0
    %4312 = vmatprep.mubr.f32.mxu0 0.0
    %4313 = vmatmul.mubr.f32.gmra.mrb[0].mxu0 %v3959
    %v4314 = vpop.f32.mrb[0].mxu0
    %v4315 = vadd.f32 0.0, %v4314
    %v4316 = vpop.f32.mrb[0].mxu0
    %4317 = vmatprep.mubr.f32.mxu0 0.0
    %4318 = vmatmul.mubr.f32.gmra.mrb[0].mxu0 %v3962
    %v4319 = vpop.f32.mrb[0].mxu0
    %v4320 = vadd.f32 0.0, %v4319
    %v4321 = vpop.f32.mrb[0].mxu0
    %4322 = vmatprep.mubr.f32.mxu0 0.0
    %4323 = vmatmul.mubr.f32.gmra.mrb[0].mxu0 %v3965
    %v4324 = vpop.f32.mrb[0].mxu0
    %v4325 = vadd.f32 0.0, %v4324
    %v4326 = vpop.f32.mrb[0].mxu0
    %4327 = vmatprep.mubr.f32.mxu0 0.0
    %4328 = vmatmul.mubr.f32.gmra.mrb[0].mxu0 %v3968
    %v4329 = vpop.f32.mrb[0].mxu0
    %v4330 = vadd.f32 0.0, %v4329
    %v4331 = vpop.f32.mrb[0].mxu0
    %4332 = vmatprep.mubr.f32.mxu0 0.0
    %4333 = vmatmul.mubr.f32.gmra.mrb[0].mxu0 %v3971
    %v4334 = vpop.f32.mrb[0].mxu0
    %v4335 = vadd.f32 0.0, %v4334
    %v4336 = vpop.f32.mrb[0].mxu0
    %4337 = vmatprep.mubr.f32.mxu0 0.0
    %4338 = vmatmul.mubr.f32.gmra.mrb[0].mxu0 %v3974
    %v4339 = vpop.f32.mrb[0].mxu0
    %v4340 = vadd.f32 0.0, %v4339
    %v4341 = vpop.f32.mrb[0].mxu0
    %4342 = vmatprep.mubr.f32.mxu0 0.0
    %4343 = vmatmul.mubr.f32.gmra.mrb[0].mxu0 %v3977
    %v4344 = vpop.f32.mrb[0].mxu0
    %v4345 = vadd.f32 0.0, %v4344
    %v4346 = vpop.f32.mrb[0].mxu0
    %4347 = vmatprep.mubr.f32.mxu0 0.0
    %4348 = vmatmul.mubr.f32.gmra.mrb[0].mxu0 %v3980
    %v4349 = vpop.f32.mrb[0].mxu0
    %v4350 = vadd.f32 0.0, %v4349
    %v4351 = vpop.f32.mrb[0].mxu0
    %4352 = vmatprep.mubr.f32.mxu0 0.0
    %4353 = vmatmul.mubr.f32.gmra.mrb[0].mxu0 %v3983
    %v4354 = vpop.f32.mrb[0].mxu0
    %v4355 = vadd.f32 0.0, %v4354
    %v4356 = vpop.f32.mrb[0].mxu0
    %4357 = vmatprep.mubr.f32.mxu0 0.0
    %4358 = vmatmul.mubr.f32.gmra.mrb[0].mxu0 %v3986
    %v4359 = vpop.f32.mrb[0].mxu0
    %v4360 = vadd.f32 0.0, %v4359
    %v4361 = vpop.f32.mrb[0].mxu0
    %4362 = vmatprep.mubr.f32.mxu0 0.0
    %4363 = vmatmul.mubr.f32.gmra.mrb[0].mxu0 %v3989
    %v4364 = vpop.f32.mrb[0].mxu0
    %v4365 = vadd.f32 0.0, %v4364
    %v4366 = vpop.f32.mrb[0].mxu0
    %4367 = vmatprep.mubr.f32.mxu0 0.0
    %4368 = vmatmul.mubr.f32.gmra.mrb[0].mxu0 %v3992
    %v4369 = vpop.f32.mrb[0].mxu0
    %v4370 = vadd.f32 0.0, %v4369
    %v4371 = vpop.f32.mrb[0].mxu0
    %4372 = vmatprep.mubr.f32.mxu0 0.0
    %4373 = vmatmul.mubr.f32.gmra.mrb[0].mxu0 %v3995
    %v4374 = vpop.f32.mrb[0].mxu0
    %v4375 = vadd.f32 0.0, %v4374
    %v4376 = vpop.f32.mrb[0].mxu0
    %4377 = vmatprep.mubr.f32.mxu0 0.0
    %4378 = vmatmul.mubr.f32.gmra.mrb[0].mxu0 %v3998
    %v4379 = vpop.f32.mrb[0].mxu0
    %v4380 = vadd.f32 0.0, %v4379
    %v4381 = vpop.f32.mrb[0].mxu0
    %4382 = vmatprep.mubr.f32.mxu0 0.0
    %4383 = vmatmul.mubr.f32.gmra.mrb[0].mxu0 %v4001
    %v4384 = vpop.f32.mrb[0].mxu0
    %v4385 = vadd.f32 0.0, %v4384
    %v4386 = vpop.f32.mrb[0].mxu0
    %4387 = vdwg.mxu0
    %v4388 = vadd.f32 %v3427, %v4070
    %v4389 = vadd.f32 %v3432, %v4075
    %v4390 = vadd.f32 %v3437, %v4080
    %v4391 = vadd.f32 %v3442, %v4085
    %v4392 = vadd.f32 %v3447, %v4090
    %v4393 = vadd.f32 %v3452, %v4095
    %v4394 = vadd.f32 %v3457, %v4100
    %v4395 = vadd.f32 %v3462, %v4105
    %v4396 = vadd.f32 %v3467, %v4110
    %v4397 = vadd.f32 %v3472, %v4115
    %v4398 = vadd.f32 %v3477, %v4120
    %v4399 = vadd.f32 %v3482, %v4125
    %v4400 = vadd.f32 %v3487, %v4130
    %v4401 = vadd.f32 %v3492, %v4135
    %v4402 = vadd.f32 %v3497, %v4140
    %v4403 = vadd.f32 %v3502, %v4145
    %v4404 = vadd.f32 %v3507, %v4150
    %v4405 = vadd.f32 %v3512, %v4155
    %v4406 = vadd.f32 %v3517, %v4160
    %v4407 = vadd.f32 %v3522, %v4165
    %v4408 = vadd.f32 %v3527, %v4170
    %v4409 = vadd.f32 %v3532, %v4175
    %v4410 = vadd.f32 %v3537, %v4180
    %v4411 = vadd.f32 %v3542, %v4185
    %v4412 = vadd.f32 %v3547, %v4190
    %v4413 = vadd.f32 %v3552, %v4195
    %v4414 = vadd.f32 %v3557, %v4200
    %v4415 = vadd.f32 %v3562, %v4205
    %v4416 = vadd.f32 %v3567, %v4210
    %v4417 = vadd.f32 %v3572, %v4215
    %v4418 = vadd.f32 %v3577, %v4220
    %v4419 = vadd.f32 %v3582, %v4225
    %v4420 = vadd.f32 %v3587, %v4230
    %v4421 = vadd.f32 %v3592, %v4235
    %v4422 = vadd.f32 %v3597, %v4240
    %v4423 = vadd.f32 %v3602, %v4245
    %v4424 = vadd.f32 %v3607, %v4250
    %v4425 = vadd.f32 %v3612, %v4255
    %v4426 = vadd.f32 %v3617, %v4260
    %v4427 = vadd.f32 %v3622, %v4265
    %v4428 = vadd.f32 %v3627, %v4270
    %v4429 = vadd.f32 %v3632, %v4275
    %v4430 = vadd.f32 %v3637, %v4280
    %v4431 = vadd.f32 %v3642, %v4285
    %v4432 = vadd.f32 %v3647, %v4290
    %v4433 = vadd.f32 %v3652, %v4295
    %v4434 = vadd.f32 %v3657, %v4300
    %v4435 = vadd.f32 %v3662, %v4305
    %v4436 = vadd.f32 %v3667, %v4310
    %v4437 = vadd.f32 %v3672, %v4315
    %v4438 = vadd.f32 %v3677, %v4320
    %v4439 = vadd.f32 %v3682, %v4325
    %v4440 = vadd.f32 %v3687, %v4330
    %v4441 = vadd.f32 %v3692, %v4335
    %v4442 = vadd.f32 %v3697, %v4340
    %v4443 = vadd.f32 %v3702, %v4345
    %v4444 = vadd.f32 %v3707, %v4350
    %v4445 = vadd.f32 %v3712, %v4355
    %v4446 = vadd.f32 %v3717, %v4360
    %v4447 = vadd.f32 %v3722, %v4365
    %v4448 = vadd.f32 %v3727, %v4370
    %v4449 = vadd.f32 %v3732, %v4375
    %v4450 = vadd.f32 %v3737, %v4380
    %v4451 = vadd.f32 %v3742, %v4385
    %v4452 = vld [vmem:[%s2395 + $0x6] sm:$0xff]
    %v4453 = vld [vmem:[%s2395 + $0xe] sm:$0xff]
    %v4454 = vld [vmem:[%s2395 + $0x26] sm:$0xff]
    %v4455 = vld [vmem:[%s2395 + $0x2e] sm:$0xff]
    %v4456 = vld [vmem:[%s2395 + $0x46] sm:$0xff]
    %v4457 = vld [vmem:[%s2395 + $0x4e] sm:$0xff]
    %v4458 = vld [vmem:[%s2395 + $0x66] sm:$0xff]
    %v4459 = vld [vmem:[%s2395 + $0x6e] sm:$0xff]
    %v4460 = vld [vmem:[%s2395 + $0x86] sm:$0xff]
    %v4461 = vld [vmem:[%s2395 + $0x8e] sm:$0xff]
    %v4462 = vld [vmem:[%s2395 + $0xa6] sm:$0xff]
    %v4463 = vld [vmem:[%s2395 + $0xae] sm:$0xff]
    %v4464 = vld [vmem:[%s2395 + $0xc6] sm:$0xff]
    %v4465 = vld [vmem:[%s2395 + $0xce] sm:$0xff]
    %v4466 = vld [vmem:[%s2395 + $0xe6] sm:$0xff]
    %v4467 = vld [vmem:[%s2395 + $0xee] sm:$0xff]
    %v4468 = vld [vmem:[%s2395 + $0x106] sm:$0xff]
    %v4469 = vld [vmem:[%s2395 + $0x10e] sm:$0xff]
    %v4470 = vld [vmem:[%s2395 + $0x126] sm:$0xff]
    %v4471 = vld [vmem:[%s2395 + $0x12e] sm:$0xff]
    %v4472 = vld [vmem:[%s2395 + $0x146] sm:$0xff]
    %v4473 = vld [vmem:[%s2395 + $0x14e] sm:$0xff]
    %v4474 = vld [vmem:[%s2395 + $0x166] sm:$0xff]
    %v4475 = vld [vmem:[%s2395 + $0x16e] sm:$0xff]
    %v4476 = vld [vmem:[%s2395 + $0x186] sm:$0xff]
    %v4477 = vld [vmem:[%s2395 + $0x18e] sm:$0xff]
    %v4478 = vld [vmem:[%s2395 + $0x1a6] sm:$0xff]
    %v4479 = vld [vmem:[%s2395 + $0x1ae] sm:$0xff]
    %v4480 = vld [vmem:[%s2395 + $0x1c6] sm:$0xff]
    %v4481 = vld [vmem:[%s2395 + $0x1ce] sm:$0xff]
    %v4482 = vld [vmem:[%s2395 + $0x1e6] sm:$0xff]
    %v4483 = vld [vmem:[%s2395 + $0x1ee] sm:$0xff]
    %v4484 = vld [vmem:[%s2395 + $0x286] sm:$0xff]
    %v4485 = vld [vmem:[%s2395 + $0x28e] sm:$0xff]
    %v4486 = vld [vmem:[%s2395 + $0x2a6] sm:$0xff]
    %v4487 = vld [vmem:[%s2395 + $0x2ae] sm:$0xff]
    %v4488 = vld [vmem:[%s2395 + $0x2c6] sm:$0xff]
    %v4489 = vld [vmem:[%s2395 + $0x2ce] sm:$0xff]
    %v4490 = vld [vmem:[%s2395 + $0x2e6] sm:$0xff]
    %v4491 = vld [vmem:[%s2395 + $0x2ee] sm:$0xff]
    %v4492 = vld [vmem:[%s2395 + $0x306] sm:$0xff]
    %v4493 = vld [vmem:[%s2395 + $0x30e] sm:$0xff]
    %v4494 = vld [vmem:[%s2395 + $0x326] sm:$0xff]
    %v4495 = vld [vmem:[%s2395 + $0x32e] sm:$0xff]
    %v4496 = vld [vmem:[%s2395 + $0x346] sm:$0xff]
    %v4497 = vld [vmem:[%s2395 + $0x34e] sm:$0xff]
    %v4498 = vld [vmem:[%s2395 + $0x366] sm:$0xff]
    %v4499 = vld [vmem:[%s2395 + $0x36e] sm:$0xff]
    %v4500 = vld [vmem:[%s2395 + $0x386] sm:$0xff]
    %v4501 = vld [vmem:[%s2395 + $0x38e] sm:$0xff]
    %v4502 = vld [vmem:[%s2395 + $0x3a6] sm:$0xff]
    %v4503 = vld [vmem:[%s2395 + $0x3ae] sm:$0xff]
    %v4504 = vld [vmem:[%s2395 + $0x3c6] sm:$0xff]
    %v4505 = vld [vmem:[%s2395 + $0x3ce] sm:$0xff]
    %v4506 = vld [vmem:[%s2395 + $0x3e6] sm:$0xff]
    %v4507 = vld [vmem:[%s2395 + $0x3ee] sm:$0xff]
    %v4508 = vld [vmem:[%s2395 + $0x406] sm:$0xff]
    %v4509 = vld [vmem:[%s2395 + $0x40e] sm:$0xff]
    %v4510 = vld [vmem:[%s2395 + $0x426] sm:$0xff]
    %v4511 = vld [vmem:[%s2395 + $0x42e] sm:$0xff]
    %v4512 = vld [vmem:[%s2395 + $0x446] sm:$0xff]
    %v4513 = vld [vmem:[%s2395 + $0x44e] sm:$0xff]
    %v4514 = vld [vmem:[%s2395 + $0x466] sm:$0xff]
    %v4515 = vld [vmem:[%s2395 + $0x46e] sm:$0xff]
    %s4516 = scalar_lea.vmem %s4, 24
    %v4517 = vld [vmem:[%s4516] sm:$0xff]
    %v4519 = vsel %vm1632, %v4452, 0
    %v4522 = vsel %vm1632, %v4453, 0
    %v4525 = vsel %vm1632, %v4454, 0
    %v4528 = vsel %vm1632, %v4455, 0
    %v4531 = vsel %vm1632, %v4456, 0
    %v4534 = vsel %vm1632, %v4457, 0
    %v4537 = vsel %vm1632, %v4458, 0
    %v4540 = vsel %vm1632, %v4459, 0
    %v4543 = vsel %vm1632, %v4460, 0
    %v4546 = vsel %vm1632, %v4461, 0
    %v4549 = vsel %vm1632, %v4462, 0
    %v4552 = vsel %vm1632, %v4463, 0
    %v4555 = vsel %vm1632, %v4464, 0
    %v4558 = vsel %vm1632, %v4465, 0
    %v4561 = vsel %vm1632, %v4466, 0
    %v4564 = vsel %vm1632, %v4467, 0
    %v4567 = vsel %vm1632, %v4468, 0
    %v4570 = vsel %vm1632, %v4469, 0
    %v4573 = vsel %vm1632, %v4470, 0
    %v4576 = vsel %vm1632, %v4471, 0
    %v4579 = vsel %vm1632, %v4472, 0
    %v4582 = vsel %vm1632, %v4473, 0
    %v4585 = vsel %vm1632, %v4474, 0
    %v4588 = vsel %vm1632, %v4475, 0
    %v4591 = vsel %vm1632, %v4476, 0
    %v4594 = vsel %vm1632, %v4477, 0
    %v4597 = vsel %vm1632, %v4478, 0
    %v4600 = vsel %vm1632, %v4479, 0
    %v4603 = vsel %vm1632, %v4480, 0
    %v4606 = vsel %vm1632, %v4481, 0
    %v4609 = vsel %vm1632, %v4482, 0
    %v4612 = vsel %vm1632, %v4483, 0
    %v4615 = vsel %vm1632, %v4484, 0
    %v4618 = vsel %vm1632, %v4485, 0
    %v4621 = vsel %vm1632, %v4486, 0
    %v4624 = vsel %vm1632, %v4487, 0
    %v4627 = vsel %vm1632, %v4488, 0
    %v4630 = vsel %vm1632, %v4489, 0
    %v4633 = vsel %vm1632, %v4490, 0
    %v4636 = vsel %vm1632, %v4491, 0
    %v4639 = vsel %vm1632, %v4492, 0
    %v4642 = vsel %vm1632, %v4493, 0
    %v4645 = vsel %vm1632, %v4494, 0
    %v4648 = vsel %vm1632, %v4495, 0
    %v4651 = vsel %vm1632, %v4496, 0
    %v4654 = vsel %vm1632, %v4497, 0
    %v4657 = vsel %vm1632, %v4498, 0
    %v4660 = vsel %vm1632, %v4499, 0
    %v4663 = vsel %vm1632, %v4500, 0
    %v4666 = vsel %vm1632, %v4501, 0
    %v4669 = vsel %vm1632, %v4502, 0
    %v4672 = vsel %vm1632, %v4503, 0
    %v4675 = vsel %vm1632, %v4504, 0
    %v4678 = vsel %vm1632, %v4505, 0
    %v4681 = vsel %vm1632, %v4506, 0
    %v4684 = vsel %vm1632, %v4507, 0
    %v4687 = vsel %vm1632, %v4508, 0
    %v4690 = vsel %vm1632, %v4509, 0
    %v4693 = vsel %vm1632, %v4510, 0
    %v4696 = vsel %vm1632, %v4511, 0
    %v4699 = vsel %vm1632, %v4512, 0
    %v4702 = vsel %vm1632, %v4513, 0
    %v4705 = vsel %vm1632, %v4514, 0
    %v4708 = vsel %vm1632, %v4515, 0
    %4710 = vmatprep.subr.mxu0 0.0
    %4711 = vmatpush1.msra.mxu0 %v4517
    %4712 = vmatprep.subr.mxu0 0.0
    %4713 = vmatpush1.msra.mxu0 0.0
    %4714 = vmatprep.subr.mxu0 0.0
    %4715 = vmatpush1.msra.mxu0 0.0
    %4716 = vmatprep.subr.mxu0 0.0
    %4717 = vmatpush1.msra.mxu0 0.0
    %4718 = vmatprep.subr.mxu0 0.0
    %4719 = vmatpush1.msra.mxu0 0.0
    %4720 = vmatprep.subr.mxu0 0.0
    %4721 = vmatpush1.msra.mxu0 0.0
    %4722 = vmatprep.subr.mxu0 0.0
    %4723 = vmatpush1.msra.mxu0 0.0
    %4724 = vmatprep.subr.mxu0 0.0
    %4725 = vmatpush1.msra.mxu0 0.0
    %4726 = vmatprep.subr.mxu0 0.0
    %4727 = vmatpush1.msra.mxu0 0.0
    %4728 = vmatprep.subr.mxu0 0.0
    %4729 = vmatpush1.msra.mxu0 0.0
    %4730 = vmatprep.subr.mxu0 0.0
    %4731 = vmatpush1.msra.mxu0 0.0
    %4732 = vmatprep.subr.mxu0 0.0
    %4733 = vmatpush1.msra.mxu0 0.0
    %4734 = vmatprep.subr.mxu0 0.0
    %4735 = vmatpush1.msra.mxu0 0.0
    %4736 = vmatprep.subr.mxu0 0.0
    %4737 = vmatpush1.msra.mxu0 0.0
    %4738 = vmatprep.subr.mxu0 0.0
    %4739 = vmatpush1.msra.mxu0 0.0
    %4740 = vmatprep.subr.mxu0 0.0
    %4741 = vmatpush1.msra.mxu0 0.0
    %4742 = vmatprep.subr.mxu0 0.0
    %4743 = vmatpush1.msra.mxu0 0.0
    %4744 = vmatprep.subr.mxu0 0.0
    %4745 = vmatpush1.msra.mxu0 0.0
    %4746 = vmatprep.subr.mxu0 0.0
    %4747 = vmatpush1.msra.mxu0 0.0
    %4748 = vmatprep.subr.mxu0 0.0
    %4749 = vmatpush1.msra.mxu0 0.0
    %4750 = vmatprep.subr.mxu0 0.0
    %4751 = vmatpush1.msra.mxu0 0.0
    %4752 = vmatprep.subr.mxu0 0.0
    %4753 = vmatpush1.msra.mxu0 0.0
    %4754 = vmatprep.subr.mxu0 0.0
    %4755 = vmatpush1.msra.mxu0 0.0
    %4756 = vmatprep.subr.mxu0 0.0
    %4757 = vmatpush1.msra.mxu0 0.0
    %4758 = vmatprep.subr.mxu0 0.0
    %4759 = vmatpush1.msra.mxu0 0.0
    %4760 = vmatprep.subr.mxu0 0.0
    %4761 = vmatpush1.msra.mxu0 0.0
    %4762 = vmatprep.subr.mxu0 0.0
    %4763 = vmatpush1.msra.mxu0 0.0
    %4764 = vmatprep.subr.mxu0 0.0
    %4765 = vmatpush1.msra.mxu0 0.0
    %4766 = vmatprep.subr.mxu0 0.0
    %4767 = vmatpush1.msra.mxu0 0.0
    %4768 = vmatprep.subr.mxu0 0.0
    %4769 = vmatpush1.msra.mxu0 0.0
    %4770 = vmatprep.subr.mxu0 0.0
    %4771 = vmatpush1.msra.mxu0 0.0
    %4772 = vmatprep.subr.mxu0 0.0
    %4773 = vmatpush1.msra.mxu0 0.0
    %4774 = vmatprep.mubr.f32.mxu0 0.0
    %4775 = vmatmul.mubr.f32.gmra.mrb[0].mxu0 %v4519
    %v4776 = vpop.f32.mrb[0].mxu0
    %v4777 = vadd.f32 0.0, %v4776
    %v4778 = vpop.f32.mrb[0].mxu0
    %4779 = vmatprep.mubr.f32.mxu0 0.0
    %4780 = vmatmul.mubr.f32.gmra.mrb[0].mxu0 %v4522
    %v4781 = vpop.f32.mrb[0].mxu0
    %v4782 = vadd.f32 0.0, %v4781
    %v4783 = vpop.f32.mrb[0].mxu0
    %4784 = vmatprep.mubr.f32.mxu0 0.0
    %4785 = vmatmul.mubr.f32.gmra.mrb[0].mxu0 %v4525
    %v4786 = vpop.f32.mrb[0].mxu0
    %v4787 = vadd.f32 0.0, %v4786
    %v4788 = vpop.f32.mrb[0].mxu0
    %4789 = vmatprep.mubr.f32.mxu0 0.0
    %4790 = vmatmul.mubr.f32.gmra.mrb[0].mxu0 %v4528
    %v4791 = vpop.f32.mrb[0].mxu0
    %v4792 = vadd.f32 0.0, %v4791
    %v4793 = vpop.f32.mrb[0].mxu0
    %4794 = vmatprep.mubr.f32.mxu0 0.0
    %4795 = vmatmul.mubr.f32.gmra.mrb[0].mxu0 %v4531
    %v4796 = vpop.f32.mrb[0].mxu0
    %v4797 = vadd.f32 0.0, %v4796
    %v4798 = vpop.f32.mrb[0].mxu0
    %4799 = vmatprep.mubr.f32.mxu0 0.0
    %4800 = vmatmul.mubr.f32.gmra.mrb[0].mxu0 %v4534
    %v4801 = vpop.f32.mrb[0].mxu0
    %v4802 = vadd.f32 0.0, %v4801
    %v4803 = vpop.f32.mrb[0].mxu0
    %4804 = vmatprep.mubr.f32.mxu0 0.0
    %4805 = vmatmul.mubr.f32.gmra.mrb[0].mxu0 %v4537
    %v4806 = vpop.f32.mrb[0].mxu0
    %v4807 = vadd.f32 0.0, %v4806
    %v4808 = vpop.f32.mrb[0].mxu0
    %4809 = vmatprep.mubr.f32.mxu0 0.0
    %4810 = vmatmul.mubr.f32.gmra.mrb[0].mxu0 %v4540
    %v4811 = vpop.f32.mrb[0].mxu0
    %v4812 = vadd.f32 0.0, %v4811
    %v4813 = vpop.f32.mrb[0].mxu0
    %4814 = vmatprep.mubr.f32.mxu0 0.0
    %4815 = vmatmul.mubr.f32.gmra.mrb[0].mxu0 %v4543
    %v4816 = vpop.f32.mrb[0].mxu0
    %v4817 = vadd.f32 0.0, %v4816
    %v4818 = vpop.f32.mrb[0].mxu0
    %4819 = vmatprep.mubr.f32.mxu0 0.0
    %4820 = vmatmul.mubr.f32.gmra.mrb[0].mxu0 %v4546
    %v4821 = vpop.f32.mrb[0].mxu0
    %v4822 = vadd.f32 0.0, %v4821
    %v4823 = vpop.f32.mrb[0].mxu0
    %4824 = vmatprep.mubr.f32.mxu0 0.0
    %4825 = vmatmul.mubr.f32.gmra.mrb[0].mxu0 %v4549
    %v4826 = vpop.f32.mrb[0].mxu0
    %v4827 = vadd.f32 0.0, %v4826
    %v4828 = vpop.f32.mrb[0].mxu0
    %4829 = vmatprep.mubr.f32.mxu0 0.0
    %4830 = vmatmul.mubr.f32.gmra.mrb[0].mxu0 %v4552
    %v4831 = vpop.f32.mrb[0].mxu0
    %v4832 = vadd.f32 0.0, %v4831
    %v4833 = vpop.f32.mrb[0].mxu0
    %4834 = vmatprep.mubr.f32.mxu0 0.0
    %4835 = vmatmul.mubr.f32.gmra.mrb[0].mxu0 %v4555
    %v4836 = vpop.f32.mrb[0].mxu0
    %v4837 = vadd.f32 0.0, %v4836
    %v4838 = vpop.f32.mrb[0].mxu0
    %4839 = vmatprep.mubr.f32.mxu0 0.0
    %4840 = vmatmul.mubr.f32.gmra.mrb[0].mxu0 %v4558
    %v4841 = vpop.f32.mrb[0].mxu0
    %v4842 = vadd.f32 0.0, %v4841
    %v4843 = vpop.f32.mrb[0].mxu0
    %4844 = vmatprep.mubr.f32.mxu0 0.0
    %4845 = vmatmul.mubr.f32.gmra.mrb[0].mxu0 %v4561
    %v4846 = vpop.f32.mrb[0].mxu0
    %v4847 = vadd.f32 0.0, %v4846
    %v4848 = vpop.f32.mrb[0].mxu0
    %4849 = vmatprep.mubr.f32.mxu0 0.0
    %4850 = vmatmul.mubr.f32.gmra.mrb[0].mxu0 %v4564
    %v4851 = vpop.f32.mrb[0].mxu0
    %v4852 = vadd.f32 0.0, %v4851
    %v4853 = vpop.f32.mrb[0].mxu0
    %4854 = vmatprep.mubr.f32.mxu0 0.0
    %4855 = vmatmul.mubr.f32.gmra.mrb[0].mxu0 %v4567
    %v4856 = vpop.f32.mrb[0].mxu0
    %v4857 = vadd.f32 0.0, %v4856
    %v4858 = vpop.f32.mrb[0].mxu0
    %4859 = vmatprep.mubr.f32.mxu0 0.0
    %4860 = vmatmul.mubr.f32.gmra.mrb[0].mxu0 %v4570
    %v4861 = vpop.f32.mrb[0].mxu0
    %v4862 = vadd.f32 0.0, %v4861
    %v4863 = vpop.f32.mrb[0].mxu0
    %4864 = vmatprep.mubr.f32.mxu0 0.0
    %4865 = vmatmul.mubr.f32.gmra.mrb[0].mxu0 %v4573
    %v4866 = vpop.f32.mrb[0].mxu0
    %v4867 = vadd.f32 0.0, %v4866
    %v4868 = vpop.f32.mrb[0].mxu0
    %4869 = vmatprep.mubr.f32.mxu0 0.0
    %4870 = vmatmul.mubr.f32.gmra.mrb[0].mxu0 %v4576
    %v4871 = vpop.f32.mrb[0].mxu0
    %v4872 = vadd.f32 0.0, %v4871
    %v4873 = vpop.f32.mrb[0].mxu0
    %4874 = vmatprep.mubr.f32.mxu0 0.0
    %4875 = vmatmul.mubr.f32.gmra.mrb[0].mxu0 %v4579
    %v4876 = vpop.f32.mrb[0].mxu0
    %v4877 = vadd.f32 0.0, %v4876
    %v4878 = vpop.f32.mrb[0].mxu0
    %4879 = vmatprep.mubr.f32.mxu0 0.0
    %4880 = vmatmul.mubr.f32.gmra.mrb[0].mxu0 %v4582
    %v4881 = vpop.f32.mrb[0].mxu0
    %v4882 = vadd.f32 0.0, %v4881
    %v4883 = vpop.f32.mrb[0].mxu0
    %4884 = vmatprep.mubr.f32.mxu0 0.0
    %4885 = vmatmul.mubr.f32.gmra.mrb[0].mxu0 %v4585
    %v4886 = vpop.f32.mrb[0].mxu0
    %v4887 = vadd.f32 0.0, %v4886
    %v4888 = vpop.f32.mrb[0].mxu0
    %4889 = vmatprep.mubr.f32.mxu0 0.0
    %4890 = vmatmul.mubr.f32.gmra.mrb[0].mxu0 %v4588
    %v4891 = vpop.f32.mrb[0].mxu0
    %v4892 = vadd.f32 0.0, %v4891
    %v4893 = vpop.f32.mrb[0].mxu0
    %4894 = vmatprep.mubr.f32.mxu0 0.0
    %4895 = vmatmul.mubr.f32.gmra.mrb[0].mxu0 %v4591
    %v4896 = vpop.f32.mrb[0].mxu0
    %v4897 = vadd.f32 0.0, %v4896
    %v4898 = vpop.f32.mrb[0].mxu0
    %4899 = vmatprep.mubr.f32.mxu0 0.0
    %4900 = vmatmul.mubr.f32.gmra.mrb[0].mxu0 %v4594
    %v4901 = vpop.f32.mrb[0].mxu0
    %v4902 = vadd.f32 0.0, %v4901
    %v4903 = vpop.f32.mrb[0].mxu0
    %4904 = vmatprep.mubr.f32.mxu0 0.0
    %4905 = vmatmul.mubr.f32.gmra.mrb[0].mxu0 %v4597
    %v4906 = vpop.f32.mrb[0].mxu0
    %v4907 = vadd.f32 0.0, %v4906
    %v4908 = vpop.f32.mrb[0].mxu0
    %4909 = vmatprep.mubr.f32.mxu0 0.0
    %4910 = vmatmul.mubr.f32.gmra.mrb[0].mxu0 %v4600
    %v4911 = vpop.f32.mrb[0].mxu0
    %v4912 = vadd.f32 0.0, %v4911
    %v4913 = vpop.f32.mrb[0].mxu0
    %4914 = vmatprep.mubr.f32.mxu0 0.0
    %4915 = vmatmul.mubr.f32.gmra.mrb[0].mxu0 %v4603
    %v4916 = vpop.f32.mrb[0].mxu0
    %v4917 = vadd.f32 0.0, %v4916
    %v4918 = vpop.f32.mrb[0].mxu0
    %4919 = vmatprep.mubr.f32.mxu0 0.0
    %4920 = vmatmul.mubr.f32.gmra.mrb[0].mxu0 %v4606
    %v4921 = vpop.f32.mrb[0].mxu0
    %v4922 = vadd.f32 0.0, %v4921
    %v4923 = vpop.f32.mrb[0].mxu0
    %4924 = vmatprep.mubr.f32.mxu0 0.0
    %4925 = vmatmul.mubr.f32.gmra.mrb[0].mxu0 %v4609
    %v4926 = vpop.f32.mrb[0].mxu0
    %v4927 = vadd.f32 0.0, %v4926
    %v4928 = vpop.f32.mrb[0].mxu0
    %4929 = vmatprep.mubr.f32.mxu0 0.0
    %4930 = vmatmul.mubr.f32.gmra.mrb[0].mxu0 %v4612
    %v4931 = vpop.f32.mrb[0].mxu0
    %v4932 = vadd.f32 0.0, %v4931
    %v4933 = vpop.f32.mrb[0].mxu0
    %4934 = vmatprep.mubr.f32.mxu0 0.0
    %4935 = vmatmul.mubr.f32.gmra.mrb[0].mxu0 %v4615
    %v4936 = vpop.f32.mrb[0].mxu0
    %v4937 = vadd.f32 0.0, %v4936
    %v4938 = vpop.f32.mrb[0].mxu0
    %4939 = vmatprep.mubr.f32.mxu0 0.0
    %4940 = vmatmul.mubr.f32.gmra.mrb[0].mxu0 %v4618
    %v4941 = vpop.f32.mrb[0].mxu0
    %v4942 = vadd.f32 0.0, %v4941
    %v4943 = vpop.f32.mrb[0].mxu0
    %4944 = vmatprep.mubr.f32.mxu0 0.0
    %4945 = vmatmul.mubr.f32.gmra.mrb[0].mxu0 %v4621
    %v4946 = vpop.f32.mrb[0].mxu0
    %v4947 = vadd.f32 0.0, %v4946
    %v4948 = vpop.f32.mrb[0].mxu0
    %4949 = vmatprep.mubr.f32.mxu0 0.0
    %4950 = vmatmul.mubr.f32.gmra.mrb[0].mxu0 %v4624
    %v4951 = vpop.f32.mrb[0].mxu0
    %v4952 = vadd.f32 0.0, %v4951
    %v4953 = vpop.f32.mrb[0].mxu0
    %4954 = vmatprep.mubr.f32.mxu0 0.0
    %4955 = vmatmul.mubr.f32.gmra.mrb[0].mxu0 %v4627
    %v4956 = vpop.f32.mrb[0].mxu0
    %v4957 = vadd.f32 0.0, %v4956
    %v4958 = vpop.f32.mrb[0].mxu0
    %4959 = vmatprep.mubr.f32.mxu0 0.0
    %4960 = vmatmul.mubr.f32.gmra.mrb[0].mxu0 %v4630
    %v4961 = vpop.f32.mrb[0].mxu0
    %v4962 = vadd.f32 0.0, %v4961
    %v4963 = vpop.f32.mrb[0].mxu0
    %4964 = vmatprep.mubr.f32.mxu0 0.0
    %4965 = vmatmul.mubr.f32.gmra.mrb[0].mxu0 %v4633
    %v4966 = vpop.f32.mrb[0].mxu0
    %v4967 = vadd.f32 0.0, %v4966
    %v4968 = vpop.f32.mrb[0].mxu0
    %4969 = vmatprep.mubr.f32.mxu0 0.0
    %4970 = vmatmul.mubr.f32.gmra.mrb[0].mxu0 %v4636
    %v4971 = vpop.f32.mrb[0].mxu0
    %v4972 = vadd.f32 0.0, %v4971
    %v4973 = vpop.f32.mrb[0].mxu0
    %4974 = vmatprep.mubr.f32.mxu0 0.0
    %4975 = vmatmul.mubr.f32.gmra.mrb[0].mxu0 %v4639
    %v4976 = vpop.f32.mrb[0].mxu0
    %v4977 = vadd.f32 0.0, %v4976
    %v4978 = vpop.f32.mrb[0].mxu0
    %4979 = vmatprep.mubr.f32.mxu0 0.0
    %4980 = vmatmul.mubr.f32.gmra.mrb[0].mxu0 %v4642
    %v4981 = vpop.f32.mrb[0].mxu0
    %v4982 = vadd.f32 0.0, %v4981
    %v4983 = vpop.f32.mrb[0].mxu0
    %4984 = vmatprep.mubr.f32.mxu0 0.0
    %4985 = vmatmul.mubr.f32.gmra.mrb[0].mxu0 %v4645
    %v4986 = vpop.f32.mrb[0].mxu0
    %v4987 = vadd.f32 0.0, %v4986
    %v4988 = vpop.f32.mrb[0].mxu0
    %4989 = vmatprep.mubr.f32.mxu0 0.0
    %4990 = vmatmul.mubr.f32.gmra.mrb[0].mxu0 %v4648
    %v4991 = vpop.f32.mrb[0].mxu0
    %v4992 = vadd.f32 0.0, %v4991
    %v4993 = vpop.f32.mrb[0].mxu0
    %4994 = vmatprep.mubr.f32.mxu0 0.0
    %4995 = vmatmul.mubr.f32.gmra.mrb[0].mxu0 %v4651
    %v4996 = vpop.f32.mrb[0].mxu0
    %v4997 = vadd.f32 0.0, %v4996
    %v4998 = vpop.f32.mrb[0].mxu0
    %4999 = vmatprep.mubr.f32.mxu0 0.0
    %5000 = vmatmul.mubr.f32.gmra.mrb[0].mxu0 %v4654
    %v5001 = vpop.f32.mrb[0].mxu0
    %v5002 = vadd.f32 0.0, %v5001
    %v5003 = vpop.f32.mrb[0].mxu0
    %5004 = vmatprep.mubr.f32.mxu0 0.0
    %5005 = vmatmul.mubr.f32.gmra.mrb[0].mxu0 %v4657
    %v5006 = vpop.f32.mrb[0].mxu0
    %v5007 = vadd.f32 0.0, %v5006
    %v5008 = vpop.f32.mrb[0].mxu0
    %5009 = vmatprep.mubr.f32.mxu0 0.0
    %5010 = vmatmul.mubr.f32.gmra.mrb[0].mxu0 %v4660
    %v5011 = vpop.f32.mrb[0].mxu0
    %v5012 = vadd.f32 0.0, %v5011
    %v5013 = vpop.f32.mrb[0].mxu0
    %5014 = vmatprep.mubr.f32.mxu0 0.0
    %5015 = vmatmul.mubr.f32.gmra.mrb[0].mxu0 %v4663
    %v5016 = vpop.f32.mrb[0].mxu0
    %v5017 = vadd.f32 0.0, %v5016
    %v5018 = vpop.f32.mrb[0].mxu0
    %5019 = vmatprep.mubr.f32.mxu0 0.0
    %5020 = vmatmul.mubr.f32.gmra.mrb[0].mxu0 %v4666
    %v5021 = vpop.f32.mrb[0].mxu0
    %v5022 = vadd.f32 0.0, %v5021
    %v5023 = vpop.f32.mrb[0].mxu0
    %5024 = vmatprep.mubr.f32.mxu0 0.0
    %5025 = vmatmul.mubr.f32.gmra.mrb[0].mxu0 %v4669
    %v5026 = vpop.f32.mrb[0].mxu0
    %v5027 = vadd.f32 0.0, %v5026
    %v5028 = vpop.f32.mrb[0].mxu0
    %5029 = vmatprep.mubr.f32.mxu0 0.0
    %5030 = vmatmul.mubr.f32.gmra.mrb[0].mxu0 %v4672
    %v5031 = vpop.f32.mrb[0].mxu0
    %v5032 = vadd.f32 0.0, %v5031
    %v5033 = vpop.f32.mrb[0].mxu0
    %5034 = vmatprep.mubr.f32.mxu0 0.0
    %5035 = vmatmul.mubr.f32.gmra.mrb[0].mxu0 %v4675
    %v5036 = vpop.f32.mrb[0].mxu0
    %v5037 = vadd.f32 0.0, %v5036
    %v5038 = vpop.f32.mrb[0].mxu0
    %5039 = vmatprep.mubr.f32.mxu0 0.0
    %5040 = vmatmul.mubr.f32.gmra.mrb[0].mxu0 %v4678
    %v5041 = vpop.f32.mrb[0].mxu0
    %v5042 = vadd.f32 0.0, %v5041
    %v5043 = vpop.f32.mrb[0].mxu0
    %5044 = vmatprep.mubr.f32.mxu0 0.0
    %5045 = vmatmul.mubr.f32.gmra.mrb[0].mxu0 %v4681
    %v5046 = vpop.f32.mrb[0].mxu0
    %v5047 = vadd.f32 0.0, %v5046
    %v5048 = vpop.f32.mrb[0].mxu0
    %5049 = vmatprep.mubr.f32.mxu0 0.0
    %5050 = vmatmul.mubr.f32.gmra.mrb[0].mxu0 %v4684
    %v5051 = vpop.f32.mrb[0].mxu0
    %v5052 = vadd.f32 0.0, %v5051
    %v5053 = vpop.f32.mrb[0].mxu0
    %5054 = vmatprep.mubr.f32.mxu0 0.0
    %5055 = vmatmul.mubr.f32.gmra.mrb[0].mxu0 %v4687
    %v5056 = vpop.f32.mrb[0].mxu0
    %v5057 = vadd.f32 0.0, %v5056
    %v5058 = vpop.f32.mrb[0].mxu0
    %5059 = vmatprep.mubr.f32.mxu0 0.0
    %5060 = vmatmul.mubr.f32.gmra.mrb[0].mxu0 %v4690
    %v5061 = vpop.f32.mrb[0].mxu0
    %v5062 = vadd.f32 0.0, %v5061
    %v5063 = vpop.f32.mrb[0].mxu0
    %5064 = vmatprep.mubr.f32.mxu0 0.0
    %5065 = vmatmul.mubr.f32.gmra.mrb[0].mxu0 %v4693
    %v5066 = vpop.f32.mrb[0].mxu0
    %v5067 = vadd.f32 0.0, %v5066
    %v5068 = vpop.f32.mrb[0].mxu0
    %5069 = vmatprep.mubr.f32.mxu0 0.0
    %5070 = vmatmul.mubr.f32.gmra.mrb[0].mxu0 %v4696
    %v5071 = vpop.f32.mrb[0].mxu0
    %v5072 = vadd.f32 0.0, %v5071
    %v5073 = vpop.f32.mrb[0].mxu0
    %5074 = vmatprep.mubr.f32.mxu0 0.0
    %5075 = vmatmul.mubr.f32.gmra.mrb[0].mxu0 %v4699
    %v5076 = vpop.f32.mrb[0].mxu0
    %v5077 = vadd.f32 0.0, %v5076
    %v5078 = vpop.f32.mrb[0].mxu0
    %5079 = vmatprep.mubr.f32.mxu0 0.0
    %5080 = vmatmul.mubr.f32.gmra.mrb[0].mxu0 %v4702
    %v5081 = vpop.f32.mrb[0].mxu0
    %v5082 = vadd.f32 0.0, %v5081
    %v5083 = vpop.f32.mrb[0].mxu0
    %5084 = vmatprep.mubr.f32.mxu0 0.0
    %5085 = vmatmul.mubr.f32.gmra.mrb[0].mxu0 %v4705
    %v5086 = vpop.f32.mrb[0].mxu0
    %v5087 = vadd.f32 0.0, %v5086
    %v5088 = vpop.f32.mrb[0].mxu0
    %5089 = vmatprep.mubr.f32.mxu0 0.0
    %5090 = vmatmul.mubr.f32.gmra.mrb[0].mxu0 %v4708
    %v5091 = vpop.f32.mrb[0].mxu0
    %v5092 = vadd.f32 0.0, %v5091
    %v5093 = vpop.f32.mrb[0].mxu0
    %5094 = vdwg.mxu0
    %v5095 = vadd.f32 %v4388, %v4777
    %v5096 = vadd.f32 %v4389, %v4782
    %v5097 = vadd.f32 %v4390, %v4787
    %v5098 = vadd.f32 %v4391, %v4792
    %v5099 = vadd.f32 %v4392, %v4797
    %v5100 = vadd.f32 %v4393, %v4802
    %v5101 = vadd.f32 %v4394, %v4807
    %v5102 = vadd.f32 %v4395, %v4812
    %v5103 = vadd.f32 %v4396, %v4817
    %v5104 = vadd.f32 %v4397, %v4822
    %v5105 = vadd.f32 %v4398, %v4827
    %v5106 = vadd.f32 %v4399, %v4832
    %v5107 = vadd.f32 %v4400, %v4837
    %v5108 = vadd.f32 %v4401, %v4842
    %v5109 = vadd.f32 %v4402, %v4847
    %v5110 = vadd.f32 %v4403, %v4852
    %v5111 = vadd.f32 %v4404, %v4857
    %v5112 = vadd.f32 %v4405, %v4862
    %v5113 = vadd.f32 %v4406, %v4867
    %v5114 = vadd.f32 %v4407, %v4872
    %v5115 = vadd.f32 %v4408, %v4877
    %v5116 = vadd.f32 %v4409, %v4882
    %v5117 = vadd.f32 %v4410, %v4887
    %v5118 = vadd.f32 %v4411, %v4892
    %v5119 = vadd.f32 %v4412, %v4897
    %v5120 = vadd.f32 %v4413, %v4902
    %v5121 = vadd.f32 %v4414, %v4907
    %v5122 = vadd.f32 %v4415, %v4912
    %v5123 = vadd.f32 %v4416, %v4917
    %v5124 = vadd.f32 %v4417, %v4922
    %v5125 = vadd.f32 %v4418, %v4927
    %v5126 = vadd.f32 %v4419, %v4932
    %v5127 = vadd.f32 %v4420, %v4937
    %v5128 = vadd.f32 %v4421, %v4942
    %v5129 = vadd.f32 %v4422, %v4947
    %v5130 = vadd.f32 %v4423, %v4952
    %v5131 = vadd.f32 %v4424, %v4957
    %v5132 = vadd.f32 %v4425, %v4962
    %v5133 = vadd.f32 %v4426, %v4967
    %v5134 = vadd.f32 %v4427, %v4972
    %v5135 = vadd.f32 %v4428, %v4977
    %v5136 = vadd.f32 %v4429, %v4982
    %v5137 = vadd.f32 %v4430, %v4987
    %v5138 = vadd.f32 %v4431, %v4992
    %v5139 = vadd.f32 %v4432, %v4997
    %v5140 = vadd.f32 %v4433, %v5002
    %v5141 = vadd.f32 %v4434, %v5007
    %v5142 = vadd.f32 %v4435, %v5012
    %v5143 = vadd.f32 %v4436, %v5017
    %v5144 = vadd.f32 %v4437, %v5022
    %v5145 = vadd.f32 %v4438, %v5027
    %v5146 = vadd.f32 %v4439, %v5032
    %v5147 = vadd.f32 %v4440, %v5037
    %v5148 = vadd.f32 %v4441, %v5042
    %v5149 = vadd.f32 %v4442, %v5047
    %v5150 = vadd.f32 %v4443, %v5052
    %v5151 = vadd.f32 %v4444, %v5057
    %v5152 = vadd.f32 %v4445, %v5062
    %v5153 = vadd.f32 %v4446, %v5067
    %v5154 = vadd.f32 %v4447, %v5072
    %v5155 = vadd.f32 %v4448, %v5077
    %v5156 = vadd.f32 %v4449, %v5082
    %v5157 = vadd.f32 %v4450, %v5087
    %v5158 = vadd.f32 %v4451, %v5092
    %v5159 = vld [vmem:[%s2395 + $0x8] sm:$0xff]
    %v5160 = vld [vmem:[%s2395 + $0x10] sm:$0xff]
    %v5161 = vld [vmem:[%s2395 + $0x28] sm:$0xff]
    %v5162 = vld [vmem:[%s2395 + $0x30] sm:$0xff]
    %v5163 = vld [vmem:[%s2395 + $0x48] sm:$0xff]
    %v5164 = vld [vmem:[%s2395 + $0x50] sm:$0xff]
    %v5165 = vld [vmem:[%s2395 + $0x68] sm:$0xff]
    %v5166 = vld [vmem:[%s2395 + $0x70] sm:$0xff]
    %v5167 = vld [vmem:[%s2395 + $0x88] sm:$0xff]
    %v5168 = vld [vmem:[%s2395 + $0x90] sm:$0xff]
    %v5169 = vld [vmem:[%s2395 + $0xa8] sm:$0xff]
    %v5170 = vld [vmem:[%s2395 + $0xb0] sm:$0xff]
    %v5171 = vld [vmem:[%s2395 + $0xc8] sm:$0xff]
    %v5172 = vld [vmem:[%s2395 + $0xd0] sm:$0xff]
    %v5173 = vld [vmem:[%s2395 + $0xe8] sm:$0xff]
    %v5174 = vld [vmem:[%s2395 + $0xf0] sm:$0xff]
    %v5175 = vld [vmem:[%s2395 + $0x108] sm:$0xff]
    %v5176 = vld [vmem:[%s2395 + $0x110] sm:$0xff]
    %v5177 = vld [vmem:[%s2395 + $0x128] sm:$0xff]
    %v5178 = vld [vmem:[%s2395 + $0x130] sm:$0xff]
    %v5179 = vld [vmem:[%s2395 + $0x148] sm:$0xff]
    %v5180 = vld [vmem:[%s2395 + $0x150] sm:$0xff]
    %v5181 = vld [vmem:[%s2395 + $0x168] sm:$0xff]
    %v5182 = vld [vmem:[%s2395 + $0x170] sm:$0xff]
    %v5183 = vld [vmem:[%s2395 + $0x188] sm:$0xff]
    %v5184 = vld [vmem:[%s2395 + $0x190] sm:$0xff]
    %v5185 = vld [vmem:[%s2395 + $0x1a8] sm:$0xff]
    %v5186 = vld [vmem:[%s2395 + $0x1b0] sm:$0xff]
    %v5187 = vld [vmem:[%s2395 + $0x1c8] sm:$0xff]
    %v5188 = vld [vmem:[%s2395 + $0x1d0] sm:$0xff]
    %v5189 = vld [vmem:[%s2395 + $0x1e8] sm:$0xff]
    %v5190 = vld [vmem:[%s2395 + $0x1f0] sm:$0xff]
    %v5191 = vld [vmem:[%s2395 + $0x288] sm:$0xff]
    %v5192 = vld [vmem:[%s2395 + $0x290] sm:$0xff]
    %v5193 = vld [vmem:[%s2395 + $0x2a8] sm:$0xff]
    %v5194 = vld [vmem:[%s2395 + $0x2b0] sm:$0xff]
    %v5195 = vld [vmem:[%s2395 + $0x2c8] sm:$0xff]
    %v5196 = vld [vmem:[%s2395 + $0x2d0] sm:$0xff]
    %v5197 = vld [vmem:[%s2395 + $0x2e8] sm:$0xff]
    %v5198 = vld [vmem:[%s2395 + $0x2f0] sm:$0xff]
    %v5199 = vld [vmem:[%s2395 + $0x308] sm:$0xff]
    %v5200 = vld [vmem:[%s2395 + $0x310] sm:$0xff]
    %v5201 = vld [vmem:[%s2395 + $0x328] sm:$0xff]
    %v5202 = vld [vmem:[%s2395 + $0x330] sm:$0xff]
    %v5203 = vld [vmem:[%s2395 + $0x348] sm:$0xff]
    %v5204 = vld [vmem:[%s2395 + $0x350] sm:$0xff]
    %v5205 = vld [vmem:[%s2395 + $0x368] sm:$0xff]
    %v5206 = vld [vmem:[%s2395 + $0x370] sm:$0xff]
    %v5207 = vld [vmem:[%s2395 + $0x388] sm:$0xff]
    %v5208 = vld [vmem:[%s2395 + $0x390] sm:$0xff]
    %v5209 = vld [vmem:[%s2395 + $0x3a8] sm:$0xff]
    %v5210 = vld [vmem:[%s2395 + $0x3b0] sm:$0xff]
    %v5211 = vld [vmem:[%s2395 + $0x3c8] sm:$0xff]
    %v5212 = vld [vmem:[%s2395 + $0x3d0] sm:$0xff]
    %v5213 = vld [vmem:[%s2395 + $0x3e8] sm:$0xff]
    %v5214 = vld [vmem:[%s2395 + $0x3f0] sm:$0xff]
    %v5215 = vld [vmem:[%s2395 + $0x408] sm:$0xff]
    %v5216 = vld [vmem:[%s2395 + $0x410] sm:$0xff]
    %v5217 = vld [vmem:[%s2395 + $0x428] sm:$0xff]
    %v5218 = vld [vmem:[%s2395 + $0x430] sm:$0xff]
    %v5219 = vld [vmem:[%s2395 + $0x448] sm:$0xff]
    %v5220 = vld [vmem:[%s2395 + $0x450] sm:$0xff]
    %v5221 = vld [vmem:[%s2395 + $0x468] sm:$0xff]
    %v5222 = vld [vmem:[%s2395 + $0x470] sm:$0xff]
    %s5223 = scalar_lea.vmem %s4, 32
    %v5224 = vld [vmem:[%s5223] sm:$0xff]
    %v5226 = vsel %vm1632, %v5159, 0
    %v5229 = vsel %vm1632, %v5160, 0
    %v5232 = vsel %vm1632, %v5161, 0
    %v5235 = vsel %vm1632, %v5162, 0
    %v5238 = vsel %vm1632, %v5163, 0
    %v5241 = vsel %vm1632, %v5164, 0
    %v5244 = vsel %vm1632, %v5165, 0
    %v5247 = vsel %vm1632, %v5166, 0
    %v5250 = vsel %vm1632, %v5167, 0
    %v5253 = vsel %vm1632, %v5168, 0
    %v5256 = vsel %vm1632, %v5169, 0
    %v5259 = vsel %vm1632, %v5170, 0
    %v5262 = vsel %vm1632, %v5171, 0
    %v5265 = vsel %vm1632, %v5172, 0
    %v5268 = vsel %vm1632, %v5173, 0
    %v5271 = vsel %vm1632, %v5174, 0
    %v5274 = vsel %vm1632, %v5175, 0
    %v5277 = vsel %vm1632, %v5176, 0
    %v5280 = vsel %vm1632, %v5177, 0
    %v5283 = vsel %vm1632, %v5178, 0
    %v5286 = vsel %vm1632, %v5179, 0
    %v5289 = vsel %vm1632, %v5180, 0
    %v5292 = vsel %vm1632, %v5181, 0
    %v5295 = vsel %vm1632, %v5182, 0
    %v5298 = vsel %vm1632, %v5183, 0
    %v5301 = vsel %vm1632, %v5184, 0
    %v5304 = vsel %vm1632, %v5185, 0
    %v5307 = vsel %vm1632, %v5186, 0
    %v5310 = vsel %vm1632, %v5187, 0
    %v5313 = vsel %vm1632, %v5188, 0
    %v5316 = vsel %vm1632, %v5189, 0
    %v5319 = vsel %vm1632, %v5190, 0
    %v5322 = vsel %vm1632, %v5191, 0
    %v5325 = vsel %vm1632, %v5192, 0
    %v5328 = vsel %vm1632, %v5193, 0
    %v5331 = vsel %vm1632, %v5194, 0
    %v5334 = vsel %vm1632, %v5195, 0
    %v5337 = vsel %vm1632, %v5196, 0
    %v5340 = vsel %vm1632, %v5197, 0
    %v5343 = vsel %vm1632, %v5198, 0
    %v5346 = vsel %vm1632, %v5199, 0
    %v5349 = vsel %vm1632, %v5200, 0
    %v5352 = vsel %vm1632, %v5201, 0
    %v5355 = vsel %vm1632, %v5202, 0
    %v5358 = vsel %vm1632, %v5203, 0
    %v5361 = vsel %vm1632, %v5204, 0
    %v5364 = vsel %vm1632, %v5205, 0
    %v5367 = vsel %vm1632, %v5206, 0
    %v5370 = vsel %vm1632, %v5207, 0
    %v5373 = vsel %vm1632, %v5208, 0
    %v5376 = vsel %vm1632, %v5209, 0
    %v5379 = vsel %vm1632, %v5210, 0
    %v5382 = vsel %vm1632, %v5211, 0
    %v5385 = vsel %vm1632, %v5212, 0
    %v5388 = vsel %vm1632, %v5213, 0
    %v5391 = vsel %vm1632, %v5214, 0
    %v5394 = vsel %vm1632, %v5215, 0
    %v5397 = vsel %vm1632, %v5216, 0
    %v5400 = vsel %vm1632, %v5217, 0
    %v5403 = vsel %vm1632, %v5218, 0
    %v5406 = vsel %vm1632, %v5219, 0
    %v5409 = vsel %vm1632, %v5220, 0
    %v5412 = vsel %vm1632, %v5221, 0
    %v5415 = vsel %vm1632, %v5222, 0
    %5417 = vmatprep.subr.mxu0 0.0
    %5418 = vmatpush1.msra.mxu0 %v5224
    %5419 = vmatprep.subr.mxu0 0.0
    %5420 = vmatpush1.msra.mxu0 0.0
    %5421 = vmatprep.subr.mxu0 0.0
    %5422 = vmatpush1.msra.mxu0 0.0
    %5423 = vmatprep.subr.mxu0 0.0
    %5424 = vmatpush1.msra.mxu0 0.0
    %5425 = vmatprep.subr.mxu0 0.0
    %5426 = vmatpush1.msra.mxu0 0.0
    %5427 = vmatprep.subr.mxu0 0.0
    %5428 = vmatpush1.msra.mxu0 0.0
    %5429 = vmatprep.subr.mxu0 0.0
    %5430 = vmatpush1.msra.mxu0 0.0
    %5431 = vmatprep.subr.mxu0 0.0
    %5432 = vmatpush1.msra.mxu0 0.0
    %5433 = vmatprep.subr.mxu0 0.0
    %5434 = vmatpush1.msra.mxu0 0.0
    %5435 = vmatprep.subr.mxu0 0.0
    %5436 = vmatpush1.msra.mxu0 0.0
    %5437 = vmatprep.subr.mxu0 0.0
    %5438 = vmatpush1.msra.mxu0 0.0
    %5439 = vmatprep.subr.mxu0 0.0
    %5440 = vmatpush1.msra.mxu0 0.0
    %5441 = vmatprep.subr.mxu0 0.0
    %5442 = vmatpush1.msra.mxu0 0.0
    %5443 = vmatprep.subr.mxu0 0.0
    %5444 = vmatpush1.msra.mxu0 0.0
    %5445 = vmatprep.subr.mxu0 0.0
    %5446 = vmatpush1.msra.mxu0 0.0
    %5447 = vmatprep.subr.mxu0 0.0
    %5448 = vmatpush1.msra.mxu0 0.0
    %5449 = vmatprep.subr.mxu0 0.0
    %5450 = vmatpush1.msra.mxu0 0.0
    %5451 = vmatprep.subr.mxu0 0.0
    %5452 = vmatpush1.msra.mxu0 0.0
    %5453 = vmatprep.subr.mxu0 0.0
    %5454 = vmatpush1.msra.mxu0 0.0
    %5455 = vmatprep.subr.mxu0 0.0
    %5456 = vmatpush1.msra.mxu0 0.0
    %5457 = vmatprep.subr.mxu0 0.0
    %5458 = vmatpush1.msra.mxu0 0.0
    %5459 = vmatprep.subr.mxu0 0.0
    %5460 = vmatpush1.msra.mxu0 0.0
    %5461 = vmatprep.subr.mxu0 0.0
    %5462 = vmatpush1.msra.mxu0 0.0
    %5463 = vmatprep.subr.mxu0 0.0
    %5464 = vmatpush1.msra.mxu0 0.0
    %5465 = vmatprep.subr.mxu0 0.0
    %5466 = vmatpush1.msra.mxu0 0.0
    %5467 = vmatprep.subr.mxu0 0.0
    %5468 = vmatpush1.msra.mxu0 0.0
    %5469 = vmatprep.subr.mxu0 0.0
    %5470 = vmatpush1.msra.mxu0 0.0
    %5471 = vmatprep.subr.mxu0 0.0
    %5472 = vmatpush1.msra.mxu0 0.0
    %5473 = vmatprep.subr.mxu0 0.0
    %5474 = vmatpush1.msra.mxu0 0.0
    %5475 = vmatprep.subr.mxu0 0.0
    %5476 = vmatpush1.msra.mxu0 0.0
    %5477 = vmatprep.subr.mxu0 0.0
    %5478 = vmatpush1.msra.mxu0 0.0
    %5479 = vmatprep.subr.mxu0 0.0
    %5480 = vmatpush1.msra.mxu0 0.0
    %5481 = vmatprep.mubr.f32.mxu0 0.0
    %5482 = vmatmul.mubr.f32.gmra.mrb[0].mxu0 %v5226
    %v5483 = vpop.f32.mrb[0].mxu0
    %v5484 = vadd.f32 0.0, %v5483
    %v5485 = vpop.f32.mrb[0].mxu0
    %5486 = vmatprep.mubr.f32.mxu0 0.0
    %5487 = vmatmul.mubr.f32.gmra.mrb[0].mxu0 %v5229
    %v5488 = vpop.f32.mrb[0].mxu0
    %v5489 = vadd.f32 0.0, %v5488
    %v5490 = vpop.f32.mrb[0].mxu0
    %5491 = vmatprep.mubr.f32.mxu0 0.0
    %5492 = vmatmul.mubr.f32.gmra.mrb[0].mxu0 %v5232
    %v5493 = vpop.f32.mrb[0].mxu0
    %v5494 = vadd.f32 0.0, %v5493
    %v5495 = vpop.f32.mrb[0].mxu0
    %5496 = vmatprep.mubr.f32.mxu0 0.0
    %5497 = vmatmul.mubr.f32.gmra.mrb[0].mxu0 %v5235
    %v5498 = vpop.f32.mrb[0].mxu0
    %v5499 = vadd.f32 0.0, %v5498
    %v5500 = vpop.f32.mrb[0].mxu0
    %5501 = vmatprep.mubr.f32.mxu0 0.0
    %5502 = vmatmul.mubr.f32.gmra.mrb[0].mxu0 %v5238
    %v5503 = vpop.f32.mrb[0].mxu0
    %v5504 = vadd.f32 0.0, %v5503
    %v5505 = vpop.f32.mrb[0].mxu0
    %5506 = vmatprep.mubr.f32.mxu0 0.0
    %5507 = vmatmul.mubr.f32.gmra.mrb[0].mxu0 %v5241
    %v5508 = vpop.f32.mrb[0].mxu0
    %v5509 = vadd.f32 0.0, %v5508
    %v5510 = vpop.f32.mrb[0].mxu0
    %5511 = vmatprep.mubr.f32.mxu0 0.0
    %5512 = vmatmul.mubr.f32.gmra.mrb[0].mxu0 %v5244
    %v5513 = vpop.f32.mrb[0].mxu0
    %v5514 = vadd.f32 0.0, %v5513
    %v5515 = vpop.f32.mrb[0].mxu0
    %5516 = vmatprep.mubr.f32.mxu0 0.0
    %5517 = vmatmul.mubr.f32.gmra.mrb[0].mxu0 %v5247
    %v5518 = vpop.f32.mrb[0].mxu0
    %v5519 = vadd.f32 0.0, %v5518
    %v5520 = vpop.f32.mrb[0].mxu0
    %5521 = vmatprep.mubr.f32.mxu0 0.0
    %5522 = vmatmul.mubr.f32.gmra.mrb[0].mxu0 %v5250
    %v5523 = vpop.f32.mrb[0].mxu0
    %v5524 = vadd.f32 0.0, %v5523
    %v5525 = vpop.f32.mrb[0].mxu0
    %5526 = vmatprep.mubr.f32.mxu0 0.0
    %5527 = vmatmul.mubr.f32.gmra.mrb[0].mxu0 %v5253
    %v5528 = vpop.f32.mrb[0].mxu0
    %v5529 = vadd.f32 0.0, %v5528
    %v5530 = vpop.f32.mrb[0].mxu0
    %5531 = vmatprep.mubr.f32.mxu0 0.0
    %5532 = vmatmul.mubr.f32.gmra.mrb[0].mxu0 %v5256
    %v5533 = vpop.f32.mrb[0].mxu0
    %v5534 = vadd.f32 0.0, %v5533
    %v5535 = vpop.f32.mrb[0].mxu0
    %5536 = vmatprep.mubr.f32.mxu0 0.0
    %5537 = vmatmul.mubr.f32.gmra.mrb[0].mxu0 %v5259
    %v5538 = vpop.f32.mrb[0].mxu0
    %v5539 = vadd.f32 0.0, %v5538
    %v5540 = vpop.f32.mrb[0].mxu0
    %5541 = vmatprep.mubr.f32.mxu0 0.0
    %5542 = vmatmul.mubr.f32.gmra.mrb[0].mxu0 %v5262
    %v5543 = vpop.f32.mrb[0].mxu0
    %v5544 = vadd.f32 0.0, %v5543
    %v5545 = vpop.f32.mrb[0].mxu0
    %5546 = vmatprep.mubr.f32.mxu0 0.0
    %5547 = vmatmul.mubr.f32.gmra.mrb[0].mxu0 %v5265
    %v5548 = vpop.f32.mrb[0].mxu0
    %v5549 = vadd.f32 0.0, %v5548
    %v5550 = vpop.f32.mrb[0].mxu0
    %5551 = vmatprep.mubr.f32.mxu0 0.0
    %5552 = vmatmul.mubr.f32.gmra.mrb[0].mxu0 %v5268
    %v5553 = vpop.f32.mrb[0].mxu0
    %v5554 = vadd.f32 0.0, %v5553
    %v5555 = vpop.f32.mrb[0].mxu0
    %5556 = vmatprep.mubr.f32.mxu0 0.0
    %5557 = vmatmul.mubr.f32.gmra.mrb[0].mxu0 %v5271
    %v5558 = vpop.f32.mrb[0].mxu0
    %v5559 = vadd.f32 0.0, %v5558
    %v5560 = vpop.f32.mrb[0].mxu0
    %5561 = vmatprep.mubr.f32.mxu0 0.0
    %5562 = vmatmul.mubr.f32.gmra.mrb[0].mxu0 %v5274
    %v5563 = vpop.f32.mrb[0].mxu0
    %v5564 = vadd.f32 0.0, %v5563
    %v5565 = vpop.f32.mrb[0].mxu0
    %5566 = vmatprep.mubr.f32.mxu0 0.0
    %5567 = vmatmul.mubr.f32.gmra.mrb[0].mxu0 %v5277
    %v5568 = vpop.f32.mrb[0].mxu0
    %v5569 = vadd.f32 0.0, %v5568
    %v5570 = vpop.f32.mrb[0].mxu0
    %5571 = vmatprep.mubr.f32.mxu0 0.0
    %5572 = vmatmul.mubr.f32.gmra.mrb[0].mxu0 %v5280
    %v5573 = vpop.f32.mrb[0].mxu0
    %v5574 = vadd.f32 0.0, %v5573
    %v5575 = vpop.f32.mrb[0].mxu0
    %5576 = vmatprep.mubr.f32.mxu0 0.0
    %5577 = vmatmul.mubr.f32.gmra.mrb[0].mxu0 %v5283
    %v5578 = vpop.f32.mrb[0].mxu0
    %v5579 = vadd.f32 0.0, %v5578
    %v5580 = vpop.f32.mrb[0].mxu0
    %5581 = vmatprep.mubr.f32.mxu0 0.0
    %5582 = vmatmul.mubr.f32.gmra.mrb[0].mxu0 %v5286
    %v5583 = vpop.f32.mrb[0].mxu0
    %v5584 = vadd.f32 0.0, %v5583
    %v5585 = vpop.f32.mrb[0].mxu0
    %5586 = vmatprep.mubr.f32.mxu0 0.0
    %5587 = vmatmul.mubr.f32.gmra.mrb[0].mxu0 %v5289
    %v5588 = vpop.f32.mrb[0].mxu0
    %v5589 = vadd.f32 0.0, %v5588
    %v5590 = vpop.f32.mrb[0].mxu0
    %5591 = vmatprep.mubr.f32.mxu0 0.0
    %5592 = vmatmul.mubr.f32.gmra.mrb[0].mxu0 %v5292
    %v5593 = vpop.f32.mrb[0].mxu0
    %v5594 = vadd.f32 0.0, %v5593
    %v5595 = vpop.f32.mrb[0].mxu0
    %5596 = vmatprep.mubr.f32.mxu0 0.0
    %5597 = vmatmul.mubr.f32.gmra.mrb[0].mxu0 %v5295
    %v5598 = vpop.f32.mrb[0].mxu0
    %v5599 = vadd.f32 0.0, %v5598
    %v5600 = vpop.f32.mrb[0].mxu0
    %5601 = vmatprep.mubr.f32.mxu0 0.0
    %5602 = vmatmul.mubr.f32.gmra.mrb[0].mxu0 %v5298
    %v5603 = vpop.f32.mrb[0].mxu0
    %v5604 = vadd.f32 0.0, %v5603
    %v5605 = vpop.f32.mrb[0].mxu0
    %5606 = vmatprep.mubr.f32.mxu0 0.0
    %5607 = vmatmul.mubr.f32.gmra.mrb[0].mxu0 %v5301
    %v5608 = vpop.f32.mrb[0].mxu0
    %v5609 = vadd.f32 0.0, %v5608
    %v5610 = vpop.f32.mrb[0].mxu0
    %5611 = vmatprep.mubr.f32.mxu0 0.0
    %5612 = vmatmul.mubr.f32.gmra.mrb[0].mxu0 %v5304
    %v5613 = vpop.f32.mrb[0].mxu0
    %v5614 = vadd.f32 0.0, %v5613
    %v5615 = vpop.f32.mrb[0].mxu0
    %5616 = vmatprep.mubr.f32.mxu0 0.0
    %5617 = vmatmul.mubr.f32.gmra.mrb[0].mxu0 %v5307
    %v5618 = vpop.f32.mrb[0].mxu0
    %v5619 = vadd.f32 0.0, %v5618
    %v5620 = vpop.f32.mrb[0].mxu0
    %5621 = vmatprep.mubr.f32.mxu0 0.0
    %5622 = vmatmul.mubr.f32.gmra.mrb[0].mxu0 %v5310
    %v5623 = vpop.f32.mrb[0].mxu0
    %v5624 = vadd.f32 0.0, %v5623
    %v5625 = vpop.f32.mrb[0].mxu0
    %5626 = vmatprep.mubr.f32.mxu0 0.0
    %5627 = vmatmul.mubr.f32.gmra.mrb[0].mxu0 %v5313
    %v5628 = vpop.f32.mrb[0].mxu0
    %v5629 = vadd.f32 0.0, %v5628
    %v5630 = vpop.f32.mrb[0].mxu0
    %5631 = vmatprep.mubr.f32.mxu0 0.0
    %5632 = vmatmul.mubr.f32.gmra.mrb[0].mxu0 %v5316
    %v5633 = vpop.f32.mrb[0].mxu0
    %v5634 = vadd.f32 0.0, %v5633
    %v5635 = vpop.f32.mrb[0].mxu0
    %5636 = vmatprep.mubr.f32.mxu0 0.0
    %5637 = vmatmul.mubr.f32.gmra.mrb[0].mxu0 %v5319
    %v5638 = vpop.f32.mrb[0].mxu0
    %v5639 = vadd.f32 0.0, %v5638
    %v5640 = vpop.f32.mrb[0].mxu0
    %5641 = vmatprep.mubr.f32.mxu0 0.0
    %5642 = vmatmul.mubr.f32.gmra.mrb[0].mxu0 %v5322
    %v5643 = vpop.f32.mrb[0].mxu0
    %v5644 = vadd.f32 0.0, %v5643
    %v5645 = vpop.f32.mrb[0].mxu0
    %5646 = vmatprep.mubr.f32.mxu0 0.0
    %5647 = vmatmul.mubr.f32.gmra.mrb[0].mxu0 %v5325
    %v5648 = vpop.f32.mrb[0].mxu0
    %v5649 = vadd.f32 0.0, %v5648
    %v5650 = vpop.f32.mrb[0].mxu0
    %5651 = vmatprep.mubr.f32.mxu0 0.0
    %5652 = vmatmul.mubr.f32.gmra.mrb[0].mxu0 %v5328
    %v5653 = vpop.f32.mrb[0].mxu0
    %v5654 = vadd.f32 0.0, %v5653
    %v5655 = vpop.f32.mrb[0].mxu0
    %5656 = vmatprep.mubr.f32.mxu0 0.0
    %5657 = vmatmul.mubr.f32.gmra.mrb[0].mxu0 %v5331
    %v5658 = vpop.f32.mrb[0].mxu0
    %v5659 = vadd.f32 0.0, %v5658
    %v5660 = vpop.f32.mrb[0].mxu0
    %5661 = vmatprep.mubr.f32.mxu0 0.0
    %5662 = vmatmul.mubr.f32.gmra.mrb[0].mxu0 %v5334
    %v5663 = vpop.f32.mrb[0].mxu0
    %v5664 = vadd.f32 0.0, %v5663
    %v5665 = vpop.f32.mrb[0].mxu0
    %5666 = vmatprep.mubr.f32.mxu0 0.0
    %5667 = vmatmul.mubr.f32.gmra.mrb[0].mxu0 %v5337
    %v5668 = vpop.f32.mrb[0].mxu0
    %v5669 = vadd.f32 0.0, %v5668
    %v5670 = vpop.f32.mrb[0].mxu0
    %5671 = vmatprep.mubr.f32.mxu0 0.0
    %5672 = vmatmul.mubr.f32.gmra.mrb[0].mxu0 %v5340
    %v5673 = vpop.f32.mrb[0].mxu0
    %v5674 = vadd.f32 0.0, %v5673
    %v5675 = vpop.f32.mrb[0].mxu0
    %5676 = vmatprep.mubr.f32.mxu0 0.0
    %5677 = vmatmul.mubr.f32.gmra.mrb[0].mxu0 %v5343
    %v5678 = vpop.f32.mrb[0].mxu0
    %v5679 = vadd.f32 0.0, %v5678
    %v5680 = vpop.f32.mrb[0].mxu0
    %5681 = vmatprep.mubr.f32.mxu0 0.0
    %5682 = vmatmul.mubr.f32.gmra.mrb[0].mxu0 %v5346
    %v5683 = vpop.f32.mrb[0].mxu0
    %v5684 = vadd.f32 0.0, %v5683
    %v5685 = vpop.f32.mrb[0].mxu0
    %5686 = vmatprep.mubr.f32.mxu0 0.0
    %5687 = vmatmul.mubr.f32.gmra.mrb[0].mxu0 %v5349
    %v5688 = vpop.f32.mrb[0].mxu0
    %v5689 = vadd.f32 0.0, %v5688
    %v5690 = vpop.f32.mrb[0].mxu0
    %5691 = vmatprep.mubr.f32.mxu0 0.0
    %5692 = vmatmul.mubr.f32.gmra.mrb[0].mxu0 %v5352
    %v5693 = vpop.f32.mrb[0].mxu0
    %v5694 = vadd.f32 0.0, %v5693
    %v5695 = vpop.f32.mrb[0].mxu0
    %5696 = vmatprep.mubr.f32.mxu0 0.0
    %5697 = vmatmul.mubr.f32.gmra.mrb[0].mxu0 %v5355
    %v5698 = vpop.f32.mrb[0].mxu0
    %v5699 = vadd.f32 0.0, %v5698
    %v5700 = vpop.f32.mrb[0].mxu0
    %5701 = vmatprep.mubr.f32.mxu0 0.0
    %5702 = vmatmul.mubr.f32.gmra.mrb[0].mxu0 %v5358
    %v5703 = vpop.f32.mrb[0].mxu0
    %v5704 = vadd.f32 0.0, %v5703
    %v5705 = vpop.f32.mrb[0].mxu0
    %5706 = vmatprep.mubr.f32.mxu0 0.0
    %5707 = vmatmul.mubr.f32.gmra.mrb[0].mxu0 %v5361
    %v5708 = vpop.f32.mrb[0].mxu0
    %v5709 = vadd.f32 0.0, %v5708
    %v5710 = vpop.f32.mrb[0].mxu0
    %5711 = vmatprep.mubr.f32.mxu0 0.0
    %5712 = vmatmul.mubr.f32.gmra.mrb[0].mxu0 %v5364
    %v5713 = vpop.f32.mrb[0].mxu0
    %v5714 = vadd.f32 0.0, %v5713
    %v5715 = vpop.f32.mrb[0].mxu0
    %5716 = vmatprep.mubr.f32.mxu0 0.0
    %5717 = vmatmul.mubr.f32.gmra.mrb[0].mxu0 %v5367
    %v5718 = vpop.f32.mrb[0].mxu0
    %v5719 = vadd.f32 0.0, %v5718
    %v5720 = vpop.f32.mrb[0].mxu0
    %5721 = vmatprep.mubr.f32.mxu0 0.0
    %5722 = vmatmul.mubr.f32.gmra.mrb[0].mxu0 %v5370
    %v5723 = vpop.f32.mrb[0].mxu0
    %v5724 = vadd.f32 0.0, %v5723
    %v5725 = vpop.f32.mrb[0].mxu0
    %5726 = vmatprep.mubr.f32.mxu0 0.0
    %5727 = vmatmul.mubr.f32.gmra.mrb[0].mxu0 %v5373
    %v5728 = vpop.f32.mrb[0].mxu0
    %v5729 = vadd.f32 0.0, %v5728
    %v5730 = vpop.f32.mrb[0].mxu0
    %5731 = vmatprep.mubr.f32.mxu0 0.0
    %5732 = vmatmul.mubr.f32.gmra.mrb[0].mxu0 %v5376
    %v5733 = vpop.f32.mrb[0].mxu0
    %v5734 = vadd.f32 0.0, %v5733
    %v5735 = vpop.f32.mrb[0].mxu0
    %5736 = vmatprep.mubr.f32.mxu0 0.0
    %5737 = vmatmul.mubr.f32.gmra.mrb[0].mxu0 %v5379
    %v5738 = vpop.f32.mrb[0].mxu0
    %v5739 = vadd.f32 0.0, %v5738
    %v5740 = vpop.f32.mrb[0].mxu0
    %5741 = vmatprep.mubr.f32.mxu0 0.0
    %5742 = vmatmul.mubr.f32.gmra.mrb[0].mxu0 %v5382
    %v5743 = vpop.f32.mrb[0].mxu0
    %v5744 = vadd.f32 0.0, %v5743
    %v5745 = vpop.f32.mrb[0].mxu0
    %5746 = vmatprep.mubr.f32.mxu0 0.0
    %5747 = vmatmul.mubr.f32.gmra.mrb[0].mxu0 %v5385
    %v5748 = vpop.f32.mrb[0].mxu0
    %v5749 = vadd.f32 0.0, %v5748
    %v5750 = vpop.f32.mrb[0].mxu0
    %5751 = vmatprep.mubr.f32.mxu0 0.0
    %5752 = vmatmul.mubr.f32.gmra.mrb[0].mxu0 %v5388
    %v5753 = vpop.f32.mrb[0].mxu0
    %v5754 = vadd.f32 0.0, %v5753
    %v5755 = vpop.f32.mrb[0].mxu0
    %5756 = vmatprep.mubr.f32.mxu0 0.0
    %5757 = vmatmul.mubr.f32.gmra.mrb[0].mxu0 %v5391
    %v5758 = vpop.f32.mrb[0].mxu0
    %v5759 = vadd.f32 0.0, %v5758
    %v5760 = vpop.f32.mrb[0].mxu0
    %5761 = vmatprep.mubr.f32.mxu0 0.0
    %5762 = vmatmul.mubr.f32.gmra.mrb[0].mxu0 %v5394
    %v5763 = vpop.f32.mrb[0].mxu0
    %v5764 = vadd.f32 0.0, %v5763
    %v5765 = vpop.f32.mrb[0].mxu0
    %5766 = vmatprep.mubr.f32.mxu0 0.0
    %5767 = vmatmul.mubr.f32.gmra.mrb[0].mxu0 %v5397
    %v5768 = vpop.f32.mrb[0].mxu0
    %v5769 = vadd.f32 0.0, %v5768
    %v5770 = vpop.f32.mrb[0].mxu0
    %5771 = vmatprep.mubr.f32.mxu0 0.0
    %5772 = vmatmul.mubr.f32.gmra.mrb[0].mxu0 %v5400
    %v5773 = vpop.f32.mrb[0].mxu0
    %v5774 = vadd.f32 0.0, %v5773
    %v5775 = vpop.f32.mrb[0].mxu0
    %5776 = vmatprep.mubr.f32.mxu0 0.0
    %5777 = vmatmul.mubr.f32.gmra.mrb[0].mxu0 %v5403
    %v5778 = vpop.f32.mrb[0].mxu0
    %v5779 = vadd.f32 0.0, %v5778
    %v5780 = vpop.f32.mrb[0].mxu0
    %5781 = vmatprep.mubr.f32.mxu0 0.0
    %5782 = vmatmul.mubr.f32.gmra.mrb[0].mxu0 %v5406
    %v5783 = vpop.f32.mrb[0].mxu0
    %v5784 = vadd.f32 0.0, %v5783
    %v5785 = vpop.f32.mrb[0].mxu0
    %5786 = vmatprep.mubr.f32.mxu0 0.0
    %5787 = vmatmul.mubr.f32.gmra.mrb[0].mxu0 %v5409
    %v5788 = vpop.f32.mrb[0].mxu0
    %v5789 = vadd.f32 0.0, %v5788
    %v5790 = vpop.f32.mrb[0].mxu0
    %5791 = vmatprep.mubr.f32.mxu0 0.0
    %5792 = vmatmul.mubr.f32.gmra.mrb[0].mxu0 %v5412
    %v5793 = vpop.f32.mrb[0].mxu0
    %v5794 = vadd.f32 0.0, %v5793
    %v5795 = vpop.f32.mrb[0].mxu0
    %5796 = vmatprep.mubr.f32.mxu0 0.0
    %5797 = vmatmul.mubr.f32.gmra.mrb[0].mxu0 %v5415
    %v5798 = vpop.f32.mrb[0].mxu0
    %v5799 = vadd.f32 0.0, %v5798
    %v5800 = vpop.f32.mrb[0].mxu0
    %5801 = vdwg.mxu0
    %v5802 = vadd.f32 %v5095, %v5484
    %v5803 = vadd.f32 %v5096, %v5489
    %v5804 = vadd.f32 %v5097, %v5494
    %v5805 = vadd.f32 %v5098, %v5499
    %v5806 = vadd.f32 %v5099, %v5504
    %v5807 = vadd.f32 %v5100, %v5509
    %v5808 = vadd.f32 %v5101, %v5514
    %v5809 = vadd.f32 %v5102, %v5519
    %v5810 = vadd.f32 %v5103, %v5524
    %v5811 = vadd.f32 %v5104, %v5529
    %v5812 = vadd.f32 %v5105, %v5534
    %v5813 = vadd.f32 %v5106, %v5539
    %v5814 = vadd.f32 %v5107, %v5544
    %v5815 = vadd.f32 %v5108, %v5549
    %v5816 = vadd.f32 %v5109, %v5554
    %v5817 = vadd.f32 %v5110, %v5559
    %v5818 = vadd.f32 %v5111, %v5564
    %v5819 = vadd.f32 %v5112, %v5569
    %v5820 = vadd.f32 %v5113, %v5574
    %v5821 = vadd.f32 %v5114, %v5579
    %v5822 = vadd.f32 %v5115, %v5584
    %v5823 = vadd.f32 %v5116, %v5589
    %v5824 = vadd.f32 %v5117, %v5594
    %v5825 = vadd.f32 %v5118, %v5599
    %v5826 = vadd.f32 %v5119, %v5604
    %v5827 = vadd.f32 %v5120, %v5609
    %v5828 = vadd.f32 %v5121, %v5614
    %v5829 = vadd.f32 %v5122, %v5619
    %v5830 = vadd.f32 %v5123, %v5624
    %v5831 = vadd.f32 %v5124, %v5629
    %v5832 = vadd.f32 %v5125, %v5634
    %v5833 = vadd.f32 %v5126, %v5639
    %v5834 = vadd.f32 %v5127, %v5644
    %v5835 = vadd.f32 %v5128, %v5649
    %v5836 = vadd.f32 %v5129, %v5654
    %v5837 = vadd.f32 %v5130, %v5659
    %v5838 = vadd.f32 %v5131, %v5664
    %v5839 = vadd.f32 %v5132, %v5669
    %v5840 = vadd.f32 %v5133, %v5674
    %v5841 = vadd.f32 %v5134, %v5679
    %v5842 = vadd.f32 %v5135, %v5684
    %v5843 = vadd.f32 %v5136, %v5689
    %v5844 = vadd.f32 %v5137, %v5694
    %v5845 = vadd.f32 %v5138, %v5699
    %v5846 = vadd.f32 %v5139, %v5704
    %v5847 = vadd.f32 %v5140, %v5709
    %v5848 = vadd.f32 %v5141, %v5714
    %v5849 = vadd.f32 %v5142, %v5719
    %v5850 = vadd.f32 %v5143, %v5724
    %v5851 = vadd.f32 %v5144, %v5729
    %v5852 = vadd.f32 %v5145, %v5734
    %v5853 = vadd.f32 %v5146, %v5739
    %v5854 = vadd.f32 %v5147, %v5744
    %v5855 = vadd.f32 %v5148, %v5749
    %v5856 = vadd.f32 %v5149, %v5754
    %v5857 = vadd.f32 %v5150, %v5759
    %v5858 = vadd.f32 %v5151, %v5764
    %v5859 = vadd.f32 %v5152, %v5769
    %v5860 = vadd.f32 %v5153, %v5774
    %v5861 = vadd.f32 %v5154, %v5779
    %v5862 = vadd.f32 %v5155, %v5784
    %v5863 = vadd.f32 %v5156, %v5789
    %v5864 = vadd.f32 %v5157, %v5794
    %v5865 = vadd.f32 %v5158, %v5799
    %v5866 = vld [vmem:[%s2395 + $0xa] sm:$0xff]
    %v5867 = vld [vmem:[%s2395 + $0x12] sm:$0xff]
    %v5868 = vld [vmem:[%s2395 + $0x2a] sm:$0xff]
    %v5869 = vld [vmem:[%s2395 + $0x32] sm:$0xff]
    %v5870 = vld [vmem:[%s2395 + $0x4a] sm:$0xff]
    %v5871 = vld [vmem:[%s2395 + $0x52] sm:$0xff]
    %v5872 = vld [vmem:[%s2395 + $0x6a] sm:$0xff]
    %v5873 = vld [vmem:[%s2395 + $0x72] sm:$0xff]
    %v5874 = vld [vmem:[%s2395 + $0x8a] sm:$0xff]
    %v5875 = vld [vmem:[%s2395 + $0x92] sm:$0xff]
    %v5876 = vld [vmem:[%s2395 + $0xaa] sm:$0xff]
    %v5877 = vld [vmem:[%s2395 + $0xb2] sm:$0xff]
    %v5878 = vld [vmem:[%s2395 + $0xca] sm:$0xff]
    %v5879 = vld [vmem:[%s2395 + $0xd2] sm:$0xff]
    %v5880 = vld [vmem:[%s2395 + $0xea] sm:$0xff]
    %v5881 = vld [vmem:[%s2395 + $0xf2] sm:$0xff]
    %v5882 = vld [vmem:[%s2395 + $0x10a] sm:$0xff]
    %v5883 = vld [vmem:[%s2395 + $0x112] sm:$0xff]
    %v5884 = vld [vmem:[%s2395 + $0x12a] sm:$0xff]
    %v5885 = vld [vmem:[%s2395 + $0x132] sm:$0xff]
    %v5886 = vld [vmem:[%s2395 + $0x14a] sm:$0xff]
    %v5887 = vld [vmem:[%s2395 + $0x152] sm:$0xff]
    %v5888 = vld [vmem:[%s2395 + $0x16a] sm:$0xff]
    %v5889 = vld [vmem:[%s2395 + $0x172] sm:$0xff]
    %v5890 = vld [vmem:[%s2395 + $0x18a] sm:$0xff]
    %v5891 = vld [vmem:[%s2395 + $0x192] sm:$0xff]
    %v5892 = vld [vmem:[%s2395 + $0x1aa] sm:$0xff]
    %v5893 = vld [vmem:[%s2395 + $0x1b2] sm:$0xff]
    %v5894 = vld [vmem:[%s2395 + $0x1ca] sm:$0xff]
    %v5895 = vld [vmem:[%s2395 + $0x1d2] sm:$0xff]
    %v5896 = vld [vmem:[%s2395 + $0x1ea] sm:$0xff]
    %v5897 = vld [vmem:[%s2395 + $0x1f2] sm:$0xff]
    %v5898 = vld [vmem:[%s2395 + $0x28a] sm:$0xff]
    %v5899 = vld [vmem:[%s2395 + $0x292] sm:$0xff]
    %v5900 = vld [vmem:[%s2395 + $0x2aa] sm:$0xff]
    %v5901 = vld [vmem:[%s2395 + $0x2b2] sm:$0xff]
    %v5902 = vld [vmem:[%s2395 + $0x2ca] sm:$0xff]
    %v5903 = vld [vmem:[%s2395 + $0x2d2] sm:$0xff]
    %v5904 = vld [vmem:[%s2395 + $0x2ea] sm:$0xff]
    %v5905 = vld [vmem:[%s2395 + $0x2f2] sm:$0xff]
    %v5906 = vld [vmem:[%s2395 + $0x30a] sm:$0xff]
    %v5907 = vld [vmem:[%s2395 + $0x312] sm:$0xff]
    %v5908 = vld [vmem:[%s2395 + $0x32a] sm:$0xff]
    %v5909 = vld [vmem:[%s2395 + $0x332] sm:$0xff]
    %v5910 = vld [vmem:[%s2395 + $0x34a] sm:$0xff]
    %v5911 = vld [vmem:[%s2395 + $0x352] sm:$0xff]
    %v5912 = vld [vmem:[%s2395 + $0x36a] sm:$0xff]
    %v5913 = vld [vmem:[%s2395 + $0x372] sm:$0xff]
    %v5914 = vld [vmem:[%s2395 + $0x38a] sm:$0xff]
    %v5915 = vld [vmem:[%s2395 + $0x392] sm:$0xff]
    %v5916 = vld [vmem:[%s2395 + $0x3aa] sm:$0xff]
    %v5917 = vld [vmem:[%s2395 + $0x3b2] sm:$0xff]
    %v5918 = vld [vmem:[%s2395 + $0x3ca] sm:$0xff]
    %v5919 = vld [vmem:[%s2395 + $0x3d2] sm:$0xff]
    %v5920 = vld [vmem:[%s2395 + $0x3ea] sm:$0xff]
    %v5921 = vld [vmem:[%s2395 + $0x3f2] sm:$0xff]
    %v5922 = vld [vmem:[%s2395 + $0x40a] sm:$0xff]
    %v5923 = vld [vmem:[%s2395 + $0x412] sm:$0xff]
    %v5924 = vld [vmem:[%s2395 + $0x42a] sm:$0xff]
    %v5925 = vld [vmem:[%s2395 + $0x432] sm:$0xff]
    %v5926 = vld [vmem:[%s2395 + $0x44a] sm:$0xff]
    %v5927 = vld [vmem:[%s2395 + $0x452] sm:$0xff]
    %v5928 = vld [vmem:[%s2395 + $0x46a] sm:$0xff]
    %v5929 = vld [vmem:[%s2395 + $0x472] sm:$0xff]
    %s5930 = scalar_lea.vmem %s4, 40
    %v5931 = vld [vmem:[%s5930] sm:$0xff]
    %v5933 = vsel %vm1632, %v5866, 0
    %v5936 = vsel %vm1632, %v5867, 0
    %v5939 = vsel %vm1632, %v5868, 0
    %v5942 = vsel %vm1632, %v5869, 0
    %v5945 = vsel %vm1632, %v5870, 0
    %v5948 = vsel %vm1632, %v5871, 0
    %v5951 = vsel %vm1632, %v5872, 0
    %v5954 = vsel %vm1632, %v5873, 0
    %v5957 = vsel %vm1632, %v5874, 0
    %v5960 = vsel %vm1632, %v5875, 0
    %v5963 = vsel %vm1632, %v5876, 0
    %v5966 = vsel %vm1632, %v5877, 0
    %v5969 = vsel %vm1632, %v5878, 0
    %v5972 = vsel %vm1632, %v5879, 0
    %v5975 = vsel %vm1632, %v5880, 0
    %v5978 = vsel %vm1632, %v5881, 0
    %v5981 = vsel %vm1632, %v5882, 0
    %v5984 = vsel %vm1632, %v5883, 0
    %v5987 = vsel %vm1632, %v5884, 0
    %v5990 = vsel %vm1632, %v5885, 0
    %v5993 = vsel %vm1632, %v5886, 0
    %v5996 = vsel %vm1632, %v5887, 0
    %v5999 = vsel %vm1632, %v5888, 0
    %v6002 = vsel %vm1632, %v5889, 0
    %v6005 = vsel %vm1632, %v5890, 0
    %v6008 = vsel %vm1632, %v5891, 0
    %v6011 = vsel %vm1632, %v5892, 0
    %v6014 = vsel %vm1632, %v5893, 0
    %v6017 = vsel %vm1632, %v5894, 0
    %v6020 = vsel %vm1632, %v5895, 0
    %v6023 = vsel %vm1632, %v5896, 0
    %v6026 = vsel %vm1632, %v5897, 0
    %v6029 = vsel %vm1632, %v5898, 0
    %v6032 = vsel %vm1632, %v5899, 0
    %v6035 = vsel %vm1632, %v5900, 0
    %v6038 = vsel %vm1632, %v5901, 0
    %v6041 = vsel %vm1632, %v5902, 0
    %v6044 = vsel %vm1632, %v5903, 0
    %v6047 = vsel %vm1632, %v5904, 0
    %v6050 = vsel %vm1632, %v5905, 0
    %v6053 = vsel %vm1632, %v5906, 0
    %v6056 = vsel %vm1632, %v5907, 0
    %v6059 = vsel %vm1632, %v5908, 0
    %v6062 = vsel %vm1632, %v5909, 0
    %v6065 = vsel %vm1632, %v5910, 0
    %v6068 = vsel %vm1632, %v5911, 0
    %v6071 = vsel %vm1632, %v5912, 0
    %v6074 = vsel %vm1632, %v5913, 0
    %v6077 = vsel %vm1632, %v5914, 0
    %v6080 = vsel %vm1632, %v5915, 0
    %v6083 = vsel %vm1632, %v5916, 0
    %v6086 = vsel %vm1632, %v5917, 0
    %v6089 = vsel %vm1632, %v5918, 0
    %v6092 = vsel %vm1632, %v5919, 0
    %v6095 = vsel %vm1632, %v5920, 0
    %v6098 = vsel %vm1632, %v5921, 0
    %v6101 = vsel %vm1632, %v5922, 0
    %v6104 = vsel %vm1632, %v5923, 0
    %v6107 = vsel %vm1632, %v5924, 0
    %v6110 = vsel %vm1632, %v5925, 0
    %v6113 = vsel %vm1632, %v5926, 0
    %v6116 = vsel %vm1632, %v5927, 0
    %v6119 = vsel %vm1632, %v5928, 0
    %v6122 = vsel %vm1632, %v5929, 0
    %6124 = vmatprep.subr.mxu0 0.0
    %6125 = vmatpush1.msra.mxu0 %v5931
    %6126 = vmatprep.subr.mxu0 0.0
    %6127 = vmatpush1.msra.mxu0 0.0
    %6128 = vmatprep.subr.mxu0 0.0
    %6129 = vmatpush1.msra.mxu0 0.0
    %6130 = vmatprep.subr.mxu0 0.0
    %6131 = vmatpush1.msra.mxu0 0.0
    %6132 = vmatprep.subr.mxu0 0.0
    %6133 = vmatpush1.msra.mxu0 0.0
    %6134 = vmatprep.subr.mxu0 0.0
    %6135 = vmatpush1.msra.mxu0 0.0
    %6136 = vmatprep.subr.mxu0 0.0
    %6137 = vmatpush1.msra.mxu0 0.0
    %6138 = vmatprep.subr.mxu0 0.0
    %6139 = vmatpush1.msra.mxu0 0.0
    %6140 = vmatprep.subr.mxu0 0.0
    %6141 = vmatpush1.msra.mxu0 0.0
    %6142 = vmatprep.subr.mxu0 0.0
    %6143 = vmatpush1.msra.mxu0 0.0
    %6144 = vmatprep.subr.mxu0 0.0
    %6145 = vmatpush1.msra.mxu0 0.0
    %6146 = vmatprep.subr.mxu0 0.0
    %6147 = vmatpush1.msra.mxu0 0.0
    %6148 = vmatprep.subr.mxu0 0.0
    %6149 = vmatpush1.msra.mxu0 0.0
    %6150 = vmatprep.subr.mxu0 0.0
    %6151 = vmatpush1.msra.mxu0 0.0
    %6152 = vmatprep.subr.mxu0 0.0
    %6153 = vmatpush1.msra.mxu0 0.0
    %6154 = vmatprep.subr.mxu0 0.0
    %6155 = vmatpush1.msra.mxu0 0.0
    %6156 = vmatprep.subr.mxu0 0.0
    %6157 = vmatpush1.msra.mxu0 0.0
    %6158 = vmatprep.subr.mxu0 0.0
    %6159 = vmatpush1.msra.mxu0 0.0
    %6160 = vmatprep.subr.mxu0 0.0
    %6161 = vmatpush1.msra.mxu0 0.0
    %6162 = vmatprep.subr.mxu0 0.0
    %6163 = vmatpush1.msra.mxu0 0.0
    %6164 = vmatprep.subr.mxu0 0.0
    %6165 = vmatpush1.msra.mxu0 0.0
    %6166 = vmatprep.subr.mxu0 0.0
    %6167 = vmatpush1.msra.mxu0 0.0
    %6168 = vmatprep.subr.mxu0 0.0
    %6169 = vmatpush1.msra.mxu0 0.0
    %6170 = vmatprep.subr.mxu0 0.0
    %6171 = vmatpush1.msra.mxu0 0.0
    %6172 = vmatprep.subr.mxu0 0.0
    %6173 = vmatpush1.msra.mxu0 0.0
    %6174 = vmatprep.subr.mxu0 0.0
    %6175 = vmatpush1.msra.mxu0 0.0
    %6176 = vmatprep.subr.mxu0 0.0
    %6177 = vmatpush1.msra.mxu0 0.0
    %6178 = vmatprep.subr.mxu0 0.0
    %6179 = vmatpush1.msra.mxu0 0.0
    %6180 = vmatprep.subr.mxu0 0.0
    %6181 = vmatpush1.msra.mxu0 0.0
    %6182 = vmatprep.subr.mxu0 0.0
    %6183 = vmatpush1.msra.mxu0 0.0
    %6184 = vmatprep.subr.mxu0 0.0
    %6185 = vmatpush1.msra.mxu0 0.0
    %6186 = vmatprep.subr.mxu0 0.0
    %6187 = vmatpush1.msra.mxu0 0.0
    %6188 = vmatprep.mubr.f32.mxu0 0.0
    %6189 = vmatmul.mubr.f32.gmra.mrb[0].mxu0 %v5933
    %v6190 = vpop.f32.mrb[0].mxu0
    %v6191 = vadd.f32 0.0, %v6190
    %v6192 = vpop.f32.mrb[0].mxu0
    %6193 = vmatprep.mubr.f32.mxu0 0.0
    %6194 = vmatmul.mubr.f32.gmra.mrb[0].mxu0 %v5936
    %v6195 = vpop.f32.mrb[0].mxu0
    %v6196 = vadd.f32 0.0, %v6195
    %v6197 = vpop.f32.mrb[0].mxu0
    %6198 = vmatprep.mubr.f32.mxu0 0.0
    %6199 = vmatmul.mubr.f32.gmra.mrb[0].mxu0 %v5939
    %v6200 = vpop.f32.mrb[0].mxu0
    %v6201 = vadd.f32 0.0, %v6200
    %v6202 = vpop.f32.mrb[0].mxu0
    %6203 = vmatprep.mubr.f32.mxu0 0.0
    %6204 = vmatmul.mubr.f32.gmra.mrb[0].mxu0 %v5942
    %v6205 = vpop.f32.mrb[0].mxu0
    %v6206 = vadd.f32 0.0, %v6205
    %v6207 = vpop.f32.mrb[0].mxu0
    %6208 = vmatprep.mubr.f32.mxu0 0.0
    %6209 = vmatmul.mubr.f32.gmra.mrb[0].mxu0 %v5945
    %v6210 = vpop.f32.mrb[0].mxu0
    %v6211 = vadd.f32 0.0, %v6210
    %v6212 = vpop.f32.mrb[0].mxu0
    %6213 = vmatprep.mubr.f32.mxu0 0.0
    %6214 = vmatmul.mubr.f32.gmra.mrb[0].mxu0 %v5948
    %v6215 = vpop.f32.mrb[0].mxu0
    %v6216 = vadd.f32 0.0, %v6215
    %v6217 = vpop.f32.mrb[0].mxu0
    %6218 = vmatprep.mubr.f32.mxu0 0.0
    %6219 = vmatmul.mubr.f32.gmra.mrb[0].mxu0 %v5951
    %v6220 = vpop.f32.mrb[0].mxu0
    %v6221 = vadd.f32 0.0, %v6220
    %v6222 = vpop.f32.mrb[0].mxu0
    %6223 = vmatprep.mubr.f32.mxu0 0.0
    %6224 = vmatmul.mubr.f32.gmra.mrb[0].mxu0 %v5954
    %v6225 = vpop.f32.mrb[0].mxu0
    %v6226 = vadd.f32 0.0, %v6225
    %v6227 = vpop.f32.mrb[0].mxu0
    %6228 = vmatprep.mubr.f32.mxu0 0.0
    %6229 = vmatmul.mubr.f32.gmra.mrb[0].mxu0 %v5957
    %v6230 = vpop.f32.mrb[0].mxu0
    %v6231 = vadd.f32 0.0, %v6230
    %v6232 = vpop.f32.mrb[0].mxu0
    %6233 = vmatprep.mubr.f32.mxu0 0.0
    %6234 = vmatmul.mubr.f32.gmra.mrb[0].mxu0 %v5960
    %v6235 = vpop.f32.mrb[0].mxu0
    %v6236 = vadd.f32 0.0, %v6235
    %v6237 = vpop.f32.mrb[0].mxu0
    %6238 = vmatprep.mubr.f32.mxu0 0.0
    %6239 = vmatmul.mubr.f32.gmra.mrb[0].mxu0 %v5963
    %v6240 = vpop.f32.mrb[0].mxu0
    %v6241 = vadd.f32 0.0, %v6240
    %v6242 = vpop.f32.mrb[0].mxu0
    %6243 = vmatprep.mubr.f32.mxu0 0.0
    %6244 = vmatmul.mubr.f32.gmra.mrb[0].mxu0 %v5966
    %v6245 = vpop.f32.mrb[0].mxu0
    %v6246 = vadd.f32 0.0, %v6245
    %v6247 = vpop.f32.mrb[0].mxu0
    %6248 = vmatprep.mubr.f32.mxu0 0.0
    %6249 = vmatmul.mubr.f32.gmra.mrb[0].mxu0 %v5969
    %v6250 = vpop.f32.mrb[0].mxu0
    %v6251 = vadd.f32 0.0, %v6250
    %v6252 = vpop.f32.mrb[0].mxu0
    %6253 = vmatprep.mubr.f32.mxu0 0.0
    %6254 = vmatmul.mubr.f32.gmra.mrb[0].mxu0 %v5972
    %v6255 = vpop.f32.mrb[0].mxu0
    %v6256 = vadd.f32 0.0, %v6255
    %v6257 = vpop.f32.mrb[0].mxu0
    %6258 = vmatprep.mubr.f32.mxu0 0.0
    %6259 = vmatmul.mubr.f32.gmra.mrb[0].mxu0 %v5975
    %v6260 = vpop.f32.mrb[0].mxu0
    %v6261 = vadd.f32 0.0, %v6260
    %v6262 = vpop.f32.mrb[0].mxu0
    %6263 = vmatprep.mubr.f32.mxu0 0.0
    %6264 = vmatmul.mubr.f32.gmra.mrb[0].mxu0 %v5978
    %v6265 = vpop.f32.mrb[0].mxu0
    %v6266 = vadd.f32 0.0, %v6265
    %v6267 = vpop.f32.mrb[0].mxu0
    %6268 = vmatprep.mubr.f32.mxu0 0.0
    %6269 = vmatmul.mubr.f32.gmra.mrb[0].mxu0 %v5981
    %v6270 = vpop.f32.mrb[0].mxu0
    %v6271 = vadd.f32 0.0, %v6270
    %v6272 = vpop.f32.mrb[0].mxu0
    %6273 = vmatprep.mubr.f32.mxu0 0.0
    %6274 = vmatmul.mubr.f32.gmra.mrb[0].mxu0 %v5984
    %v6275 = vpop.f32.mrb[0].mxu0
    %v6276 = vadd.f32 0.0, %v6275
    %v6277 = vpop.f32.mrb[0].mxu0
    %6278 = vmatprep.mubr.f32.mxu0 0.0
    %6279 = vmatmul.mubr.f32.gmra.mrb[0].mxu0 %v5987
    %v6280 = vpop.f32.mrb[0].mxu0
    %v6281 = vadd.f32 0.0, %v6280
    %v6282 = vpop.f32.mrb[0].mxu0
    %6283 = vmatprep.mubr.f32.mxu0 0.0
    %6284 = vmatmul.mubr.f32.gmra.mrb[0].mxu0 %v5990
    %v6285 = vpop.f32.mrb[0].mxu0
    %v6286 = vadd.f32 0.0, %v6285
    %v6287 = vpop.f32.mrb[0].mxu0
    %6288 = vmatprep.mubr.f32.mxu0 0.0
    %6289 = vmatmul.mubr.f32.gmra.mrb[0].mxu0 %v5993
    %v6290 = vpop.f32.mrb[0].mxu0
    %v6291 = vadd.f32 0.0, %v6290
    %v6292 = vpop.f32.mrb[0].mxu0
    %6293 = vmatprep.mubr.f32.mxu0 0.0
    %6294 = vmatmul.mubr.f32.gmra.mrb[0].mxu0 %v5996
    %v6295 = vpop.f32.mrb[0].mxu0
    %v6296 = vadd.f32 0.0, %v6295
    %v6297 = vpop.f32.mrb[0].mxu0
    %6298 = vmatprep.mubr.f32.mxu0 0.0
    %6299 = vmatmul.mubr.f32.gmra.mrb[0].mxu0 %v5999
    %v6300 = vpop.f32.mrb[0].mxu0
    %v6301 = vadd.f32 0.0, %v6300
    %v6302 = vpop.f32.mrb[0].mxu0
    %6303 = vmatprep.mubr.f32.mxu0 0.0
    %6304 = vmatmul.mubr.f32.gmra.mrb[0].mxu0 %v6002
    %v6305 = vpop.f32.mrb[0].mxu0
    %v6306 = vadd.f32 0.0, %v6305
    %v6307 = vpop.f32.mrb[0].mxu0
    %6308 = vmatprep.mubr.f32.mxu0 0.0
    %6309 = vmatmul.mubr.f32.gmra.mrb[0].mxu0 %v6005
    %v6310 = vpop.f32.mrb[0].mxu0
    %v6311 = vadd.f32 0.0, %v6310
    %v6312 = vpop.f32.mrb[0].mxu0
    %6313 = vmatprep.mubr.f32.mxu0 0.0
    %6314 = vmatmul.mubr.f32.gmra.mrb[0].mxu0 %v6008
    %v6315 = vpop.f32.mrb[0].mxu0
    %v6316 = vadd.f32 0.0, %v6315
    %v6317 = vpop.f32.mrb[0].mxu0
    %6318 = vmatprep.mubr.f32.mxu0 0.0
    %6319 = vmatmul.mubr.f32.gmra.mrb[0].mxu0 %v6011
    %v6320 = vpop.f32.mrb[0].mxu0
    %v6321 = vadd.f32 0.0, %v6320
    %v6322 = vpop.f32.mrb[0].mxu0
    %6323 = vmatprep.mubr.f32.mxu0 0.0
    %6324 = vmatmul.mubr.f32.gmra.mrb[0].mxu0 %v6014
    %v6325 = vpop.f32.mrb[0].mxu0
    %v6326 = vadd.f32 0.0, %v6325
    %v6327 = vpop.f32.mrb[0].mxu0
    %6328 = vmatprep.mubr.f32.mxu0 0.0
    %6329 = vmatmul.mubr.f32.gmra.mrb[0].mxu0 %v6017
    %v6330 = vpop.f32.mrb[0].mxu0
    %v6331 = vadd.f32 0.0, %v6330
    %v6332 = vpop.f32.mrb[0].mxu0
    %6333 = vmatprep.mubr.f32.mxu0 0.0
    %6334 = vmatmul.mubr.f32.gmra.mrb[0].mxu0 %v6020
    %v6335 = vpop.f32.mrb[0].mxu0
    %v6336 = vadd.f32 0.0, %v6335
    %v6337 = vpop.f32.mrb[0].mxu0
    %6338 = vmatprep.mubr.f32.mxu0 0.0
    %6339 = vmatmul.mubr.f32.gmra.mrb[0].mxu0 %v6023
    %v6340 = vpop.f32.mrb[0].mxu0
    %v6341 = vadd.f32 0.0, %v6340
    %v6342 = vpop.f32.mrb[0].mxu0
    %6343 = vmatprep.mubr.f32.mxu0 0.0
    %6344 = vmatmul.mubr.f32.gmra.mrb[0].mxu0 %v6026
    %v6345 = vpop.f32.mrb[0].mxu0
    %v6346 = vadd.f32 0.0, %v6345
    %v6347 = vpop.f32.mrb[0].mxu0
    %6348 = vmatprep.mubr.f32.mxu0 0.0
    %6349 = vmatmul.mubr.f32.gmra.mrb[0].mxu0 %v6029
    %v6350 = vpop.f32.mrb[0].mxu0
    %v6351 = vadd.f32 0.0, %v6350
    %v6352 = vpop.f32.mrb[0].mxu0
    %6353 = vmatprep.mubr.f32.mxu0 0.0
    %6354 = vmatmul.mubr.f32.gmra.mrb[0].mxu0 %v6032
    %v6355 = vpop.f32.mrb[0].mxu0
    %v6356 = vadd.f32 0.0, %v6355
    %v6357 = vpop.f32.mrb[0].mxu0
    %6358 = vmatprep.mubr.f32.mxu0 0.0
    %6359 = vmatmul.mubr.f32.gmra.mrb[0].mxu0 %v6035
    %v6360 = vpop.f32.mrb[0].mxu0
    %v6361 = vadd.f32 0.0, %v6360
    %v6362 = vpop.f32.mrb[0].mxu0
    %6363 = vmatprep.mubr.f32.mxu0 0.0
    %6364 = vmatmul.mubr.f32.gmra.mrb[0].mxu0 %v6038
    %v6365 = vpop.f32.mrb[0].mxu0
    %v6366 = vadd.f32 0.0, %v6365
    %v6367 = vpop.f32.mrb[0].mxu0
    %6368 = vmatprep.mubr.f32.mxu0 0.0
    %6369 = vmatmul.mubr.f32.gmra.mrb[0].mxu0 %v6041
    %v6370 = vpop.f32.mrb[0].mxu0
    %v6371 = vadd.f32 0.0, %v6370
    %v6372 = vpop.f32.mrb[0].mxu0
    %6373 = vmatprep.mubr.f32.mxu0 0.0
    %6374 = vmatmul.mubr.f32.gmra.mrb[0].mxu0 %v6044
    %v6375 = vpop.f32.mrb[0].mxu0
    %v6376 = vadd.f32 0.0, %v6375
    %v6377 = vpop.f32.mrb[0].mxu0
    %6378 = vmatprep.mubr.f32.mxu0 0.0
    %6379 = vmatmul.mubr.f32.gmra.mrb[0].mxu0 %v6047
    %v6380 = vpop.f32.mrb[0].mxu0
    %v6381 = vadd.f32 0.0, %v6380
    %v6382 = vpop.f32.mrb[0].mxu0
    %6383 = vmatprep.mubr.f32.mxu0 0.0
    %6384 = vmatmul.mubr.f32.gmra.mrb[0].mxu0 %v6050
    %v6385 = vpop.f32.mrb[0].mxu0
    %v6386 = vadd.f32 0.0, %v6385
    %v6387 = vpop.f32.mrb[0].mxu0
    %6388 = vmatprep.mubr.f32.mxu0 0.0
    %6389 = vmatmul.mubr.f32.gmra.mrb[0].mxu0 %v6053
    %v6390 = vpop.f32.mrb[0].mxu0
    %v6391 = vadd.f32 0.0, %v6390
    %v6392 = vpop.f32.mrb[0].mxu0
    %6393 = vmatprep.mubr.f32.mxu0 0.0
    %6394 = vmatmul.mubr.f32.gmra.mrb[0].mxu0 %v6056
    %v6395 = vpop.f32.mrb[0].mxu0
    %v6396 = vadd.f32 0.0, %v6395
    %v6397 = vpop.f32.mrb[0].mxu0
    %6398 = vmatprep.mubr.f32.mxu0 0.0
    %6399 = vmatmul.mubr.f32.gmra.mrb[0].mxu0 %v6059
    %v6400 = vpop.f32.mrb[0].mxu0
    %v6401 = vadd.f32 0.0, %v6400
    %v6402 = vpop.f32.mrb[0].mxu0
    %6403 = vmatprep.mubr.f32.mxu0 0.0
    %6404 = vmatmul.mubr.f32.gmra.mrb[0].mxu0 %v6062
    %v6405 = vpop.f32.mrb[0].mxu0
    %v6406 = vadd.f32 0.0, %v6405
    %v6407 = vpop.f32.mrb[0].mxu0
    %6408 = vmatprep.mubr.f32.mxu0 0.0
    %6409 = vmatmul.mubr.f32.gmra.mrb[0].mxu0 %v6065
    %v6410 = vpop.f32.mrb[0].mxu0
    %v6411 = vadd.f32 0.0, %v6410
    %v6412 = vpop.f32.mrb[0].mxu0
    %6413 = vmatprep.mubr.f32.mxu0 0.0
    %6414 = vmatmul.mubr.f32.gmra.mrb[0].mxu0 %v6068
    %v6415 = vpop.f32.mrb[0].mxu0
    %v6416 = vadd.f32 0.0, %v6415
    %v6417 = vpop.f32.mrb[0].mxu0
    %6418 = vmatprep.mubr.f32.mxu0 0.0
    %6419 = vmatmul.mubr.f32.gmra.mrb[0].mxu0 %v6071
    %v6420 = vpop.f32.mrb[0].mxu0
    %v6421 = vadd.f32 0.0, %v6420
    %v6422 = vpop.f32.mrb[0].mxu0
    %6423 = vmatprep.mubr.f32.mxu0 0.0
    %6424 = vmatmul.mubr.f32.gmra.mrb[0].mxu0 %v6074
    %v6425 = vpop.f32.mrb[0].mxu0
    %v6426 = vadd.f32 0.0, %v6425
    %v6427 = vpop.f32.mrb[0].mxu0
    %6428 = vmatprep.mubr.f32.mxu0 0.0
    %6429 = vmatmul.mubr.f32.gmra.mrb[0].mxu0 %v6077
    %v6430 = vpop.f32.mrb[0].mxu0
    %v6431 = vadd.f32 0.0, %v6430
    %v6432 = vpop.f32.mrb[0].mxu0
    %6433 = vmatprep.mubr.f32.mxu0 0.0
    %6434 = vmatmul.mubr.f32.gmra.mrb[0].mxu0 %v6080
    %v6435 = vpop.f32.mrb[0].mxu0
    %v6436 = vadd.f32 0.0, %v6435
    %v6437 = vpop.f32.mrb[0].mxu0
    %6438 = vmatprep.mubr.f32.mxu0 0.0
    %6439 = vmatmul.mubr.f32.gmra.mrb[0].mxu0 %v6083
    %v6440 = vpop.f32.mrb[0].mxu0
    %v6441 = vadd.f32 0.0, %v6440
    %v6442 = vpop.f32.mrb[0].mxu0
    %6443 = vmatprep.mubr.f32.mxu0 0.0
    %6444 = vmatmul.mubr.f32.gmra.mrb[0].mxu0 %v6086
    %v6445 = vpop.f32.mrb[0].mxu0
    %v6446 = vadd.f32 0.0, %v6445
    %v6447 = vpop.f32.mrb[0].mxu0
    %6448 = vmatprep.mubr.f32.mxu0 0.0
    %6449 = vmatmul.mubr.f32.gmra.mrb[0].mxu0 %v6089
    %v6450 = vpop.f32.mrb[0].mxu0
    %v6451 = vadd.f32 0.0, %v6450
    %v6452 = vpop.f32.mrb[0].mxu0
    %6453 = vmatprep.mubr.f32.mxu0 0.0
    %6454 = vmatmul.mubr.f32.gmra.mrb[0].mxu0 %v6092
    %v6455 = vpop.f32.mrb[0].mxu0
    %v6456 = vadd.f32 0.0, %v6455
    %v6457 = vpop.f32.mrb[0].mxu0
    %6458 = vmatprep.mubr.f32.mxu0 0.0
    %6459 = vmatmul.mubr.f32.gmra.mrb[0].mxu0 %v6095
    %v6460 = vpop.f32.mrb[0].mxu0
    %v6461 = vadd.f32 0.0, %v6460
    %v6462 = vpop.f32.mrb[0].mxu0
    %6463 = vmatprep.mubr.f32.mxu0 0.0
    %6464 = vmatmul.mubr.f32.gmra.mrb[0].mxu0 %v6098
    %v6465 = vpop.f32.mrb[0].mxu0
    %v6466 = vadd.f32 0.0, %v6465
    %v6467 = vpop.f32.mrb[0].mxu0
    %6468 = vmatprep.mubr.f32.mxu0 0.0
    %6469 = vmatmul.mubr.f32.gmra.mrb[0].mxu0 %v6101
    %v6470 = vpop.f32.mrb[0].mxu0
    %v6471 = vadd.f32 0.0, %v6470
    %v6472 = vpop.f32.mrb[0].mxu0
    %6473 = vmatprep.mubr.f32.mxu0 0.0
    %6474 = vmatmul.mubr.f32.gmra.mrb[0].mxu0 %v6104
    %v6475 = vpop.f32.mrb[0].mxu0
    %v6476 = vadd.f32 0.0, %v6475
    %v6477 = vpop.f32.mrb[0].mxu0
    %6478 = vmatprep.mubr.f32.mxu0 0.0
    %6479 = vmatmul.mubr.f32.gmra.mrb[0].mxu0 %v6107
    %v6480 = vpop.f32.mrb[0].mxu0
    %v6481 = vadd.f32 0.0, %v6480
    %v6482 = vpop.f32.mrb[0].mxu0
    %6483 = vmatprep.mubr.f32.mxu0 0.0
    %6484 = vmatmul.mubr.f32.gmra.mrb[0].mxu0 %v6110
    %v6485 = vpop.f32.mrb[0].mxu0
    %v6486 = vadd.f32 0.0, %v6485
    %v6487 = vpop.f32.mrb[0].mxu0
    %6488 = vmatprep.mubr.f32.mxu0 0.0
    %6489 = vmatmul.mubr.f32.gmra.mrb[0].mxu0 %v6113
    %v6490 = vpop.f32.mrb[0].mxu0
    %v6491 = vadd.f32 0.0, %v6490
    %v6492 = vpop.f32.mrb[0].mxu0
    %6493 = vmatprep.mubr.f32.mxu0 0.0
    %6494 = vmatmul.mubr.f32.gmra.mrb[0].mxu0 %v6116
    %v6495 = vpop.f32.mrb[0].mxu0
    %v6496 = vadd.f32 0.0, %v6495
    %v6497 = vpop.f32.mrb[0].mxu0
    %6498 = vmatprep.mubr.f32.mxu0 0.0
    %6499 = vmatmul.mubr.f32.gmra.mrb[0].mxu0 %v6119
    %v6500 = vpop.f32.mrb[0].mxu0
    %v6501 = vadd.f32 0.0, %v6500
    %v6502 = vpop.f32.mrb[0].mxu0
    %6503 = vmatprep.mubr.f32.mxu0 0.0
    %6504 = vmatmul.mubr.f32.gmra.mrb[0].mxu0 %v6122
    %v6505 = vpop.f32.mrb[0].mxu0
    %v6506 = vadd.f32 0.0, %v6505
    %v6507 = vpop.f32.mrb[0].mxu0
    %6508 = vdwg.mxu0
    %v6509 = vadd.f32 %v5802, %v6191
    %v6510 = vadd.f32 %v5803, %v6196
    %v6511 = vadd.f32 %v5804, %v6201
    %v6512 = vadd.f32 %v5805, %v6206
    %v6513 = vadd.f32 %v5806, %v6211
    %v6514 = vadd.f32 %v5807, %v6216
    %v6515 = vadd.f32 %v5808, %v6221
    %v6516 = vadd.f32 %v5809, %v6226
    %v6517 = vadd.f32 %v5810, %v6231
    %v6518 = vadd.f32 %v5811, %v6236
    %v6519 = vadd.f32 %v5812, %v6241
    %v6520 = vadd.f32 %v5813, %v6246
    %v6521 = vadd.f32 %v5814, %v6251
    %v6522 = vadd.f32 %v5815, %v6256
    %v6523 = vadd.f32 %v5816, %v6261
    %v6524 = vadd.f32 %v5817, %v6266
    %v6525 = vadd.f32 %v5818, %v6271
    %v6526 = vadd.f32 %v5819, %v6276
    %v6527 = vadd.f32 %v5820, %v6281
    %v6528 = vadd.f32 %v5821, %v6286
    %v6529 = vadd.f32 %v5822, %v6291
    %v6530 = vadd.f32 %v5823, %v6296
    %v6531 = vadd.f32 %v5824, %v6301
    %v6532 = vadd.f32 %v5825, %v6306
    %v6533 = vadd.f32 %v5826, %v6311
    %v6534 = vadd.f32 %v5827, %v6316
    %v6535 = vadd.f32 %v5828, %v6321
    %v6536 = vadd.f32 %v5829, %v6326
    %v6537 = vadd.f32 %v5830, %v6331
    %v6538 = vadd.f32 %v5831, %v6336
    %v6539 = vadd.f32 %v5832, %v6341
    %v6540 = vadd.f32 %v5833, %v6346
    %v6541 = vadd.f32 %v5834, %v6351
    %v6542 = vadd.f32 %v5835, %v6356
    %v6543 = vadd.f32 %v5836, %v6361
    %v6544 = vadd.f32 %v5837, %v6366
    %v6545 = vadd.f32 %v5838, %v6371
    %v6546 = vadd.f32 %v5839, %v6376
    %v6547 = vadd.f32 %v5840, %v6381
    %v6548 = vadd.f32 %v5841, %v6386
    %v6549 = vadd.f32 %v5842, %v6391
    %v6550 = vadd.f32 %v5843, %v6396
    %v6551 = vadd.f32 %v5844, %v6401
    %v6552 = vadd.f32 %v5845, %v6406
    %v6553 = vadd.f32 %v5846, %v6411
    %v6554 = vadd.f32 %v5847, %v6416
    %v6555 = vadd.f32 %v5848, %v6421
    %v6556 = vadd.f32 %v5849, %v6426
    %v6557 = vadd.f32 %v5850, %v6431
    %v6558 = vadd.f32 %v5851, %v6436
    %v6559 = vadd.f32 %v5852, %v6441
    %v6560 = vadd.f32 %v5853, %v6446
    %v6561 = vadd.f32 %v5854, %v6451
    %v6562 = vadd.f32 %v5855, %v6456
    %v6563 = vadd.f32 %v5856, %v6461
    %v6564 = vadd.f32 %v5857, %v6466
    %v6565 = vadd.f32 %v5858, %v6471
    %v6566 = vadd.f32 %v5859, %v6476
    %v6567 = vadd.f32 %v5860, %v6481
    %v6568 = vadd.f32 %v5861, %v6486
    %v6569 = vadd.f32 %v5862, %v6491
    %v6570 = vadd.f32 %v5863, %v6496
    %v6571 = vadd.f32 %v5864, %v6501
    %v6572 = vadd.f32 %v5865, %v6506
    %s6573 = scalar_lea.vmem [#allocation2], 128
    %v6574 = vld [vmem:[%s6573 + $0x6] sm:$0xff]
    %v6575 = vld [vmem:[%s6573 + $0xe] sm:$0xff]
    %v6576 = vld [vmem:[%s6573 + $0x26] sm:$0xff]
    %v6577 = vld [vmem:[%s6573 + $0x2e] sm:$0xff]
    %v6578 = vld [vmem:[%s6573 + $0x46] sm:$0xff]
    %v6579 = vld [vmem:[%s6573 + $0x4e] sm:$0xff]
    %v6580 = vld [vmem:[%s6573 + $0x66] sm:$0xff]
    %v6581 = vld [vmem:[%s6573 + $0x6e] sm:$0xff]
    %v6582 = vld [vmem:[%s6573 + $0x86] sm:$0xff]
    %v6583 = vld [vmem:[%s6573 + $0x8e] sm:$0xff]
    %v6584 = vld [vmem:[%s6573 + $0xa6] sm:$0xff]
    %v6585 = vld [vmem:[%s6573 + $0xae] sm:$0xff]
    %v6586 = vld [vmem:[%s6573 + $0xc6] sm:$0xff]
    %v6587 = vld [vmem:[%s6573 + $0xce] sm:$0xff]
    %v6588 = vld [vmem:[%s6573 + $0xe6] sm:$0xff]
    %v6589 = vld [vmem:[%s6573 + $0xee] sm:$0xff]
    %v6590 = vld [vmem:[%s6573 + $0x106] sm:$0xff]
    %v6591 = vld [vmem:[%s6573 + $0x10e] sm:$0xff]
    %v6592 = vld [vmem:[%s6573 + $0x126] sm:$0xff]
    %v6593 = vld [vmem:[%s6573 + $0x12e] sm:$0xff]
    %v6594 = vld [vmem:[%s6573 + $0x146] sm:$0xff]
    %v6595 = vld [vmem:[%s6573 + $0x14e] sm:$0xff]
    %v6596 = vld [vmem:[%s6573 + $0x166] sm:$0xff]
    %v6597 = vld [vmem:[%s6573 + $0x16e] sm:$0xff]
    %v6598 = vld [vmem:[%s6573 + $0x186] sm:$0xff]
    %v6599 = vld [vmem:[%s6573 + $0x18e] sm:$0xff]
    %v6600 = vld [vmem:[%s6573 + $0x1a6] sm:$0xff]
    %v6601 = vld [vmem:[%s6573 + $0x1ae] sm:$0xff]
    %v6602 = vld [vmem:[%s6573 + $0x1c6] sm:$0xff]
    %v6603 = vld [vmem:[%s6573 + $0x1ce] sm:$0xff]
    %v6604 = vld [vmem:[%s6573 + $0x1e6] sm:$0xff]
    %v6605 = vld [vmem:[%s6573 + $0x1ee] sm:$0xff]
    %v6606 = vld [vmem:[%s6573 + $0x286] sm:$0xff]
    %v6607 = vld [vmem:[%s6573 + $0x28e] sm:$0xff]
    %v6608 = vld [vmem:[%s6573 + $0x2a6] sm:$0xff]
    %v6609 = vld [vmem:[%s6573 + $0x2ae] sm:$0xff]
    %v6610 = vld [vmem:[%s6573 + $0x2c6] sm:$0xff]
    %v6611 = vld [vmem:[%s6573 + $0x2ce] sm:$0xff]
    %v6612 = vld [vmem:[%s6573 + $0x2e6] sm:$0xff]
    %v6613 = vld [vmem:[%s6573 + $0x2ee] sm:$0xff]
    %v6614 = vld [vmem:[%s6573 + $0x306] sm:$0xff]
    %v6615 = vld [vmem:[%s6573 + $0x30e] sm:$0xff]
    %v6616 = vld [vmem:[%s6573 + $0x326] sm:$0xff]
    %v6617 = vld [vmem:[%s6573 + $0x32e] sm:$0xff]
    %v6618 = vld [vmem:[%s6573 + $0x346] sm:$0xff]
    %v6619 = vld [vmem:[%s6573 + $0x34e] sm:$0xff]
    %v6620 = vld [vmem:[%s6573 + $0x366] sm:$0xff]
    %v6621 = vld [vmem:[%s6573 + $0x36e] sm:$0xff]
    %v6622 = vld [vmem:[%s6573 + $0x386] sm:$0xff]
    %v6623 = vld [vmem:[%s6573 + $0x38e] sm:$0xff]
    %v6624 = vld [vmem:[%s6573 + $0x3a6] sm:$0xff]
    %v6625 = vld [vmem:[%s6573 + $0x3ae] sm:$0xff]
    %v6626 = vld [vmem:[%s6573 + $0x3c6] sm:$0xff]
    %v6627 = vld [vmem:[%s6573 + $0x3ce] sm:$0xff]
    %v6628 = vld [vmem:[%s6573 + $0x3e6] sm:$0xff]
    %v6629 = vld [vmem:[%s6573 + $0x3ee] sm:$0xff]
    %v6630 = vld [vmem:[%s6573 + $0x406] sm:$0xff]
    %v6631 = vld [vmem:[%s6573 + $0x40e] sm:$0xff]
    %v6632 = vld [vmem:[%s6573 + $0x426] sm:$0xff]
    %v6633 = vld [vmem:[%s6573 + $0x42e] sm:$0xff]
    %v6634 = vld [vmem:[%s6573 + $0x446] sm:$0xff]
    %v6635 = vld [vmem:[%s6573 + $0x44e] sm:$0xff]
    %v6636 = vld [vmem:[%s6573 + $0x466] sm:$0xff]
    %v6637 = vld [vmem:[%s6573 + $0x46e] sm:$0xff]
    %s6638 = scalar_lea.vmem %s4, 48
    %v6639 = vld [vmem:[%s6638] sm:$0xff]
    %v6641 = vsel %vm1632, %v6574, 0
    %v6644 = vsel %vm1632, %v6575, 0
    %v6647 = vsel %vm1632, %v6576, 0
    %v6650 = vsel %vm1632, %v6577, 0
    %v6653 = vsel %vm1632, %v6578, 0
    %v6656 = vsel %vm1632, %v6579, 0
    %v6659 = vsel %vm1632, %v6580, 0
    %v6662 = vsel %vm1632, %v6581, 0
    %v6665 = vsel %vm1632, %v6582, 0
    %v6668 = vsel %vm1632, %v6583, 0
    %v6671 = vsel %vm1632, %v6584, 0
    %v6674 = vsel %vm1632, %v6585, 0
    %v6677 = vsel %vm1632, %v6586, 0
    %v6680 = vsel %vm1632, %v6587, 0
    %v6683 = vsel %vm1632, %v6588, 0
    %v6686 = vsel %vm1632, %v6589, 0
    %v6689 = vsel %vm1632, %v6590, 0
    %v6692 = vsel %vm1632, %v6591, 0
    %v6695 = vsel %vm1632, %v6592, 0
    %v6698 = vsel %vm1632, %v6593, 0
    %v6701 = vsel %vm1632, %v6594, 0
    %v6704 = vsel %vm1632, %v6595, 0
    %v6707 = vsel %vm1632, %v6596, 0
    %v6710 = vsel %vm1632, %v6597, 0
    %v6713 = vsel %vm1632, %v6598, 0
    %v6716 = vsel %vm1632, %v6599, 0
    %v6719 = vsel %vm1632, %v6600, 0
    %v6722 = vsel %vm1632, %v6601, 0
    %v6725 = vsel %vm1632, %v6602, 0
    %v6728 = vsel %vm1632, %v6603, 0
    %v6731 = vsel %vm1632, %v6604, 0
    %v6734 = vsel %vm1632, %v6605, 0
    %v6737 = vsel %vm1632, %v6606, 0
    %v6740 = vsel %vm1632, %v6607, 0
    %v6743 = vsel %vm1632, %v6608, 0
    %v6746 = vsel %vm1632, %v6609, 0
    %v6749 = vsel %vm1632, %v6610, 0
    %v6752 = vsel %vm1632, %v6611, 0
    %v6755 = vsel %vm1632, %v6612, 0
    %v6758 = vsel %vm1632, %v6613, 0
    %v6761 = vsel %vm1632, %v6614, 0
    %v6764 = vsel %vm1632, %v6615, 0
    %v6767 = vsel %vm1632, %v6616, 0
    %v6770 = vsel %vm1632, %v6617, 0
    %v6773 = vsel %vm1632, %v6618, 0
    %v6776 = vsel %vm1632, %v6619, 0
    %v6779 = vsel %vm1632, %v6620, 0
    %v6782 = vsel %vm1632, %v6621, 0
    %v6785 = vsel %vm1632, %v6622, 0
    %v6788 = vsel %vm1632, %v6623, 0
    %v6791 = vsel %vm1632, %v6624, 0
    %v6794 = vsel %vm1632, %v6625, 0
    %v6797 = vsel %vm1632, %v6626, 0
    %v6800 = vsel %vm1632, %v6627, 0
    %v6803 = vsel %vm1632, %v6628, 0
    %v6806 = vsel %vm1632, %v6629, 0
    %v6809 = vsel %vm1632, %v6630, 0
    %v6812 = vsel %vm1632, %v6631, 0
    %v6815 = vsel %vm1632, %v6632, 0
    %v6818 = vsel %vm1632, %v6633, 0
    %v6821 = vsel %vm1632, %v6634, 0
    %v6824 = vsel %vm1632, %v6635, 0
    %v6827 = vsel %vm1632, %v6636, 0
    %v6830 = vsel %vm1632, %v6637, 0
    %6832 = vmatprep.subr.mxu0 0.0
    %6833 = vmatpush1.msra.mxu0 %v6639
    %6834 = vmatprep.subr.mxu0 0.0
    %6835 = vmatpush1.msra.mxu0 0.0
    %6836 = vmatprep.subr.mxu0 0.0
    %6837 = vmatpush1.msra.mxu0 0.0
    %6838 = vmatprep.subr.mxu0 0.0
    %6839 = vmatpush1.msra.mxu0 0.0
    %6840 = vmatprep.subr.mxu0 0.0
    %6841 = vmatpush1.msra.mxu0 0.0
    %6842 = vmatprep.subr.mxu0 0.0
    %6843 = vmatpush1.msra.mxu0 0.0
    %6844 = vmatprep.subr.mxu0 0.0
    %6845 = vmatpush1.msra.mxu0 0.0
    %6846 = vmatprep.subr.mxu0 0.0
    %6847 = vmatpush1.msra.mxu0 0.0
    %6848 = vmatprep.subr.mxu0 0.0
    %6849 = vmatpush1.msra.mxu0 0.0
    %6850 = vmatprep.subr.mxu0 0.0
    %6851 = vmatpush1.msra.mxu0 0.0
    %6852 = vmatprep.subr.mxu0 0.0
    %6853 = vmatpush1.msra.mxu0 0.0
    %6854 = vmatprep.subr.mxu0 0.0
    %6855 = vmatpush1.msra.mxu0 0.0
    %6856 = vmatprep.subr.mxu0 0.0
    %6857 = vmatpush1.msra.mxu0 0.0
    %6858 = vmatprep.subr.mxu0 0.0
    %6859 = vmatpush1.msra.mxu0 0.0
    %6860 = vmatprep.subr.mxu0 0.0
    %6861 = vmatpush1.msra.mxu0 0.0
    %6862 = vmatprep.subr.mxu0 0.0
    %6863 = vmatpush1.msra.mxu0 0.0
    %6864 = vmatprep.subr.mxu0 0.0
    %6865 = vmatpush1.msra.mxu0 0.0
    %6866 = vmatprep.subr.mxu0 0.0
    %6867 = vmatpush1.msra.mxu0 0.0
    %6868 = vmatprep.subr.mxu0 0.0
    %6869 = vmatpush1.msra.mxu0 0.0
    %6870 = vmatprep.subr.mxu0 0.0
    %6871 = vmatpush1.msra.mxu0 0.0
    %6872 = vmatprep.subr.mxu0 0.0
    %6873 = vmatpush1.msra.mxu0 0.0
    %6874 = vmatprep.subr.mxu0 0.0
    %6875 = vmatpush1.msra.mxu0 0.0
    %6876 = vmatprep.subr.mxu0 0.0
    %6877 = vmatpush1.msra.mxu0 0.0
    %6878 = vmatprep.subr.mxu0 0.0
    %6879 = vmatpush1.msra.mxu0 0.0
    %6880 = vmatprep.subr.mxu0 0.0
    %6881 = vmatpush1.msra.mxu0 0.0
    %6882 = vmatprep.subr.mxu0 0.0
    %6883 = vmatpush1.msra.mxu0 0.0
    %6884 = vmatprep.subr.mxu0 0.0
    %6885 = vmatpush1.msra.mxu0 0.0
    %6886 = vmatprep.subr.mxu0 0.0
    %6887 = vmatpush1.msra.mxu0 0.0
    %6888 = vmatprep.subr.mxu0 0.0
    %6889 = vmatpush1.msra.mxu0 0.0
    %6890 = vmatprep.subr.mxu0 0.0
    %6891 = vmatpush1.msra.mxu0 0.0
    %6892 = vmatprep.subr.mxu0 0.0
    %6893 = vmatpush1.msra.mxu0 0.0
    %6894 = vmatprep.subr.mxu0 0.0
    %6895 = vmatpush1.msra.mxu0 0.0
    %6896 = vmatprep.mubr.f32.mxu0 0.0
    %6897 = vmatmul.mubr.f32.gmra.mrb[0].mxu0 %v6641
    %v6898 = vpop.f32.mrb[0].mxu0
    %v6899 = vadd.f32 0.0, %v6898
    %v6900 = vpop.f32.mrb[0].mxu0
    %6901 = vmatprep.mubr.f32.mxu0 0.0
    %6902 = vmatmul.mubr.f32.gmra.mrb[0].mxu0 %v6644
    %v6903 = vpop.f32.mrb[0].mxu0
    %v6904 = vadd.f32 0.0, %v6903
    %v6905 = vpop.f32.mrb[0].mxu0
    %6906 = vmatprep.mubr.f32.mxu0 0.0
    %6907 = vmatmul.mubr.f32.gmra.mrb[0].mxu0 %v6647
    %v6908 = vpop.f32.mrb[0].mxu0
    %v6909 = vadd.f32 0.0, %v6908
    %v6910 = vpop.f32.mrb[0].mxu0
    %6911 = vmatprep.mubr.f32.mxu0 0.0
    %6912 = vmatmul.mubr.f32.gmra.mrb[0].mxu0 %v6650
    %v6913 = vpop.f32.mrb[0].mxu0
    %v6914 = vadd.f32 0.0, %v6913
    %v6915 = vpop.f32.mrb[0].mxu0
    %6916 = vmatprep.mubr.f32.mxu0 0.0
    %6917 = vmatmul.mubr.f32.gmra.mrb[0].mxu0 %v6653
    %v6918 = vpop.f32.mrb[0].mxu0
    %v6919 = vadd.f32 0.0, %v6918
    %v6920 = vpop.f32.mrb[0].mxu0
    %6921 = vmatprep.mubr.f32.mxu0 0.0
    %6922 = vmatmul.mubr.f32.gmra.mrb[0].mxu0 %v6656
    %v6923 = vpop.f32.mrb[0].mxu0
    %v6924 = vadd.f32 0.0, %v6923
    %v6925 = vpop.f32.mrb[0].mxu0
    %6926 = vmatprep.mubr.f32.mxu0 0.0
    %6927 = vmatmul.mubr.f32.gmra.mrb[0].mxu0 %v6659
    %v6928 = vpop.f32.mrb[0].mxu0
    %v6929 = vadd.f32 0.0, %v6928
    %v6930 = vpop.f32.mrb[0].mxu0
    %6931 = vmatprep.mubr.f32.mxu0 0.0
    %6932 = vmatmul.mubr.f32.gmra.mrb[0].mxu0 %v6662
    %v6933 = vpop.f32.mrb[0].mxu0
    %v6934 = vadd.f32 0.0, %v6933
    %v6935 = vpop.f32.mrb[0].mxu0
    %6936 = vmatprep.mubr.f32.mxu0 0.0
    %6937 = vmatmul.mubr.f32.gmra.mrb[0].mxu0 %v6665
    %v6938 = vpop.f32.mrb[0].mxu0
    %v6939 = vadd.f32 0.0, %v6938
    %v6940 = vpop.f32.mrb[0].mxu0
    %6941 = vmatprep.mubr.f32.mxu0 0.0
    %6942 = vmatmul.mubr.f32.gmra.mrb[0].mxu0 %v6668
    %v6943 = vpop.f32.mrb[0].mxu0
    %v6944 = vadd.f32 0.0, %v6943
    %v6945 = vpop.f32.mrb[0].mxu0
    %6946 = vmatprep.mubr.f32.mxu0 0.0
    %6947 = vmatmul.mubr.f32.gmra.mrb[0].mxu0 %v6671
    %v6948 = vpop.f32.mrb[0].mxu0
    %v6949 = vadd.f32 0.0, %v6948
    %v6950 = vpop.f32.mrb[0].mxu0
    %6951 = vmatprep.mubr.f32.mxu0 0.0
    %6952 = vmatmul.mubr.f32.gmra.mrb[0].mxu0 %v6674
    %v6953 = vpop.f32.mrb[0].mxu0
    %v6954 = vadd.f32 0.0, %v6953
    %v6955 = vpop.f32.mrb[0].mxu0
    %6956 = vmatprep.mubr.f32.mxu0 0.0
    %6957 = vmatmul.mubr.f32.gmra.mrb[0].mxu0 %v6677
    %v6958 = vpop.f32.mrb[0].mxu0
    %v6959 = vadd.f32 0.0, %v6958
    %v6960 = vpop.f32.mrb[0].mxu0
    %6961 = vmatprep.mubr.f32.mxu0 0.0
    %6962 = vmatmul.mubr.f32.gmra.mrb[0].mxu0 %v6680
    %v6963 = vpop.f32.mrb[0].mxu0
    %v6964 = vadd.f32 0.0, %v6963
    %v6965 = vpop.f32.mrb[0].mxu0
    %6966 = vmatprep.mubr.f32.mxu0 0.0
    %6967 = vmatmul.mubr.f32.gmra.mrb[0].mxu0 %v6683
    %v6968 = vpop.f32.mrb[0].mxu0
    %v6969 = vadd.f32 0.0, %v6968
    %v6970 = vpop.f32.mrb[0].mxu0
    %6971 = vmatprep.mubr.f32.mxu0 0.0
    %6972 = vmatmul.mubr.f32.gmra.mrb[0].mxu0 %v6686
    %v6973 = vpop.f32.mrb[0].mxu0
    %v6974 = vadd.f32 0.0, %v6973
    %v6975 = vpop.f32.mrb[0].mxu0
    %6976 = vmatprep.mubr.f32.mxu0 0.0
    %6977 = vmatmul.mubr.f32.gmra.mrb[0].mxu0 %v6689
    %v6978 = vpop.f32.mrb[0].mxu0
    %v6979 = vadd.f32 0.0, %v6978
    %v6980 = vpop.f32.mrb[0].mxu0
    %6981 = vmatprep.mubr.f32.mxu0 0.0
    %6982 = vmatmul.mubr.f32.gmra.mrb[0].mxu0 %v6692
    %v6983 = vpop.f32.mrb[0].mxu0
    %v6984 = vadd.f32 0.0, %v6983
    %v6985 = vpop.f32.mrb[0].mxu0
    %6986 = vmatprep.mubr.f32.mxu0 0.0
    %6987 = vmatmul.mubr.f32.gmra.mrb[0].mxu0 %v6695
    %v6988 = vpop.f32.mrb[0].mxu0
    %v6989 = vadd.f32 0.0, %v6988
    %v6990 = vpop.f32.mrb[0].mxu0
    %6991 = vmatprep.mubr.f32.mxu0 0.0
    %6992 = vmatmul.mubr.f32.gmra.mrb[0].mxu0 %v6698
    %v6993 = vpop.f32.mrb[0].mxu0
    %v6994 = vadd.f32 0.0, %v6993
    %v6995 = vpop.f32.mrb[0].mxu0
    %6996 = vmatprep.mubr.f32.mxu0 0.0
    %6997 = vmatmul.mubr.f32.gmra.mrb[0].mxu0 %v6701
    %v6998 = vpop.f32.mrb[0].mxu0
    %v6999 = vadd.f32 0.0, %v6998
    %v7000 = vpop.f32.mrb[0].mxu0
    %7001 = vmatprep.mubr.f32.mxu0 0.0
    %7002 = vmatmul.mubr.f32.gmra.mrb[0].mxu0 %v6704
    %v7003 = vpop.f32.mrb[0].mxu0
    %v7004 = vadd.f32 0.0, %v7003
    %v7005 = vpop.f32.mrb[0].mxu0
    %7006 = vmatprep.mubr.f32.mxu0 0.0
    %7007 = vmatmul.mubr.f32.gmra.mrb[0].mxu0 %v6707
    %v7008 = vpop.f32.mrb[0].mxu0
    %v7009 = vadd.f32 0.0, %v7008
    %v7010 = vpop.f32.mrb[0].mxu0
    %7011 = vmatprep.mubr.f32.mxu0 0.0
    %7012 = vmatmul.mubr.f32.gmra.mrb[0].mxu0 %v6710
    %v7013 = vpop.f32.mrb[0].mxu0
    %v7014 = vadd.f32 0.0, %v7013
    %v7015 = vpop.f32.mrb[0].mxu0
    %7016 = vmatprep.mubr.f32.mxu0 0.0
    %7017 = vmatmul.mubr.f32.gmra.mrb[0].mxu0 %v6713
    %v7018 = vpop.f32.mrb[0].mxu0
    %v7019 = vadd.f32 0.0, %v7018
    %v7020 = vpop.f32.mrb[0].mxu0
    %7021 = vmatprep.mubr.f32.mxu0 0.0
    %7022 = vmatmul.mubr.f32.gmra.mrb[0].mxu0 %v6716
    %v7023 = vpop.f32.mrb[0].mxu0
    %v7024 = vadd.f32 0.0, %v7023
    %v7025 = vpop.f32.mrb[0].mxu0
    %7026 = vmatprep.mubr.f32.mxu0 0.0
    %7027 = vmatmul.mubr.f32.gmra.mrb[0].mxu0 %v6719
    %v7028 = vpop.f32.mrb[0].mxu0
    %v7029 = vadd.f32 0.0, %v7028
    %v7030 = vpop.f32.mrb[0].mxu0
    %7031 = vmatprep.mubr.f32.mxu0 0.0
    %7032 = vmatmul.mubr.f32.gmra.mrb[0].mxu0 %v6722
    %v7033 = vpop.f32.mrb[0].mxu0
    %v7034 = vadd.f32 0.0, %v7033
    %v7035 = vpop.f32.mrb[0].mxu0
    %7036 = vmatprep.mubr.f32.mxu0 0.0
    %7037 = vmatmul.mubr.f32.gmra.mrb[0].mxu0 %v6725
    %v7038 = vpop.f32.mrb[0].mxu0
    %v7039 = vadd.f32 0.0, %v7038
    %v7040 = vpop.f32.mrb[0].mxu0
    %7041 = vmatprep.mubr.f32.mxu0 0.0
    %7042 = vmatmul.mubr.f32.gmra.mrb[0].mxu0 %v6728
    %v7043 = vpop.f32.mrb[0].mxu0
    %v7044 = vadd.f32 0.0, %v7043
    %v7045 = vpop.f32.mrb[0].mxu0
    %7046 = vmatprep.mubr.f32.mxu0 0.0
    %7047 = vmatmul.mubr.f32.gmra.mrb[0].mxu0 %v6731
    %v7048 = vpop.f32.mrb[0].mxu0
    %v7049 = vadd.f32 0.0, %v7048
    %v7050 = vpop.f32.mrb[0].mxu0
    %7051 = vmatprep.mubr.f32.mxu0 0.0
    %7052 = vmatmul.mubr.f32.gmra.mrb[0].mxu0 %v6734
    %v7053 = vpop.f32.mrb[0].mxu0
    %v7054 = vadd.f32 0.0, %v7053
    %v7055 = vpop.f32.mrb[0].mxu0
    %7056 = vmatprep.mubr.f32.mxu0 0.0
    %7057 = vmatmul.mubr.f32.gmra.mrb[0].mxu0 %v6737
    %v7058 = vpop.f32.mrb[0].mxu0
    %v7059 = vadd.f32 0.0, %v7058
    %v7060 = vpop.f32.mrb[0].mxu0
    %7061 = vmatprep.mubr.f32.mxu0 0.0
    %7062 = vmatmul.mubr.f32.gmra.mrb[0].mxu0 %v6740
    %v7063 = vpop.f32.mrb[0].mxu0
    %v7064 = vadd.f32 0.0, %v7063
    %v7065 = vpop.f32.mrb[0].mxu0
    %7066 = vmatprep.mubr.f32.mxu0 0.0
    %7067 = vmatmul.mubr.f32.gmra.mrb[0].mxu0 %v6743
    %v7068 = vpop.f32.mrb[0].mxu0
    %v7069 = vadd.f32 0.0, %v7068
    %v7070 = vpop.f32.mrb[0].mxu0
    %7071 = vmatprep.mubr.f32.mxu0 0.0
    %7072 = vmatmul.mubr.f32.gmra.mrb[0].mxu0 %v6746
    %v7073 = vpop.f32.mrb[0].mxu0
    %v7074 = vadd.f32 0.0, %v7073
    %v7075 = vpop.f32.mrb[0].mxu0
    %7076 = vmatprep.mubr.f32.mxu0 0.0
    %7077 = vmatmul.mubr.f32.gmra.mrb[0].mxu0 %v6749
    %v7078 = vpop.f32.mrb[0].mxu0
    %v7079 = vadd.f32 0.0, %v7078
    %v7080 = vpop.f32.mrb[0].mxu0
    %7081 = vmatprep.mubr.f32.mxu0 0.0
    %7082 = vmatmul.mubr.f32.gmra.mrb[0].mxu0 %v6752
    %v7083 = vpop.f32.mrb[0].mxu0
    %v7084 = vadd.f32 0.0, %v7083
    %v7085 = vpop.f32.mrb[0].mxu0
    %7086 = vmatprep.mubr.f32.mxu0 0.0
    %7087 = vmatmul.mubr.f32.gmra.mrb[0].mxu0 %v6755
    %v7088 = vpop.f32.mrb[0].mxu0
    %v7089 = vadd.f32 0.0, %v7088
    %v7090 = vpop.f32.mrb[0].mxu0
    %7091 = vmatprep.mubr.f32.mxu0 0.0
    %7092 = vmatmul.mubr.f32.gmra.mrb[0].mxu0 %v6758
    %v7093 = vpop.f32.mrb[0].mxu0
    %v7094 = vadd.f32 0.0, %v7093
    %v7095 = vpop.f32.mrb[0].mxu0
    %7096 = vmatprep.mubr.f32.mxu0 0.0
    %7097 = vmatmul.mubr.f32.gmra.mrb[0].mxu0 %v6761
    %v7098 = vpop.f32.mrb[0].mxu0
    %v7099 = vadd.f32 0.0, %v7098
    %v7100 = vpop.f32.mrb[0].mxu0
    %7101 = vmatprep.mubr.f32.mxu0 0.0
    %7102 = vmatmul.mubr.f32.gmra.mrb[0].mxu0 %v6764
    %v7103 = vpop.f32.mrb[0].mxu0
    %v7104 = vadd.f32 0.0, %v7103
    %v7105 = vpop.f32.mrb[0].mxu0
    %7106 = vmatprep.mubr.f32.mxu0 0.0
    %7107 = vmatmul.mubr.f32.gmra.mrb[0].mxu0 %v6767
    %v7108 = vpop.f32.mrb[0].mxu0
    %v7109 = vadd.f32 0.0, %v7108
    %v7110 = vpop.f32.mrb[0].mxu0
    %7111 = vmatprep.mubr.f32.mxu0 0.0
    %7112 = vmatmul.mubr.f32.gmra.mrb[0].mxu0 %v6770
    %v7113 = vpop.f32.mrb[0].mxu0
    %v7114 = vadd.f32 0.0, %v7113
    %v7115 = vpop.f32.mrb[0].mxu0
    %7116 = vmatprep.mubr.f32.mxu0 0.0
    %7117 = vmatmul.mubr.f32.gmra.mrb[0].mxu0 %v6773
    %v7118 = vpop.f32.mrb[0].mxu0
    %v7119 = vadd.f32 0.0, %v7118
    %v7120 = vpop.f32.mrb[0].mxu0
    %7121 = vmatprep.mubr.f32.mxu0 0.0
    %7122 = vmatmul.mubr.f32.gmra.mrb[0].mxu0 %v6776
    %v7123 = vpop.f32.mrb[0].mxu0
    %v7124 = vadd.f32 0.0, %v7123
    %v7125 = vpop.f32.mrb[0].mxu0
    %7126 = vmatprep.mubr.f32.mxu0 0.0
    %7127 = vmatmul.mubr.f32.gmra.mrb[0].mxu0 %v6779
    %v7128 = vpop.f32.mrb[0].mxu0
    %v7129 = vadd.f32 0.0, %v7128
    %v7130 = vpop.f32.mrb[0].mxu0
    %7131 = vmatprep.mubr.f32.mxu0 0.0
    %7132 = vmatmul.mubr.f32.gmra.mrb[0].mxu0 %v6782
    %v7133 = vpop.f32.mrb[0].mxu0
    %v7134 = vadd.f32 0.0, %v7133
    %v7135 = vpop.f32.mrb[0].mxu0
    %7136 = vmatprep.mubr.f32.mxu0 0.0
    %7137 = vmatmul.mubr.f32.gmra.mrb[0].mxu0 %v6785
    %v7138 = vpop.f32.mrb[0].mxu0
    %v7139 = vadd.f32 0.0, %v7138
    %v7140 = vpop.f32.mrb[0].mxu0
    %7141 = vmatprep.mubr.f32.mxu0 0.0
    %7142 = vmatmul.mubr.f32.gmra.mrb[0].mxu0 %v6788
    %v7143 = vpop.f32.mrb[0].mxu0
    %v7144 = vadd.f32 0.0, %v7143
    %v7145 = vpop.f32.mrb[0].mxu0
    %7146 = vmatprep.mubr.f32.mxu0 0.0
    %7147 = vmatmul.mubr.f32.gmra.mrb[0].mxu0 %v6791
    %v7148 = vpop.f32.mrb[0].mxu0
    %v7149 = vadd.f32 0.0, %v7148
    %v7150 = vpop.f32.mrb[0].mxu0
    %7151 = vmatprep.mubr.f32.mxu0 0.0
    %7152 = vmatmul.mubr.f32.gmra.mrb[0].mxu0 %v6794
    %v7153 = vpop.f32.mrb[0].mxu0
    %v7154 = vadd.f32 0.0, %v7153
    %v7155 = vpop.f32.mrb[0].mxu0
    %7156 = vmatprep.mubr.f32.mxu0 0.0
    %7157 = vmatmul.mubr.f32.gmra.mrb[0].mxu0 %v6797
    %v7158 = vpop.f32.mrb[0].mxu0
    %v7159 = vadd.f32 0.0, %v7158
    %v7160 = vpop.f32.mrb[0].mxu0
    %7161 = vmatprep.mubr.f32.mxu0 0.0
    %7162 = vmatmul.mubr.f32.gmra.mrb[0].mxu0 %v6800
    %v7163 = vpop.f32.mrb[0].mxu0
    %v7164 = vadd.f32 0.0, %v7163
    %v7165 = vpop.f32.mrb[0].mxu0
    %7166 = vmatprep.mubr.f32.mxu0 0.0
    %7167 = vmatmul.mubr.f32.gmra.mrb[0].mxu0 %v6803
    %v7168 = vpop.f32.mrb[0].mxu0
    %v7169 = vadd.f32 0.0, %v7168
    %v7170 = vpop.f32.mrb[0].mxu0
    %7171 = vmatprep.mubr.f32.mxu0 0.0
    %7172 = vmatmul.mubr.f32.gmra.mrb[0].mxu0 %v6806
    %v7173 = vpop.f32.mrb[0].mxu0
    %v7174 = vadd.f32 0.0, %v7173
    %v7175 = vpop.f32.mrb[0].mxu0
    %7176 = vmatprep.mubr.f32.mxu0 0.0
    %7177 = vmatmul.mubr.f32.gmra.mrb[0].mxu0 %v6809
    %v7178 = vpop.f32.mrb[0].mxu0
    %v7179 = vadd.f32 0.0, %v7178
    %v7180 = vpop.f32.mrb[0].mxu0
    %7181 = vmatprep.mubr.f32.mxu0 0.0
    %7182 = vmatmul.mubr.f32.gmra.mrb[0].mxu0 %v6812
    %v7183 = vpop.f32.mrb[0].mxu0
    %v7184 = vadd.f32 0.0, %v7183
    %v7185 = vpop.f32.mrb[0].mxu0
    %7186 = vmatprep.mubr.f32.mxu0 0.0
    %7187 = vmatmul.mubr.f32.gmra.mrb[0].mxu0 %v6815
    %v7188 = vpop.f32.mrb[0].mxu0
    %v7189 = vadd.f32 0.0, %v7188
    %v7190 = vpop.f32.mrb[0].mxu0
    %7191 = vmatprep.mubr.f32.mxu0 0.0
    %7192 = vmatmul.mubr.f32.gmra.mrb[0].mxu0 %v6818
    %v7193 = vpop.f32.mrb[0].mxu0
    %v7194 = vadd.f32 0.0, %v7193
    %v7195 = vpop.f32.mrb[0].mxu0
    %7196 = vmatprep.mubr.f32.mxu0 0.0
    %7197 = vmatmul.mubr.f32.gmra.mrb[0].mxu0 %v6821
    %v7198 = vpop.f32.mrb[0].mxu0
    %v7199 = vadd.f32 0.0, %v7198
    %v7200 = vpop.f32.mrb[0].mxu0
    %7201 = vmatprep.mubr.f32.mxu0 0.0
    %7202 = vmatmul.mubr.f32.gmra.mrb[0].mxu0 %v6824
    %v7203 = vpop.f32.mrb[0].mxu0
    %v7204 = vadd.f32 0.0, %v7203
    %v7205 = vpop.f32.mrb[0].mxu0
    %7206 = vmatprep.mubr.f32.mxu0 0.0
    %7207 = vmatmul.mubr.f32.gmra.mrb[0].mxu0 %v6827
    %v7208 = vpop.f32.mrb[0].mxu0
    %v7209 = vadd.f32 0.0, %v7208
    %v7210 = vpop.f32.mrb[0].mxu0
    %7211 = vmatprep.mubr.f32.mxu0 0.0
    %7212 = vmatmul.mubr.f32.gmra.mrb[0].mxu0 %v6830
    %v7213 = vpop.f32.mrb[0].mxu0
    %v7214 = vadd.f32 0.0, %v7213
    %v7215 = vpop.f32.mrb[0].mxu0
    %7216 = vdwg.mxu0
    %v7217 = vadd.f32 %v6509, %v6899
    %v7218 = vadd.f32 %v6510, %v6904
    %v7219 = vadd.f32 %v6511, %v6909
    %v7220 = vadd.f32 %v6512, %v6914
    %v7221 = vadd.f32 %v6513, %v6919
    %v7222 = vadd.f32 %v6514, %v6924
    %v7223 = vadd.f32 %v6515, %v6929
    %v7224 = vadd.f32 %v6516, %v6934
    %v7225 = vadd.f32 %v6517, %v6939
    %v7226 = vadd.f32 %v6518, %v6944
    %v7227 = vadd.f32 %v6519, %v6949
    %v7228 = vadd.f32 %v6520, %v6954
    %v7229 = vadd.f32 %v6521, %v6959
    %v7230 = vadd.f32 %v6522, %v6964
    %v7231 = vadd.f32 %v6523, %v6969
    %v7232 = vadd.f32 %v6524, %v6974
    %v7233 = vadd.f32 %v6525, %v6979
    %v7234 = vadd.f32 %v6526, %v6984
    %v7235 = vadd.f32 %v6527, %v6989
    %v7236 = vadd.f32 %v6528, %v6994
    %v7237 = vadd.f32 %v6529, %v6999
    %v7238 = vadd.f32 %v6530, %v7004
    %v7239 = vadd.f32 %v6531, %v7009
    %v7240 = vadd.f32 %v6532, %v7014
    %v7241 = vadd.f32 %v6533, %v7019
    %v7242 = vadd.f32 %v6534, %v7024
    %v7243 = vadd.f32 %v6535, %v7029
    %v7244 = vadd.f32 %v6536, %v7034
    %v7245 = vadd.f32 %v6537, %v7039
    %v7246 = vadd.f32 %v6538, %v7044
    %v7247 = vadd.f32 %v6539, %v7049
    %v7248 = vadd.f32 %v6540, %v7054
    %v7249 = vadd.f32 %v6541, %v7059
    %v7250 = vadd.f32 %v6542, %v7064
    %v7251 = vadd.f32 %v6543, %v7069
    %v7252 = vadd.f32 %v6544, %v7074
    %v7253 = vadd.f32 %v6545, %v7079
    %v7254 = vadd.f32 %v6546, %v7084
    %v7255 = vadd.f32 %v6547, %v7089
    %v7256 = vadd.f32 %v6548, %v7094
    %v7257 = vadd.f32 %v6549, %v7099
    %v7258 = vadd.f32 %v6550, %v7104
    %v7259 = vadd.f32 %v6551, %v7109
    %v7260 = vadd.f32 %v6552, %v7114
    %v7261 = vadd.f32 %v6553, %v7119
    %v7262 = vadd.f32 %v6554, %v7124
    %v7263 = vadd.f32 %v6555, %v7129
    %v7264 = vadd.f32 %v6556, %v7134
    %v7265 = vadd.f32 %v6557, %v7139
    %v7266 = vadd.f32 %v6558, %v7144
    %v7267 = vadd.f32 %v6559, %v7149
    %v7268 = vadd.f32 %v6560, %v7154
    %v7269 = vadd.f32 %v6561, %v7159
    %v7270 = vadd.f32 %v6562, %v7164
    %v7271 = vadd.f32 %v6563, %v7169
    %v7272 = vadd.f32 %v6564, %v7174
    %v7273 = vadd.f32 %v6565, %v7179
    %v7274 = vadd.f32 %v6566, %v7184
    %v7275 = vadd.f32 %v6567, %v7189
    %v7276 = vadd.f32 %v6568, %v7194
    %v7277 = vadd.f32 %v6569, %v7199
    %v7278 = vadd.f32 %v6570, %v7204
    %v7279 = vadd.f32 %v6571, %v7209
    %v7280 = vadd.f32 %v6572, %v7214
    %v7281 = vld [vmem:[%s6573 + $0x8] sm:$0xff]
    %v7282 = vld [vmem:[%s6573 + $0x10] sm:$0xff]
    %v7283 = vld [vmem:[%s6573 + $0x28] sm:$0xff]
    %v7284 = vld [vmem:[%s6573 + $0x30] sm:$0xff]
    %v7285 = vld [vmem:[%s6573 + $0x48] sm:$0xff]
    %v7286 = vld [vmem:[%s6573 + $0x50] sm:$0xff]
    %v7287 = vld [vmem:[%s6573 + $0x68] sm:$0xff]
    %v7288 = vld [vmem:[%s6573 + $0x70] sm:$0xff]
    %v7289 = vld [vmem:[%s6573 + $0x88] sm:$0xff]
    %v7290 = vld [vmem:[%s6573 + $0x90] sm:$0xff]
    %v7291 = vld [vmem:[%s6573 + $0xa8] sm:$0xff]
    %v7292 = vld [vmem:[%s6573 + $0xb0] sm:$0xff]
    %v7293 = vld [vmem:[%s6573 + $0xc8] sm:$0xff]
    %v7294 = vld [vmem:[%s6573 + $0xd0] sm:$0xff]
    %v7295 = vld [vmem:[%s6573 + $0xe8] sm:$0xff]
    %v7296 = vld [vmem:[%s6573 + $0xf0] sm:$0xff]
    %v7297 = vld [vmem:[%s6573 + $0x108] sm:$0xff]
    %v7298 = vld [vmem:[%s6573 + $0x110] sm:$0xff]
    %v7299 = vld [vmem:[%s6573 + $0x128] sm:$0xff]
    %v7300 = vld [vmem:[%s6573 + $0x130] sm:$0xff]
    %v7301 = vld [vmem:[%s6573 + $0x148] sm:$0xff]
    %v7302 = vld [vmem:[%s6573 + $0x150] sm:$0xff]
    %v7303 = vld [vmem:[%s6573 + $0x168] sm:$0xff]
    %v7304 = vld [vmem:[%s6573 + $0x170] sm:$0xff]
    %v7305 = vld [vmem:[%s6573 + $0x188] sm:$0xff]
    %v7306 = vld [vmem:[%s6573 + $0x190] sm:$0xff]
    %v7307 = vld [vmem:[%s6573 + $0x1a8] sm:$0xff]
    %v7308 = vld [vmem:[%s6573 + $0x1b0] sm:$0xff]
    %v7309 = vld [vmem:[%s6573 + $0x1c8] sm:$0xff]
    %v7310 = vld [vmem:[%s6573 + $0x1d0] sm:$0xff]
    %v7311 = vld [vmem:[%s6573 + $0x1e8] sm:$0xff]
    %v7312 = vld [vmem:[%s6573 + $0x1f0] sm:$0xff]
    %v7313 = vld [vmem:[%s6573 + $0x288] sm:$0xff]
    %v7314 = vld [vmem:[%s6573 + $0x290] sm:$0xff]
    %v7315 = vld [vmem:[%s6573 + $0x2a8] sm:$0xff]
    %v7316 = vld [vmem:[%s6573 + $0x2b0] sm:$0xff]
    %v7317 = vld [vmem:[%s6573 + $0x2c8] sm:$0xff]
    %v7318 = vld [vmem:[%s6573 + $0x2d0] sm:$0xff]
    %v7319 = vld [vmem:[%s6573 + $0x2e8] sm:$0xff]
    %v7320 = vld [vmem:[%s6573 + $0x2f0] sm:$0xff]
    %v7321 = vld [vmem:[%s6573 + $0x308] sm:$0xff]
    %v7322 = vld [vmem:[%s6573 + $0x310] sm:$0xff]
    %v7323 = vld [vmem:[%s6573 + $0x328] sm:$0xff]
    %v7324 = vld [vmem:[%s6573 + $0x330] sm:$0xff]
    %v7325 = vld [vmem:[%s6573 + $0x348] sm:$0xff]
    %v7326 = vld [vmem:[%s6573 + $0x350] sm:$0xff]
    %v7327 = vld [vmem:[%s6573 + $0x368] sm:$0xff]
    %v7328 = vld [vmem:[%s6573 + $0x370] sm:$0xff]
    %v7329 = vld [vmem:[%s6573 + $0x388] sm:$0xff]
    %v7330 = vld [vmem:[%s6573 + $0x390] sm:$0xff]
    %v7331 = vld [vmem:[%s6573 + $0x3a8] sm:$0xff]
    %v7332 = vld [vmem:[%s6573 + $0x3b0] sm:$0xff]
    %v7333 = vld [vmem:[%s6573 + $0x3c8] sm:$0xff]
    %v7334 = vld [vmem:[%s6573 + $0x3d0] sm:$0xff]
    %v7335 = vld [vmem:[%s6573 + $0x3e8] sm:$0xff]
    %v7336 = vld [vmem:[%s6573 + $0x3f0] sm:$0xff]
    %v7337 = vld [vmem:[%s6573 + $0x408] sm:$0xff]
    %v7338 = vld [vmem:[%s6573 + $0x410] sm:$0xff]
    %v7339 = vld [vmem:[%s6573 + $0x428] sm:$0xff]
    %v7340 = vld [vmem:[%s6573 + $0x430] sm:$0xff]
    %v7341 = vld [vmem:[%s6573 + $0x448] sm:$0xff]
    %v7342 = vld [vmem:[%s6573 + $0x450] sm:$0xff]
    %v7343 = vld [vmem:[%s6573 + $0x468] sm:$0xff]
    %v7344 = vld [vmem:[%s6573 + $0x470] sm:$0xff]
    %s7345 = scalar_lea.vmem %s4, 56
    %v7346 = vld [vmem:[%s7345] sm:$0xff]
    %v7348 = vsel %vm1632, %v7281, 0
    %v7351 = vsel %vm1632, %v7282, 0
    %v7354 = vsel %vm1632, %v7283, 0
    %v7357 = vsel %vm1632, %v7284, 0
    %v7360 = vsel %vm1632, %v7285, 0
    %v7363 = vsel %vm1632, %v7286, 0
    %v7366 = vsel %vm1632, %v7287, 0
    %v7369 = vsel %vm1632, %v7288, 0
    %v7372 = vsel %vm1632, %v7289, 0
    %v7375 = vsel %vm1632, %v7290, 0
    %v7378 = vsel %vm1632, %v7291, 0
    %v7381 = vsel %vm1632, %v7292, 0
    %v7384 = vsel %vm1632, %v7293, 0
    %v7387 = vsel %vm1632, %v7294, 0
    %v7390 = vsel %vm1632, %v7295, 0
    %v7393 = vsel %vm1632, %v7296, 0
    %v7396 = vsel %vm1632, %v7297, 0
    %v7399 = vsel %vm1632, %v7298, 0
    %v7402 = vsel %vm1632, %v7299, 0
    %v7405 = vsel %vm1632, %v7300, 0
    %v7408 = vsel %vm1632, %v7301, 0
    %v7411 = vsel %vm1632, %v7302, 0
    %v7414 = vsel %vm1632, %v7303, 0
    %v7417 = vsel %vm1632, %v7304, 0
    %v7420 = vsel %vm1632, %v7305, 0
    %v7423 = vsel %vm1632, %v7306, 0
    %v7426 = vsel %vm1632, %v7307, 0
    %v7429 = vsel %vm1632, %v7308, 0
    %v7432 = vsel %vm1632, %v7309, 0
    %v7435 = vsel %vm1632, %v7310, 0
    %v7438 = vsel %vm1632, %v7311, 0
    %v7441 = vsel %vm1632, %v7312, 0
    %v7444 = vsel %vm1632, %v7313, 0
    %v7447 = vsel %vm1632, %v7314, 0
    %v7450 = vsel %vm1632, %v7315, 0
    %v7453 = vsel %vm1632, %v7316, 0
    %v7456 = vsel %vm1632, %v7317, 0
    %v7459 = vsel %vm1632, %v7318, 0
    %v7462 = vsel %vm1632, %v7319, 0
    %v7465 = vsel %vm1632, %v7320, 0
    %v7468 = vsel %vm1632, %v7321, 0
    %v7471 = vsel %vm1632, %v7322, 0
    %v7474 = vsel %vm1632, %v7323, 0
    %v7477 = vsel %vm1632, %v7324, 0
    %v7480 = vsel %vm1632, %v7325, 0
    %v7483 = vsel %vm1632, %v7326, 0
    %v7486 = vsel %vm1632, %v7327, 0
    %v7489 = vsel %vm1632, %v7328, 0
    %v7492 = vsel %vm1632, %v7329, 0
    %v7495 = vsel %vm1632, %v7330, 0
    %v7498 = vsel %vm1632, %v7331, 0
    %v7501 = vsel %vm1632, %v7332, 0
    %v7504 = vsel %vm1632, %v7333, 0
    %v7507 = vsel %vm1632, %v7334, 0
    %v7510 = vsel %vm1632, %v7335, 0
    %v7513 = vsel %vm1632, %v7336, 0
    %v7516 = vsel %vm1632, %v7337, 0
    %v7519 = vsel %vm1632, %v7338, 0
    %v7522 = vsel %vm1632, %v7339, 0
    %v7525 = vsel %vm1632, %v7340, 0
    %v7528 = vsel %vm1632, %v7341, 0
    %v7531 = vsel %vm1632, %v7342, 0
    %v7534 = vsel %vm1632, %v7343, 0
    %v7537 = vsel %vm1632, %v7344, 0
    %7539 = vmatprep.subr.mxu0 0.0
    %7540 = vmatpush1.msra.mxu0 %v7346
    %7541 = vmatprep.subr.mxu0 0.0
    %7542 = vmatpush1.msra.mxu0 0.0
    %7543 = vmatprep.subr.mxu0 0.0
    %7544 = vmatpush1.msra.mxu0 0.0
    %7545 = vmatprep.subr.mxu0 0.0
    %7546 = vmatpush1.msra.mxu0 0.0
    %7547 = vmatprep.subr.mxu0 0.0
    %7548 = vmatpush1.msra.mxu0 0.0
    %7549 = vmatprep.subr.mxu0 0.0
    %7550 = vmatpush1.msra.mxu0 0.0
    %7551 = vmatprep.subr.mxu0 0.0
    %7552 = vmatpush1.msra.mxu0 0.0
    %7553 = vmatprep.subr.mxu0 0.0
    %7554 = vmatpush1.msra.mxu0 0.0
    %7555 = vmatprep.subr.mxu0 0.0
    %7556 = vmatpush1.msra.mxu0 0.0
    %7557 = vmatprep.subr.mxu0 0.0
    %7558 = vmatpush1.msra.mxu0 0.0
    %7559 = vmatprep.subr.mxu0 0.0
    %7560 = vmatpush1.msra.mxu0 0.0
    %7561 = vmatprep.subr.mxu0 0.0
    %7562 = vmatpush1.msra.mxu0 0.0
    %7563 = vmatprep.subr.mxu0 0.0
    %7564 = vmatpush1.msra.mxu0 0.0
    %7565 = vmatprep.subr.mxu0 0.0
    %7566 = vmatpush1.msra.mxu0 0.0
    %7567 = vmatprep.subr.mxu0 0.0
    %7568 = vmatpush1.msra.mxu0 0.0
    %7569 = vmatprep.subr.mxu0 0.0
    %7570 = vmatpush1.msra.mxu0 0.0
    %7571 = vmatprep.subr.mxu0 0.0
    %7572 = vmatpush1.msra.mxu0 0.0
    %7573 = vmatprep.subr.mxu0 0.0
    %7574 = vmatpush1.msra.mxu0 0.0
    %7575 = vmatprep.subr.mxu0 0.0
    %7576 = vmatpush1.msra.mxu0 0.0
    %7577 = vmatprep.subr.mxu0 0.0
    %7578 = vmatpush1.msra.mxu0 0.0
    %7579 = vmatprep.subr.mxu0 0.0
    %7580 = vmatpush1.msra.mxu0 0.0
    %7581 = vmatprep.subr.mxu0 0.0
    %7582 = vmatpush1.msra.mxu0 0.0
    %7583 = vmatprep.subr.mxu0 0.0
    %7584 = vmatpush1.msra.mxu0 0.0
    %7585 = vmatprep.subr.mxu0 0.0
    %7586 = vmatpush1.msra.mxu0 0.0
    %7587 = vmatprep.subr.mxu0 0.0
    %7588 = vmatpush1.msra.mxu0 0.0
    %7589 = vmatprep.subr.mxu0 0.0
    %7590 = vmatpush1.msra.mxu0 0.0
    %7591 = vmatprep.subr.mxu0 0.0
    %7592 = vmatpush1.msra.mxu0 0.0
    %7593 = vmatprep.subr.mxu0 0.0
    %7594 = vmatpush1.msra.mxu0 0.0
    %7595 = vmatprep.subr.mxu0 0.0
    %7596 = vmatpush1.msra.mxu0 0.0
    %7597 = vmatprep.subr.mxu0 0.0
    %7598 = vmatpush1.msra.mxu0 0.0
    %7599 = vmatprep.subr.mxu0 0.0
    %7600 = vmatpush1.msra.mxu0 0.0
    %7601 = vmatprep.subr.mxu0 0.0
    %7602 = vmatpush1.msra.mxu0 0.0
    %7603 = vmatprep.mubr.f32.mxu0 0.0
    %7604 = vmatmul.mubr.f32.gmra.mrb[0].mxu0 %v7348
    %v7605 = vpop.f32.mrb[0].mxu0
    %v7606 = vadd.f32 0.0, %v7605
    %v7607 = vpop.f32.mrb[0].mxu0
    %7608 = vmatprep.mubr.f32.mxu0 0.0
    %7609 = vmatmul.mubr.f32.gmra.mrb[0].mxu0 %v7351
    %v7610 = vpop.f32.mrb[0].mxu0
    %v7611 = vadd.f32 0.0, %v7610
    %v7612 = vpop.f32.mrb[0].mxu0
    %7613 = vmatprep.mubr.f32.mxu0 0.0
    %7614 = vmatmul.mubr.f32.gmra.mrb[0].mxu0 %v7354
    %v7615 = vpop.f32.mrb[0].mxu0
    %v7616 = vadd.f32 0.0, %v7615
    %v7617 = vpop.f32.mrb[0].mxu0
    %7618 = vmatprep.mubr.f32.mxu0 0.0
    %7619 = vmatmul.mubr.f32.gmra.mrb[0].mxu0 %v7357
    %v7620 = vpop.f32.mrb[0].mxu0
    %v7621 = vadd.f32 0.0, %v7620
    %v7622 = vpop.f32.mrb[0].mxu0
    %7623 = vmatprep.mubr.f32.mxu0 0.0
    %7624 = vmatmul.mubr.f32.gmra.mrb[0].mxu0 %v7360
    %v7625 = vpop.f32.mrb[0].mxu0
    %v7626 = vadd.f32 0.0, %v7625
    %v7627 = vpop.f32.mrb[0].mxu0
    %7628 = vmatprep.mubr.f32.mxu0 0.0
    %7629 = vmatmul.mubr.f32.gmra.mrb[0].mxu0 %v7363
    %v7630 = vpop.f32.mrb[0].mxu0
    %v7631 = vadd.f32 0.0, %v7630
    %v7632 = vpop.f32.mrb[0].mxu0
    %7633 = vmatprep.mubr.f32.mxu0 0.0
    %7634 = vmatmul.mubr.f32.gmra.mrb[0].mxu0 %v7366
    %v7635 = vpop.f32.mrb[0].mxu0
    %v7636 = vadd.f32 0.0, %v7635
    %v7637 = vpop.f32.mrb[0].mxu0
    %7638 = vmatprep.mubr.f32.mxu0 0.0
    %7639 = vmatmul.mubr.f32.gmra.mrb[0].mxu0 %v7369
    %v7640 = vpop.f32.mrb[0].mxu0
    %v7641 = vadd.f32 0.0, %v7640
    %v7642 = vpop.f32.mrb[0].mxu0
    %7643 = vmatprep.mubr.f32.mxu0 0.0
    %7644 = vmatmul.mubr.f32.gmra.mrb[0].mxu0 %v7372
    %v7645 = vpop.f32.mrb[0].mxu0
    %v7646 = vadd.f32 0.0, %v7645
    %v7647 = vpop.f32.mrb[0].mxu0
    %7648 = vmatprep.mubr.f32.mxu0 0.0
    %7649 = vmatmul.mubr.f32.gmra.mrb[0].mxu0 %v7375
    %v7650 = vpop.f32.mrb[0].mxu0
    %v7651 = vadd.f32 0.0, %v7650
    %v7652 = vpop.f32.mrb[0].mxu0
    %7653 = vmatprep.mubr.f32.mxu0 0.0
    %7654 = vmatmul.mubr.f32.gmra.mrb[0].mxu0 %v7378
    %v7655 = vpop.f32.mrb[0].mxu0
    %v7656 = vadd.f32 0.0, %v7655
    %v7657 = vpop.f32.mrb[0].mxu0
    %7658 = vmatprep.mubr.f32.mxu0 0.0
    %7659 = vmatmul.mubr.f32.gmra.mrb[0].mxu0 %v7381
    %v7660 = vpop.f32.mrb[0].mxu0
    %v7661 = vadd.f32 0.0, %v7660
    %v7662 = vpop.f32.mrb[0].mxu0
    %7663 = vmatprep.mubr.f32.mxu0 0.0
    %7664 = vmatmul.mubr.f32.gmra.mrb[0].mxu0 %v7384
    %v7665 = vpop.f32.mrb[0].mxu0
    %v7666 = vadd.f32 0.0, %v7665
    %v7667 = vpop.f32.mrb[0].mxu0
    %7668 = vmatprep.mubr.f32.mxu0 0.0
    %7669 = vmatmul.mubr.f32.gmra.mrb[0].mxu0 %v7387
    %v7670 = vpop.f32.mrb[0].mxu0
    %v7671 = vadd.f32 0.0, %v7670
    %v7672 = vpop.f32.mrb[0].mxu0
    %7673 = vmatprep.mubr.f32.mxu0 0.0
    %7674 = vmatmul.mubr.f32.gmra.mrb[0].mxu0 %v7390
    %v7675 = vpop.f32.mrb[0].mxu0
    %v7676 = vadd.f32 0.0, %v7675
    %v7677 = vpop.f32.mrb[0].mxu0
    %7678 = vmatprep.mubr.f32.mxu0 0.0
    %7679 = vmatmul.mubr.f32.gmra.mrb[0].mxu0 %v7393
    %v7680 = vpop.f32.mrb[0].mxu0
    %v7681 = vadd.f32 0.0, %v7680
    %v7682 = vpop.f32.mrb[0].mxu0
    %7683 = vmatprep.mubr.f32.mxu0 0.0
    %7684 = vmatmul.mubr.f32.gmra.mrb[0].mxu0 %v7396
    %v7685 = vpop.f32.mrb[0].mxu0
    %v7686 = vadd.f32 0.0, %v7685
    %v7687 = vpop.f32.mrb[0].mxu0
    %7688 = vmatprep.mubr.f32.mxu0 0.0
    %7689 = vmatmul.mubr.f32.gmra.mrb[0].mxu0 %v7399
    %v7690 = vpop.f32.mrb[0].mxu0
    %v7691 = vadd.f32 0.0, %v7690
    %v7692 = vpop.f32.mrb[0].mxu0
    %7693 = vmatprep.mubr.f32.mxu0 0.0
    %7694 = vmatmul.mubr.f32.gmra.mrb[0].mxu0 %v7402
    %v7695 = vpop.f32.mrb[0].mxu0
    %v7696 = vadd.f32 0.0, %v7695
    %v7697 = vpop.f32.mrb[0].mxu0
    %7698 = vmatprep.mubr.f32.mxu0 0.0
    %7699 = vmatmul.mubr.f32.gmra.mrb[0].mxu0 %v7405
    %v7700 = vpop.f32.mrb[0].mxu0
    %v7701 = vadd.f32 0.0, %v7700
    %v7702 = vpop.f32.mrb[0].mxu0
    %7703 = vmatprep.mubr.f32.mxu0 0.0
    %7704 = vmatmul.mubr.f32.gmra.mrb[0].mxu0 %v7408
    %v7705 = vpop.f32.mrb[0].mxu0
    %v7706 = vadd.f32 0.0, %v7705
    %v7707 = vpop.f32.mrb[0].mxu0
    %7708 = vmatprep.mubr.f32.mxu0 0.0
    %7709 = vmatmul.mubr.f32.gmra.mrb[0].mxu0 %v7411
    %v7710 = vpop.f32.mrb[0].mxu0
    %v7711 = vadd.f32 0.0, %v7710
    %v7712 = vpop.f32.mrb[0].mxu0
    %7713 = vmatprep.mubr.f32.mxu0 0.0
    %7714 = vmatmul.mubr.f32.gmra.mrb[0].mxu0 %v7414
    %v7715 = vpop.f32.mrb[0].mxu0
    %v7716 = vadd.f32 0.0, %v7715
    %v7717 = vpop.f32.mrb[0].mxu0
    %7718 = vmatprep.mubr.f32.mxu0 0.0
    %7719 = vmatmul.mubr.f32.gmra.mrb[0].mxu0 %v7417
    %v7720 = vpop.f32.mrb[0].mxu0
    %v7721 = vadd.f32 0.0, %v7720
    %v7722 = vpop.f32.mrb[0].mxu0
    %7723 = vmatprep.mubr.f32.mxu0 0.0
    %7724 = vmatmul.mubr.f32.gmra.mrb[0].mxu0 %v7420
    %v7725 = vpop.f32.mrb[0].mxu0
    %v7726 = vadd.f32 0.0, %v7725
    %v7727 = vpop.f32.mrb[0].mxu0
    %7728 = vmatprep.mubr.f32.mxu0 0.0
    %7729 = vmatmul.mubr.f32.gmra.mrb[0].mxu0 %v7423
    %v7730 = vpop.f32.mrb[0].mxu0
    %v7731 = vadd.f32 0.0, %v7730
    %v7732 = vpop.f32.mrb[0].mxu0
    %7733 = vmatprep.mubr.f32.mxu0 0.0
    %7734 = vmatmul.mubr.f32.gmra.mrb[0].mxu0 %v7426
    %v7735 = vpop.f32.mrb[0].mxu0
    %v7736 = vadd.f32 0.0, %v7735
    %v7737 = vpop.f32.mrb[0].mxu0
    %7738 = vmatprep.mubr.f32.mxu0 0.0
    %7739 = vmatmul.mubr.f32.gmra.mrb[0].mxu0 %v7429
    %v7740 = vpop.f32.mrb[0].mxu0
    %v7741 = vadd.f32 0.0, %v7740
    %v7742 = vpop.f32.mrb[0].mxu0
    %7743 = vmatprep.mubr.f32.mxu0 0.0
    %7744 = vmatmul.mubr.f32.gmra.mrb[0].mxu0 %v7432
    %v7745 = vpop.f32.mrb[0].mxu0
    %v7746 = vadd.f32 0.0, %v7745
    %v7747 = vpop.f32.mrb[0].mxu0
    %7748 = vmatprep.mubr.f32.mxu0 0.0
    %7749 = vmatmul.mubr.f32.gmra.mrb[0].mxu0 %v7435
    %v7750 = vpop.f32.mrb[0].mxu0
    %v7751 = vadd.f32 0.0, %v7750
    %v7752 = vpop.f32.mrb[0].mxu0
    %7753 = vmatprep.mubr.f32.mxu0 0.0
    %7754 = vmatmul.mubr.f32.gmra.mrb[0].mxu0 %v7438
    %v7755 = vpop.f32.mrb[0].mxu0
    %v7756 = vadd.f32 0.0, %v7755
    %v7757 = vpop.f32.mrb[0].mxu0
    %7758 = vmatprep.mubr.f32.mxu0 0.0
    %7759 = vmatmul.mubr.f32.gmra.mrb[0].mxu0 %v7441
    %v7760 = vpop.f32.mrb[0].mxu0
    %v7761 = vadd.f32 0.0, %v7760
    %v7762 = vpop.f32.mrb[0].mxu0
    %7763 = vmatprep.mubr.f32.mxu0 0.0
    %7764 = vmatmul.mubr.f32.gmra.mrb[0].mxu0 %v7444
    %v7765 = vpop.f32.mrb[0].mxu0
    %v7766 = vadd.f32 0.0, %v7765
    %v7767 = vpop.f32.mrb[0].mxu0
    %7768 = vmatprep.mubr.f32.mxu0 0.0
    %7769 = vmatmul.mubr.f32.gmra.mrb[0].mxu0 %v7447
    %v7770 = vpop.f32.mrb[0].mxu0
    %v7771 = vadd.f32 0.0, %v7770
    %v7772 = vpop.f32.mrb[0].mxu0
    %7773 = vmatprep.mubr.f32.mxu0 0.0
    %7774 = vmatmul.mubr.f32.gmra.mrb[0].mxu0 %v7450
    %v7775 = vpop.f32.mrb[0].mxu0
    %v7776 = vadd.f32 0.0, %v7775
    %v7777 = vpop.f32.mrb[0].mxu0
    %7778 = vmatprep.mubr.f32.mxu0 0.0
    %7779 = vmatmul.mubr.f32.gmra.mrb[0].mxu0 %v7453
    %v7780 = vpop.f32.mrb[0].mxu0
    %v7781 = vadd.f32 0.0, %v7780
    %v7782 = vpop.f32.mrb[0].mxu0
    %7783 = vmatprep.mubr.f32.mxu0 0.0
    %7784 = vmatmul.mubr.f32.gmra.mrb[0].mxu0 %v7456
    %v7785 = vpop.f32.mrb[0].mxu0
    %v7786 = vadd.f32 0.0, %v7785
    %v7787 = vpop.f32.mrb[0].mxu0
    %7788 = vmatprep.mubr.f32.mxu0 0.0
    %7789 = vmatmul.mubr.f32.gmra.mrb[0].mxu0 %v7459
    %v7790 = vpop.f32.mrb[0].mxu0
    %v7791 = vadd.f32 0.0, %v7790
    %v7792 = vpop.f32.mrb[0].mxu0
    %7793 = vmatprep.mubr.f32.mxu0 0.0
    %7794 = vmatmul.mubr.f32.gmra.mrb[0].mxu0 %v7462
    %v7795 = vpop.f32.mrb[0].mxu0
    %v7796 = vadd.f32 0.0, %v7795
    %v7797 = vpop.f32.mrb[0].mxu0
    %7798 = vmatprep.mubr.f32.mxu0 0.0
    %7799 = vmatmul.mubr.f32.gmra.mrb[0].mxu0 %v7465
    %v7800 = vpop.f32.mrb[0].mxu0
    %v7801 = vadd.f32 0.0, %v7800
    %v7802 = vpop.f32.mrb[0].mxu0
    %7803 = vmatprep.mubr.f32.mxu0 0.0
    %7804 = vmatmul.mubr.f32.gmra.mrb[0].mxu0 %v7468
    %v7805 = vpop.f32.mrb[0].mxu0
    %v7806 = vadd.f32 0.0, %v7805
    %v7807 = vpop.f32.mrb[0].mxu0
    %7808 = vmatprep.mubr.f32.mxu0 0.0
    %7809 = vmatmul.mubr.f32.gmra.mrb[0].mxu0 %v7471
    %v7810 = vpop.f32.mrb[0].mxu0
    %v7811 = vadd.f32 0.0, %v7810
    %v7812 = vpop.f32.mrb[0].mxu0
    %7813 = vmatprep.mubr.f32.mxu0 0.0
    %7814 = vmatmul.mubr.f32.gmra.mrb[0].mxu0 %v7474
    %v7815 = vpop.f32.mrb[0].mxu0
    %v7816 = vadd.f32 0.0, %v7815
    %v7817 = vpop.f32.mrb[0].mxu0
    %7818 = vmatprep.mubr.f32.mxu0 0.0
    %7819 = vmatmul.mubr.f32.gmra.mrb[0].mxu0 %v7477
    %v7820 = vpop.f32.mrb[0].mxu0
    %v7821 = vadd.f32 0.0, %v7820
    %v7822 = vpop.f32.mrb[0].mxu0
    %7823 = vmatprep.mubr.f32.mxu0 0.0
    %7824 = vmatmul.mubr.f32.gmra.mrb[0].mxu0 %v7480
    %v7825 = vpop.f32.mrb[0].mxu0
    %v7826 = vadd.f32 0.0, %v7825
    %v7827 = vpop.f32.mrb[0].mxu0
    %7828 = vmatprep.mubr.f32.mxu0 0.0
    %7829 = vmatmul.mubr.f32.gmra.mrb[0].mxu0 %v7483
    %v7830 = vpop.f32.mrb[0].mxu0
    %v7831 = vadd.f32 0.0, %v7830
    %v7832 = vpop.f32.mrb[0].mxu0
    %7833 = vmatprep.mubr.f32.mxu0 0.0
    %7834 = vmatmul.mubr.f32.gmra.mrb[0].mxu0 %v7486
    %v7835 = vpop.f32.mrb[0].mxu0
    %v7836 = vadd.f32 0.0, %v7835
    %v7837 = vpop.f32.mrb[0].mxu0
    %7838 = vmatprep.mubr.f32.mxu0 0.0
    %7839 = vmatmul.mubr.f32.gmra.mrb[0].mxu0 %v7489
    %v7840 = vpop.f32.mrb[0].mxu0
    %v7841 = vadd.f32 0.0, %v7840
    %v7842 = vpop.f32.mrb[0].mxu0
    %7843 = vmatprep.mubr.f32.mxu0 0.0
    %7844 = vmatmul.mubr.f32.gmra.mrb[0].mxu0 %v7492
    %v7845 = vpop.f32.mrb[0].mxu0
    %v7846 = vadd.f32 0.0, %v7845
    %v7847 = vpop.f32.mrb[0].mxu0
    %7848 = vmatprep.mubr.f32.mxu0 0.0
    %7849 = vmatmul.mubr.f32.gmra.mrb[0].mxu0 %v7495
    %v7850 = vpop.f32.mrb[0].mxu0
    %v7851 = vadd.f32 0.0, %v7850
    %v7852 = vpop.f32.mrb[0].mxu0
    %7853 = vmatprep.mubr.f32.mxu0 0.0
    %7854 = vmatmul.mubr.f32.gmra.mrb[0].mxu0 %v7498
    %v7855 = vpop.f32.mrb[0].mxu0
    %v7856 = vadd.f32 0.0, %v7855
    %v7857 = vpop.f32.mrb[0].mxu0
    %7858 = vmatprep.mubr.f32.mxu0 0.0
    %7859 = vmatmul.mubr.f32.gmra.mrb[0].mxu0 %v7501
    %v7860 = vpop.f32.mrb[0].mxu0
    %v7861 = vadd.f32 0.0, %v7860
    %v7862 = vpop.f32.mrb[0].mxu0
    %7863 = vmatprep.mubr.f32.mxu0 0.0
    %7864 = vmatmul.mubr.f32.gmra.mrb[0].mxu0 %v7504
    %v7865 = vpop.f32.mrb[0].mxu0
    %v7866 = vadd.f32 0.0, %v7865
    %v7867 = vpop.f32.mrb[0].mxu0
    %7868 = vmatprep.mubr.f32.mxu0 0.0
    %7869 = vmatmul.mubr.f32.gmra.mrb[0].mxu0 %v7507
    %v7870 = vpop.f32.mrb[0].mxu0
    %v7871 = vadd.f32 0.0, %v7870
    %v7872 = vpop.f32.mrb[0].mxu0
    %7873 = vmatprep.mubr.f32.mxu0 0.0
    %7874 = vmatmul.mubr.f32.gmra.mrb[0].mxu0 %v7510
    %v7875 = vpop.f32.mrb[0].mxu0
    %v7876 = vadd.f32 0.0, %v7875
    %v7877 = vpop.f32.mrb[0].mxu0
    %7878 = vmatprep.mubr.f32.mxu0 0.0
    %7879 = vmatmul.mubr.f32.gmra.mrb[0].mxu0 %v7513
    %v7880 = vpop.f32.mrb[0].mxu0
    %v7881 = vadd.f32 0.0, %v7880
    %v7882 = vpop.f32.mrb[0].mxu0
    %7883 = vmatprep.mubr.f32.mxu0 0.0
    %7884 = vmatmul.mubr.f32.gmra.mrb[0].mxu0 %v7516
    %v7885 = vpop.f32.mrb[0].mxu0
    %v7886 = vadd.f32 0.0, %v7885
    %v7887 = vpop.f32.mrb[0].mxu0
    %7888 = vmatprep.mubr.f32.mxu0 0.0
    %7889 = vmatmul.mubr.f32.gmra.mrb[0].mxu0 %v7519
    %v7890 = vpop.f32.mrb[0].mxu0
    %v7891 = vadd.f32 0.0, %v7890
    %v7892 = vpop.f32.mrb[0].mxu0
    %7893 = vmatprep.mubr.f32.mxu0 0.0
    %7894 = vmatmul.mubr.f32.gmra.mrb[0].mxu0 %v7522
    %v7895 = vpop.f32.mrb[0].mxu0
    %v7896 = vadd.f32 0.0, %v7895
    %v7897 = vpop.f32.mrb[0].mxu0
    %7898 = vmatprep.mubr.f32.mxu0 0.0
    %7899 = vmatmul.mubr.f32.gmra.mrb[0].mxu0 %v7525
    %v7900 = vpop.f32.mrb[0].mxu0
    %v7901 = vadd.f32 0.0, %v7900
    %v7902 = vpop.f32.mrb[0].mxu0
    %7903 = vmatprep.mubr.f32.mxu0 0.0
    %7904 = vmatmul.mubr.f32.gmra.mrb[0].mxu0 %v7528
    %v7905 = vpop.f32.mrb[0].mxu0
    %v7906 = vadd.f32 0.0, %v7905
    %v7907 = vpop.f32.mrb[0].mxu0
    %7908 = vmatprep.mubr.f32.mxu0 0.0
    %7909 = vmatmul.mubr.f32.gmra.mrb[0].mxu0 %v7531
    %v7910 = vpop.f32.mrb[0].mxu0
    %v7911 = vadd.f32 0.0, %v7910
    %v7912 = vpop.f32.mrb[0].mxu0
    %7913 = vmatprep.mubr.f32.mxu0 0.0
    %7914 = vmatmul.mubr.f32.gmra.mrb[0].mxu0 %v7534
    %v7915 = vpop.f32.mrb[0].mxu0
    %v7916 = vadd.f32 0.0, %v7915
    %v7917 = vpop.f32.mrb[0].mxu0
    %7918 = vmatprep.mubr.f32.mxu0 0.0
    %7919 = vmatmul.mubr.f32.gmra.mrb[0].mxu0 %v7537
    %v7920 = vpop.f32.mrb[0].mxu0
    %v7921 = vadd.f32 0.0, %v7920
    %v7922 = vpop.f32.mrb[0].mxu0
    %7923 = vdwg.mxu0
    %v7924 = vadd.f32 %v7217, %v7606
    %v7925 = vadd.f32 %v7218, %v7611
    %v7926 = vadd.f32 %v7219, %v7616
    %v7927 = vadd.f32 %v7220, %v7621
    %v7928 = vadd.f32 %v7221, %v7626
    %v7929 = vadd.f32 %v7222, %v7631
    %v7930 = vadd.f32 %v7223, %v7636
    %v7931 = vadd.f32 %v7224, %v7641
    %v7932 = vadd.f32 %v7225, %v7646
    %v7933 = vadd.f32 %v7226, %v7651
    %v7934 = vadd.f32 %v7227, %v7656
    %v7935 = vadd.f32 %v7228, %v7661
    %v7936 = vadd.f32 %v7229, %v7666
    %v7937 = vadd.f32 %v7230, %v7671
    %v7938 = vadd.f32 %v7231, %v7676
    %v7939 = vadd.f32 %v7232, %v7681
    %v7940 = vadd.f32 %v7233, %v7686
    %v7941 = vadd.f32 %v7234, %v7691
    %v7942 = vadd.f32 %v7235, %v7696
    %v7943 = vadd.f32 %v7236, %v7701
    %v7944 = vadd.f32 %v7237, %v7706
    %v7945 = vadd.f32 %v7238, %v7711
    %v7946 = vadd.f32 %v7239, %v7716
    %v7947 = vadd.f32 %v7240, %v7721
    %v7948 = vadd.f32 %v7241, %v7726
    %v7949 = vadd.f32 %v7242, %v7731
    %v7950 = vadd.f32 %v7243, %v7736
    %v7951 = vadd.f32 %v7244, %v7741
    %v7952 = vadd.f32 %v7245, %v7746
    %v7953 = vadd.f32 %v7246, %v7751
    %v7954 = vadd.f32 %v7247, %v7756
    %v7955 = vadd.f32 %v7248, %v7761
    %v7956 = vadd.f32 %v7249, %v7766
    %v7957 = vadd.f32 %v7250, %v7771
    %v7958 = vadd.f32 %v7251, %v7776
    %v7959 = vadd.f32 %v7252, %v7781
    %v7960 = vadd.f32 %v7253, %v7786
    %v7961 = vadd.f32 %v7254, %v7791
    %v7962 = vadd.f32 %v7255, %v7796
    %v7963 = vadd.f32 %v7256, %v7801
    %v7964 = vadd.f32 %v7257, %v7806
    %v7965 = vadd.f32 %v7258, %v7811
    %v7966 = vadd.f32 %v7259, %v7816
    %v7967 = vadd.f32 %v7260, %v7821
    %v7968 = vadd.f32 %v7261, %v7826
    %v7969 = vadd.f32 %v7262, %v7831
    %v7970 = vadd.f32 %v7263, %v7836
    %v7971 = vadd.f32 %v7264, %v7841
    %v7972 = vadd.f32 %v7265, %v7846
    %v7973 = vadd.f32 %v7266, %v7851
    %v7974 = vadd.f32 %v7267, %v7856
    %v7975 = vadd.f32 %v7268, %v7861
    %v7976 = vadd.f32 %v7269, %v7866
    %v7977 = vadd.f32 %v7270, %v7871
    %v7978 = vadd.f32 %v7271, %v7876
    %v7979 = vadd.f32 %v7272, %v7881
    %v7980 = vadd.f32 %v7273, %v7886
    %v7981 = vadd.f32 %v7274, %v7891
    %v7982 = vadd.f32 %v7275, %v7896
    %v7983 = vadd.f32 %v7276, %v7901
    %v7984 = vadd.f32 %v7277, %v7906
    %v7985 = vadd.f32 %v7278, %v7911
    %v7986 = vadd.f32 %v7279, %v7916
    %v7987 = vadd.f32 %v7280, %v7921
    %v7988 = vld [vmem:[%s6573 + $0xa] sm:$0xff]
    %v7989 = vld [vmem:[%s6573 + $0x12] sm:$0xff]
    %v7990 = vld [vmem:[%s6573 + $0x2a] sm:$0xff]
    %v7991 = vld [vmem:[%s6573 + $0x32] sm:$0xff]
    %v7992 = vld [vmem:[%s6573 + $0x4a] sm:$0xff]
    %v7993 = vld [vmem:[%s6573 + $0x52] sm:$0xff]
    %v7994 = vld [vmem:[%s6573 + $0x6a] sm:$0xff]
    %v7995 = vld [vmem:[%s6573 + $0x72] sm:$0xff]
    %v7996 = vld [vmem:[%s6573 + $0x8a] sm:$0xff]
    %v7997 = vld [vmem:[%s6573 + $0x92] sm:$0xff]
    %v7998 = vld [vmem:[%s6573 + $0xaa] sm:$0xff]
    %v7999 = vld [vmem:[%s6573 + $0xb2] sm:$0xff]
    %v8000 = vld [vmem:[%s6573 + $0xca] sm:$0xff]
    %v8001 = vld [vmem:[%s6573 + $0xd2] sm:$0xff]
    %v8002 = vld [vmem:[%s6573 + $0xea] sm:$0xff]
    %v8003 = vld [vmem:[%s6573 + $0xf2] sm:$0xff]
    %v8004 = vld [vmem:[%s6573 + $0x10a] sm:$0xff]
    %v8005 = vld [vmem:[%s6573 + $0x112] sm:$0xff]
    %v8006 = vld [vmem:[%s6573 + $0x12a] sm:$0xff]
    %v8007 = vld [vmem:[%s6573 + $0x132] sm:$0xff]
    %v8008 = vld [vmem:[%s6573 + $0x14a] sm:$0xff]
    %v8009 = vld [vmem:[%s6573 + $0x152] sm:$0xff]
    %v8010 = vld [vmem:[%s6573 + $0x16a] sm:$0xff]
    %v8011 = vld [vmem:[%s6573 + $0x172] sm:$0xff]
    %v8012 = vld [vmem:[%s6573 + $0x18a] sm:$0xff]
    %v8013 = vld [vmem:[%s6573 + $0x192] sm:$0xff]
    %v8014 = vld [vmem:[%s6573 + $0x1aa] sm:$0xff]
    %v8015 = vld [vmem:[%s6573 + $0x1b2] sm:$0xff]
    %v8016 = vld [vmem:[%s6573 + $0x1ca] sm:$0xff]
    %v8017 = vld [vmem:[%s6573 + $0x1d2] sm:$0xff]
    %v8018 = vld [vmem:[%s6573 + $0x1ea] sm:$0xff]
    %v8019 = vld [vmem:[%s6573 + $0x1f2] sm:$0xff]
    %v8020 = vld [vmem:[%s6573 + $0x28a] sm:$0xff]
    %v8021 = vld [vmem:[%s6573 + $0x292] sm:$0xff]
    %v8022 = vld [vmem:[%s6573 + $0x2aa] sm:$0xff]
    %v8023 = vld [vmem:[%s6573 + $0x2b2] sm:$0xff]
    %v8024 = vld [vmem:[%s6573 + $0x2ca] sm:$0xff]
    %v8025 = vld [vmem:[%s6573 + $0x2d2] sm:$0xff]
    %v8026 = vld [vmem:[%s6573 + $0x2ea] sm:$0xff]
    %v8027 = vld [vmem:[%s6573 + $0x2f2] sm:$0xff]
    %v8028 = vld [vmem:[%s6573 + $0x30a] sm:$0xff]
    %v8029 = vld [vmem:[%s6573 + $0x312] sm:$0xff]
    %v8030 = vld [vmem:[%s6573 + $0x32a] sm:$0xff]
    %v8031 = vld [vmem:[%s6573 + $0x332] sm:$0xff]
    %v8032 = vld [vmem:[%s6573 + $0x34a] sm:$0xff]
    %v8033 = vld [vmem:[%s6573 + $0x352] sm:$0xff]
    %v8034 = vld [vmem:[%s6573 + $0x36a] sm:$0xff]
    %v8035 = vld [vmem:[%s6573 + $0x372] sm:$0xff]
    %v8036 = vld [vmem:[%s6573 + $0x38a] sm:$0xff]
    %v8037 = vld [vmem:[%s6573 + $0x392] sm:$0xff]
    %v8038 = vld [vmem:[%s6573 + $0x3aa] sm:$0xff]
    %v8039 = vld [vmem:[%s6573 + $0x3b2] sm:$0xff]
    %v8040 = vld [vmem:[%s6573 + $0x3ca] sm:$0xff]
    %v8041 = vld [vmem:[%s6573 + $0x3d2] sm:$0xff]
    %v8042 = vld [vmem:[%s6573 + $0x3ea] sm:$0xff]
    %v8043 = vld [vmem:[%s6573 + $0x3f2] sm:$0xff]
    %v8044 = vld [vmem:[%s6573 + $0x40a] sm:$0xff]
    %v8045 = vld [vmem:[%s6573 + $0x412] sm:$0xff]
    %v8046 = vld [vmem:[%s6573 + $0x42a] sm:$0xff]
    %v8047 = vld [vmem:[%s6573 + $0x432] sm:$0xff]
    %v8048 = vld [vmem:[%s6573 + $0x44a] sm:$0xff]
    %v8049 = vld [vmem:[%s6573 + $0x452] sm:$0xff]
    %v8050 = vld [vmem:[%s6573 + $0x46a] sm:$0xff]
    %v8051 = vld [vmem:[%s6573 + $0x472] sm:$0xff]
    %s8052 = scalar_lea.vmem %s4, 64
    %v8053 = vld [vmem:[%s8052] sm:$0xff]
    %v8055 = vsel %vm1632, %v7988, 0
    %v8058 = vsel %vm1632, %v7989, 0
    %v8061 = vsel %vm1632, %v7990, 0
    %v8064 = vsel %vm1632, %v7991, 0
    %v8067 = vsel %vm1632, %v7992, 0
    %v8070 = vsel %vm1632, %v7993, 0
    %v8073 = vsel %vm1632, %v7994, 0
    %v8076 = vsel %vm1632, %v7995, 0
    %v8079 = vsel %vm1632, %v7996, 0
    %v8082 = vsel %vm1632, %v7997, 0
    %v8085 = vsel %vm1632, %v7998, 0
    %v8088 = vsel %vm1632, %v7999, 0
    %v8091 = vsel %vm1632, %v8000, 0
    %v8094 = vsel %vm1632, %v8001, 0
    %v8097 = vsel %vm1632, %v8002, 0
    %v8100 = vsel %vm1632, %v8003, 0
    %v8103 = vsel %vm1632, %v8004, 0
    %v8106 = vsel %vm1632, %v8005, 0
    %v8109 = vsel %vm1632, %v8006, 0
    %v8112 = vsel %vm1632, %v8007, 0
    %v8115 = vsel %vm1632, %v8008, 0
    %v8118 = vsel %vm1632, %v8009, 0
    %v8121 = vsel %vm1632, %v8010, 0
    %v8124 = vsel %vm1632, %v8011, 0
    %v8127 = vsel %vm1632, %v8012, 0
    %v8130 = vsel %vm1632, %v8013, 0
    %v8133 = vsel %vm1632, %v8014, 0
    %v8136 = vsel %vm1632, %v8015, 0
    %v8139 = vsel %vm1632, %v8016, 0
    %v8142 = vsel %vm1632, %v8017, 0
    %v8145 = vsel %vm1632, %v8018, 0
    %v8148 = vsel %vm1632, %v8019, 0
    %v8151 = vsel %vm1632, %v8020, 0
    %v8154 = vsel %vm1632, %v8021, 0
    %v8157 = vsel %vm1632, %v8022, 0
    %v8160 = vsel %vm1632, %v8023, 0
    %v8163 = vsel %vm1632, %v8024, 0
    %v8166 = vsel %vm1632, %v8025, 0
    %v8169 = vsel %vm1632, %v8026, 0
    %v8172 = vsel %vm1632, %v8027, 0
    %v8175 = vsel %vm1632, %v8028, 0
    %v8178 = vsel %vm1632, %v8029, 0
    %v8181 = vsel %vm1632, %v8030, 0
    %v8184 = vsel %vm1632, %v8031, 0
    %v8187 = vsel %vm1632, %v8032, 0
    %v8190 = vsel %vm1632, %v8033, 0
    %v8193 = vsel %vm1632, %v8034, 0
    %v8196 = vsel %vm1632, %v8035, 0
    %v8199 = vsel %vm1632, %v8036, 0
    %v8202 = vsel %vm1632, %v8037, 0
    %v8205 = vsel %vm1632, %v8038, 0
    %v8208 = vsel %vm1632, %v8039, 0
    %v8211 = vsel %vm1632, %v8040, 0
    %v8214 = vsel %vm1632, %v8041, 0
    %v8217 = vsel %vm1632, %v8042, 0
    %v8220 = vsel %vm1632, %v8043, 0
    %v8223 = vsel %vm1632, %v8044, 0
    %v8226 = vsel %vm1632, %v8045, 0
    %v8229 = vsel %vm1632, %v8046, 0
    %v8232 = vsel %vm1632, %v8047, 0
    %v8235 = vsel %vm1632, %v8048, 0
    %v8238 = vsel %vm1632, %v8049, 0
    %v8241 = vsel %vm1632, %v8050, 0
    %v8244 = vsel %vm1632, %v8051, 0
    %8246 = vmatprep.subr.mxu0 0.0
    %8247 = vmatpush1.msra.mxu0 %v8053
    %8248 = vmatprep.subr.mxu0 0.0
    %8249 = vmatpush1.msra.mxu0 0.0
    %8250 = vmatprep.subr.mxu0 0.0
    %8251 = vmatpush1.msra.mxu0 0.0
    %8252 = vmatprep.subr.mxu0 0.0
    %8253 = vmatpush1.msra.mxu0 0.0
    %8254 = vmatprep.subr.mxu0 0.0
    %8255 = vmatpush1.msra.mxu0 0.0
    %8256 = vmatprep.subr.mxu0 0.0
    %8257 = vmatpush1.msra.mxu0 0.0
    %8258 = vmatprep.subr.mxu0 0.0
    %8259 = vmatpush1.msra.mxu0 0.0
    %8260 = vmatprep.subr.mxu0 0.0
    %8261 = vmatpush1.msra.mxu0 0.0
    %8262 = vmatprep.subr.mxu0 0.0
    %8263 = vmatpush1.msra.mxu0 0.0
    %8264 = vmatprep.subr.mxu0 0.0
    %8265 = vmatpush1.msra.mxu0 0.0
    %8266 = vmatprep.subr.mxu0 0.0
    %8267 = vmatpush1.msra.mxu0 0.0
    %8268 = vmatprep.subr.mxu0 0.0
    %8269 = vmatpush1.msra.mxu0 0.0
    %8270 = vmatprep.subr.mxu0 0.0
    %8271 = vmatpush1.msra.mxu0 0.0
    %8272 = vmatprep.subr.mxu0 0.0
    %8273 = vmatpush1.msra.mxu0 0.0
    %8274 = vmatprep.subr.mxu0 0.0
    %8275 = vmatpush1.msra.mxu0 0.0
    %8276 = vmatprep.subr.mxu0 0.0
    %8277 = vmatpush1.msra.mxu0 0.0
    %8278 = vmatprep.subr.mxu0 0.0
    %8279 = vmatpush1.msra.mxu0 0.0
    %8280 = vmatprep.subr.mxu0 0.0
    %8281 = vmatpush1.msra.mxu0 0.0
    %8282 = vmatprep.subr.mxu0 0.0
    %8283 = vmatpush1.msra.mxu0 0.0
    %8284 = vmatprep.subr.mxu0 0.0
    %8285 = vmatpush1.msra.mxu0 0.0
    %8286 = vmatprep.subr.mxu0 0.0
    %8287 = vmatpush1.msra.mxu0 0.0
    %8288 = vmatprep.subr.mxu0 0.0
    %8289 = vmatpush1.msra.mxu0 0.0
    %8290 = vmatprep.subr.mxu0 0.0
    %8291 = vmatpush1.msra.mxu0 0.0
    %8292 = vmatprep.subr.mxu0 0.0
    %8293 = vmatpush1.msra.mxu0 0.0
    %8294 = vmatprep.subr.mxu0 0.0
    %8295 = vmatpush1.msra.mxu0 0.0
    %8296 = vmatprep.subr.mxu0 0.0
    %8297 = vmatpush1.msra.mxu0 0.0
    %8298 = vmatprep.subr.mxu0 0.0
    %8299 = vmatpush1.msra.mxu0 0.0
    %8300 = vmatprep.subr.mxu0 0.0
    %8301 = vmatpush1.msra.mxu0 0.0
    %8302 = vmatprep.subr.mxu0 0.0
    %8303 = vmatpush1.msra.mxu0 0.0
    %8304 = vmatprep.subr.mxu0 0.0
    %8305 = vmatpush1.msra.mxu0 0.0
    %8306 = vmatprep.subr.mxu0 0.0
    %8307 = vmatpush1.msra.mxu0 0.0
    %8308 = vmatprep.subr.mxu0 0.0
    %8309 = vmatpush1.msra.mxu0 0.0
    %8310 = vmatprep.mubr.f32.mxu0 0.0
    %8311 = vmatmul.mubr.f32.gmra.mrb[0].mxu0 %v8055
    %v8312 = vpop.f32.mrb[0].mxu0
    %v8313 = vadd.f32 0.0, %v8312
    %v8314 = vpop.f32.mrb[0].mxu0
    %8315 = vmatprep.mubr.f32.mxu0 0.0
    %8316 = vmatmul.mubr.f32.gmra.mrb[0].mxu0 %v8058
    %v8317 = vpop.f32.mrb[0].mxu0
    %v8318 = vadd.f32 0.0, %v8317
    %v8319 = vpop.f32.mrb[0].mxu0
    %8320 = vmatprep.mubr.f32.mxu0 0.0
    %8321 = vmatmul.mubr.f32.gmra.mrb[0].mxu0 %v8061
    %v8322 = vpop.f32.mrb[0].mxu0
    %v8323 = vadd.f32 0.0, %v8322
    %v8324 = vpop.f32.mrb[0].mxu0
    %8325 = vmatprep.mubr.f32.mxu0 0.0
    %8326 = vmatmul.mubr.f32.gmra.mrb[0].mxu0 %v8064
    %v8327 = vpop.f32.mrb[0].mxu0
    %v8328 = vadd.f32 0.0, %v8327
    %v8329 = vpop.f32.mrb[0].mxu0
    %8330 = vmatprep.mubr.f32.mxu0 0.0
    %8331 = vmatmul.mubr.f32.gmra.mrb[0].mxu0 %v8067
    %v8332 = vpop.f32.mrb[0].mxu0
    %v8333 = vadd.f32 0.0, %v8332
    %v8334 = vpop.f32.mrb[0].mxu0
    %8335 = vmatprep.mubr.f32.mxu0 0.0
    %8336 = vmatmul.mubr.f32.gmra.mrb[0].mxu0 %v8070
    %v8337 = vpop.f32.mrb[0].mxu0
    %v8338 = vadd.f32 0.0, %v8337
    %v8339 = vpop.f32.mrb[0].mxu0
    %8340 = vmatprep.mubr.f32.mxu0 0.0
    %8341 = vmatmul.mubr.f32.gmra.mrb[0].mxu0 %v8073
    %v8342 = vpop.f32.mrb[0].mxu0
    %v8343 = vadd.f32 0.0, %v8342
    %v8344 = vpop.f32.mrb[0].mxu0
    %8345 = vmatprep.mubr.f32.mxu0 0.0
    %8346 = vmatmul.mubr.f32.gmra.mrb[0].mxu0 %v8076
    %v8347 = vpop.f32.mrb[0].mxu0
    %v8348 = vadd.f32 0.0, %v8347
    %v8349 = vpop.f32.mrb[0].mxu0
    %8350 = vmatprep.mubr.f32.mxu0 0.0
    %8351 = vmatmul.mubr.f32.gmra.mrb[0].mxu0 %v8079
    %v8352 = vpop.f32.mrb[0].mxu0
    %v8353 = vadd.f32 0.0, %v8352
    %v8354 = vpop.f32.mrb[0].mxu0
    %8355 = vmatprep.mubr.f32.mxu0 0.0
    %8356 = vmatmul.mubr.f32.gmra.mrb[0].mxu0 %v8082
    %v8357 = vpop.f32.mrb[0].mxu0
    %v8358 = vadd.f32 0.0, %v8357
    %v8359 = vpop.f32.mrb[0].mxu0
    %8360 = vmatprep.mubr.f32.mxu0 0.0
    %8361 = vmatmul.mubr.f32.gmra.mrb[0].mxu0 %v8085
    %v8362 = vpop.f32.mrb[0].mxu0
    %v8363 = vadd.f32 0.0, %v8362
    %v8364 = vpop.f32.mrb[0].mxu0
    %8365 = vmatprep.mubr.f32.mxu0 0.0
    %8366 = vmatmul.mubr.f32.gmra.mrb[0].mxu0 %v8088
    %v8367 = vpop.f32.mrb[0].mxu0
    %v8368 = vadd.f32 0.0, %v8367
    %v8369 = vpop.f32.mrb[0].mxu0
    %8370 = vmatprep.mubr.f32.mxu0 0.0
    %8371 = vmatmul.mubr.f32.gmra.mrb[0].mxu0 %v8091
    %v8372 = vpop.f32.mrb[0].mxu0
    %v8373 = vadd.f32 0.0, %v8372
    %v8374 = vpop.f32.mrb[0].mxu0
    %8375 = vmatprep.mubr.f32.mxu0 0.0
    %8376 = vmatmul.mubr.f32.gmra.mrb[0].mxu0 %v8094
    %v8377 = vpop.f32.mrb[0].mxu0
    %v8378 = vadd.f32 0.0, %v8377
    %v8379 = vpop.f32.mrb[0].mxu0
    %8380 = vmatprep.mubr.f32.mxu0 0.0
    %8381 = vmatmul.mubr.f32.gmra.mrb[0].mxu0 %v8097
    %v8382 = vpop.f32.mrb[0].mxu0
    %v8383 = vadd.f32 0.0, %v8382
    %v8384 = vpop.f32.mrb[0].mxu0
    %8385 = vmatprep.mubr.f32.mxu0 0.0
    %8386 = vmatmul.mubr.f32.gmra.mrb[0].mxu0 %v8100
    %v8387 = vpop.f32.mrb[0].mxu0
    %v8388 = vadd.f32 0.0, %v8387
    %v8389 = vpop.f32.mrb[0].mxu0
    %8390 = vmatprep.mubr.f32.mxu0 0.0
    %8391 = vmatmul.mubr.f32.gmra.mrb[0].mxu0 %v8103
    %v8392 = vpop.f32.mrb[0].mxu0
    %v8393 = vadd.f32 0.0, %v8392
    %v8394 = vpop.f32.mrb[0].mxu0
    %8395 = vmatprep.mubr.f32.mxu0 0.0
    %8396 = vmatmul.mubr.f32.gmra.mrb[0].mxu0 %v8106
    %v8397 = vpop.f32.mrb[0].mxu0
    %v8398 = vadd.f32 0.0, %v8397
    %v8399 = vpop.f32.mrb[0].mxu0
    %8400 = vmatprep.mubr.f32.mxu0 0.0
    %8401 = vmatmul.mubr.f32.gmra.mrb[0].mxu0 %v8109
    %v8402 = vpop.f32.mrb[0].mxu0
    %v8403 = vadd.f32 0.0, %v8402
    %v8404 = vpop.f32.mrb[0].mxu0
    %8405 = vmatprep.mubr.f32.mxu0 0.0
    %8406 = vmatmul.mubr.f32.gmra.mrb[0].mxu0 %v8112
    %v8407 = vpop.f32.mrb[0].mxu0
    %v8408 = vadd.f32 0.0, %v8407
    %v8409 = vpop.f32.mrb[0].mxu0
    %8410 = vmatprep.mubr.f32.mxu0 0.0
    %8411 = vmatmul.mubr.f32.gmra.mrb[0].mxu0 %v8115
    %v8412 = vpop.f32.mrb[0].mxu0
    %v8413 = vadd.f32 0.0, %v8412
    %v8414 = vpop.f32.mrb[0].mxu0
    %8415 = vmatprep.mubr.f32.mxu0 0.0
    %8416 = vmatmul.mubr.f32.gmra.mrb[0].mxu0 %v8118
    %v8417 = vpop.f32.mrb[0].mxu0
    %v8418 = vadd.f32 0.0, %v8417
    %v8419 = vpop.f32.mrb[0].mxu0
    %8420 = vmatprep.mubr.f32.mxu0 0.0
    %8421 = vmatmul.mubr.f32.gmra.mrb[0].mxu0 %v8121
    %v8422 = vpop.f32.mrb[0].mxu0
    %v8423 = vadd.f32 0.0, %v8422
    %v8424 = vpop.f32.mrb[0].mxu0
    %8425 = vmatprep.mubr.f32.mxu0 0.0
    %8426 = vmatmul.mubr.f32.gmra.mrb[0].mxu0 %v8124
    %v8427 = vpop.f32.mrb[0].mxu0
    %v8428 = vadd.f32 0.0, %v8427
    %v8429 = vpop.f32.mrb[0].mxu0
    %8430 = vmatprep.mubr.f32.mxu0 0.0
    %8431 = vmatmul.mubr.f32.gmra.mrb[0].mxu0 %v8127
    %v8432 = vpop.f32.mrb[0].mxu0
    %v8433 = vadd.f32 0.0, %v8432
    %v8434 = vpop.f32.mrb[0].mxu0
    %8435 = vmatprep.mubr.f32.mxu0 0.0
    %8436 = vmatmul.mubr.f32.gmra.mrb[0].mxu0 %v8130
    %v8437 = vpop.f32.mrb[0].mxu0
    %v8438 = vadd.f32 0.0, %v8437
    %v8439 = vpop.f32.mrb[0].mxu0
    %8440 = vmatprep.mubr.f32.mxu0 0.0
    %8441 = vmatmul.mubr.f32.gmra.mrb[0].mxu0 %v8133
    %v8442 = vpop.f32.mrb[0].mxu0
    %v8443 = vadd.f32 0.0, %v8442
    %v8444 = vpop.f32.mrb[0].mxu0
    %8445 = vmatprep.mubr.f32.mxu0 0.0
    %8446 = vmatmul.mubr.f32.gmra.mrb[0].mxu0 %v8136
    %v8447 = vpop.f32.mrb[0].mxu0
    %v8448 = vadd.f32 0.0, %v8447
    %v8449 = vpop.f32.mrb[0].mxu0
    %8450 = vmatprep.mubr.f32.mxu0 0.0
    %8451 = vmatmul.mubr.f32.gmra.mrb[0].mxu0 %v8139
    %v8452 = vpop.f32.mrb[0].mxu0
    %v8453 = vadd.f32 0.0, %v8452
    %v8454 = vpop.f32.mrb[0].mxu0
    %8455 = vmatprep.mubr.f32.mxu0 0.0
    %8456 = vmatmul.mubr.f32.gmra.mrb[0].mxu0 %v8142
    %v8457 = vpop.f32.mrb[0].mxu0
    %v8458 = vadd.f32 0.0, %v8457
    %v8459 = vpop.f32.mrb[0].mxu0
    %8460 = vmatprep.mubr.f32.mxu0 0.0
    %8461 = vmatmul.mubr.f32.gmra.mrb[0].mxu0 %v8145
    %v8462 = vpop.f32.mrb[0].mxu0
    %v8463 = vadd.f32 0.0, %v8462
    %v8464 = vpop.f32.mrb[0].mxu0
    %8465 = vmatprep.mubr.f32.mxu0 0.0
    %8466 = vmatmul.mubr.f32.gmra.mrb[0].mxu0 %v8148
    %v8467 = vpop.f32.mrb[0].mxu0
    %v8468 = vadd.f32 0.0, %v8467
    %v8469 = vpop.f32.mrb[0].mxu0
    %8470 = vmatprep.mubr.f32.mxu0 0.0
    %8471 = vmatmul.mubr.f32.gmra.mrb[0].mxu0 %v8151
    %v8472 = vpop.f32.mrb[0].mxu0
    %v8473 = vadd.f32 0.0, %v8472
    %v8474 = vpop.f32.mrb[0].mxu0
    %8475 = vmatprep.mubr.f32.mxu0 0.0
    %8476 = vmatmul.mubr.f32.gmra.mrb[0].mxu0 %v8154
    %v8477 = vpop.f32.mrb[0].mxu0
    %v8478 = vadd.f32 0.0, %v8477
    %v8479 = vpop.f32.mrb[0].mxu0
    %8480 = vmatprep.mubr.f32.mxu0 0.0
    %8481 = vmatmul.mubr.f32.gmra.mrb[0].mxu0 %v8157
    %v8482 = vpop.f32.mrb[0].mxu0
    %v8483 = vadd.f32 0.0, %v8482
    %v8484 = vpop.f32.mrb[0].mxu0
    %8485 = vmatprep.mubr.f32.mxu0 0.0
    %8486 = vmatmul.mubr.f32.gmra.mrb[0].mxu0 %v8160
    %v8487 = vpop.f32.mrb[0].mxu0
    %v8488 = vadd.f32 0.0, %v8487
    %v8489 = vpop.f32.mrb[0].mxu0
    %8490 = vmatprep.mubr.f32.mxu0 0.0
    %8491 = vmatmul.mubr.f32.gmra.mrb[0].mxu0 %v8163
    %v8492 = vpop.f32.mrb[0].mxu0
    %v8493 = vadd.f32 0.0, %v8492
    %v8494 = vpop.f32.mrb[0].mxu0
    %8495 = vmatprep.mubr.f32.mxu0 0.0
    %8496 = vmatmul.mubr.f32.gmra.mrb[0].mxu0 %v8166
    %v8497 = vpop.f32.mrb[0].mxu0
    %v8498 = vadd.f32 0.0, %v8497
    %v8499 = vpop.f32.mrb[0].mxu0
    %8500 = vmatprep.mubr.f32.mxu0 0.0
    %8501 = vmatmul.mubr.f32.gmra.mrb[0].mxu0 %v8169
    %v8502 = vpop.f32.mrb[0].mxu0
    %v8503 = vadd.f32 0.0, %v8502
    %v8504 = vpop.f32.mrb[0].mxu0
    %8505 = vmatprep.mubr.f32.mxu0 0.0
    %8506 = vmatmul.mubr.f32.gmra.mrb[0].mxu0 %v8172
    %v8507 = vpop.f32.mrb[0].mxu0
    %v8508 = vadd.f32 0.0, %v8507
    %v8509 = vpop.f32.mrb[0].mxu0
    %8510 = vmatprep.mubr.f32.mxu0 0.0
    %8511 = vmatmul.mubr.f32.gmra.mrb[0].mxu0 %v8175
    %v8512 = vpop.f32.mrb[0].mxu0
    %v8513 = vadd.f32 0.0, %v8512
    %v8514 = vpop.f32.mrb[0].mxu0
    %8515 = vmatprep.mubr.f32.mxu0 0.0
    %8516 = vmatmul.mubr.f32.gmra.mrb[0].mxu0 %v8178
    %v8517 = vpop.f32.mrb[0].mxu0
    %v8518 = vadd.f32 0.0, %v8517
    %v8519 = vpop.f32.mrb[0].mxu0
    %8520 = vmatprep.mubr.f32.mxu0 0.0
    %8521 = vmatmul.mubr.f32.gmra.mrb[0].mxu0 %v8181
    %v8522 = vpop.f32.mrb[0].mxu0
    %v8523 = vadd.f32 0.0, %v8522
    %v8524 = vpop.f32.mrb[0].mxu0
    %8525 = vmatprep.mubr.f32.mxu0 0.0
    %8526 = vmatmul.mubr.f32.gmra.mrb[0].mxu0 %v8184
    %v8527 = vpop.f32.mrb[0].mxu0
    %v8528 = vadd.f32 0.0, %v8527
    %v8529 = vpop.f32.mrb[0].mxu0
    %8530 = vmatprep.mubr.f32.mxu0 0.0
    %8531 = vmatmul.mubr.f32.gmra.mrb[0].mxu0 %v8187
    %v8532 = vpop.f32.mrb[0].mxu0
    %v8533 = vadd.f32 0.0, %v8532
    %v8534 = vpop.f32.mrb[0].mxu0
    %8535 = vmatprep.mubr.f32.mxu0 0.0
    %8536 = vmatmul.mubr.f32.gmra.mrb[0].mxu0 %v8190
    %v8537 = vpop.f32.mrb[0].mxu0
    %v8538 = vadd.f32 0.0, %v8537
    %v8539 = vpop.f32.mrb[0].mxu0
    %8540 = vmatprep.mubr.f32.mxu0 0.0
    %8541 = vmatmul.mubr.f32.gmra.mrb[0].mxu0 %v8193
    %v8542 = vpop.f32.mrb[0].mxu0
    %v8543 = vadd.f32 0.0, %v8542
    %v8544 = vpop.f32.mrb[0].mxu0
    %8545 = vmatprep.mubr.f32.mxu0 0.0
    %8546 = vmatmul.mubr.f32.gmra.mrb[0].mxu0 %v8196
    %v8547 = vpop.f32.mrb[0].mxu0
    %v8548 = vadd.f32 0.0, %v8547
    %v8549 = vpop.f32.mrb[0].mxu0
    %8550 = vmatprep.mubr.f32.mxu0 0.0
    %8551 = vmatmul.mubr.f32.gmra.mrb[0].mxu0 %v8199
    %v8552 = vpop.f32.mrb[0].mxu0
    %v8553 = vadd.f32 0.0, %v8552
    %v8554 = vpop.f32.mrb[0].mxu0
    %8555 = vmatprep.mubr.f32.mxu0 0.0
    %8556 = vmatmul.mubr.f32.gmra.mrb[0].mxu0 %v8202
    %v8557 = vpop.f32.mrb[0].mxu0
    %v8558 = vadd.f32 0.0, %v8557
    %v8559 = vpop.f32.mrb[0].mxu0
    %8560 = vmatprep.mubr.f32.mxu0 0.0
    %8561 = vmatmul.mubr.f32.gmra.mrb[0].mxu0 %v8205
    %v8562 = vpop.f32.mrb[0].mxu0
    %v8563 = vadd.f32 0.0, %v8562
    %v8564 = vpop.f32.mrb[0].mxu0
    %8565 = vmatprep.mubr.f32.mxu0 0.0
    %8566 = vmatmul.mubr.f32.gmra.mrb[0].mxu0 %v8208
    %v8567 = vpop.f32.mrb[0].mxu0
    %v8568 = vadd.f32 0.0, %v8567
    %v8569 = vpop.f32.mrb[0].mxu0
    %8570 = vmatprep.mubr.f32.mxu0 0.0
    %8571 = vmatmul.mubr.f32.gmra.mrb[0].mxu0 %v8211
    %v8572 = vpop.f32.mrb[0].mxu0
    %v8573 = vadd.f32 0.0, %v8572
    %v8574 = vpop.f32.mrb[0].mxu0
    %8575 = vmatprep.mubr.f32.mxu0 0.0
    %8576 = vmatmul.mubr.f32.gmra.mrb[0].mxu0 %v8214
    %v8577 = vpop.f32.mrb[0].mxu0
    %v8578 = vadd.f32 0.0, %v8577
    %v8579 = vpop.f32.mrb[0].mxu0
    %8580 = vmatprep.mubr.f32.mxu0 0.0
    %8581 = vmatmul.mubr.f32.gmra.mrb[0].mxu0 %v8217
    %v8582 = vpop.f32.mrb[0].mxu0
    %v8583 = vadd.f32 0.0, %v8582
    %v8584 = vpop.f32.mrb[0].mxu0
    %8585 = vmatprep.mubr.f32.mxu0 0.0
    %8586 = vmatmul.mubr.f32.gmra.mrb[0].mxu0 %v8220
    %v8587 = vpop.f32.mrb[0].mxu0
    %v8588 = vadd.f32 0.0, %v8587
    %v8589 = vpop.f32.mrb[0].mxu0
    %8590 = vmatprep.mubr.f32.mxu0 0.0
    %8591 = vmatmul.mubr.f32.gmra.mrb[0].mxu0 %v8223
    %v8592 = vpop.f32.mrb[0].mxu0
    %v8593 = vadd.f32 0.0, %v8592
    %v8594 = vpop.f32.mrb[0].mxu0
    %8595 = vmatprep.mubr.f32.mxu0 0.0
    %8596 = vmatmul.mubr.f32.gmra.mrb[0].mxu0 %v8226
    %v8597 = vpop.f32.mrb[0].mxu0
    %v8598 = vadd.f32 0.0, %v8597
    %v8599 = vpop.f32.mrb[0].mxu0
    %8600 = vmatprep.mubr.f32.mxu0 0.0
    %8601 = vmatmul.mubr.f32.gmra.mrb[0].mxu0 %v8229
    %v8602 = vpop.f32.mrb[0].mxu0
    %v8603 = vadd.f32 0.0, %v8602
    %v8604 = vpop.f32.mrb[0].mxu0
    %8605 = vmatprep.mubr.f32.mxu0 0.0
    %8606 = vmatmul.mubr.f32.gmra.mrb[0].mxu0 %v8232
    %v8607 = vpop.f32.mrb[0].mxu0
    %v8608 = vadd.f32 0.0, %v8607
    %v8609 = vpop.f32.mrb[0].mxu0
    %8610 = vmatprep.mubr.f32.mxu0 0.0
    %8611 = vmatmul.mubr.f32.gmra.mrb[0].mxu0 %v8235
    %v8612 = vpop.f32.mrb[0].mxu0
    %v8613 = vadd.f32 0.0, %v8612
    %v8614 = vpop.f32.mrb[0].mxu0
    %8615 = vmatprep.mubr.f32.mxu0 0.0
    %8616 = vmatmul.mubr.f32.gmra.mrb[0].mxu0 %v8238
    %v8617 = vpop.f32.mrb[0].mxu0
    %v8618 = vadd.f32 0.0, %v8617
    %v8619 = vpop.f32.mrb[0].mxu0
    %8620 = vmatprep.mubr.f32.mxu0 0.0
    %8621 = vmatmul.mubr.f32.gmra.mrb[0].mxu0 %v8241
    %v8622 = vpop.f32.mrb[0].mxu0
    %v8623 = vadd.f32 0.0, %v8622
    %v8624 = vpop.f32.mrb[0].mxu0
    %8625 = vmatprep.mubr.f32.mxu0 0.0
    %8626 = vmatmul.mubr.f32.gmra.mrb[0].mxu0 %v8244
    %v8627 = vpop.f32.mrb[0].mxu0
    %v8628 = vadd.f32 0.0, %v8627
    %v8629 = vpop.f32.mrb[0].mxu0
    %8630 = vdwg.mxu0
    %v8631 = vadd.f32 %v7924, %v8313
    %v8632 = vadd.f32 %v7925, %v8318
    %v8633 = vadd.f32 %v7926, %v8323
    %v8634 = vadd.f32 %v7927, %v8328
    %v8635 = vadd.f32 %v7928, %v8333
    %v8636 = vadd.f32 %v7929, %v8338
    %v8637 = vadd.f32 %v7930, %v8343
    %v8638 = vadd.f32 %v7931, %v8348
    %v8639 = vadd.f32 %v7932, %v8353
    %v8640 = vadd.f32 %v7933, %v8358
    %v8641 = vadd.f32 %v7934, %v8363
    %v8642 = vadd.f32 %v7935, %v8368
    %v8643 = vadd.f32 %v7936, %v8373
    %v8644 = vadd.f32 %v7937, %v8378
    %v8645 = vadd.f32 %v7938, %v8383
    %v8646 = vadd.f32 %v7939, %v8388
    %v8647 = vadd.f32 %v7940, %v8393
    %v8648 = vadd.f32 %v7941, %v8398
    %v8649 = vadd.f32 %v7942, %v8403
    %v8650 = vadd.f32 %v7943, %v8408
    %v8651 = vadd.f32 %v7944, %v8413
    %v8652 = vadd.f32 %v7945, %v8418
    %v8653 = vadd.f32 %v7946, %v8423
    %v8654 = vadd.f32 %v7947, %v8428
    %v8655 = vadd.f32 %v7948, %v8433
    %v8656 = vadd.f32 %v7949, %v8438
    %v8657 = vadd.f32 %v7950, %v8443
    %v8658 = vadd.f32 %v7951, %v8448
    %v8659 = vadd.f32 %v7952, %v8453
    %v8660 = vadd.f32 %v7953, %v8458
    %v8661 = vadd.f32 %v7954, %v8463
    %v8662 = vadd.f32 %v7955, %v8468
    %v8663 = vadd.f32 %v7956, %v8473
    %v8664 = vadd.f32 %v7957, %v8478
    %v8665 = vadd.f32 %v7958, %v8483
    %v8666 = vadd.f32 %v7959, %v8488
    %v8667 = vadd.f32 %v7960, %v8493
    %v8668 = vadd.f32 %v7961, %v8498
    %v8669 = vadd.f32 %v7962, %v8503
    %v8670 = vadd.f32 %v7963, %v8508
    %v8671 = vadd.f32 %v7964, %v8513
    %v8672 = vadd.f32 %v7965, %v8518
    %v8673 = vadd.f32 %v7966, %v8523
    %v8674 = vadd.f32 %v7967, %v8528
    %v8675 = vadd.f32 %v7968, %v8533
    %v8676 = vadd.f32 %v7969, %v8538
    %v8677 = vadd.f32 %v7970, %v8543
    %v8678 = vadd.f32 %v7971, %v8548
    %v8679 = vadd.f32 %v7972, %v8553
    %v8680 = vadd.f32 %v7973, %v8558
    %v8681 = vadd.f32 %v7974, %v8563
    %v8682 = vadd.f32 %v7975, %v8568
    %v8683 = vadd.f32 %v7976, %v8573
    %v8684 = vadd.f32 %v7977, %v8578
    %v8685 = vadd.f32 %v7978, %v8583
    %v8686 = vadd.f32 %v7979, %v8588
    %v8687 = vadd.f32 %v7980, %v8593
    %v8688 = vadd.f32 %v7981, %v8598
    %v8689 = vadd.f32 %v7982, %v8603
    %v8690 = vadd.f32 %v7983, %v8608
    %v8691 = vadd.f32 %v7984, %v8613
    %v8692 = vadd.f32 %v7985, %v8618
    %v8693 = vadd.f32 %v7986, %v8623
    %v8694 = vadd.f32 %v7987, %v8628
    %v8695 = vld [vmem:[%s5] sm:$0x1]
    %v8696 = vld [vmem:[%s6] sm:$0x1]
    %v8697 = vsel %vm1632, %v8631, 0.0
    %v8698 = vsel %vm1632, %v8632, 0.0
    %v8699 = vadd.f32 %v8697, %v8698
    %v8700 = vsel %vm1632, %v8633, 0.0
    %v8701 = vadd.f32 %v8699, %v8700
    %v8702 = vsel %vm1632, %v8634, 0.0
    %v8703 = vadd.f32 %v8701, %v8702
    %v8704 = vsel %vm1632, %v8635, 0.0
    %v8705 = vadd.f32 %v8703, %v8704
    %v8706 = vsel %vm1632, %v8636, 0.0
    %v8707 = vadd.f32 %v8705, %v8706
    %v8708 = vsel %vm1632, %v8637, 0.0
    %v8709 = vadd.f32 %v8707, %v8708
    %v8710 = vsel %vm1632, %v8638, 0.0
    %v8711 = vadd.f32 %v8709, %v8710
    %v8712 = vsel %vm1632, %v8639, 0.0
    %v8713 = vadd.f32 %v8711, %v8712
    %v8714 = vsel %vm1632, %v8640, 0.0
    %v8715 = vadd.f32 %v8713, %v8714
    %v8716 = vsel %vm1632, %v8641, 0.0
    %v8717 = vadd.f32 %v8715, %v8716
    %v8718 = vsel %vm1632, %v8642, 0.0
    %v8719 = vadd.f32 %v8717, %v8718
    %v8720 = vsel %vm1632, %v8643, 0.0
    %v8721 = vadd.f32 %v8719, %v8720
    %v8722 = vsel %vm1632, %v8644, 0.0
    %v8723 = vadd.f32 %v8721, %v8722
    %v8724 = vsel %vm1632, %v8645, 0.0
    %v8725 = vadd.f32 %v8723, %v8724
    %v8726 = vsel %vm1632, %v8646, 0.0
    %v8727 = vadd.f32 %v8725, %v8726
    %v8728 = vsel %vm1632, %v8647, 0.0
    %v8729 = vadd.f32 %v8727, %v8728
    %v8730 = vsel %vm1632, %v8648, 0.0
    %v8731 = vadd.f32 %v8729, %v8730
    %v8732 = vsel %vm1632, %v8649, 0.0
    %v8733 = vadd.f32 %v8731, %v8732
    %v8734 = vsel %vm1632, %v8650, 0.0
    %v8735 = vadd.f32 %v8733, %v8734
    %v8736 = vsel %vm1632, %v8651, 0.0
    %v8737 = vadd.f32 %v8735, %v8736
    %v8738 = vsel %vm1632, %v8652, 0.0
    %v8739 = vadd.f32 %v8737, %v8738
    %v8740 = vsel %vm1632, %v8653, 0.0
    %v8741 = vadd.f32 %v8739, %v8740
    %v8742 = vsel %vm1632, %v8654, 0.0
    %v8743 = vadd.f32 %v8741, %v8742
    %v8744 = vsel %vm1632, %v8655, 0.0
    %v8745 = vadd.f32 %v8743, %v8744
    %v8746 = vsel %vm1632, %v8656, 0.0
    %v8747 = vadd.f32 %v8745, %v8746
    %v8748 = vsel %vm1632, %v8657, 0.0
    %v8749 = vadd.f32 %v8747, %v8748
    %v8750 = vsel %vm1632, %v8658, 0.0
    %v8751 = vadd.f32 %v8749, %v8750
    %v8752 = vsel %vm1632, %v8659, 0.0
    %v8753 = vadd.f32 %v8751, %v8752
    %v8754 = vsel %vm1632, %v8660, 0.0
    %v8755 = vadd.f32 %v8753, %v8754
    %v8756 = vsel %vm1632, %v8661, 0.0
    %v8757 = vadd.f32 %v8755, %v8756
    %v8758 = vsel %vm1632, %v8662, 0.0
    %v8759 = vadd.f32 %v8757, %v8758
    %v8760 = vsel %vm1632, %v8663, 0.0
    %v8761 = vadd.f32 %v8759, %v8760
    %v8762 = vsel %vm1632, %v8664, 0.0
    %v8763 = vadd.f32 %v8761, %v8762
    %v8764 = vsel %vm1632, %v8665, 0.0
    %v8765 = vadd.f32 %v8763, %v8764
    %v8766 = vsel %vm1632, %v8666, 0.0
    %v8767 = vadd.f32 %v8765, %v8766
    %v8768 = vsel %vm1632, %v8667, 0.0
    %v8769 = vadd.f32 %v8767, %v8768
    %v8770 = vsel %vm1632, %v8668, 0.0
    %v8771 = vadd.f32 %v8769, %v8770
    %v8772 = vsel %vm1632, %v8669, 0.0
    %v8773 = vadd.f32 %v8771, %v8772
    %v8774 = vsel %vm1632, %v8670, 0.0
    %v8775 = vadd.f32 %v8773, %v8774
    %v8776 = vsel %vm1632, %v8671, 0.0
    %v8777 = vadd.f32 %v8775, %v8776
    %v8778 = vsel %vm1632, %v8672, 0.0
    %v8779 = vadd.f32 %v8777, %v8778
    %v8780 = vsel %vm1632, %v8673, 0.0
    %v8781 = vadd.f32 %v8779, %v8780
    %v8782 = vsel %vm1632, %v8674, 0.0
    %v8783 = vadd.f32 %v8781, %v8782
    %v8784 = vsel %vm1632, %v8675, 0.0
    %v8785 = vadd.f32 %v8783, %v8784
    %v8786 = vsel %vm1632, %v8676, 0.0
    %v8787 = vadd.f32 %v8785, %v8786
    %v8788 = vsel %vm1632, %v8677, 0.0
    %v8789 = vadd.f32 %v8787, %v8788
    %v8790 = vsel %vm1632, %v8678, 0.0
    %v8791 = vadd.f32 %v8789, %v8790
    %v8792 = vsel %vm1632, %v8679, 0.0
    %v8793 = vadd.f32 %v8791, %v8792
    %v8794 = vsel %vm1632, %v8680, 0.0
    %v8795 = vadd.f32 %v8793, %v8794
    %v8796 = vsel %vm1632, %v8681, 0.0
    %v8797 = vadd.f32 %v8795, %v8796
    %v8798 = vsel %vm1632, %v8682, 0.0
    %v8799 = vadd.f32 %v8797, %v8798
    %v8800 = vsel %vm1632, %v8683, 0.0
    %v8801 = vadd.f32 %v8799, %v8800
    %v8802 = vsel %vm1632, %v8684, 0.0
    %v8803 = vadd.f32 %v8801, %v8802
    %v8804 = vsel %vm1632, %v8685, 0.0
    %v8805 = vadd.f32 %v8803, %v8804
    %v8806 = vsel %vm1632, %v8686, 0.0
    %v8807 = vadd.f32 %v8805, %v8806
    %v8808 = vsel %vm1632, %v8687, 0.0
    %v8809 = vadd.f32 %v8807, %v8808
    %v8810 = vsel %vm1632, %v8688, 0.0
    %v8811 = vadd.f32 %v8809, %v8810
    %v8812 = vsel %vm1632, %v8689, 0.0
    %v8813 = vadd.f32 %v8811, %v8812
    %v8814 = vsel %vm1632, %v8690, 0.0
    %v8815 = vadd.f32 %v8813, %v8814
    %v8816 = vsel %vm1632, %v8691, 0.0
    %v8817 = vadd.f32 %v8815, %v8816
    %v8818 = vsel %vm1632, %v8692, 0.0
    %v8819 = vadd.f32 %v8817, %v8818
    %v8820 = vsel %vm1632, %v8693, 0.0
    %v8821 = vadd.f32 %v8819, %v8820
    %v8822 = vsel %vm1632, %v8694, 0.0
    %v8823 = vadd.f32 %v8821, %v8822
    %v8824 = vrot.slane %v8823, 4
    %v8825 = vadd.f32 %v8823, %v8824
    %v8826 = vrot.slane %v8825, 2
    %v8827 = vadd.f32 %v8825, %v8826
    %v8828 = vrot.slane %v8827, 1
    %v8829 = vadd.f32 %v8827, %v8828
    %v8830 = vmul.f32 %v8829, 0.001953125
    %v8831 = vsub.f32 %v8631, %v8830
    %v8832 = vsub.f32 %v8632, %v8830
    %v8833 = vsub.f32 %v8633, %v8830
    %v8834 = vsub.f32 %v8634, %v8830
    %v8835 = vsub.f32 %v8635, %v8830
    %v8836 = vsub.f32 %v8636, %v8830
    %v8837 = vsub.f32 %v8637, %v8830
    %v8838 = vsub.f32 %v8638, %v8830
    %v8839 = vsub.f32 %v8639, %v8830
    %v8840 = vsub.f32 %v8640, %v8830
    %v8841 = vsub.f32 %v8641, %v8830
    %v8842 = vsub.f32 %v8642, %v8830
    %v8843 = vsub.f32 %v8643, %v8830
    %v8844 = vsub.f32 %v8644, %v8830
    %v8845 = vsub.f32 %v8645, %v8830
    %v8846 = vsub.f32 %v8646, %v8830
    %v8847 = vsub.f32 %v8647, %v8830
    %v8848 = vsub.f32 %v8648, %v8830
    %v8849 = vsub.f32 %v8649, %v8830
    %v8850 = vsub.f32 %v8650, %v8830
    %v8851 = vsub.f32 %v8651, %v8830
    %v8852 = vsub.f32 %v8652, %v8830
    %v8853 = vsub.f32 %v8653, %v8830
    %v8854 = vsub.f32 %v8654, %v8830
    %v8855 = vsub.f32 %v8655, %v8830
    %v8856 = vsub.f32 %v8656, %v8830
    %v8857 = vsub.f32 %v8657, %v8830
    %v8858 = vsub.f32 %v8658, %v8830
    %v8859 = vsub.f32 %v8659, %v8830
    %v8860 = vsub.f32 %v8660, %v8830
    %v8861 = vsub.f32 %v8661, %v8830
    %v8862 = vsub.f32 %v8662, %v8830
    %v8863 = vsub.f32 %v8663, %v8830
    %v8864 = vsub.f32 %v8664, %v8830
    %v8865 = vsub.f32 %v8665, %v8830
    %v8866 = vsub.f32 %v8666, %v8830
    %v8867 = vsub.f32 %v8667, %v8830
    %v8868 = vsub.f32 %v8668, %v8830
    %v8869 = vsub.f32 %v8669, %v8830
    %v8870 = vsub.f32 %v8670, %v8830
    %v8871 = vsub.f32 %v8671, %v8830
    %v8872 = vsub.f32 %v8672, %v8830
    %v8873 = vsub.f32 %v8673, %v8830
    %v8874 = vsub.f32 %v8674, %v8830
    %v8875 = vsub.f32 %v8675, %v8830
    %v8876 = vsub.f32 %v8676, %v8830
    %v8877 = vsub.f32 %v8677, %v8830
    %v8878 = vsub.f32 %v8678, %v8830
    %v8879 = vsub.f32 %v8679, %v8830
    %v8880 = vsub.f32 %v8680, %v8830
    %v8881 = vsub.f32 %v8681, %v8830
    %v8882 = vsub.f32 %v8682, %v8830
    %v8883 = vsub.f32 %v8683, %v8830
    %v8884 = vsub.f32 %v8684, %v8830
    %v8885 = vsub.f32 %v8685, %v8830
    %v8886 = vsub.f32 %v8686, %v8830
    %v8887 = vsub.f32 %v8687, %v8830
    %v8888 = vsub.f32 %v8688, %v8830
    %v8889 = vsub.f32 %v8689, %v8830
    %v8890 = vsub.f32 %v8690, %v8830
    %v8891 = vsub.f32 %v8691, %v8830
    %v8892 = vsub.f32 %v8692, %v8830
    %v8893 = vsub.f32 %v8693, %v8830
    %v8894 = vsub.f32 %v8694, %v8830
    %v8895 = vmul.f32 %v8831, %v8831
    %v8896 = vmul.f32 %v8832, %v8832
    %v8897 = vmul.f32 %v8833, %v8833
    %v8898 = vmul.f32 %v8834, %v8834
    %v8899 = vmul.f32 %v8835, %v8835
    %v8900 = vmul.f32 %v8836, %v8836
    %v8901 = vmul.f32 %v8837, %v8837
    %v8902 = vmul.f32 %v8838, %v8838
    %v8903 = vmul.f32 %v8839, %v8839
    %v8904 = vmul.f32 %v8840, %v8840
    %v8905 = vmul.f32 %v8841, %v8841
    %v8906 = vmul.f32 %v8842, %v8842
    %v8907 = vmul.f32 %v8843, %v8843
    %v8908 = vmul.f32 %v8844, %v8844
    %v8909 = vmul.f32 %v8845, %v8845
    %v8910 = vmul.f32 %v8846, %v8846
    %v8911 = vmul.f32 %v8847, %v8847
    %v8912 = vmul.f32 %v8848, %v8848
    %v8913 = vmul.f32 %v8849, %v8849
    %v8914 = vmul.f32 %v8850, %v8850
    %v8915 = vmul.f32 %v8851, %v8851
    %v8916 = vmul.f32 %v8852, %v8852
    %v8917 = vmul.f32 %v8853, %v8853
    %v8918 = vmul.f32 %v8854, %v8854
    %v8919 = vmul.f32 %v8855, %v8855
    %v8920 = vmul.f32 %v8856, %v8856
    %v8921 = vmul.f32 %v8857, %v8857
    %v8922 = vmul.f32 %v8858, %v8858
    %v8923 = vmul.f32 %v8859, %v8859
    %v8924 = vmul.f32 %v8860, %v8860
    %v8925 = vmul.f32 %v8861, %v8861
    %v8926 = vmul.f32 %v8862, %v8862
    %v8927 = vmul.f32 %v8863, %v8863
    %v8928 = vmul.f32 %v8864, %v8864
    %v8929 = vmul.f32 %v8865, %v8865
    %v8930 = vmul.f32 %v8866, %v8866
    %v8931 = vmul.f32 %v8867, %v8867
    %v8932 = vmul.f32 %v8868, %v8868
    %v8933 = vmul.f32 %v8869, %v8869
    %v8934 = vmul.f32 %v8870, %v8870
    %v8935 = vmul.f32 %v8871, %v8871
    %v8936 = vmul.f32 %v8872, %v8872
    %v8937 = vmul.f32 %v8873, %v8873
    %v8938 = vmul.f32 %v8874, %v8874
    %v8939 = vmul.f32 %v8875, %v8875
    %v8940 = vmul.f32 %v8876, %v8876
    %v8941 = vmul.f32 %v8877, %v8877
    %v8942 = vmul.f32 %v8878, %v8878
    %v8943 = vmul.f32 %v8879, %v8879
    %v8944 = vmul.f32 %v8880, %v8880
    %v8945 = vmul.f32 %v8881, %v8881
    %v8946 = vmul.f32 %v8882, %v8882
    %v8947 = vmul.f32 %v8883, %v8883
    %v8948 = vmul.f32 %v8884, %v8884
    %v8949 = vmul.f32 %v8885, %v8885
    %v8950 = vmul.f32 %v8886, %v8886
    %v8951 = vmul.f32 %v8887, %v8887
    %v8952 = vmul.f32 %v8888, %v8888
    %v8953 = vmul.f32 %v8889, %v8889
    %v8954 = vmul.f32 %v8890, %v8890
    %v8955 = vmul.f32 %v8891, %v8891
    %v8956 = vmul.f32 %v8892, %v8892
    %v8957 = vmul.f32 %v8893, %v8893
    %v8958 = vmul.f32 %v8894, %v8894
    %v8959 = vsel %vm1632, %v8895, 0.0
    %v8960 = vsel %vm1632, %v8896, 0.0
    %v8961 = vadd.f32 %v8959, %v8960
    %v8962 = vsel %vm1632, %v8897, 0.0
    %v8963 = vadd.f32 %v8961, %v8962
    %v8964 = vsel %vm1632, %v8898, 0.0
    %v8965 = vadd.f32 %v8963, %v8964
    %v8966 = vsel %vm1632, %v8899, 0.0
    %v8967 = vadd.f32 %v8965, %v8966
    %v8968 = vsel %vm1632, %v8900, 0.0
    %v8969 = vadd.f32 %v8967, %v8968
    %v8970 = vsel %vm1632, %v8901, 0.0
    %v8971 = vadd.f32 %v8969, %v8970
    %v8972 = vsel %vm1632, %v8902, 0.0
    %v8973 = vadd.f32 %v8971, %v8972
    %v8974 = vsel %vm1632, %v8903, 0.0
    %v8975 = vadd.f32 %v8973, %v8974
    %v8976 = vsel %vm1632, %v8904, 0.0
    %v8977 = vadd.f32 %v8975, %v8976
    %v8978 = vsel %vm1632, %v8905, 0.0
    %v8979 = vadd.f32 %v8977, %v8978
    %v8980 = vsel %vm1632, %v8906, 0.0
    %v8981 = vadd.f32 %v8979, %v8980
    %v8982 = vsel %vm1632, %v8907, 0.0
    %v8983 = vadd.f32 %v8981, %v8982
    %v8984 = vsel %vm1632, %v8908, 0.0
    %v8985 = vadd.f32 %v8983, %v8984
    %v8986 = vsel %vm1632, %v8909, 0.0
    %v8987 = vadd.f32 %v8985, %v8986
    %v8988 = vsel %vm1632, %v8910, 0.0
    %v8989 = vadd.f32 %v8987, %v8988
    %v8990 = vsel %vm1632, %v8911, 0.0
    %v8991 = vadd.f32 %v8989, %v8990
    %v8992 = vsel %vm1632, %v8912, 0.0
    %v8993 = vadd.f32 %v8991, %v8992
    %v8994 = vsel %vm1632, %v8913, 0.0
    %v8995 = vadd.f32 %v8993, %v8994
    %v8996 = vsel %vm1632, %v8914, 0.0
    %v8997 = vadd.f32 %v8995, %v8996
    %v8998 = vsel %vm1632, %v8915, 0.0
    %v8999 = vadd.f32 %v8997, %v8998
    %v9000 = vsel %vm1632, %v8916, 0.0
    %v9001 = vadd.f32 %v8999, %v9000
    %v9002 = vsel %vm1632, %v8917, 0.0
    %v9003 = vadd.f32 %v9001, %v9002
    %v9004 = vsel %vm1632, %v8918, 0.0
    %v9005 = vadd.f32 %v9003, %v9004
    %v9006 = vsel %vm1632, %v8919, 0.0
    %v9007 = vadd.f32 %v9005, %v9006
    %v9008 = vsel %vm1632, %v8920, 0.0
    %v9009 = vadd.f32 %v9007, %v9008
    %v9010 = vsel %vm1632, %v8921, 0.0
    %v9011 = vadd.f32 %v9009, %v9010
    %v9012 = vsel %vm1632, %v8922, 0.0
    %v9013 = vadd.f32 %v9011, %v9012
    %v9014 = vsel %vm1632, %v8923, 0.0
    %v9015 = vadd.f32 %v9013, %v9014
    %v9016 = vsel %vm1632, %v8924, 0.0
    %v9017 = vadd.f32 %v9015, %v9016
    %v9018 = vsel %vm1632, %v8925, 0.0
    %v9019 = vadd.f32 %v9017, %v9018
    %v9020 = vsel %vm1632, %v8926, 0.0
    %v9021 = vadd.f32 %v9019, %v9020
    %v9022 = vsel %vm1632, %v8927, 0.0
    %v9023 = vadd.f32 %v9021, %v9022
    %v9024 = vsel %vm1632, %v8928, 0.0
    %v9025 = vadd.f32 %v9023, %v9024
    %v9026 = vsel %vm1632, %v8929, 0.0
    %v9027 = vadd.f32 %v9025, %v9026
    %v9028 = vsel %vm1632, %v8930, 0.0
    %v9029 = vadd.f32 %v9027, %v9028
    %v9030 = vsel %vm1632, %v8931, 0.0
    %v9031 = vadd.f32 %v9029, %v9030
    %v9032 = vsel %vm1632, %v8932, 0.0
    %v9033 = vadd.f32 %v9031, %v9032
    %v9034 = vsel %vm1632, %v8933, 0.0
    %v9035 = vadd.f32 %v9033, %v9034
    %v9036 = vsel %vm1632, %v8934, 0.0
    %v9037 = vadd.f32 %v9035, %v9036
    %v9038 = vsel %vm1632, %v8935, 0.0
    %v9039 = vadd.f32 %v9037, %v9038
    %v9040 = vsel %vm1632, %v8936, 0.0
    %v9041 = vadd.f32 %v9039, %v9040
    %v9042 = vsel %vm1632, %v8937, 0.0
    %v9043 = vadd.f32 %v9041, %v9042
    %v9044 = vsel %vm1632, %v8938, 0.0
    %v9045 = vadd.f32 %v9043, %v9044
    %v9046 = vsel %vm1632, %v8939, 0.0
    %v9047 = vadd.f32 %v9045, %v9046
    %v9048 = vsel %vm1632, %v8940, 0.0
    %v9049 = vadd.f32 %v9047, %v9048
    %v9050 = vsel %vm1632, %v8941, 0.0
    %v9051 = vadd.f32 %v9049, %v9050
    %v9052 = vsel %vm1632, %v8942, 0.0
    %v9053 = vadd.f32 %v9051, %v9052
    %v9054 = vsel %vm1632, %v8943, 0.0
    %v9055 = vadd.f32 %v9053, %v9054
    %v9056 = vsel %vm1632, %v8944, 0.0
    %v9057 = vadd.f32 %v9055, %v9056
    %v9058 = vsel %vm1632, %v8945, 0.0
    %v9059 = vadd.f32 %v9057, %v9058
    %v9060 = vsel %vm1632, %v8946, 0.0
    %v9061 = vadd.f32 %v9059, %v9060
    %v9062 = vsel %vm1632, %v8947, 0.0
    %v9063 = vadd.f32 %v9061, %v9062
    %v9064 = vsel %vm1632, %v8948, 0.0
    %v9065 = vadd.f32 %v9063, %v9064
    %v9066 = vsel %vm1632, %v8949, 0.0
    %v9067 = vadd.f32 %v9065, %v9066
    %v9068 = vsel %vm1632, %v8950, 0.0
    %v9069 = vadd.f32 %v9067, %v9068
    %v9070 = vsel %vm1632, %v8951, 0.0
    %v9071 = vadd.f32 %v9069, %v9070
    %v9072 = vsel %vm1632, %v8952, 0.0
    %v9073 = vadd.f32 %v9071, %v9072
    %v9074 = vsel %vm1632, %v8953, 0.0
    %v9075 = vadd.f32 %v9073, %v9074
    %v9076 = vsel %vm1632, %v8954, 0.0
    %v9077 = vadd.f32 %v9075, %v9076
    %v9078 = vsel %vm1632, %v8955, 0.0
    %v9079 = vadd.f32 %v9077, %v9078
    %v9080 = vsel %vm1632, %v8956, 0.0
    %v9081 = vadd.f32 %v9079, %v9080
    %v9082 = vsel %vm1632, %v8957, 0.0
    %v9083 = vadd.f32 %v9081, %v9082
    %v9084 = vsel %vm1632, %v8958, 0.0
    %v9085 = vadd.f32 %v9083, %v9084
    %v9086 = vrot.slane %v9085, 4
    %v9087 = vadd.f32 %v9085, %v9086
    %v9088 = vrot.slane %v9087, 2
    %v9089 = vadd.f32 %v9087, %v9088
    %v9090 = vrot.slane %v9089, 1
    %v9091 = vadd.f32 %v9089, %v9090
    %v9092 = vmul.f32 %v9091, 0.001953125
    %v9093 = vadd.f32 %v9092, 1e-05
    %v9094 = vrsqrt.pop %v9093
    %v9095 = vmul.f32 %v9094, %v8695
    %v9096 = vlaneseq
    %v9097 = vshrl.u32 %v9096, 7
    %v9098 = vsub.s32 0, %v9097
    %v9099 = vrot.slane %v9095, %v9098
    %v9100 = vmul.f32 %v8831, %v9099
    %v9101 = vmul.f32 %v8832, %v9099
    %v9102 = vmul.f32 %v8833, %v9099
    %v9103 = vmul.f32 %v8834, %v9099
    %v9104 = vmul.f32 %v8835, %v9099
    %v9105 = vmul.f32 %v8836, %v9099
    %v9106 = vmul.f32 %v8837, %v9099
    %v9107 = vmul.f32 %v8838, %v9099
    %v9108 = vmul.f32 %v8839, %v9099
    %v9109 = vmul.f32 %v8840, %v9099
    %v9110 = vmul.f32 %v8841, %v9099
    %v9111 = vmul.f32 %v8842, %v9099
    %v9112 = vmul.f32 %v8843, %v9099
    %v9113 = vmul.f32 %v8844, %v9099
    %v9114 = vmul.f32 %v8845, %v9099
    %v9115 = vmul.f32 %v8846, %v9099
    %v9116 = vmul.f32 %v8847, %v9099
    %v9117 = vmul.f32 %v8848, %v9099
    %v9118 = vmul.f32 %v8849, %v9099
    %v9119 = vmul.f32 %v8850, %v9099
    %v9120 = vmul.f32 %v8851, %v9099
    %v9121 = vmul.f32 %v8852, %v9099
    %v9122 = vmul.f32 %v8853, %v9099
    %v9123 = vmul.f32 %v8854, %v9099
    %v9124 = vmul.f32 %v8855, %v9099
    %v9125 = vmul.f32 %v8856, %v9099
    %v9126 = vmul.f32 %v8857, %v9099
    %v9127 = vmul.f32 %v8858, %v9099
    %v9128 = vmul.f32 %v8859, %v9099
    %v9129 = vmul.f32 %v8860, %v9099
    %v9130 = vmul.f32 %v8861, %v9099
    %v9131 = vmul.f32 %v8862, %v9099
    %v9132 = vmul.f32 %v8863, %v9099
    %v9133 = vmul.f32 %v8864, %v9099
    %v9134 = vmul.f32 %v8865, %v9099
    %v9135 = vmul.f32 %v8866, %v9099
    %v9136 = vmul.f32 %v8867, %v9099
    %v9137 = vmul.f32 %v8868, %v9099
    %v9138 = vmul.f32 %v8869, %v9099
    %v9139 = vmul.f32 %v8870, %v9099
    %v9140 = vmul.f32 %v8871, %v9099
    %v9141 = vmul.f32 %v8872, %v9099
    %v9142 = vmul.f32 %v8873, %v9099
    %v9143 = vmul.f32 %v8874, %v9099
    %v9144 = vmul.f32 %v8875, %v9099
    %v9145 = vmul.f32 %v8876, %v9099
    %v9146 = vmul.f32 %v8877, %v9099
    %v9147 = vmul.f32 %v8878, %v9099
    %v9148 = vmul.f32 %v8879, %v9099
    %v9149 = vmul.f32 %v8880, %v9099
    %v9150 = vmul.f32 %v8881, %v9099
    %v9151 = vmul.f32 %v8882, %v9099
    %v9152 = vmul.f32 %v8883, %v9099
    %v9153 = vmul.f32 %v8884, %v9099
    %v9154 = vmul.f32 %v8885, %v9099
    %v9155 = vmul.f32 %v8886, %v9099
    %v9156 = vmul.f32 %v8887, %v9099
    %v9157 = vmul.f32 %v8888, %v9099
    %v9158 = vmul.f32 %v8889, %v9099
    %v9159 = vmul.f32 %v8890, %v9099
    %v9160 = vmul.f32 %v8891, %v9099
    %v9161 = vmul.f32 %v8892, %v9099
    %v9162 = vmul.f32 %v8893, %v9099
    %v9163 = vmul.f32 %v8894, %v9099
    %v9165 = vlaneseq
    %v9166 = vshrl.u32 %v9165, 7
    %v9167 = vsub.s32 0, %v9166
    %v9168 = vrot.slane %v8696, %v9167
    %v9170 = vadd.f32 %v9100, %v9168
    %v9171 = vadd.f32 %v9101, %v9168
    %v9172 = vadd.f32 %v9102, %v9168
    %v9173 = vadd.f32 %v9103, %v9168
    %v9174 = vadd.f32 %v9104, %v9168
    %v9175 = vadd.f32 %v9105, %v9168
    %v9176 = vadd.f32 %v9106, %v9168
    %v9177 = vadd.f32 %v9107, %v9168
    %v9178 = vadd.f32 %v9108, %v9168
    %v9179 = vadd.f32 %v9109, %v9168
    %v9180 = vadd.f32 %v9110, %v9168
    %v9181 = vadd.f32 %v9111, %v9168
    %v9182 = vadd.f32 %v9112, %v9168
    %v9183 = vadd.f32 %v9113, %v9168
    %v9184 = vadd.f32 %v9114, %v9168
    %v9185 = vadd.f32 %v9115, %v9168
    %v9186 = vadd.f32 %v9116, %v9168
    %v9187 = vadd.f32 %v9117, %v9168
    %v9188 = vadd.f32 %v9118, %v9168
    %v9189 = vadd.f32 %v9119, %v9168
    %v9190 = vadd.f32 %v9120, %v9168
    %v9191 = vadd.f32 %v9121, %v9168
    %v9192 = vadd.f32 %v9122, %v9168
    %v9193 = vadd.f32 %v9123, %v9168
    %v9194 = vadd.f32 %v9124, %v9168
    %v9195 = vadd.f32 %v9125, %v9168
    %v9196 = vadd.f32 %v9126, %v9168
    %v9197 = vadd.f32 %v9127, %v9168
    %v9198 = vadd.f32 %v9128, %v9168
    %v9199 = vadd.f32 %v9129, %v9168
    %v9200 = vadd.f32 %v9130, %v9168
    %v9201 = vadd.f32 %v9131, %v9168
    %v9202 = vadd.f32 %v9132, %v9168
    %v9203 = vadd.f32 %v9133, %v9168
    %v9204 = vadd.f32 %v9134, %v9168
    %v9205 = vadd.f32 %v9135, %v9168
    %v9206 = vadd.f32 %v9136, %v9168
    %v9207 = vadd.f32 %v9137, %v9168
    %v9208 = vadd.f32 %v9138, %v9168
    %v9209 = vadd.f32 %v9139, %v9168
    %v9210 = vadd.f32 %v9140, %v9168
    %v9211 = vadd.f32 %v9141, %v9168
    %v9212 = vadd.f32 %v9142, %v9168
    %v9213 = vadd.f32 %v9143, %v9168
    %v9214 = vadd.f32 %v9144, %v9168
    %v9215 = vadd.f32 %v9145, %v9168
    %v9216 = vadd.f32 %v9146, %v9168
    %v9217 = vadd.f32 %v9147, %v9168
    %v9218 = vadd.f32 %v9148, %v9168
    %v9219 = vadd.f32 %v9149, %v9168
    %v9220 = vadd.f32 %v9150, %v9168
    %v9221 = vadd.f32 %v9151, %v9168
    %v9222 = vadd.f32 %v9152, %v9168
    %v9223 = vadd.f32 %v9153, %v9168
    %v9224 = vadd.f32 %v9154, %v9168
    %v9225 = vadd.f32 %v9155, %v9168
    %v9226 = vadd.f32 %v9156, %v9168
    %v9227 = vadd.f32 %v9157, %v9168
    %v9228 = vadd.f32 %v9158, %v9168
    %v9229 = vadd.f32 %v9159, %v9168
    %v9230 = vadd.f32 %v9160, %v9168
    %v9231 = vadd.f32 %v9161, %v9168
    %v9232 = vadd.f32 %v9162, %v9168
    %v9233 = vadd.f32 %v9163, %v9168
    %v9234 = vmax.f32 %v9170, 0.0
    %v9235 = vmax.f32 %v9171, 0.0
    %v9236 = vmax.f32 %v9172, 0.0
    %v9237 = vmax.f32 %v9173, 0.0
    %v9238 = vmax.f32 %v9174, 0.0
    %v9239 = vmax.f32 %v9175, 0.0
    %v9240 = vmax.f32 %v9176, 0.0
    %v9241 = vmax.f32 %v9177, 0.0
    %v9242 = vmax.f32 %v9178, 0.0
    %v9243 = vmax.f32 %v9179, 0.0
    %v9244 = vmax.f32 %v9180, 0.0
    %v9245 = vmax.f32 %v9181, 0.0
    %v9246 = vmax.f32 %v9182, 0.0
    %v9247 = vmax.f32 %v9183, 0.0
    %v9248 = vmax.f32 %v9184, 0.0
    %v9249 = vmax.f32 %v9185, 0.0
    %v9250 = vmax.f32 %v9186, 0.0
    %v9251 = vmax.f32 %v9187, 0.0
    %v9252 = vmax.f32 %v9188, 0.0
    %v9253 = vmax.f32 %v9189, 0.0
    %v9254 = vmax.f32 %v9190, 0.0
    %v9255 = vmax.f32 %v9191, 0.0
    %v9256 = vmax.f32 %v9192, 0.0
    %v9257 = vmax.f32 %v9193, 0.0
    %v9258 = vmax.f32 %v9194, 0.0
    %v9259 = vmax.f32 %v9195, 0.0
    %v9260 = vmax.f32 %v9196, 0.0
    %v9261 = vmax.f32 %v9197, 0.0
    %v9262 = vmax.f32 %v9198, 0.0
    %v9263 = vmax.f32 %v9199, 0.0
    %v9264 = vmax.f32 %v9200, 0.0
    %v9265 = vmax.f32 %v9201, 0.0
    %v9266 = vmax.f32 %v9202, 0.0
    %v9267 = vmax.f32 %v9203, 0.0
    %v9268 = vmax.f32 %v9204, 0.0
    %v9269 = vmax.f32 %v9205, 0.0
    %v9270 = vmax.f32 %v9206, 0.0
    %v9271 = vmax.f32 %v9207, 0.0
    %v9272 = vmax.f32 %v9208, 0.0
    %v9273 = vmax.f32 %v9209, 0.0
    %v9274 = vmax.f32 %v9210, 0.0
    %v9275 = vmax.f32 %v9211, 0.0
    %v9276 = vmax.f32 %v9212, 0.0
    %v9277 = vmax.f32 %v9213, 0.0
    %v9278 = vmax.f32 %v9214, 0.0
    %v9279 = vmax.f32 %v9215, 0.0
    %v9280 = vmax.f32 %v9216, 0.0
    %v9281 = vmax.f32 %v9217, 0.0
    %v9282 = vmax.f32 %v9218, 0.0
    %v9283 = vmax.f32 %v9219, 0.0
    %v9284 = vmax.f32 %v9220, 0.0
    %v9285 = vmax.f32 %v9221, 0.0
    %v9286 = vmax.f32 %v9222, 0.0
    %v9287 = vmax.f32 %v9223, 0.0
    %v9288 = vmax.f32 %v9224, 0.0
    %v9289 = vmax.f32 %v9225, 0.0
    %v9290 = vmax.f32 %v9226, 0.0
    %v9291 = vmax.f32 %v9227, 0.0
    %v9292 = vmax.f32 %v9228, 0.0
    %v9293 = vmax.f32 %v9229, 0.0
    %v9294 = vmax.f32 %v9230, 0.0
    %v9295 = vmax.f32 %v9231, 0.0
    %v9296 = vmax.f32 %v9232, 0.0
    %v9297 = vmax.f32 %v9233, 0.0
    %v9298 = vld [vmem:[%s7] sm:$0xff]
    %v9300 = vsel %vm1632, %v9234, 0
    %v9303 = vsel %vm1632, %v9235, 0
    %v9306 = vsel %vm1632, %v9236, 0
    %v9309 = vsel %vm1632, %v9237, 0
    %v9312 = vsel %vm1632, %v9238, 0
    %v9315 = vsel %vm1632, %v9239, 0
    %v9318 = vsel %vm1632, %v9240, 0
    %v9321 = vsel %vm1632, %v9241, 0
    %v9324 = vsel %vm1632, %v9242, 0
    %v9327 = vsel %vm1632, %v9243, 0
    %v9330 = vsel %vm1632, %v9244, 0
    %v9333 = vsel %vm1632, %v9245, 0
    %v9336 = vsel %vm1632, %v9246, 0
    %v9339 = vsel %vm1632, %v9247, 0
    %v9342 = vsel %vm1632, %v9248, 0
    %v9345 = vsel %vm1632, %v9249, 0
    %v9348 = vsel %vm1632, %v9250, 0
    %v9351 = vsel %vm1632, %v9251, 0
    %v9354 = vsel %vm1632, %v9252, 0
    %v9357 = vsel %vm1632, %v9253, 0
    %v9360 = vsel %vm1632, %v9254, 0
    %v9363 = vsel %vm1632, %v9255, 0
    %v9366 = vsel %vm1632, %v9256, 0
    %v9369 = vsel %vm1632, %v9257, 0
    %v9372 = vsel %vm1632, %v9258, 0
    %v9375 = vsel %vm1632, %v9259, 0
    %v9378 = vsel %vm1632, %v9260, 0
    %v9381 = vsel %vm1632, %v9261, 0
    %v9384 = vsel %vm1632, %v9262, 0
    %v9387 = vsel %vm1632, %v9263, 0
    %v9390 = vsel %vm1632, %v9264, 0
    %v9393 = vsel %vm1632, %v9265, 0
    %v9396 = vsel %vm1632, %v9266, 0
    %v9399 = vsel %vm1632, %v9267, 0
    %v9402 = vsel %vm1632, %v9268, 0
    %v9405 = vsel %vm1632, %v9269, 0
    %v9408 = vsel %vm1632, %v9270, 0
    %v9411 = vsel %vm1632, %v9271, 0
    %v9414 = vsel %vm1632, %v9272, 0
    %v9417 = vsel %vm1632, %v9273, 0
    %v9420 = vsel %vm1632, %v9274, 0
    %v9423 = vsel %vm1632, %v9275, 0
    %v9426 = vsel %vm1632, %v9276, 0
    %v9429 = vsel %vm1632, %v9277, 0
    %v9432 = vsel %vm1632, %v9278, 0
    %v9435 = vsel %vm1632, %v9279, 0
    %v9438 = vsel %vm1632, %v9280, 0
    %v9441 = vsel %vm1632, %v9281, 0
    %v9444 = vsel %vm1632, %v9282, 0
    %v9447 = vsel %vm1632, %v9283, 0
    %v9450 = vsel %vm1632, %v9284, 0
    %v9453 = vsel %vm1632, %v9285, 0
    %v9456 = vsel %vm1632, %v9286, 0
    %v9459 = vsel %vm1632, %v9287, 0
    %v9462 = vsel %vm1632, %v9288, 0
    %v9465 = vsel %vm1632, %v9289, 0
    %v9468 = vsel %vm1632, %v9290, 0
    %v9471 = vsel %vm1632, %v9291, 0
    %v9474 = vsel %vm1632, %v9292, 0
    %v9477 = vsel %vm1632, %v9293, 0
    %v9480 = vsel %vm1632, %v9294, 0
    %v9483 = vsel %vm1632, %v9295, 0
    %v9486 = vsel %vm1632, %v9296, 0
    %v9489 = vsel %vm1632, %v9297, 0
    %9491 = vmatprep.subr.mxu0 0.0
    %9492 = vmatpush1.msra.mxu0 %v9298
    %9493 = vmatprep.subr.mxu0 0.0
    %9494 = vmatpush1.msra.mxu0 0.0
    %9495 = vmatprep.subr.mxu0 0.0
    %9496 = vmatpush1.msra.mxu0 0.0
    %9497 = vmatprep.subr.mxu0 0.0
    %9498 = vmatpush1.msra.mxu0 0.0
    %9499 = vmatprep.subr.mxu0 0.0
    %9500 = vmatpush1.msra.mxu0 0.0
    %9501 = vmatprep.subr.mxu0 0.0
    %9502 = vmatpush1.msra.mxu0 0.0
    %9503 = vmatprep.subr.mxu0 0.0
    %9504 = vmatpush1.msra.mxu0 0.0
    %9505 = vmatprep.subr.mxu0 0.0
    %9506 = vmatpush1.msra.mxu0 0.0
    %9507 = vmatprep.subr.mxu0 0.0
    %9508 = vmatpush1.msra.mxu0 0.0
    %9509 = vmatprep.subr.mxu0 0.0
    %9510 = vmatpush1.msra.mxu0 0.0
    %9511 = vmatprep.subr.mxu0 0.0
    %9512 = vmatpush1.msra.mxu0 0.0
    %9513 = vmatprep.subr.mxu0 0.0
    %9514 = vmatpush1.msra.mxu0 0.0
    %9515 = vmatprep.subr.mxu0 0.0
    %9516 = vmatpush1.msra.mxu0 0.0
    %9517 = vmatprep.subr.mxu0 0.0
    %9518 = vmatpush1.msra.mxu0 0.0
    %9519 = vmatprep.subr.mxu0 0.0
    %9520 = vmatpush1.msra.mxu0 0.0
    %9521 = vmatprep.subr.mxu0 0.0
    %9522 = vmatpush1.msra.mxu0 0.0
    %9523 = vmatprep.subr.mxu0 0.0
    %9524 = vmatpush1.msra.mxu0 0.0
    %9525 = vmatprep.subr.mxu0 0.0
    %9526 = vmatpush1.msra.mxu0 0.0
    %9527 = vmatprep.subr.mxu0 0.0
    %9528 = vmatpush1.msra.mxu0 0.0
    %9529 = vmatprep.subr.mxu0 0.0
    %9530 = vmatpush1.msra.mxu0 0.0
    %9531 = vmatprep.subr.mxu0 0.0
    %9532 = vmatpush1.msra.mxu0 0.0
    %9533 = vmatprep.subr.mxu0 0.0
    %9534 = vmatpush1.msra.mxu0 0.0
    %9535 = vmatprep.subr.mxu0 0.0
    %9536 = vmatpush1.msra.mxu0 0.0
    %9537 = vmatprep.subr.mxu0 0.0
    %9538 = vmatpush1.msra.mxu0 0.0
    %9539 = vmatprep.subr.mxu0 0.0
    %9540 = vmatpush1.msra.mxu0 0.0
    %9541 = vmatprep.subr.mxu0 0.0
    %9542 = vmatpush1.msra.mxu0 0.0
    %9543 = vmatprep.subr.mxu0 0.0
    %9544 = vmatpush1.msra.mxu0 0.0
    %9545 = vmatprep.subr.mxu0 0.0
    %9546 = vmatpush1.msra.mxu0 0.0
    %9547 = vmatprep.subr.mxu0 0.0
    %9548 = vmatpush1.msra.mxu0 0.0
    %9549 = vmatprep.subr.mxu0 0.0
    %9550 = vmatpush1.msra.mxu0 0.0
    %9551 = vmatprep.subr.mxu0 0.0
    %9552 = vmatpush1.msra.mxu0 0.0
    %9553 = vmatprep.subr.mxu0 0.0
    %9554 = vmatpush1.msra.mxu0 0.0
    %9555 = vmatprep.mubr.f32.mxu0 0.0
    %9556 = vmatmul.mubr.f32.gmra.mrb[0].mxu0 %v9300
    %v9557 = vpop.f32.mrb[0].mxu0
    %v9558 = vadd.f32 0.0, %v9557
    %v9559 = vpop.f32.mrb[0].mxu0
    %9560 = vmatprep.mubr.f32.mxu0 0.0
    %9561 = vmatmul.mubr.f32.gmra.mrb[0].mxu0 %v9303
    %v9562 = vpop.f32.mrb[0].mxu0
    %v9563 = vadd.f32 0.0, %v9562
    %v9564 = vpop.f32.mrb[0].mxu0
    %9565 = vmatprep.mubr.f32.mxu0 0.0
    %9566 = vmatmul.mubr.f32.gmra.mrb[0].mxu0 %v9306
    %v9567 = vpop.f32.mrb[0].mxu0
    %v9568 = vadd.f32 0.0, %v9567
    %v9569 = vpop.f32.mrb[0].mxu0
    %9570 = vmatprep.mubr.f32.mxu0 0.0
    %9571 = vmatmul.mubr.f32.gmra.mrb[0].mxu0 %v9309
    %v9572 = vpop.f32.mrb[0].mxu0
    %v9573 = vadd.f32 0.0, %v9572
    %v9574 = vpop.f32.mrb[0].mxu0
    %9575 = vmatprep.mubr.f32.mxu0 0.0
    %9576 = vmatmul.mubr.f32.gmra.mrb[0].mxu0 %v9312
    %v9577 = vpop.f32.mrb[0].mxu0
    %v9578 = vadd.f32 0.0, %v9577
    %v9579 = vpop.f32.mrb[0].mxu0
    %9580 = vmatprep.mubr.f32.mxu0 0.0
    %9581 = vmatmul.mubr.f32.gmra.mrb[0].mxu0 %v9315
    %v9582 = vpop.f32.mrb[0].mxu0
    %v9583 = vadd.f32 0.0, %v9582
    %v9584 = vpop.f32.mrb[0].mxu0
    %9585 = vmatprep.mubr.f32.mxu0 0.0
    %9586 = vmatmul.mubr.f32.gmra.mrb[0].mxu0 %v9318
    %v9587 = vpop.f32.mrb[0].mxu0
    %v9588 = vadd.f32 0.0, %v9587
    %v9589 = vpop.f32.mrb[0].mxu0
    %9590 = vmatprep.mubr.f32.mxu0 0.0
    %9591 = vmatmul.mubr.f32.gmra.mrb[0].mxu0 %v9321
    %v9592 = vpop.f32.mrb[0].mxu0
    %v9593 = vadd.f32 0.0, %v9592
    %v9594 = vpop.f32.mrb[0].mxu0
    %9595 = vmatprep.mubr.f32.mxu0 0.0
    %9596 = vmatmul.mubr.f32.gmra.mrb[0].mxu0 %v9324
    %v9597 = vpop.f32.mrb[0].mxu0
    %v9598 = vadd.f32 0.0, %v9597
    %v9599 = vpop.f32.mrb[0].mxu0
    %9600 = vmatprep.mubr.f32.mxu0 0.0
    %9601 = vmatmul.mubr.f32.gmra.mrb[0].mxu0 %v9327
    %v9602 = vpop.f32.mrb[0].mxu0
    %v9603 = vadd.f32 0.0, %v9602
    %v9604 = vpop.f32.mrb[0].mxu0
    %9605 = vmatprep.mubr.f32.mxu0 0.0
    %9606 = vmatmul.mubr.f32.gmra.mrb[0].mxu0 %v9330
    %v9607 = vpop.f32.mrb[0].mxu0
    %v9608 = vadd.f32 0.0, %v9607
    %v9609 = vpop.f32.mrb[0].mxu0
    %9610 = vmatprep.mubr.f32.mxu0 0.0
    %9611 = vmatmul.mubr.f32.gmra.mrb[0].mxu0 %v9333
    %v9612 = vpop.f32.mrb[0].mxu0
    %v9613 = vadd.f32 0.0, %v9612
    %v9614 = vpop.f32.mrb[0].mxu0
    %9615 = vmatprep.mubr.f32.mxu0 0.0
    %9616 = vmatmul.mubr.f32.gmra.mrb[0].mxu0 %v9336
    %v9617 = vpop.f32.mrb[0].mxu0
    %v9618 = vadd.f32 0.0, %v9617
    %v9619 = vpop.f32.mrb[0].mxu0
    %9620 = vmatprep.mubr.f32.mxu0 0.0
    %9621 = vmatmul.mubr.f32.gmra.mrb[0].mxu0 %v9339
    %v9622 = vpop.f32.mrb[0].mxu0
    %v9623 = vadd.f32 0.0, %v9622
    %v9624 = vpop.f32.mrb[0].mxu0
    %9625 = vmatprep.mubr.f32.mxu0 0.0
    %9626 = vmatmul.mubr.f32.gmra.mrb[0].mxu0 %v9342
    %v9627 = vpop.f32.mrb[0].mxu0
    %v9628 = vadd.f32 0.0, %v9627
    %v9629 = vpop.f32.mrb[0].mxu0
    %9630 = vmatprep.mubr.f32.mxu0 0.0
    %9631 = vmatmul.mubr.f32.gmra.mrb[0].mxu0 %v9345
    %v9632 = vpop.f32.mrb[0].mxu0
    %v9633 = vadd.f32 0.0, %v9632
    %v9634 = vpop.f32.mrb[0].mxu0
    %9635 = vmatprep.mubr.f32.mxu0 0.0
    %9636 = vmatmul.mubr.f32.gmra.mrb[0].mxu0 %v9348
    %v9637 = vpop.f32.mrb[0].mxu0
    %v9638 = vadd.f32 0.0, %v9637
    %v9639 = vpop.f32.mrb[0].mxu0
    %9640 = vmatprep.mubr.f32.mxu0 0.0
    %9641 = vmatmul.mubr.f32.gmra.mrb[0].mxu0 %v9351
    %v9642 = vpop.f32.mrb[0].mxu0
    %v9643 = vadd.f32 0.0, %v9642
    %v9644 = vpop.f32.mrb[0].mxu0
    %9645 = vmatprep.mubr.f32.mxu0 0.0
    %9646 = vmatmul.mubr.f32.gmra.mrb[0].mxu0 %v9354
    %v9647 = vpop.f32.mrb[0].mxu0
    %v9648 = vadd.f32 0.0, %v9647
    %v9649 = vpop.f32.mrb[0].mxu0
    %9650 = vmatprep.mubr.f32.mxu0 0.0
    %9651 = vmatmul.mubr.f32.gmra.mrb[0].mxu0 %v9357
    %v9652 = vpop.f32.mrb[0].mxu0
    %v9653 = vadd.f32 0.0, %v9652
    %v9654 = vpop.f32.mrb[0].mxu0
    %9655 = vmatprep.mubr.f32.mxu0 0.0
    %9656 = vmatmul.mubr.f32.gmra.mrb[0].mxu0 %v9360
    %v9657 = vpop.f32.mrb[0].mxu0
    %v9658 = vadd.f32 0.0, %v9657
    %v9659 = vpop.f32.mrb[0].mxu0
    %9660 = vmatprep.mubr.f32.mxu0 0.0
    %9661 = vmatmul.mubr.f32.gmra.mrb[0].mxu0 %v9363
    %v9662 = vpop.f32.mrb[0].mxu0
    %v9663 = vadd.f32 0.0, %v9662
    %v9664 = vpop.f32.mrb[0].mxu0
    %9665 = vmatprep.mubr.f32.mxu0 0.0
    %9666 = vmatmul.mubr.f32.gmra.mrb[0].mxu0 %v9366
    %v9667 = vpop.f32.mrb[0].mxu0
    %v9668 = vadd.f32 0.0, %v9667
    %v9669 = vpop.f32.mrb[0].mxu0
    %9670 = vmatprep.mubr.f32.mxu0 0.0
    %9671 = vmatmul.mubr.f32.gmra.mrb[0].mxu0 %v9369
    %v9672 = vpop.f32.mrb[0].mxu0
    %v9673 = vadd.f32 0.0, %v9672
    %v9674 = vpop.f32.mrb[0].mxu0
    %9675 = vmatprep.mubr.f32.mxu0 0.0
    %9676 = vmatmul.mubr.f32.gmra.mrb[0].mxu0 %v9372
    %v9677 = vpop.f32.mrb[0].mxu0
    %v9678 = vadd.f32 0.0, %v9677
    %v9679 = vpop.f32.mrb[0].mxu0
    %9680 = vmatprep.mubr.f32.mxu0 0.0
    %9681 = vmatmul.mubr.f32.gmra.mrb[0].mxu0 %v9375
    %v9682 = vpop.f32.mrb[0].mxu0
    %v9683 = vadd.f32 0.0, %v9682
    %v9684 = vpop.f32.mrb[0].mxu0
    %9685 = vmatprep.mubr.f32.mxu0 0.0
    %9686 = vmatmul.mubr.f32.gmra.mrb[0].mxu0 %v9378
    %v9687 = vpop.f32.mrb[0].mxu0
    %v9688 = vadd.f32 0.0, %v9687
    %v9689 = vpop.f32.mrb[0].mxu0
    %9690 = vmatprep.mubr.f32.mxu0 0.0
    %9691 = vmatmul.mubr.f32.gmra.mrb[0].mxu0 %v9381
    %v9692 = vpop.f32.mrb[0].mxu0
    %v9693 = vadd.f32 0.0, %v9692
    %v9694 = vpop.f32.mrb[0].mxu0
    %9695 = vmatprep.mubr.f32.mxu0 0.0
    %9696 = vmatmul.mubr.f32.gmra.mrb[0].mxu0 %v9384
    %v9697 = vpop.f32.mrb[0].mxu0
    %v9698 = vadd.f32 0.0, %v9697
    %v9699 = vpop.f32.mrb[0].mxu0
    %9700 = vmatprep.mubr.f32.mxu0 0.0
    %9701 = vmatmul.mubr.f32.gmra.mrb[0].mxu0 %v9387
    %v9702 = vpop.f32.mrb[0].mxu0
    %v9703 = vadd.f32 0.0, %v9702
    %v9704 = vpop.f32.mrb[0].mxu0
    %9705 = vmatprep.mubr.f32.mxu0 0.0
    %9706 = vmatmul.mubr.f32.gmra.mrb[0].mxu0 %v9390
    %v9707 = vpop.f32.mrb[0].mxu0
    %v9708 = vadd.f32 0.0, %v9707
    %v9709 = vpop.f32.mrb[0].mxu0
    %9710 = vmatprep.mubr.f32.mxu0 0.0
    %9711 = vmatmul.mubr.f32.gmra.mrb[0].mxu0 %v9393
    %v9712 = vpop.f32.mrb[0].mxu0
    %v9713 = vadd.f32 0.0, %v9712
    %v9714 = vpop.f32.mrb[0].mxu0
    %9715 = vmatprep.mubr.f32.mxu0 0.0
    %9716 = vmatmul.mubr.f32.gmra.mrb[0].mxu0 %v9396
    %v9717 = vpop.f32.mrb[0].mxu0
    %v9718 = vadd.f32 0.0, %v9717
    %v9719 = vpop.f32.mrb[0].mxu0
    %9720 = vmatprep.mubr.f32.mxu0 0.0
    %9721 = vmatmul.mubr.f32.gmra.mrb[0].mxu0 %v9399
    %v9722 = vpop.f32.mrb[0].mxu0
    %v9723 = vadd.f32 0.0, %v9722
    %v9724 = vpop.f32.mrb[0].mxu0
    %9725 = vmatprep.mubr.f32.mxu0 0.0
    %9726 = vmatmul.mubr.f32.gmra.mrb[0].mxu0 %v9402
    %v9727 = vpop.f32.mrb[0].mxu0
    %v9728 = vadd.f32 0.0, %v9727
    %v9729 = vpop.f32.mrb[0].mxu0
    %9730 = vmatprep.mubr.f32.mxu0 0.0
    %9731 = vmatmul.mubr.f32.gmra.mrb[0].mxu0 %v9405
    %v9732 = vpop.f32.mrb[0].mxu0
    %v9733 = vadd.f32 0.0, %v9732
    %v9734 = vpop.f32.mrb[0].mxu0
    %9735 = vmatprep.mubr.f32.mxu0 0.0
    %9736 = vmatmul.mubr.f32.gmra.mrb[0].mxu0 %v9408
    %v9737 = vpop.f32.mrb[0].mxu0
    %v9738 = vadd.f32 0.0, %v9737
    %v9739 = vpop.f32.mrb[0].mxu0
    %9740 = vmatprep.mubr.f32.mxu0 0.0
    %9741 = vmatmul.mubr.f32.gmra.mrb[0].mxu0 %v9411
    %v9742 = vpop.f32.mrb[0].mxu0
    %v9743 = vadd.f32 0.0, %v9742
    %v9744 = vpop.f32.mrb[0].mxu0
    %9745 = vmatprep.mubr.f32.mxu0 0.0
    %9746 = vmatmul.mubr.f32.gmra.mrb[0].mxu0 %v9414
    %v9747 = vpop.f32.mrb[0].mxu0
    %v9748 = vadd.f32 0.0, %v9747
    %v9749 = vpop.f32.mrb[0].mxu0
    %9750 = vmatprep.mubr.f32.mxu0 0.0
    %9751 = vmatmul.mubr.f32.gmra.mrb[0].mxu0 %v9417
    %v9752 = vpop.f32.mrb[0].mxu0
    %v9753 = vadd.f32 0.0, %v9752
    %v9754 = vpop.f32.mrb[0].mxu0
    %9755 = vmatprep.mubr.f32.mxu0 0.0
    %9756 = vmatmul.mubr.f32.gmra.mrb[0].mxu0 %v9420
    %v9757 = vpop.f32.mrb[0].mxu0
    %v9758 = vadd.f32 0.0, %v9757
    %v9759 = vpop.f32.mrb[0].mxu0
    %9760 = vmatprep.mubr.f32.mxu0 0.0
    %9761 = vmatmul.mubr.f32.gmra.mrb[0].mxu0 %v9423
    %v9762 = vpop.f32.mrb[0].mxu0
    %v9763 = vadd.f32 0.0, %v9762
    %v9764 = vpop.f32.mrb[0].mxu0
    %9765 = vmatprep.mubr.f32.mxu0 0.0
    %9766 = vmatmul.mubr.f32.gmra.mrb[0].mxu0 %v9426
    %v9767 = vpop.f32.mrb[0].mxu0
    %v9768 = vadd.f32 0.0, %v9767
    %v9769 = vpop.f32.mrb[0].mxu0
    %9770 = vmatprep.mubr.f32.mxu0 0.0
    %9771 = vmatmul.mubr.f32.gmra.mrb[0].mxu0 %v9429
    %v9772 = vpop.f32.mrb[0].mxu0
    %v9773 = vadd.f32 0.0, %v9772
    %v9774 = vpop.f32.mrb[0].mxu0
    %9775 = vmatprep.mubr.f32.mxu0 0.0
    %9776 = vmatmul.mubr.f32.gmra.mrb[0].mxu0 %v9432
    %v9777 = vpop.f32.mrb[0].mxu0
    %v9778 = vadd.f32 0.0, %v9777
    %v9779 = vpop.f32.mrb[0].mxu0
    %9780 = vmatprep.mubr.f32.mxu0 0.0
    %9781 = vmatmul.mubr.f32.gmra.mrb[0].mxu0 %v9435
    %v9782 = vpop.f32.mrb[0].mxu0
    %v9783 = vadd.f32 0.0, %v9782
    %v9784 = vpop.f32.mrb[0].mxu0
    %9785 = vmatprep.mubr.f32.mxu0 0.0
    %9786 = vmatmul.mubr.f32.gmra.mrb[0].mxu0 %v9438
    %v9787 = vpop.f32.mrb[0].mxu0
    %v9788 = vadd.f32 0.0, %v9787
    %v9789 = vpop.f32.mrb[0].mxu0
    %9790 = vmatprep.mubr.f32.mxu0 0.0
    %9791 = vmatmul.mubr.f32.gmra.mrb[0].mxu0 %v9441
    %v9792 = vpop.f32.mrb[0].mxu0
    %v9793 = vadd.f32 0.0, %v9792
    %v9794 = vpop.f32.mrb[0].mxu0
    %9795 = vmatprep.mubr.f32.mxu0 0.0
    %9796 = vmatmul.mubr.f32.gmra.mrb[0].mxu0 %v9444
    %v9797 = vpop.f32.mrb[0].mxu0
    %v9798 = vadd.f32 0.0, %v9797
    %v9799 = vpop.f32.mrb[0].mxu0
    %9800 = vmatprep.mubr.f32.mxu0 0.0
    %9801 = vmatmul.mubr.f32.gmra.mrb[0].mxu0 %v9447
    %v9802 = vpop.f32.mrb[0].mxu0
    %v9803 = vadd.f32 0.0, %v9802
    %v9804 = vpop.f32.mrb[0].mxu0
    %9805 = vmatprep.mubr.f32.mxu0 0.0
    %9806 = vmatmul.mubr.f32.gmra.mrb[0].mxu0 %v9450
    %v9807 = vpop.f32.mrb[0].mxu0
    %v9808 = vadd.f32 0.0, %v9807
    %v9809 = vpop.f32.mrb[0].mxu0
    %9810 = vmatprep.mubr.f32.mxu0 0.0
    %9811 = vmatmul.mubr.f32.gmra.mrb[0].mxu0 %v9453
    %v9812 = vpop.f32.mrb[0].mxu0
    %v9813 = vadd.f32 0.0, %v9812
    %v9814 = vpop.f32.mrb[0].mxu0
    %9815 = vmatprep.mubr.f32.mxu0 0.0
    %9816 = vmatmul.mubr.f32.gmra.mrb[0].mxu0 %v9456
    %v9817 = vpop.f32.mrb[0].mxu0
    %v9818 = vadd.f32 0.0, %v9817
    %v9819 = vpop.f32.mrb[0].mxu0
    %9820 = vmatprep.mubr.f32.mxu0 0.0
    %9821 = vmatmul.mubr.f32.gmra.mrb[0].mxu0 %v9459
    %v9822 = vpop.f32.mrb[0].mxu0
    %v9823 = vadd.f32 0.0, %v9822
    %v9824 = vpop.f32.mrb[0].mxu0
    %9825 = vmatprep.mubr.f32.mxu0 0.0
    %9826 = vmatmul.mubr.f32.gmra.mrb[0].mxu0 %v9462
    %v9827 = vpop.f32.mrb[0].mxu0
    %v9828 = vadd.f32 0.0, %v9827
    %v9829 = vpop.f32.mrb[0].mxu0
    %9830 = vmatprep.mubr.f32.mxu0 0.0
    %9831 = vmatmul.mubr.f32.gmra.mrb[0].mxu0 %v9465
    %v9832 = vpop.f32.mrb[0].mxu0
    %v9833 = vadd.f32 0.0, %v9832
    %v9834 = vpop.f32.mrb[0].mxu0
    %9835 = vmatprep.mubr.f32.mxu0 0.0
    %9836 = vmatmul.mubr.f32.gmra.mrb[0].mxu0 %v9468
    %v9837 = vpop.f32.mrb[0].mxu0
    %v9838 = vadd.f32 0.0, %v9837
    %v9839 = vpop.f32.mrb[0].mxu0
    %9840 = vmatprep.mubr.f32.mxu0 0.0
    %9841 = vmatmul.mubr.f32.gmra.mrb[0].mxu0 %v9471
    %v9842 = vpop.f32.mrb[0].mxu0
    %v9843 = vadd.f32 0.0, %v9842
    %v9844 = vpop.f32.mrb[0].mxu0
    %9845 = vmatprep.mubr.f32.mxu0 0.0
    %9846 = vmatmul.mubr.f32.gmra.mrb[0].mxu0 %v9474
    %v9847 = vpop.f32.mrb[0].mxu0
    %v9848 = vadd.f32 0.0, %v9847
    %v9849 = vpop.f32.mrb[0].mxu0
    %9850 = vmatprep.mubr.f32.mxu0 0.0
    %9851 = vmatmul.mubr.f32.gmra.mrb[0].mxu0 %v9477
    %v9852 = vpop.f32.mrb[0].mxu0
    %v9853 = vadd.f32 0.0, %v9852
    %v9854 = vpop.f32.mrb[0].mxu0
    %9855 = vmatprep.mubr.f32.mxu0 0.0
    %9856 = vmatmul.mubr.f32.gmra.mrb[0].mxu0 %v9480
    %v9857 = vpop.f32.mrb[0].mxu0
    %v9858 = vadd.f32 0.0, %v9857
    %v9859 = vpop.f32.mrb[0].mxu0
    %9860 = vmatprep.mubr.f32.mxu0 0.0
    %9861 = vmatmul.mubr.f32.gmra.mrb[0].mxu0 %v9483
    %v9862 = vpop.f32.mrb[0].mxu0
    %v9863 = vadd.f32 0.0, %v9862
    %v9864 = vpop.f32.mrb[0].mxu0
    %9865 = vmatprep.mubr.f32.mxu0 0.0
    %9866 = vmatmul.mubr.f32.gmra.mrb[0].mxu0 %v9486
    %v9867 = vpop.f32.mrb[0].mxu0
    %v9868 = vadd.f32 0.0, %v9867
    %v9869 = vpop.f32.mrb[0].mxu0
    %9870 = vmatprep.mubr.f32.mxu0 0.0
    %9871 = vmatmul.mubr.f32.gmra.mrb[0].mxu0 %v9489
    %v9872 = vpop.f32.mrb[0].mxu0
    %v9873 = vadd.f32 0.0, %v9872
    %v9874 = vpop.f32.mrb[0].mxu0
    %9875 = vdwg.mxu0
    %v9876 = vld [vmem:[%s8] sm:$0x1]
    %v9877 = vld [vmem:[%s9] sm:$0x1]
    %v9878 = vsel %vm1092, %v9558, 0.0
    %v9879 = vsel %vm1092, %v9563, 0.0
    %v9880 = vadd.f32 %v9878, %v9879
    %v9881 = vsel %vm1092, %v9568, 0.0
    %v9882 = vadd.f32 %v9880, %v9881
    %v9883 = vsel %vm1092, %v9573, 0.0
    %v9884 = vadd.f32 %v9882, %v9883
    %v9885 = vsel %vm1092, %v9578, 0.0
    %v9886 = vadd.f32 %v9884, %v9885
    %v9887 = vsel %vm1092, %v9583, 0.0
    %v9888 = vadd.f32 %v9886, %v9887
    %v9889 = vsel %vm1092, %v9588, 0.0
    %v9890 = vadd.f32 %v9888, %v9889
    %v9891 = vsel %vm1092, %v9593, 0.0
    %v9892 = vadd.f32 %v9890, %v9891
    %v9893 = vsel %vm1092, %v9598, 0.0
    %v9894 = vadd.f32 %v9892, %v9893
    %v9895 = vsel %vm1092, %v9603, 0.0
    %v9896 = vadd.f32 %v9894, %v9895
    %v9897 = vsel %vm1092, %v9608, 0.0
    %v9898 = vadd.f32 %v9896, %v9897
    %v9899 = vsel %vm1092, %v9613, 0.0
    %v9900 = vadd.f32 %v9898, %v9899
    %v9901 = vsel %vm1092, %v9618, 0.0
    %v9902 = vadd.f32 %v9900, %v9901
    %v9903 = vsel %vm1092, %v9623, 0.0
    %v9904 = vadd.f32 %v9902, %v9903
    %v9905 = vsel %vm1092, %v9628, 0.0
    %v9906 = vadd.f32 %v9904, %v9905
    %v9907 = vsel %vm1092, %v9633, 0.0
    %v9908 = vadd.f32 %v9906, %v9907
    %v9909 = vsel %vm1092, %v9638, 0.0
    %v9910 = vadd.f32 %v9908, %v9909
    %v9911 = vsel %vm1092, %v9643, 0.0
    %v9912 = vadd.f32 %v9910, %v9911
    %v9913 = vsel %vm1092, %v9648, 0.0
    %v9914 = vadd.f32 %v9912, %v9913
    %v9915 = vsel %vm1092, %v9653, 0.0
    %v9916 = vadd.f32 %v9914, %v9915
    %v9917 = vsel %vm1092, %v9658, 0.0
    %v9918 = vadd.f32 %v9916, %v9917
    %v9919 = vsel %vm1092, %v9663, 0.0
    %v9920 = vadd.f32 %v9918, %v9919
    %v9921 = vsel %vm1092, %v9668, 0.0
    %v9922 = vadd.f32 %v9920, %v9921
    %v9923 = vsel %vm1092, %v9673, 0.0
    %v9924 = vadd.f32 %v9922, %v9923
    %v9925 = vsel %vm1092, %v9678, 0.0
    %v9926 = vadd.f32 %v9924, %v9925
    %v9927 = vsel %vm1092, %v9683, 0.0
    %v9928 = vadd.f32 %v9926, %v9927
    %v9929 = vsel %vm1092, %v9688, 0.0
    %v9930 = vadd.f32 %v9928, %v9929
    %v9931 = vsel %vm1092, %v9693, 0.0
    %v9932 = vadd.f32 %v9930, %v9931
    %v9933 = vsel %vm1092, %v9698, 0.0
    %v9934 = vadd.f32 %v9932, %v9933
    %v9935 = vsel %vm1092, %v9703, 0.0
    %v9936 = vadd.f32 %v9934, %v9935
    %v9937 = vsel %vm1092, %v9708, 0.0
    %v9938 = vadd.f32 %v9936, %v9937
    %v9939 = vsel %vm1092, %v9713, 0.0
    %v9940 = vadd.f32 %v9938, %v9939
    %v9941 = vsel %vm1092, %v9718, 0.0
    %v9942 = vadd.f32 %v9940, %v9941
    %v9943 = vsel %vm1092, %v9723, 0.0
    %v9944 = vadd.f32 %v9942, %v9943
    %v9945 = vsel %vm1092, %v9728, 0.0
    %v9946 = vadd.f32 %v9944, %v9945
    %v9947 = vsel %vm1092, %v9733, 0.0
    %v9948 = vadd.f32 %v9946, %v9947
    %v9949 = vsel %vm1092, %v9738, 0.0
    %v9950 = vadd.f32 %v9948, %v9949
    %v9951 = vsel %vm1092, %v9743, 0.0
    %v9952 = vadd.f32 %v9950, %v9951
    %v9953 = vsel %vm1092, %v9748, 0.0
    %v9954 = vadd.f32 %v9952, %v9953
    %v9955 = vsel %vm1092, %v9753, 0.0
    %v9956 = vadd.f32 %v9954, %v9955
    %v9957 = vsel %vm1092, %v9758, 0.0
    %v9958 = vadd.f32 %v9956, %v9957
    %v9959 = vsel %vm1092, %v9763, 0.0
    %v9960 = vadd.f32 %v9958, %v9959
    %v9961 = vsel %vm1092, %v9768, 0.0
    %v9962 = vadd.f32 %v9960, %v9961
    %v9963 = vsel %vm1092, %v9773, 0.0
    %v9964 = vadd.f32 %v9962, %v9963
    %v9965 = vsel %vm1092, %v9778, 0.0
    %v9966 = vadd.f32 %v9964, %v9965
    %v9967 = vsel %vm1092, %v9783, 0.0
    %v9968 = vadd.f32 %v9966, %v9967
    %v9969 = vsel %vm1092, %v9788, 0.0
    %v9970 = vadd.f32 %v9968, %v9969
    %v9971 = vsel %vm1092, %v9793, 0.0
    %v9972 = vadd.f32 %v9970, %v9971
    %v9973 = vsel %vm1092, %v9798, 0.0
    %v9974 = vadd.f32 %v9972, %v9973
    %v9975 = vsel %vm1092, %v9803, 0.0
    %v9976 = vadd.f32 %v9974, %v9975
    %v9977 = vsel %vm1092, %v9808, 0.0
    %v9978 = vadd.f32 %v9976, %v9977
    %v9979 = vsel %vm1092, %v9813, 0.0
    %v9980 = vadd.f32 %v9978, %v9979
    %v9981 = vsel %vm1092, %v9818, 0.0
    %v9982 = vadd.f32 %v9980, %v9981
    %v9983 = vsel %vm1092, %v9823, 0.0
    %v9984 = vadd.f32 %v9982, %v9983
    %v9985 = vsel %vm1092, %v9828, 0.0
    %v9986 = vadd.f32 %v9984, %v9985
    %v9987 = vsel %vm1092, %v9833, 0.0
    %v9988 = vadd.f32 %v9986, %v9987
    %v9989 = vsel %vm1092, %v9838, 0.0
    %v9990 = vadd.f32 %v9988, %v9989
    %v9991 = vsel %vm1092, %v9843, 0.0
    %v9992 = vadd.f32 %v9990, %v9991
    %v9993 = vsel %vm1092, %v9848, 0.0
    %v9994 = vadd.f32 %v9992, %v9993
    %v9995 = vsel %vm1092, %v9853, 0.0
    %v9996 = vadd.f32 %v9994, %v9995
    %v9997 = vsel %vm1092, %v9858, 0.0
    %v9998 = vadd.f32 %v9996, %v9997
    %v9999 = vsel %vm1092, %v9863, 0.0
    %v10000 = vadd.f32 %v9998, %v9999
    %v10001 = vsel %vm1092, %v9868, 0.0
    %v10002 = vadd.f32 %v10000, %v10001
    %v10003 = vsel %vm1092, %v9873, 0.0
    %v10004 = vadd.f32 %v10002, %v10003
    %v10005 = vrot.slane %v10004, 4
    %v10006 = vadd.f32 %v10004, %v10005
    %v10007 = vrot.slane %v10006, 2
    %v10008 = vadd.f32 %v10006, %v10007
    %v10009 = vrot.slane %v10008, 1
    %v10010 = vadd.f32 %v10008, %v10009
    %v10011 = vmul.f32 %v10010, 0.001953125
    %v10012 = vsub.f32 %v9558, %v10011
    %v10013 = vsub.f32 %v9563, %v10011
    %v10014 = vsub.f32 %v9568, %v10011
    %v10015 = vsub.f32 %v9573, %v10011
    %v10016 = vsub.f32 %v9578, %v10011
    %v10017 = vsub.f32 %v9583, %v10011
    %v10018 = vsub.f32 %v9588, %v10011
    %v10019 = vsub.f32 %v9593, %v10011
    %v10020 = vsub.f32 %v9598, %v10011
    %v10021 = vsub.f32 %v9603, %v10011
    %v10022 = vsub.f32 %v9608, %v10011
    %v10023 = vsub.f32 %v9613, %v10011
    %v10024 = vsub.f32 %v9618, %v10011
    %v10025 = vsub.f32 %v9623, %v10011
    %v10026 = vsub.f32 %v9628, %v10011
    %v10027 = vsub.f32 %v9633, %v10011
    %v10028 = vsub.f32 %v9638, %v10011
    %v10029 = vsub.f32 %v9643, %v10011
    %v10030 = vsub.f32 %v9648, %v10011
    %v10031 = vsub.f32 %v9653, %v10011
    %v10032 = vsub.f32 %v9658, %v10011
    %v10033 = vsub.f32 %v9663, %v10011
    %v10034 = vsub.f32 %v9668, %v10011
    %v10035 = vsub.f32 %v9673, %v10011
    %v10036 = vsub.f32 %v9678, %v10011
    %v10037 = vsub.f32 %v9683, %v10011
    %v10038 = vsub.f32 %v9688, %v10011
    %v10039 = vsub.f32 %v9693, %v10011
    %v10040 = vsub.f32 %v9698, %v10011
    %v10041 = vsub.f32 %v9703, %v10011
    %v10042 = vsub.f32 %v9708, %v10011
    %v10043 = vsub.f32 %v9713, %v10011
    %v10044 = vsub.f32 %v9718, %v10011
    %v10045 = vsub.f32 %v9723, %v10011
    %v10046 = vsub.f32 %v9728, %v10011
    %v10047 = vsub.f32 %v9733, %v10011
    %v10048 = vsub.f32 %v9738, %v10011
    %v10049 = vsub.f32 %v9743, %v10011
    %v10050 = vsub.f32 %v9748, %v10011
    %v10051 = vsub.f32 %v9753, %v10011
    %v10052 = vsub.f32 %v9758, %v10011
    %v10053 = vsub.f32 %v9763, %v10011
    %v10054 = vsub.f32 %v9768, %v10011
    %v10055 = vsub.f32 %v9773, %v10011
    %v10056 = vsub.f32 %v9778, %v10011
    %v10057 = vsub.f32 %v9783, %v10011
    %v10058 = vsub.f32 %v9788, %v10011
    %v10059 = vsub.f32 %v9793, %v10011
    %v10060 = vsub.f32 %v9798, %v10011
    %v10061 = vsub.f32 %v9803, %v10011
    %v10062 = vsub.f32 %v9808, %v10011
    %v10063 = vsub.f32 %v9813, %v10011
    %v10064 = vsub.f32 %v9818, %v10011
    %v10065 = vsub.f32 %v9823, %v10011
    %v10066 = vsub.f32 %v9828, %v10011
    %v10067 = vsub.f32 %v9833, %v10011
    %v10068 = vsub.f32 %v9838, %v10011
    %v10069 = vsub.f32 %v9843, %v10011
    %v10070 = vsub.f32 %v9848, %v10011
    %v10071 = vsub.f32 %v9853, %v10011
    %v10072 = vsub.f32 %v9858, %v10011
    %v10073 = vsub.f32 %v9863, %v10011
    %v10074 = vsub.f32 %v9868, %v10011
    %v10075 = vsub.f32 %v9873, %v10011
    %v10076 = vmul.f32 %v10012, %v10012
    %v10077 = vmul.f32 %v10013, %v10013
    %v10078 = vmul.f32 %v10014, %v10014
    %v10079 = vmul.f32 %v10015, %v10015
    %v10080 = vmul.f32 %v10016, %v10016
    %v10081 = vmul.f32 %v10017, %v10017
    %v10082 = vmul.f32 %v10018, %v10018
    %v10083 = vmul.f32 %v10019, %v10019
    %v10084 = vmul.f32 %v10020, %v10020
    %v10085 = vmul.f32 %v10021, %v10021
    %v10086 = vmul.f32 %v10022, %v10022
    %v10087 = vmul.f32 %v10023, %v10023
    %v10088 = vmul.f32 %v10024, %v10024
    %v10089 = vmul.f32 %v10025, %v10025
    %v10090 = vmul.f32 %v10026, %v10026
    %v10091 = vmul.f32 %v10027, %v10027
    %v10092 = vmul.f32 %v10028, %v10028
    %v10093 = vmul.f32 %v10029, %v10029
    %v10094 = vmul.f32 %v10030, %v10030
    %v10095 = vmul.f32 %v10031, %v10031
    %v10096 = vmul.f32 %v10032, %v10032
    %v10097 = vmul.f32 %v10033, %v10033
    %v10098 = vmul.f32 %v10034, %v10034
    %v10099 = vmul.f32 %v10035, %v10035
    %v10100 = vmul.f32 %v10036, %v10036
    %v10101 = vmul.f32 %v10037, %v10037
    %v10102 = vmul.f32 %v10038, %v10038
    %v10103 = vmul.f32 %v10039, %v10039
    %v10104 = vmul.f32 %v10040, %v10040
    %v10105 = vmul.f32 %v10041, %v10041
    %v10106 = vmul.f32 %v10042, %v10042
    %v10107 = vmul.f32 %v10043, %v10043
    %v10108 = vmul.f32 %v10044, %v10044
    %v10109 = vmul.f32 %v10045, %v10045
    %v10110 = vmul.f32 %v10046, %v10046
    %v10111 = vmul.f32 %v10047, %v10047
    %v10112 = vmul.f32 %v10048, %v10048
    %v10113 = vmul.f32 %v10049, %v10049
    %v10114 = vmul.f32 %v10050, %v10050
    %v10115 = vmul.f32 %v10051, %v10051
    %v10116 = vmul.f32 %v10052, %v10052
    %v10117 = vmul.f32 %v10053, %v10053
    %v10118 = vmul.f32 %v10054, %v10054
    %v10119 = vmul.f32 %v10055, %v10055
    %v10120 = vmul.f32 %v10056, %v10056
    %v10121 = vmul.f32 %v10057, %v10057
    %v10122 = vmul.f32 %v10058, %v10058
    %v10123 = vmul.f32 %v10059, %v10059
    %v10124 = vmul.f32 %v10060, %v10060
    %v10125 = vmul.f32 %v10061, %v10061
    %v10126 = vmul.f32 %v10062, %v10062
    %v10127 = vmul.f32 %v10063, %v10063
    %v10128 = vmul.f32 %v10064, %v10064
    %v10129 = vmul.f32 %v10065, %v10065
    %v10130 = vmul.f32 %v10066, %v10066
    %v10131 = vmul.f32 %v10067, %v10067
    %v10132 = vmul.f32 %v10068, %v10068
    %v10133 = vmul.f32 %v10069, %v10069
    %v10134 = vmul.f32 %v10070, %v10070
    %v10135 = vmul.f32 %v10071, %v10071
    %v10136 = vmul.f32 %v10072, %v10072
    %v10137 = vmul.f32 %v10073, %v10073
    %v10138 = vmul.f32 %v10074, %v10074
    %v10139 = vmul.f32 %v10075, %v10075
    %v10140 = vsel %vm1092, %v10076, 0.0
    %v10141 = vsel %vm1092, %v10077, 0.0
    %v10142 = vadd.f32 %v10140, %v10141
    %v10143 = vsel %vm1092, %v10078, 0.0
    %v10144 = vadd.f32 %v10142, %v10143
    %v10145 = vsel %vm1092, %v10079, 0.0
    %v10146 = vadd.f32 %v10144, %v10145
    %v10147 = vsel %vm1092, %v10080, 0.0
    %v10148 = vadd.f32 %v10146, %v10147
    %v10149 = vsel %vm1092, %v10081, 0.0
    %v10150 = vadd.f32 %v10148, %v10149
    %v10151 = vsel %vm1092, %v10082, 0.0
    %v10152 = vadd.f32 %v10150, %v10151
    %v10153 = vsel %vm1092, %v10083, 0.0
    %v10154 = vadd.f32 %v10152, %v10153
    %v10155 = vsel %vm1092, %v10084, 0.0
    %v10156 = vadd.f32 %v10154, %v10155
    %v10157 = vsel %vm1092, %v10085, 0.0
    %v10158 = vadd.f32 %v10156, %v10157
    %v10159 = vsel %vm1092, %v10086, 0.0
    %v10160 = vadd.f32 %v10158, %v10159
    %v10161 = vsel %vm1092, %v10087, 0.0
    %v10162 = vadd.f32 %v10160, %v10161
    %v10163 = vsel %vm1092, %v10088, 0.0
    %v10164 = vadd.f32 %v10162, %v10163
    %v10165 = vsel %vm1092, %v10089, 0.0
    %v10166 = vadd.f32 %v10164, %v10165
    %v10167 = vsel %vm1092, %v10090, 0.0
    %v10168 = vadd.f32 %v10166, %v10167
    %v10169 = vsel %vm1092, %v10091, 0.0
    %v10170 = vadd.f32 %v10168, %v10169
    %v10171 = vsel %vm1092, %v10092, 0.0
    %v10172 = vadd.f32 %v10170, %v10171
    %v10173 = vsel %vm1092, %v10093, 0.0
    %v10174 = vadd.f32 %v10172, %v10173
    %v10175 = vsel %vm1092, %v10094, 0.0
    %v10176 = vadd.f32 %v10174, %v10175
    %v10177 = vsel %vm1092, %v10095, 0.0
    %v10178 = vadd.f32 %v10176, %v10177
    %v10179 = vsel %vm1092, %v10096, 0.0
    %v10180 = vadd.f32 %v10178, %v10179
    %v10181 = vsel %vm1092, %v10097, 0.0
    %v10182 = vadd.f32 %v10180, %v10181
    %v10183 = vsel %vm1092, %v10098, 0.0
    %v10184 = vadd.f32 %v10182, %v10183
    %v10185 = vsel %vm1092, %v10099, 0.0
    %v10186 = vadd.f32 %v10184, %v10185
    %v10187 = vsel %vm1092, %v10100, 0.0
    %v10188 = vadd.f32 %v10186, %v10187
    %v10189 = vsel %vm1092, %v10101, 0.0
    %v10190 = vadd.f32 %v10188, %v10189
    %v10191 = vsel %vm1092, %v10102, 0.0
    %v10192 = vadd.f32 %v10190, %v10191
    %v10193 = vsel %vm1092, %v10103, 0.0
    %v10194 = vadd.f32 %v10192, %v10193
    %v10195 = vsel %vm1092, %v10104, 0.0
    %v10196 = vadd.f32 %v10194, %v10195
    %v10197 = vsel %vm1092, %v10105, 0.0
    %v10198 = vadd.f32 %v10196, %v10197
    %v10199 = vsel %vm1092, %v10106, 0.0
    %v10200 = vadd.f32 %v10198, %v10199
    %v10201 = vsel %vm1092, %v10107, 0.0
    %v10202 = vadd.f32 %v10200, %v10201
    %v10203 = vsel %vm1092, %v10108, 0.0
    %v10204 = vadd.f32 %v10202, %v10203
    %v10205 = vsel %vm1092, %v10109, 0.0
    %v10206 = vadd.f32 %v10204, %v10205
    %v10207 = vsel %vm1092, %v10110, 0.0
    %v10208 = vadd.f32 %v10206, %v10207
    %v10209 = vsel %vm1092, %v10111, 0.0
    %v10210 = vadd.f32 %v10208, %v10209
    %v10211 = vsel %vm1092, %v10112, 0.0
    %v10212 = vadd.f32 %v10210, %v10211
    %v10213 = vsel %vm1092, %v10113, 0.0
    %v10214 = vadd.f32 %v10212, %v10213
    %v10215 = vsel %vm1092, %v10114, 0.0
    %v10216 = vadd.f32 %v10214, %v10215
    %v10217 = vsel %vm1092, %v10115, 0.0
    %v10218 = vadd.f32 %v10216, %v10217
    %v10219 = vsel %vm1092, %v10116, 0.0
    %v10220 = vadd.f32 %v10218, %v10219
    %v10221 = vsel %vm1092, %v10117, 0.0
    %v10222 = vadd.f32 %v10220, %v10221
    %v10223 = vsel %vm1092, %v10118, 0.0
    %v10224 = vadd.f32 %v10222, %v10223
    %v10225 = vsel %vm1092, %v10119, 0.0
    %v10226 = vadd.f32 %v10224, %v10225
    %v10227 = vsel %vm1092, %v10120, 0.0
    %v10228 = vadd.f32 %v10226, %v10227
    %v10229 = vsel %vm1092, %v10121, 0.0
    %v10230 = vadd.f32 %v10228, %v10229
    %v10231 = vsel %vm1092, %v10122, 0.0
    %v10232 = vadd.f32 %v10230, %v10231
    %v10233 = vsel %vm1092, %v10123, 0.0
    %v10234 = vadd.f32 %v10232, %v10233
    %v10235 = vsel %vm1092, %v10124, 0.0
    %v10236 = vadd.f32 %v10234, %v10235
    %v10237 = vsel %vm1092, %v10125, 0.0
    %v10238 = vadd.f32 %v10236, %v10237
    %v10239 = vsel %vm1092, %v10126, 0.0
    %v10240 = vadd.f32 %v10238, %v10239
    %v10241 = vsel %vm1092, %v10127, 0.0
    %v10242 = vadd.f32 %v10240, %v10241
    %v10243 = vsel %vm1092, %v10128, 0.0
    %v10244 = vadd.f32 %v10242, %v10243
    %v10245 = vsel %vm1092, %v10129, 0.0
    %v10246 = vadd.f32 %v10244, %v10245
    %v10247 = vsel %vm1092, %v10130, 0.0
    %v10248 = vadd.f32 %v10246, %v10247
    %v10249 = vsel %vm1092, %v10131, 0.0
    %v10250 = vadd.f32 %v10248, %v10249
    %v10251 = vsel %vm1092, %v10132, 0.0
    %v10252 = vadd.f32 %v10250, %v10251
    %v10253 = vsel %vm1092, %v10133, 0.0
    %v10254 = vadd.f32 %v10252, %v10253
    %v10255 = vsel %vm1092, %v10134, 0.0
    %v10256 = vadd.f32 %v10254, %v10255
    %v10257 = vsel %vm1092, %v10135, 0.0
    %v10258 = vadd.f32 %v10256, %v10257
    %v10259 = vsel %vm1092, %v10136, 0.0
    %v10260 = vadd.f32 %v10258, %v10259
    %v10261 = vsel %vm1092, %v10137, 0.0
    %v10262 = vadd.f32 %v10260, %v10261
    %v10263 = vsel %vm1092, %v10138, 0.0
    %v10264 = vadd.f32 %v10262, %v10263
    %v10265 = vsel %vm1092, %v10139, 0.0
    %v10266 = vadd.f32 %v10264, %v10265
    %v10267 = vrot.slane %v10266, 4
    %v10268 = vadd.f32 %v10266, %v10267
    %v10269 = vrot.slane %v10268, 2
    %v10270 = vadd.f32 %v10268, %v10269
    %v10271 = vrot.slane %v10270, 1
    %v10272 = vadd.f32 %v10270, %v10271
    %v10273 = vmul.f32 %v10272, 0.001953125
    %v10274 = vadd.f32 %v10273, 1e-05
    %v10275 = vrsqrt.pop %v10274
    %v10276 = vmul.f32 %v10275, %v9876
    %v10277 = vlaneseq
    %v10278 = vshrl.u32 %v10277, 7
    %v10279 = vsub.s32 0, %v10278
    %v10280 = vrot.slane %v10276, %v10279
    %v10281 = vmul.f32 %v10012, %v10280
    %v10282 = vmul.f32 %v10013, %v10280
    %v10283 = vmul.f32 %v10014, %v10280
    %v10284 = vmul.f32 %v10015, %v10280
    %v10285 = vmul.f32 %v10016, %v10280
    %v10286 = vmul.f32 %v10017, %v10280
    %v10287 = vmul.f32 %v10018, %v10280
    %v10288 = vmul.f32 %v10019, %v10280
    %v10289 = vmul.f32 %v10020, %v10280
    %v10290 = vmul.f32 %v10021, %v10280
    %v10291 = vmul.f32 %v10022, %v10280
    %v10292 = vmul.f32 %v10023, %v10280
    %v10293 = vmul.f32 %v10024, %v10280
    %v10294 = vmul.f32 %v10025, %v10280
    %v10295 = vmul.f32 %v10026, %v10280
    %v10296 = vmul.f32 %v10027, %v10280
    %v10297 = vmul.f32 %v10028, %v10280
    %v10298 = vmul.f32 %v10029, %v10280
    %v10299 = vmul.f32 %v10030, %v10280
    %v10300 = vmul.f32 %v10031, %v10280
    %v10301 = vmul.f32 %v10032, %v10280
    %v10302 = vmul.f32 %v10033, %v10280
    %v10303 = vmul.f32 %v10034, %v10280
    %v10304 = vmul.f32 %v10035, %v10280
    %v10305 = vmul.f32 %v10036, %v10280
    %v10306 = vmul.f32 %v10037, %v10280
    %v10307 = vmul.f32 %v10038, %v10280
    %v10308 = vmul.f32 %v10039, %v10280
    %v10309 = vmul.f32 %v10040, %v10280
    %v10310 = vmul.f32 %v10041, %v10280
    %v10311 = vmul.f32 %v10042, %v10280
    %v10312 = vmul.f32 %v10043, %v10280
    %v10313 = vmul.f32 %v10044, %v10280
    %v10314 = vmul.f32 %v10045, %v10280
    %v10315 = vmul.f32 %v10046, %v10280
    %v10316 = vmul.f32 %v10047, %v10280
    %v10317 = vmul.f32 %v10048, %v10280
    %v10318 = vmul.f32 %v10049, %v10280
    %v10319 = vmul.f32 %v10050, %v10280
    %v10320 = vmul.f32 %v10051, %v10280
    %v10321 = vmul.f32 %v10052, %v10280
    %v10322 = vmul.f32 %v10053, %v10280
    %v10323 = vmul.f32 %v10054, %v10280
    %v10324 = vmul.f32 %v10055, %v10280
    %v10325 = vmul.f32 %v10056, %v10280
    %v10326 = vmul.f32 %v10057, %v10280
    %v10327 = vmul.f32 %v10058, %v10280
    %v10328 = vmul.f32 %v10059, %v10280
    %v10329 = vmul.f32 %v10060, %v10280
    %v10330 = vmul.f32 %v10061, %v10280
    %v10331 = vmul.f32 %v10062, %v10280
    %v10332 = vmul.f32 %v10063, %v10280
    %v10333 = vmul.f32 %v10064, %v10280
    %v10334 = vmul.f32 %v10065, %v10280
    %v10335 = vmul.f32 %v10066, %v10280
    %v10336 = vmul.f32 %v10067, %v10280
    %v10337 = vmul.f32 %v10068, %v10280
    %v10338 = vmul.f32 %v10069, %v10280
    %v10339 = vmul.f32 %v10070, %v10280
    %v10340 = vmul.f32 %v10071, %v10280
    %v10341 = vmul.f32 %v10072, %v10280
    %v10342 = vmul.f32 %v10073, %v10280
    %v10343 = vmul.f32 %v10074, %v10280
    %v10344 = vmul.f32 %v10075, %v10280
    %v10346 = vlaneseq
    %v10347 = vshrl.u32 %v10346, 7
    %v10348 = vsub.s32 0, %v10347
    %v10349 = vrot.slane %v9877, %v10348
    %v10351 = vadd.f32 %v10281, %v10349
    %v10352 = vadd.f32 %v10282, %v10349
    %v10353 = vadd.f32 %v10283, %v10349
    %v10354 = vadd.f32 %v10284, %v10349
    %v10355 = vadd.f32 %v10285, %v10349
    %v10356 = vadd.f32 %v10286, %v10349
    %v10357 = vadd.f32 %v10287, %v10349
    %v10358 = vadd.f32 %v10288, %v10349
    %v10359 = vadd.f32 %v10289, %v10349
    %v10360 = vadd.f32 %v10290, %v10349
    %v10361 = vadd.f32 %v10291, %v10349
    %v10362 = vadd.f32 %v10292, %v10349
    %v10363 = vadd.f32 %v10293, %v10349
    %v10364 = vadd.f32 %v10294, %v10349
    %v10365 = vadd.f32 %v10295, %v10349
    %v10366 = vadd.f32 %v10296, %v10349
    %v10367 = vadd.f32 %v10297, %v10349
    %v10368 = vadd.f32 %v10298, %v10349
    %v10369 = vadd.f32 %v10299, %v10349
    %v10370 = vadd.f32 %v10300, %v10349
    %v10371 = vadd.f32 %v10301, %v10349
    %v10372 = vadd.f32 %v10302, %v10349
    %v10373 = vadd.f32 %v10303, %v10349
    %v10374 = vadd.f32 %v10304, %v10349
    %v10375 = vadd.f32 %v10305, %v10349
    %v10376 = vadd.f32 %v10306, %v10349
    %v10377 = vadd.f32 %v10307, %v10349
    %v10378 = vadd.f32 %v10308, %v10349
    %v10379 = vadd.f32 %v10309, %v10349
    %v10380 = vadd.f32 %v10310, %v10349
    %v10381 = vadd.f32 %v10311, %v10349
    %v10382 = vadd.f32 %v10312, %v10349
    %v10383 = vadd.f32 %v10313, %v10349
    %v10384 = vadd.f32 %v10314, %v10349
    %v10385 = vadd.f32 %v10315, %v10349
    %v10386 = vadd.f32 %v10316, %v10349
    %v10387 = vadd.f32 %v10317, %v10349
    %v10388 = vadd.f32 %v10318, %v10349
    %v10389 = vadd.f32 %v10319, %v10349
    %v10390 = vadd.f32 %v10320, %v10349
    %v10391 = vadd.f32 %v10321, %v10349
    %v10392 = vadd.f32 %v10322, %v10349
    %v10393 = vadd.f32 %v10323, %v10349
    %v10394 = vadd.f32 %v10324, %v10349
    %v10395 = vadd.f32 %v10325, %v10349
    %v10396 = vadd.f32 %v10326, %v10349
    %v10397 = vadd.f32 %v10327, %v10349
    %v10398 = vadd.f32 %v10328, %v10349
    %v10399 = vadd.f32 %v10329, %v10349
    %v10400 = vadd.f32 %v10330, %v10349
    %v10401 = vadd.f32 %v10331, %v10349
    %v10402 = vadd.f32 %v10332, %v10349
    %v10403 = vadd.f32 %v10333, %v10349
    %v10404 = vadd.f32 %v10334, %v10349
    %v10405 = vadd.f32 %v10335, %v10349
    %v10406 = vadd.f32 %v10336, %v10349
    %v10407 = vadd.f32 %v10337, %v10349
    %v10408 = vadd.f32 %v10338, %v10349
    %v10409 = vadd.f32 %v10339, %v10349
    %v10410 = vadd.f32 %v10340, %v10349
    %v10411 = vadd.f32 %v10341, %v10349
    %v10412 = vadd.f32 %v10342, %v10349
    %v10413 = vadd.f32 %v10343, %v10349
    %v10414 = vadd.f32 %v10344, %v10349
    %v10415 = vadd.f32 %v10351, %v1566
    %v10416 = vadd.f32 %v10352, %v1567
    %v10417 = vadd.f32 %v10353, %v1568
    %v10418 = vadd.f32 %v10354, %v1569
    %v10419 = vadd.f32 %v10355, %v1570
    %v10420 = vadd.f32 %v10356, %v1571
    %v10421 = vadd.f32 %v10357, %v1572
    %v10422 = vadd.f32 %v10358, %v1573
    %v10423 = vadd.f32 %v10359, %v1574
    %v10424 = vadd.f32 %v10360, %v1575
    %v10425 = vadd.f32 %v10361, %v1576
    %v10426 = vadd.f32 %v10362, %v1577
    %v10427 = vadd.f32 %v10363, %v1578
    %v10428 = vadd.f32 %v10364, %v1579
    %v10429 = vadd.f32 %v10365, %v1580
    %v10430 = vadd.f32 %v10366, %v1581
    %v10431 = vadd.f32 %v10367, %v1582
    %v10432 = vadd.f32 %v10368, %v1583
    %v10433 = vadd.f32 %v10369, %v1584
    %v10434 = vadd.f32 %v10370, %v1585
    %v10435 = vadd.f32 %v10371, %v1586
    %v10436 = vadd.f32 %v10372, %v1587
    %v10437 = vadd.f32 %v10373, %v1588
    %v10438 = vadd.f32 %v10374, %v1589
    %v10439 = vadd.f32 %v10375, %v1590
    %v10440 = vadd.f32 %v10376, %v1591
    %v10441 = vadd.f32 %v10377, %v1592
    %v10442 = vadd.f32 %v10378, %v1593
    %v10443 = vadd.f32 %v10379, %v1594
    %v10444 = vadd.f32 %v10380, %v1595
    %v10445 = vadd.f32 %v10381, %v1596
    %v10446 = vadd.f32 %v10382, %v1597
    %v10447 = vadd.f32 %v10383, %v1598
    %v10448 = vadd.f32 %v10384, %v1599
    %v10449 = vadd.f32 %v10385, %v1600
    %v10450 = vadd.f32 %v10386, %v1601
    %v10451 = vadd.f32 %v10387, %v1602
    %v10452 = vadd.f32 %v10388, %v1603
    %v10453 = vadd.f32 %v10389, %v1604
    %v10454 = vadd.f32 %v10390, %v1605
    %v10455 = vadd.f32 %v10391, %v1606
    %v10456 = vadd.f32 %v10392, %v1607
    %v10457 = vadd.f32 %v10393, %v1608
    %v10458 = vadd.f32 %v10394, %v1609
    %v10459 = vadd.f32 %v10395, %v1610
    %v10460 = vadd.f32 %v10396, %v1611
    %v10461 = vadd.f32 %v10397, %v1612
    %v10462 = vadd.f32 %v10398, %v1613
    %v10463 = vadd.f32 %v10399, %v1614
    %v10464 = vadd.f32 %v10400, %v1615
    %v10465 = vadd.f32 %v10401, %v1616
    %v10466 = vadd.f32 %v10402, %v1617
    %v10467 = vadd.f32 %v10403, %v1618
    %v10468 = vadd.f32 %v10404, %v1619
    %v10469 = vadd.f32 %v10405, %v1620
    %v10470 = vadd.f32 %v10406, %v1621
    %v10471 = vadd.f32 %v10407, %v1622
    %v10472 = vadd.f32 %v10408, %v1623
    %v10473 = vadd.f32 %v10409, %v1624
    %v10474 = vadd.f32 %v10410, %v1625
    %v10475 = vadd.f32 %v10411, %v1626
    %v10476 = vadd.f32 %v10412, %v1627
    %v10477 = vadd.f32 %v10413, %v1628
    %v10478 = vadd.f32 %v10414, %v1629
    %v10479 = vmax.f32 %v10415, 0.0
    %v10480 = vmax.f32 %v10416, 0.0
    %v10481 = vmax.f32 %v10417, 0.0
    %v10482 = vmax.f32 %v10418, 0.0
    %v10483 = vmax.f32 %v10419, 0.0
    %v10484 = vmax.f32 %v10420, 0.0
    %v10485 = vmax.f32 %v10421, 0.0
    %v10486 = vmax.f32 %v10422, 0.0
    %v10487 = vmax.f32 %v10423, 0.0
    %v10488 = vmax.f32 %v10424, 0.0
    %v10489 = vmax.f32 %v10425, 0.0
    %v10490 = vmax.f32 %v10426, 0.0
    %v10491 = vmax.f32 %v10427, 0.0
    %v10492 = vmax.f32 %v10428, 0.0
    %v10493 = vmax.f32 %v10429, 0.0
    %v10494 = vmax.f32 %v10430, 0.0
    %v10495 = vmax.f32 %v10431, 0.0
    %v10496 = vmax.f32 %v10432, 0.0
    %v10497 = vmax.f32 %v10433, 0.0
    %v10498 = vmax.f32 %v10434, 0.0
    %v10499 = vmax.f32 %v10435, 0.0
    %v10500 = vmax.f32 %v10436, 0.0
    %v10501 = vmax.f32 %v10437, 0.0
    %v10502 = vmax.f32 %v10438, 0.0
    %v10503 = vmax.f32 %v10439, 0.0
    %v10504 = vmax.f32 %v10440, 0.0
    %v10505 = vmax.f32 %v10441, 0.0
    %v10506 = vmax.f32 %v10442, 0.0
    %v10507 = vmax.f32 %v10443, 0.0
    %v10508 = vmax.f32 %v10444, 0.0
    %v10509 = vmax.f32 %v10445, 0.0
    %v10510 = vmax.f32 %v10446, 0.0
    %v10511 = vmax.f32 %v10447, 0.0
    %v10512 = vmax.f32 %v10448, 0.0
    %v10513 = vmax.f32 %v10449, 0.0
    %v10514 = vmax.f32 %v10450, 0.0
    %v10515 = vmax.f32 %v10451, 0.0
    %v10516 = vmax.f32 %v10452, 0.0
    %v10517 = vmax.f32 %v10453, 0.0
    %v10518 = vmax.f32 %v10454, 0.0
    %v10519 = vmax.f32 %v10455, 0.0
    %v10520 = vmax.f32 %v10456, 0.0
    %v10521 = vmax.f32 %v10457, 0.0
    %v10522 = vmax.f32 %v10458, 0.0
    %v10523 = vmax.f32 %v10459, 0.0
    %v10524 = vmax.f32 %v10460, 0.0
    %v10525 = vmax.f32 %v10461, 0.0
    %v10526 = vmax.f32 %v10462, 0.0
    %v10527 = vmax.f32 %v10463, 0.0
    %v10528 = vmax.f32 %v10464, 0.0
    %v10529 = vmax.f32 %v10465, 0.0
    %v10530 = vmax.f32 %v10466, 0.0
    %v10531 = vmax.f32 %v10467, 0.0
    %v10532 = vmax.f32 %v10468, 0.0
    %v10533 = vmax.f32 %v10469, 0.0
    %v10534 = vmax.f32 %v10470, 0.0
    %v10535 = vmax.f32 %v10471, 0.0
    %v10536 = vmax.f32 %v10472, 0.0
    %v10537 = vmax.f32 %v10473, 0.0
    %v10538 = vmax.f32 %v10474, 0.0
    %v10539 = vmax.f32 %v10475, 0.0
    %v10540 = vmax.f32 %v10476, 0.0
    %v10541 = vmax.f32 %v10477, 0.0
    %v10542 = vmax.f32 %v10478, 0.0
    %10543 = vst.msk [vmem:[#allocation6] sm:$0xff] %vm1092, %v10479
    %10544 = vst.msk [vmem:[#allocation6 + $0x8] sm:$0xff] %vm1092, %v10480
    %10545 = vst.msk [vmem:[#allocation6 + $0x10] sm:$0xff] %vm1092, %v10481
    %10546 = vst.msk [vmem:[#allocation6 + $0x18] sm:$0xff] %vm1092, %v10482
    %10547 = vst.msk [vmem:[#allocation6 + $0x20] sm:$0xff] %vm1092, %v10483
    %10548 = vst.msk [vmem:[#allocation6 + $0x28] sm:$0xff] %vm1092, %v10484
    %10549 = vst.msk [vmem:[#allocation6 + $0x30] sm:$0xff] %vm1092, %v10485
    %10550 = vst.msk [vmem:[#allocation6 + $0x38] sm:$0xff] %vm1092, %v10486
    %10551 = vst.msk [vmem:[#allocation6 + $0x40] sm:$0xff] %vm1092, %v10487
    %10552 = vst.msk [vmem:[#allocation6 + $0x48] sm:$0xff] %vm1092, %v10488
    %10553 = vst.msk [vmem:[#allocation6 + $0x50] sm:$0xff] %vm1092, %v10489
    %10554 = vst.msk [vmem:[#allocation6 + $0x58] sm:$0xff] %vm1092, %v10490
    %10555 = vst.msk [vmem:[#allocation6 + $0x60] sm:$0xff] %vm1092, %v10491
    %10556 = vst.msk [vmem:[#allocation6 + $0x68] sm:$0xff] %vm1092, %v10492
    %10557 = vst.msk [vmem:[#allocation6 + $0x70] sm:$0xff] %vm1092, %v10493
    %10558 = vst.msk [vmem:[#allocation6 + $0x78] sm:$0xff] %vm1092, %v10494
    %10559 = vst.msk [vmem:[#allocation6 + $0x80] sm:$0xff] %vm1092, %v10495
    %10560 = vst.msk [vmem:[#allocation6 + $0x88] sm:$0xff] %vm1092, %v10496
    %10561 = vst.msk [vmem:[#allocation6 + $0x90] sm:$0xff] %vm1092, %v10497
    %10562 = vst.msk [vmem:[#allocation6 + $0x98] sm:$0xff] %vm1092, %v10498
    %10563 = vst.msk [vmem:[#allocation6 + $0xa0] sm:$0xff] %vm1092, %v10499
    %10564 = vst.msk [vmem:[#allocation6 + $0xa8] sm:$0xff] %vm1092, %v10500
    %10565 = vst.msk [vmem:[#allocation6 + $0xb0] sm:$0xff] %vm1092, %v10501
    %10566 = vst.msk [vmem:[#allocation6 + $0xb8] sm:$0xff] %vm1092, %v10502
    %10567 = vst.msk [vmem:[#allocation6 + $0xc0] sm:$0xff] %vm1092, %v10503
    %10568 = vst.msk [vmem:[#allocation6 + $0xc8] sm:$0xff] %vm1092, %v10504
    %10569 = vst.msk [vmem:[#allocation6 + $0xd0] sm:$0xff] %vm1092, %v10505
    %10570 = vst.msk [vmem:[#allocation6 + $0xd8] sm:$0xff] %vm1092, %v10506
    %10571 = vst.msk [vmem:[#allocation6 + $0xe0] sm:$0xff] %vm1092, %v10507
    %10572 = vst.msk [vmem:[#allocation6 + $0xe8] sm:$0xff] %vm1092, %v10508
    %10573 = vst.msk [vmem:[#allocation6 + $0xf0] sm:$0xff] %vm1092, %v10509
    %10574 = vst.msk [vmem:[#allocation6 + $0xf8] sm:$0xff] %vm1092, %v10510
    %10575 = vst.msk [vmem:[#allocation6 + $0x100] sm:$0xff] %vm1092, %v10511
    %10576 = vst.msk [vmem:[#allocation6 + $0x108] sm:$0xff] %vm1092, %v10512
    %10577 = vst.msk [vmem:[#allocation6 + $0x110] sm:$0xff] %vm1092, %v10513
    %10578 = vst.msk [vmem:[#allocation6 + $0x118] sm:$0xff] %vm1092, %v10514
    %10579 = vst.msk [vmem:[#allocation6 + $0x120] sm:$0xff] %vm1092, %v10515
    %10580 = vst.msk [vmem:[#allocation6 + $0x128] sm:$0xff] %vm1092, %v10516
    %10581 = vst.msk [vmem:[#allocation6 + $0x130] sm:$0xff] %vm1092, %v10517
    %10582 = vst.msk [vmem:[#allocation6 + $0x138] sm:$0xff] %vm1092, %v10518
    %10583 = vst.msk [vmem:[#allocation6 + $0x140] sm:$0xff] %vm1092, %v10519
    %10584 = vst.msk [vmem:[#allocation6 + $0x148] sm:$0xff] %vm1092, %v10520
    %10585 = vst.msk [vmem:[#allocation6 + $0x150] sm:$0xff] %vm1092, %v10521
    %10586 = vst.msk [vmem:[#allocation6 + $0x158] sm:$0xff] %vm1092, %v10522
    %10587 = vst.msk [vmem:[#allocation6 + $0x160] sm:$0xff] %vm1092, %v10523
    %10588 = vst.msk [vmem:[#allocation6 + $0x168] sm:$0xff] %vm1092, %v10524
    %10589 = vst.msk [vmem:[#allocation6 + $0x170] sm:$0xff] %vm1092, %v10525
    %10590 = vst.msk [vmem:[#allocation6 + $0x178] sm:$0xff] %vm1092, %v10526
    %10591 = vst.msk [vmem:[#allocation6 + $0x180] sm:$0xff] %vm1092, %v10527
    %10592 = vst.msk [vmem:[#allocation6 + $0x188] sm:$0xff] %vm1092, %v10528
    %10593 = vst.msk [vmem:[#allocation6 + $0x190] sm:$0xff] %vm1092, %v10529
    %10594 = vst.msk [vmem:[#allocation6 + $0x198] sm:$0xff] %vm1092, %v10530
    %10595 = vst.msk [vmem:[#allocation6 + $0x1a0] sm:$0xff] %vm1092, %v10531
    %10596 = vst.msk [vmem:[#allocation6 + $0x1a8] sm:$0xff] %vm1092, %v10532
    %10597 = vst.msk [vmem:[#allocation6 + $0x1b0] sm:$0xff] %vm1092, %v10533
    %10598 = vst.msk [vmem:[#allocation6 + $0x1b8] sm:$0xff] %vm1092, %v10534
    %10599 = vst.msk [vmem:[#allocation6 + $0x1c0] sm:$0xff] %vm1092, %v10535
    %10600 = vst.msk [vmem:[#allocation6 + $0x1c8] sm:$0xff] %vm1092, %v10536
    %10601 = vst.msk [vmem:[#allocation6 + $0x1d0] sm:$0xff] %vm1092, %v10537
    %10602 = vst.msk [vmem:[#allocation6 + $0x1d8] sm:$0xff] %vm1092, %v10538
    %10603 = vst.msk [vmem:[#allocation6 + $0x1e0] sm:$0xff] %vm1092, %v10539
    %10604 = vst.msk [vmem:[#allocation6 + $0x1e8] sm:$0xff] %vm1092, %v10540
    %10605 = vst.msk [vmem:[#allocation6 + $0x1f0] sm:$0xff] %vm1092, %v10541
    %10606 = vst.msk [vmem:[#allocation6 + $0x1f8] sm:$0xff] %vm1092, %v10542
    // Predicated region
    $region58: #{tpu_custom_call.1} parent=1 // pred_check
      _
    $region59: #{tpu_custom_call.1} parent=1 // pred_check_branch
      %10608 = sbr.rel (0) target = $region61
    $region60: #{tpu_custom_call.1} parent=1 // pred_region
      %s10610 = ssub.s32 8192, 8192
      %10611 = vsyncadd [#allocation5], %s10610
      %s10612 = sshll.u32 [#allocation6], 4
      %s10613 = int_to_ptr.vmem [resolvable:$true] %s10612
      %10618 = dma.vmem_to_hbm [thread:$0]  %s10613, 8192, %s13, [#allocation5], 128, 128, 8
    $region61: #{tpu_custom_call.1} parent=1 // pred_fallthru
      _
    // Predicated region
    $region62: #{tpu_custom_call.1} parent=1 // pred_check
      _
    $region63: #{tpu_custom_call.1} parent=1 // pred_check_branch
      %10620 = sbr.rel (0) target = $region65
    $region64: #{tpu_custom_call.1} parent=1 // pred_region
      %10621 = dma.done [#allocation5], 8192
    $region65: #{tpu_custom_call.1} parent=1 // pred_fallthru
      _
    %10622 = vsyncpa [#allocation4], 1
    %10623 = vsyncpa [#allocation5], 1

</llo_original>
